<compile_context>
chip_gen: v6e
topology: v6e:2x2x1
jax: 0.10.0
libtpu: 0.0.40
codegen_flags: <defaults>
</compile_context>

<pallas_src>
import math

import jax
import jax.numpy as jnp
from jax.experimental import pallas as pl
from jax.experimental.pallas import tpu as pltpu

# ----------------------------- configuration --------------------------------
IMAGE_SIZE  = 20
PATCH_SIZE  = 4
CHANNELS    = 3
NUM_CLASSES = 10
DIM         = 64
DEPTH       = 2
HEADS       = 4
DIM_HEAD    = 16
MLP_DIM     = 128

INNER       = HEADS * DIM_HEAD                      # 64
NUM_PATCHES = (IMAGE_SIZE // PATCH_SIZE) ** 2       # 25 (> MIN_NUM_PATCHES=16)
PATCH_DIM   = CHANNELS * PATCH_SIZE ** 2            # 48
SEQ         = NUM_PATCHES + 1                       # 26 (cls token + patches)
SEQ_PAD     = 32                                    # pad to sublane multiple
SCALE       = DIM ** (-0.5)                         # ViT scales by dim (not dim_head)
LN_EPS      = 1e-5
NEG_INF     = -1e30

_N_LAYER_REFS = 13
_LAYER_KEYS = ("ln1_g", "ln1_b", "w_q", "w_k", "w_v", "w_out", "b_out",
               "ln2_g", "ln2_b", "w_ff1", "b_ff1", "w_ff2", "b_ff2")


# ----------------------------- in-kernel helpers ----------------------------
def _erf(x):
    # Abramowitz & Stegun 7.1.26 rational approximation, |err| < 1.5e-7
    p  = 0.3275911
    a1, a2, a3, a4, a5 = 0.254829592, -0.284496736, 1.421413741, -1.453152027, 1.061405429
    ax = jnp.abs(x)
    t  = 1.0 / (1.0 + p * ax)
    poly = ((((a5 * t + a4) * t + a3) * t + a2) * t + a1) * t
    y  = 1.0 - poly * jnp.exp(-ax * ax)
    return jnp.where(x >= 0.0, y, -y)


def _gelu(x):
    # exact (erf-based) GELU, like torch.nn.GELU() default
    return 0.5 * x * (1.0 + _erf(x * (1.0 / math.sqrt(2.0))))


def _layernorm(x, g, b):
    mu  = jnp.mean(x, axis=-1, keepdims=True)
    var = jnp.mean((x - mu) ** 2, axis=-1, keepdims=True)
    return (x - mu) * jax.lax.rsqrt(var + LN_EPS) * g + b


# ----------------------------- fused Pallas kernel --------------------------
def _vit_kernel(aug_ref, w_aug_ref, pos_bias_ref, *rest):
    # rest = [13 refs per layer] * DEPTH
    #        + [head_ln_g, head_ln_b, head_w, head_b] + [o_ref] + [x_scratch]
    x_ref = rest[-1]                                 # VMEM scratch (B*SEQ_PAD, DIM) f32
    o_ref = rest[-2]                                 # (B, NUM_CLASSES) f32
    hg_ref, hb_ref, hw_ref, hbias_ref = rest[-6:-2]
    lrefs = rest[:-6]
    assert len(lrefs) == DEPTH * _N_LAYER_REFS

    n_rows  = x_ref.shape[0]
    n_batch = n_rows // SEQ_PAD

    # ---- fused patch embedding + cls token + positional embedding ----------
    # aug row 0 of each batch is an indicator selecting the cls row of w_aug;
    # pos_bias carries pos-embedding (+ patch-embed bias on patch rows).
    x_ref[...] = jnp.dot(aug_ref[...].astype(jnp.bfloat16), w_aug_ref[...],
                         preferred_element_type=jnp.float32) + pos_bias_ref[...]

    # key-padding mask: columns >= SEQ are pad rows -> excluded from softmax
    col = jax.lax.broadcasted_iota(jnp.int32, (SEQ_PAD, SEQ_PAD), 1)
    key_mask = col < SEQ

    for layer in range(DEPTH):
        (ln1g, ln1b, wq, wk, wv, wo, bo,
         ln2g, ln2b, w1, b1, w2, b2) = lrefs[layer * _N_LAYER_REFS:
                                             (layer + 1) * _N_LAYER_REFS]

        # -------- Residual(PreNorm(Attention)); QKV batched over all rows ----
        x = x_ref[...]                                             # (B*32, DIM) f32
        h = _layernorm(x, ln1g[...], ln1b[...]).astype(jnp.bfloat16)
        q = jnp.dot(h, wq[...], preferred_element_type=jnp.float32)
        k = jnp.dot(h, wk[...], preferred_element_type=jnp.float32)
        v = jnp.dot(h, wv[...], preferred_element_type=jnp.float32)
        wo_all = wo[...]                                           # (INNER, DIM) bf16
        bo_row = bo[...]                                           # (1, DIM) f32

        for b in range(n_batch):                                   # static unroll
            r0 = b * SEQ_PAD
            acc = jnp.zeros((SEQ_PAD, DIM), jnp.float32)
            for hd in range(HEADS):                                # static unroll
                c0 = hd * DIM_HEAD
                qh = q[r0:r0 + SEQ_PAD, c0:c0 + DIM_HEAD].astype(jnp.bfloat16)
                kh = k[r0:r0 + SEQ_PAD, c0:c0 + DIM_HEAD].astype(jnp.bfloat16)
                vh = v[r0:r0 + SEQ_PAD, c0:c0 + DIM_HEAD].astype(jnp.bfloat16)
                # q @ k^T without explicit transpose
                dots = jax.lax.dot_general(
                    qh, kh, (((1,), (1,)), ((), ())),
                    preferred_element_type=jnp.float32) * SCALE
                dots = jnp.where(key_mask, dots, NEG_INF)
                dots = dots - jnp.max(dots, axis=-1, keepdims=True)
                e = jnp.exp(dots)
                attn = e * pl.reciprocal(jnp.sum(e, axis=-1, keepdims=True),
                                         approx=True)
                head = jnp.dot(attn.astype(jnp.bfloat16), vh,
                               preferred_element_type=jnp.float32)
                # per-head accumulation against w_out slice (no concat)
                acc = acc + jnp.dot(head.astype(jnp.bfloat16),
                                    wo_all[c0:c0 + DIM_HEAD, :],
                                    preferred_element_type=jnp.float32)
            x_ref[pl.ds(r0, SEQ_PAD), :] = x[r0:r0 + SEQ_PAD, :] + acc + bo_row

        # -------- Residual(PreNorm(FeedForward)); batched over all rows ------
        x = x_ref[...]
        h2 = _layernorm(x, ln2g[...], ln2b[...]).astype(jnp.bfloat16)
        f = jnp.dot(h2, w1[...], preferred_element_type=jnp.float32) + b1[...]
        f = _gelu(f)
        f = jnp.dot(f.astype(jnp.bfloat16), w2[...],
                    preferred_element_type=jnp.float32) + b2[...]
        x_ref[...] = x + f

    # ---- mlp_head on the cls rows (row b*SEQ_PAD of each batch element) -----
    for b in range(n_batch):
        cls_b = x_ref[pl.ds(b * SEQ_PAD, 1), :]                    # (1, DIM)
        hcls = _layernorm(cls_b, hg_ref[...], hb_ref[...])
        logit = jnp.dot(hcls.astype(jnp.bfloat16), hw_ref[...],
                        preferred_element_type=jnp.float32) + hbias_ref[...]
        o_ref[pl.ds(b, 1), :] = logit


# ----------------------------- wrapper ---------------------------------------
def _prep_inputs(img, params):
    B = img.shape[0]
    p = PATCH_SIZE
    hn = IMAGE_SIZE // p

    # rearrange 'b c (h p1) (w p2) -> b (h w) (p1 p2 c)'
    x = img.reshape(B, CHANNELS, hn, p, hn, p)
    x = jnp.transpose(x, (0, 2, 4, 3, 5, 1))
    x = x.reshape(B, NUM_PATCHES, PATCH_DIM)

    # augmented patch matrix: row 0 per batch is an indicator column that
    # selects the cls token; rows SEQ..SEQ_PAD-1 are zero padding.
    aug = jnp.zeros((B, SEQ_PAD, PATCH_DIM + 1), jnp.float32)
    aug = aug.at[:, 1:SEQ, :PATCH_DIM].set(x)
    aug = aug.at[:, 0, PATCH_DIM].set(1.0)
    aug_flat = aug.reshape(B * SEQ_PAD, PATCH_DIM + 1)

    # augmented embedding weight: extra last row produces the cls token
    w_aug = jnp.concatenate(
        [params["patch_w"],
         params["cls_token"].reshape(1, DIM).astype(params["patch_w"].dtype)],
        axis=0)

    # per-row additive term: pos embedding (+ patch-embed bias on patch rows)
    pos = params["pos_embedding"][0, :SEQ]                 # (SEQ, DIM) f32
    row_bias = pos.at[1:].add(params["patch_b"][0])        # bias only on patch rows
    pos_bias = jnp.zeros((B, SEQ_PAD, DIM), jnp.float32)
    pos_bias = pos_bias.at[:, :SEQ].set(row_bias)
    pos_bias = pos_bias.reshape(B * SEQ_PAD, DIM)

    return aug_flat, w_aug, pos_bias


@jax.jit
def vit_forward(img, params):
    B = img.shape[0]
    aug_flat, w_aug, pos_bias = _prep_inputs(img, params)

    layer_args = []
    for lp in params["layers"]:
        layer_args += [lp[k] for k in _LAYER_KEYS]

    logits = pl.pallas_call(
        _vit_kernel,
        out_shape=jax.ShapeDtypeStruct((B, NUM_CLASSES), jnp.float32),
        scratch_shapes=[pltpu.VMEM((B * SEQ_PAD, DIM), jnp.float32)],
    )(aug_flat, w_aug, pos_bias, *layer_args,
      params["head_ln_g"], params["head_ln_b"],
      params["head_w"], params["head_b"])
    return logits


# ----------------------------- param init ------------------------------------
def init_params(key):
    keys = iter(jax.random.split(key, 64))

    def nrm(shape, s=0.02):
        # matmul weights stored in bf16 (MXU-native on v5e/v6e/v7x)
        return (s * jax.random.normal(next(keys), shape, jnp.float32)).astype(jnp.bfloat16)

    params = {
        "patch_w":       nrm((PATCH_DIM, DIM)),
        "patch_b":       jnp.zeros((1, DIM), jnp.float32),
        "cls_token":     jax.random.normal(next(keys), (1, 1, DIM), jnp.float32),
        "pos_embedding": jax.random.normal(next(keys), (1, SEQ, DIM), jnp.float32),
        "head_ln_g":     jnp.ones((1, DIM), jnp.float32),
        "head_ln_b":     jnp.zeros((1, DIM), jnp.float32),
        "head_w":        nrm((DIM, NUM_CLASSES)),
        "head_b":        jnp.zeros((1, NUM_CLASSES), jnp.float32),
        "layers": [],
    }
    for _ in range(DEPTH):
        params["layers"].append({
            "ln1_g": jnp.ones((1, DIM), jnp.float32),
            "ln1_b": jnp.zeros((1, DIM), jnp.float32),
            "w_q":   nrm((DIM, INNER)),            # to_qkv has bias=False
            "w_k":   nrm((DIM, INNER)),
            "w_v":   nrm((DIM, INNER)),
            "w_out": nrm((INNER, DIM)),
            "b_out": jnp.zeros((1, DIM), jnp.float32),
            "ln2_g": jnp.ones((1, DIM), jnp.float32),
            "ln2_b": jnp.zeros((1, DIM), jnp.float32),
            "w_ff1": nrm((DIM, MLP_DIM)),
            "b_ff1": jnp.zeros((1, MLP_DIM), jnp.float32),
            "w_ff2": nrm((MLP_DIM, DIM)),
            "b_ff2": jnp.zeros((1, DIM), jnp.float32),
        })
    return params


# ----------------------------- main -------------------------------------------
if __name__ == "__main__":
    key = jax.random.PRNGKey(0)
    k_img, k_par = jax.random.split(key)

    img = jax.random.normal(k_img, (2, CHANNELS, IMAGE_SIZE, IMAGE_SIZE), jnp.float32)
    params = init_params(k_par)

    logits = vit_forward(img, params)
    logits = jax.block_until_ready(logits)

    assert logits.shape == (2, NUM_CLASSES), logits.shape
    assert bool(jnp.all(jnp.isfinite(logits)))
    print("KERNEL_OK")
</pallas_src>

<mosaic_0001>
module attributes {stable_mosaic.version = 11 : i64} {
  func.func @_vit_kernel(%arg0: memref<64x49xf32, #tpu.memory_space<vmem>>, %arg1: memref<49x64xbf16, #tpu.memory_space<vmem>>, %arg2: memref<64x64xf32, #tpu.memory_space<vmem>>, %arg3: memref<1x64xf32, #tpu.memory_space<vmem>>, %arg4: memref<1x64xf32, #tpu.memory_space<vmem>>, %arg5: memref<64x64xbf16, #tpu.memory_space<vmem>>, %arg6: memref<64x64xbf16, #tpu.memory_space<vmem>>, %arg7: memref<64x64xbf16, #tpu.memory_space<vmem>>, %arg8: memref<64x64xbf16, #tpu.memory_space<vmem>>, %arg9: memref<1x64xf32, #tpu.memory_space<vmem>>, %arg10: memref<1x64xf32, #tpu.memory_space<vmem>>, %arg11: memref<1x64xf32, #tpu.memory_space<vmem>>, %arg12: memref<64x128xbf16, #tpu.memory_space<vmem>>, %arg13: memref<1x128xf32, #tpu.memory_space<vmem>>, %arg14: memref<128x64xbf16, #tpu.memory_space<vmem>>, %arg15: memref<1x64xf32, #tpu.memory_space<vmem>>, %arg16: memref<1x64xf32, #tpu.memory_space<vmem>>, %arg17: memref<1x64xf32, #tpu.memory_space<vmem>>, %arg18: memref<64x64xbf16, #tpu.memory_space<vmem>>, %arg19: memref<64x64xbf16, #tpu.memory_space<vmem>>, %arg20: memref<64x64xbf16, #tpu.memory_space<vmem>>, %arg21: memref<64x64xbf16, #tpu.memory_space<vmem>>, %arg22: memref<1x64xf32, #tpu.memory_space<vmem>>, %arg23: memref<1x64xf32, #tpu.memory_space<vmem>>, %arg24: memref<1x64xf32, #tpu.memory_space<vmem>>, %arg25: memref<64x128xbf16, #tpu.memory_space<vmem>>, %arg26: memref<1x128xf32, #tpu.memory_space<vmem>>, %arg27: memref<128x64xbf16, #tpu.memory_space<vmem>>, %arg28: memref<1x64xf32, #tpu.memory_space<vmem>>, %arg29: memref<1x64xf32, #tpu.memory_space<vmem>>, %arg30: memref<1x64xf32, #tpu.memory_space<vmem>>, %arg31: memref<64x10xbf16, #tpu.memory_space<vmem>>, %arg32: memref<1x10xf32, #tpu.memory_space<vmem>>, %arg33: memref<2x10xf32, #tpu.memory_space<vmem>>, %arg34: memref<64x64xf32, #tpu.memory_space<vmem>>) attributes {dimension_semantics = [], scalar_prefetch = 0 : i64, scratch_operands = 1 : i64, tpu.core_type = #tpu.core_type<tc>} {
    %c0 = arith.constant 0 : index
    %c0_0 = arith.constant 0 : index
    %0 = vector.load %arg0[%c0, %c0_0] : memref<64x49xf32, #tpu.memory_space<vmem>>, vector<64x49xf32>
    %1 = arith.truncf %0 : vector<64x49xf32> to vector<64x49xbf16>
    %c0_1 = arith.constant 0 : index
    %c0_2 = arith.constant 0 : index
    %2 = vector.load %arg1[%c0_1, %c0_2] : memref<49x64xbf16, #tpu.memory_space<vmem>>, vector<49x64xbf16>
    %cst = arith.constant dense<0.000000e+00> : vector<64x64xf32>
    %3 = tpu.matmul %1, %2, %cst {dimension_numbers = #tpu.dot_dimension_numbers<[1], [0], [0], [1], [0, 0, 1, 1], [], []>} : vector<64x49xbf16>, vector<49x64xbf16>, vector<64x64xf32> -> vector<64x64xf32>
    %c0_3 = arith.constant 0 : index
    %c0_4 = arith.constant 0 : index
    %4 = vector.load %arg2[%c0_3, %c0_4] : memref<64x64xf32, #tpu.memory_space<vmem>>, vector<64x64xf32>
    %5 = arith.addf %3, %4 : vector<64x64xf32>
    %c0_5 = arith.constant 0 : index
    %c0_6 = arith.constant 0 : index
    %6 = vector.load %arg34[%c0_5, %c0_6] : memref<64x64xf32, #tpu.memory_space<vmem>>, vector<64x64xf32>
    tpu.vector_store %arg34[%c0_5, %c0_6], %5 {strides = array<i32>} : memref<64x64xf32, #tpu.memory_space<vmem>>, vector<64x64xf32>,
    %7 = tpu.iota {dimensions = array<i32: 1>} : vector<32x32xi32>
    %c26_i32 = arith.constant 26 : i32
    %8 = vector.broadcast %c26_i32 : i32 to vector<32x32xi32>
    %9 = arith.cmpi slt, %7, %8 : vector<32x32xi32>
    %c0_7 = arith.constant 0 : index
    %c0_8 = arith.constant 0 : index
    %10 = vector.load %arg34[%c0_7, %c0_8] : memref<64x64xf32, #tpu.memory_space<vmem>>, vector<64x64xf32>
    %c0_9 = arith.constant 0 : index
    %c0_10 = arith.constant 0 : index
    %11 = vector.load %arg3[%c0_9, %c0_10] : memref<1x64xf32, #tpu.memory_space<vmem>>, vector<1x64xf32>
    %c0_11 = arith.constant 0 : index
    %c0_12 = arith.constant 0 : index
    %12 = vector.load %arg4[%c0_11, %c0_12] : memref<1x64xf32, #tpu.memory_space<vmem>>, vector<1x64xf32>
    %cst_13 = arith.constant dense<0.000000e+00> : vector<64xf32>
    %13 = vector.multi_reduction <add>, %10, %cst_13 [1] : vector<64x64xf32> to vector<64xf32>
    %14 = vector.shape_cast %13 : vector<64xf32> to vector<64x1xf32>
    %cst_14 = arith.constant 6.400000e+01 : f32
    %15 = vector.broadcast %cst_14 : f32 to vector<64x1xf32>
    %16 = arith.divf %14, %15 : vector<64x1xf32>
    %17 = vector.broadcast %16 : vector<64x1xf32> to vector<64x64xf32>
    %18 = arith.subf %10, %17 : vector<64x64xf32>
    %19 = arith.mulf %18, %18 : vector<64x64xf32>
    %cst_15 = arith.constant dense<0.000000e+00> : vector<64xf32>
    %20 = vector.multi_reduction <add>, %19, %cst_15 [1] : vector<64x64xf32> to vector<64xf32>
    %21 = vector.shape_cast %20 : vector<64xf32> to vector<64x1xf32>
    %cst_16 = arith.constant 6.400000e+01 : f32
    %22 = vector.broadcast %cst_16 : f32 to vector<64x1xf32>
    %23 = arith.divf %21, %22 : vector<64x1xf32>
    %24 = vector.broadcast %16 : vector<64x1xf32> to vector<64x64xf32>
    %25 = arith.subf %10, %24 : vector<64x64xf32>
    %cst_17 = arith.constant 9.99999974E-6 : f32
    %26 = vector.broadcast %cst_17 : f32 to vector<64x1xf32>
    %27 = arith.addf %23, %26 : vector<64x1xf32>
    %28 = math.rsqrt %27 : vector<64x1xf32>
    %29 = vector.broadcast %28 : vector<64x1xf32> to vector<64x64xf32>
    %30 = arith.mulf %25, %29 : vector<64x64xf32>
    %31 = vector.broadcast %11 : vector<1x64xf32> to vector<64x64xf32>
    %32 = arith.mulf %30, %31 : vector<64x64xf32>
    %33 = vector.broadcast %12 : vector<1x64xf32> to vector<64x64xf32>
    %34 = arith.addf %32, %33 : vector<64x64xf32>
    %35 = arith.truncf %34 : vector<64x64xf32> to vector<64x64xbf16>
    %c0_18 = arith.constant 0 : index
    %c0_19 = arith.constant 0 : index
    %36 = vector.load %arg5[%c0_18, %c0_19] : memref<64x64xbf16, #tpu.memory_space<vmem>>, vector<64x64xbf16>
    %cst_20 = arith.constant dense<0.000000e+00> : vector<64x64xf32>
    %37 = tpu.matmul %35, %36, %cst_20 {dimension_numbers = #tpu.dot_dimension_numbers<[1], [0], [0], [1], [0, 0, 1, 1], [], []>} : vector<64x64xbf16>, vector<64x64xbf16>, vector<64x64xf32> -> vector<64x64xf32>
    %c0_21 = arith.constant 0 : index
    %c0_22 = arith.constant 0 : index
    %38 = vector.load %arg6[%c0_21, %c0_22] : memref<64x64xbf16, #tpu.memory_space<vmem>>, vector<64x64xbf16>
    %cst_23 = arith.constant dense<0.000000e+00> : vector<64x64xf32>
    %39 = tpu.matmul %35, %38, %cst_23 {dimension_numbers = #tpu.dot_dimension_numbers<[1], [0], [0], [1], [0, 0, 1, 1], [], []>} : vector<64x64xbf16>, vector<64x64xbf16>, vector<64x64xf32> -> vector<64x64xf32>
    %c0_24 = arith.constant 0 : index
    %c0_25 = arith.constant 0 : index
    %40 = vector.load %arg7[%c0_24, %c0_25] : memref<64x64xbf16, #tpu.memory_space<vmem>>, vector<64x64xbf16>
    %cst_26 = arith.constant dense<0.000000e+00> : vector<64x64xf32>
    %41 = tpu.matmul %35, %40, %cst_26 {dimension_numbers = #tpu.dot_dimension_numbers<[1], [0], [0], [1], [0, 0, 1, 1], [], []>} : vector<64x64xbf16>, vector<64x64xbf16>, vector<64x64xf32> -> vector<64x64xf32>
    %c0_27 = arith.constant 0 : index
    %c0_28 = arith.constant 0 : index
    %42 = vector.load %arg8[%c0_27, %c0_28] : memref<64x64xbf16, #tpu.memory_space<vmem>>, vector<64x64xbf16>
    %c0_29 = arith.constant 0 : index
    %c0_30 = arith.constant 0 : index
    %43 = vector.load %arg9[%c0_29, %c0_30] : memref<1x64xf32, #tpu.memory_space<vmem>>, vector<1x64xf32>
    %cst_31 = arith.constant 0.000000e+00 : f32
    %44 = vector.broadcast %cst_31 : f32 to vector<32x64xf32>
    %45 = vector.extract_strided_slice %37 {offsets = [0, 0], sizes = [32, 16], strides = [1, 1]} : vector<64x64xf32> to vector<32x16xf32>
    %46 = arith.truncf %45 : vector<32x16xf32> to vector<32x16xbf16>
    %47 = vector.extract_strided_slice %39 {offsets = [0, 0], sizes = [32, 16], strides = [1, 1]} : vector<64x64xf32> to vector<32x16xf32>
    %48 = arith.truncf %47 : vector<32x16xf32> to vector<32x16xbf16>
    %49 = vector.extract_strided_slice %41 {offsets = [0, 0], sizes = [32, 16], strides = [1, 1]} : vector<64x64xf32> to vector<32x16xf32>
    %50 = arith.truncf %49 : vector<32x16xf32> to vector<32x16xbf16>
    %cst_32 = arith.constant dense<0.000000e+00> : vector<32x32xf32>
    %51 = tpu.matmul %46, %48, %cst_32 {dimension_numbers = #tpu.dot_dimension_numbers<[1], [1], [0], [0], [0, 0, 1, 0], [], []>} : vector<32x16xbf16>, vector<32x16xbf16>, vector<32x32xf32> -> vector<32x32xf32>
    %cst_33 = arith.constant 1.250000e-01 : f32
    %52 = vector.broadcast %cst_33 : f32 to vector<32x32xf32>
    %53 = arith.mulf %51, %52 : vector<32x32xf32>
    %cst_34 = arith.constant -1.000000e+30 : f32
    %54 = vector.broadcast %cst_34 : f32 to vector<32x32xf32>
    %55 = arith.select %9, %53, %54 : vector<32x32xi1>, vector<32x32xf32>
    %cst_35 = arith.constant dense<0xFF800000> : vector<32xf32>
    %56 = vector.multi_reduction <maximumf>, %55, %cst_35 [1] : vector<32x32xf32> to vector<32xf32>
    %57 = vector.shape_cast %56 : vector<32xf32> to vector<32x1xf32>
    %58 = vector.broadcast %57 : vector<32x1xf32> to vector<32x32xf32>
    %59 = arith.subf %55, %58 : vector<32x32xf32>
    %60 = math.exp %59 : vector<32x32xf32>
    %cst_36 = arith.constant dense<0.000000e+00> : vector<32xf32>
    %61 = vector.multi_reduction <add>, %60, %cst_36 [1] : vector<32x32xf32> to vector<32xf32>
    %62 = vector.shape_cast %61 : vector<32xf32> to vector<32x1xf32>
    %63 = tpu.reciprocal %62 {approx = true} : vector<32x1xf32> -> vector<32x1xf32>
    %64 = vector.broadcast %63 : vector<32x1xf32> to vector<32x32xf32>
    %65 = arith.mulf %60, %64 : vector<32x32xf32>
    %66 = arith.truncf %65 : vector<32x32xf32> to vector<32x32xbf16>
    %cst_37 = arith.constant dense<0.000000e+00> : vector<32x16xf32>
    %67 = tpu.matmul %66, %50, %cst_37 {dimension_numbers = #tpu.dot_dimension_numbers<[1], [0], [0], [1], [0, 0, 1, 1], [], []>} : vector<32x32xbf16>, vector<32x16xbf16>, vector<32x16xf32> -> vector<32x16xf32>
    %68 = arith.truncf %67 : vector<32x16xf32> to vector<32x16xbf16>
    %69 = vector.extract_strided_slice %42 {offsets = [0, 0], sizes = [16, 64], strides = [1, 1]} : vector<64x64xbf16> to vector<16x64xbf16>
    %cst_38 = arith.constant dense<0.000000e+00> : vector<32x64xf32>
    %70 = tpu.matmul %68, %69, %cst_38 {dimension_numbers = #tpu.dot_dimension_numbers<[1], [0], [0], [1], [0, 0, 1, 1], [], []>} : vector<32x16xbf16>, vector<16x64xbf16>, vector<32x64xf32> -> vector<32x64xf32>
    %71 = arith.addf %44, %70 : vector<32x64xf32>
    %72 = vector.extract_strided_slice %37 {offsets = [0, 16], sizes = [32, 16], strides = [1, 1]} : vector<64x64xf32> to vector<32x16xf32>
    %73 = arith.truncf %72 : vector<32x16xf32> to vector<32x16xbf16>
    %74 = vector.extract_strided_slice %39 {offsets = [0, 16], sizes = [32, 16], strides = [1, 1]} : vector<64x64xf32> to vector<32x16xf32>
    %75 = arith.truncf %74 : vector<32x16xf32> to vector<32x16xbf16>
    %76 = vector.extract_strided_slice %41 {offsets = [0, 16], sizes = [32, 16], strides = [1, 1]} : vector<64x64xf32> to vector<32x16xf32>
    %77 = arith.truncf %76 : vector<32x16xf32> to vector<32x16xbf16>
    %cst_39 = arith.constant dense<0.000000e+00> : vector<32x32xf32>
    %78 = tpu.matmul %73, %75, %cst_39 {dimension_numbers = #tpu.dot_dimension_numbers<[1], [1], [0], [0], [0, 0, 1, 0], [], []>} : vector<32x16xbf16>, vector<32x16xbf16>, vector<32x32xf32> -> vector<32x32xf32>
    %cst_40 = arith.constant 1.250000e-01 : f32
    %79 = vector.broadcast %cst_40 : f32 to vector<32x32xf32>
    %80 = arith.mulf %78, %79 : vector<32x32xf32>
    %cst_41 = arith.constant -1.000000e+30 : f32
    %81 = vector.broadcast %cst_41 : f32 to vector<32x32xf32>
    %82 = arith.select %9, %80, %81 : vector<32x32xi1>, vector<32x32xf32>
    %cst_42 = arith.constant dense<0xFF800000> : vector<32xf32>
    %83 = vector.multi_reduction <maximumf>, %82, %cst_42 [1] : vector<32x32xf32> to vector<32xf32>
    %84 = vector.shape_cast %83 : vector<32xf32> to vector<32x1xf32>
    %85 = vector.broadcast %84 : vector<32x1xf32> to vector<32x32xf32>
    %86 = arith.subf %82, %85 : vector<32x32xf32>
    %87 = math.exp %86 : vector<32x32xf32>
    %cst_43 = arith.constant dense<0.000000e+00> : vector<32xf32>
    %88 = vector.multi_reduction <add>, %87, %cst_43 [1] : vector<32x32xf32> to vector<32xf32>
    %89 = vector.shape_cast %88 : vector<32xf32> to vector<32x1xf32>
    %90 = tpu.reciprocal %89 {approx = true} : vector<32x1xf32> -> vector<32x1xf32>
    %91 = vector.broadcast %90 : vector<32x1xf32> to vector<32x32xf32>
    %92 = arith.mulf %87, %91 : vector<32x32xf32>
    %93 = arith.truncf %92 : vector<32x32xf32> to vector<32x32xbf16>
    %cst_44 = arith.constant dense<0.000000e+00> : vector<32x16xf32>
    %94 = tpu.matmul %93, %77, %cst_44 {dimension_numbers = #tpu.dot_dimension_numbers<[1], [0], [0], [1], [0, 0, 1, 1], [], []>} : vector<32x32xbf16>, vector<32x16xbf16>, vector<32x16xf32> -> vector<32x16xf32>
    %95 = arith.truncf %94 : vector<32x16xf32> to vector<32x16xbf16>
    %96 = vector.extract_strided_slice %42 {offsets = [16, 0], sizes = [16, 64], strides = [1, 1]} : vector<64x64xbf16> to vector<16x64xbf16>
    %cst_45 = arith.constant dense<0.000000e+00> : vector<32x64xf32>
    %97 = tpu.matmul %95, %96, %cst_45 {dimension_numbers = #tpu.dot_dimension_numbers<[1], [0], [0], [1], [0, 0, 1, 1], [], []>} : vector<32x16xbf16>, vector<16x64xbf16>, vector<32x64xf32> -> vector<32x64xf32>
    %98 = arith.addf %71, %97 : vector<32x64xf32>
    %99 = vector.extract_strided_slice %37 {offsets = [0, 32], sizes = [32, 16], strides = [1, 1]} : vector<64x64xf32> to vector<32x16xf32>
    %100 = arith.truncf %99 : vector<32x16xf32> to vector<32x16xbf16>
    %101 = vector.extract_strided_slice %39 {offsets = [0, 32], sizes = [32, 16], strides = [1, 1]} : vector<64x64xf32> to vector<32x16xf32>
    %102 = arith.truncf %101 : vector<32x16xf32> to vector<32x16xbf16>
    %103 = vector.extract_strided_slice %41 {offsets = [0, 32], sizes = [32, 16], strides = [1, 1]} : vector<64x64xf32> to vector<32x16xf32>
    %104 = arith.truncf %103 : vector<32x16xf32> to vector<32x16xbf16>
    %cst_46 = arith.constant dense<0.000000e+00> : vector<32x32xf32>
    %105 = tpu.matmul %100, %102, %cst_46 {dimension_numbers = #tpu.dot_dimension_numbers<[1], [1], [0], [0], [0, 0, 1, 0], [], []>} : vector<32x16xbf16>, vector<32x16xbf16>, vector<32x32xf32> -> vector<32x32xf32>
    %cst_47 = arith.constant 1.250000e-01 : f32
    %106 = vector.broadcast %cst_47 : f32 to vector<32x32xf32>
    %107 = arith.mulf %105, %106 : vector<32x32xf32>
    %cst_48 = arith.constant -1.000000e+30 : f32
    %108 = vector.broadcast %cst_48 : f32 to vector<32x32xf32>
    %109 = arith.select %9, %107, %108 : vector<32x32xi1>, vector<32x32xf32>
    %cst_49 = arith.constant dense<0xFF800000> : vector<32xf32>
    %110 = vector.multi_reduction <maximumf>, %109, %cst_49 [1] : vector<32x32xf32> to vector<32xf32>
    %111 = vector.shape_cast %110 : vector<32xf32> to vector<32x1xf32>
    %112 = vector.broadcast %111 : vector<32x1xf32> to vector<32x32xf32>
    %113 = arith.subf %109, %112 : vector<32x32xf32>
    %114 = math.exp %113 : vector<32x32xf32>
    %cst_50 = arith.constant dense<0.000000e+00> : vector<32xf32>
    %115 = vector.multi_reduction <add>, %114, %cst_50 [1] : vector<32x32xf32> to vector<32xf32>
    %116 = vector.shape_cast %115 : vector<32xf32> to vector<32x1xf32>
    %117 = tpu.reciprocal %116 {approx = true} : vector<32x1xf32> -> vector<32x1xf32>
    %118 = vector.broadcast %117 : vector<32x1xf32> to vector<32x32xf32>
    %119 = arith.mulf %114, %118 : vector<32x32xf32>
    %120 = arith.truncf %119 : vector<32x32xf32> to vector<32x32xbf16>
    %cst_51 = arith.constant dense<0.000000e+00> : vector<32x16xf32>
    %121 = tpu.matmul %120, %104, %cst_51 {dimension_numbers = #tpu.dot_dimension_numbers<[1], [0], [0], [1], [0, 0, 1, 1], [], []>} : vector<32x32xbf16>, vector<32x16xbf16>, vector<32x16xf32> -> vector<32x16xf32>
    %122 = arith.truncf %121 : vector<32x16xf32> to vector<32x16xbf16>
    %123 = vector.extract_strided_slice %42 {offsets = [32, 0], sizes = [16, 64], strides = [1, 1]} : vector<64x64xbf16> to vector<16x64xbf16>
    %cst_52 = arith.constant dense<0.000000e+00> : vector<32x64xf32>
    %124 = tpu.matmul %122, %123, %cst_52 {dimension_numbers = #tpu.dot_dimension_numbers<[1], [0], [0], [1], [0, 0, 1, 1], [], []>} : vector<32x16xbf16>, vector<16x64xbf16>, vector<32x64xf32> -> vector<32x64xf32>
    %125 = arith.addf %98, %124 : vector<32x64xf32>
    %126 = vector.extract_strided_slice %37 {offsets = [0, 48], sizes = [32, 16], strides = [1, 1]} : vector<64x64xf32> to vector<32x16xf32>
    %127 = arith.truncf %126 : vector<32x16xf32> to vector<32x16xbf16>
    %128 = vector.extract_strided_slice %39 {offsets = [0, 48], sizes = [32, 16], strides = [1, 1]} : vector<64x64xf32> to vector<32x16xf32>
    %129 = arith.truncf %128 : vector<32x16xf32> to vector<32x16xbf16>
    %130 = vector.extract_strided_slice %41 {offsets = [0, 48], sizes = [32, 16], strides = [1, 1]} : vector<64x64xf32> to vector<32x16xf32>
    %131 = arith.truncf %130 : vector<32x16xf32> to vector<32x16xbf16>
    %cst_53 = arith.constant dense<0.000000e+00> : vector<32x32xf32>
    %132 = tpu.matmul %127, %129, %cst_53 {dimension_numbers = #tpu.dot_dimension_numbers<[1], [1], [0], [0], [0, 0, 1, 0], [], []>} : vector<32x16xbf16>, vector<32x16xbf16>, vector<32x32xf32> -> vector<32x32xf32>
    %cst_54 = arith.constant 1.250000e-01 : f32
    %133 = vector.broadcast %cst_54 : f32 to vector<32x32xf32>
    %134 = arith.mulf %132, %133 : vector<32x32xf32>
    %cst_55 = arith.constant -1.000000e+30 : f32
    %135 = vector.broadcast %cst_55 : f32 to vector<32x32xf32>
    %136 = arith.select %9, %134, %135 : vector<32x32xi1>, vector<32x32xf32>
    %cst_56 = arith.constant dense<0xFF800000> : vector<32xf32>
    %137 = vector.multi_reduction <maximumf>, %136, %cst_56 [1] : vector<32x32xf32> to vector<32xf32>
    %138 = vector.shape_cast %137 : vector<32xf32> to vector<32x1xf32>
    %139 = vector.broadcast %138 : vector<32x1xf32> to vector<32x32xf32>
    %140 = arith.subf %136, %139 : vector<32x32xf32>
    %141 = math.exp %140 : vector<32x32xf32>
    %cst_57 = arith.constant dense<0.000000e+00> : vector<32xf32>
    %142 = vector.multi_reduction <add>, %141, %cst_57 [1] : vector<32x32xf32> to vector<32xf32>
    %143 = vector.shape_cast %142 : vector<32xf32> to vector<32x1xf32>
    %144 = tpu.reciprocal %143 {approx = true} : vector<32x1xf32> -> vector<32x1xf32>
    %145 = vector.broadcast %144 : vector<32x1xf32> to vector<32x32xf32>
    %146 = arith.mulf %141, %145 : vector<32x32xf32>
    %147 = arith.truncf %146 : vector<32x32xf32> to vector<32x32xbf16>
    %cst_58 = arith.constant dense<0.000000e+00> : vector<32x16xf32>
    %148 = tpu.matmul %147, %131, %cst_58 {dimension_numbers = #tpu.dot_dimension_numbers<[1], [0], [0], [1], [0, 0, 1, 1], [], []>} : vector<32x32xbf16>, vector<32x16xbf16>, vector<32x16xf32> -> vector<32x16xf32>
    %149 = arith.truncf %148 : vector<32x16xf32> to vector<32x16xbf16>
    %150 = vector.extract_strided_slice %42 {offsets = [48, 0], sizes = [16, 64], strides = [1, 1]} : vector<64x64xbf16> to vector<16x64xbf16>
    %cst_59 = arith.constant dense<0.000000e+00> : vector<32x64xf32>
    %151 = tpu.matmul %149, %150, %cst_59 {dimension_numbers = #tpu.dot_dimension_numbers<[1], [0], [0], [1], [0, 0, 1, 1], [], []>} : vector<32x16xbf16>, vector<16x64xbf16>, vector<32x64xf32> -> vector<32x64xf32>
    %152 = arith.addf %125, %151 : vector<32x64xf32>
    %153 = vector.extract_strided_slice %10 {offsets = [0, 0], sizes = [32, 64], strides = [1, 1]} : vector<64x64xf32> to vector<32x64xf32>
    %154 = arith.addf %153, %152 : vector<32x64xf32>
    %155 = vector.broadcast %43 : vector<1x64xf32> to vector<32x64xf32>
    %156 = arith.addf %154, %155 : vector<32x64xf32>
    %c0_60 = arith.constant 0 : index
    %c0_61 = arith.constant 0 : index
    %157 = vector.load %arg34[%c0_60, %c0_61] : memref<64x64xf32, #tpu.memory_space<vmem>>, vector<32x64xf32>
    tpu.vector_store %arg34[%c0_60, %c0_61], %156 {strides = array<i32>} : memref<64x64xf32, #tpu.memory_space<vmem>>, vector<32x64xf32>,
    %cst_62 = arith.constant 0.000000e+00 : f32
    %158 = vector.broadcast %cst_62 : f32 to vector<32x64xf32>
    %159 = vector.extract_strided_slice %37 {offsets = [32, 0], sizes = [32, 16], strides = [1, 1]} : vector<64x64xf32> to vector<32x16xf32>
    %160 = arith.truncf %159 : vector<32x16xf32> to vector<32x16xbf16>
    %161 = vector.extract_strided_slice %39 {offsets = [32, 0], sizes = [32, 16], strides = [1, 1]} : vector<64x64xf32> to vector<32x16xf32>
    %162 = arith.truncf %161 : vector<32x16xf32> to vector<32x16xbf16>
    %163 = vector.extract_strided_slice %41 {offsets = [32, 0], sizes = [32, 16], strides = [1, 1]} : vector<64x64xf32> to vector<32x16xf32>
    %164 = arith.truncf %163 : vector<32x16xf32> to vector<32x16xbf16>
    %cst_63 = arith.constant dense<0.000000e+00> : vector<32x32xf32>
    %165 = tpu.matmul %160, %162, %cst_63 {dimension_numbers = #tpu.dot_dimension_numbers<[1], [1], [0], [0], [0, 0, 1, 0], [], []>} : vector<32x16xbf16>, vector<32x16xbf16>, vector<32x32xf32> -> vector<32x32xf32>
    %cst_64 = arith.constant 1.250000e-01 : f32
    %166 = vector.broadcast %cst_64 : f32 to vector<32x32xf32>
    %167 = arith.mulf %165, %166 : vector<32x32xf32>
    %cst_65 = arith.constant -1.000000e+30 : f32
    %168 = vector.broadcast %cst_65 : f32 to vector<32x32xf32>
    %169 = arith.select %9, %167, %168 : vector<32x32xi1>, vector<32x32xf32>
    %cst_66 = arith.constant dense<0xFF800000> : vector<32xf32>
    %170 = vector.multi_reduction <maximumf>, %169, %cst_66 [1] : vector<32x32xf32> to vector<32xf32>
    %171 = vector.shape_cast %170 : vector<32xf32> to vector<32x1xf32>
    %172 = vector.broadcast %171 : vector<32x1xf32> to vector<32x32xf32>
    %173 = arith.subf %169, %172 : vector<32x32xf32>
    %174 = math.exp %173 : vector<32x32xf32>
    %cst_67 = arith.constant dense<0.000000e+00> : vector<32xf32>
    %175 = vector.multi_reduction <add>, %174, %cst_67 [1] : vector<32x32xf32> to vector<32xf32>
    %176 = vector.shape_cast %175 : vector<32xf32> to vector<32x1xf32>
    %177 = tpu.reciprocal %176 {approx = true} : vector<32x1xf32> -> vector<32x1xf32>
    %178 = vector.broadcast %177 : vector<32x1xf32> to vector<32x32xf32>
    %179 = arith.mulf %174, %178 : vector<32x32xf32>
    %180 = arith.truncf %179 : vector<32x32xf32> to vector<32x32xbf16>
    %cst_68 = arith.constant dense<0.000000e+00> : vector<32x16xf32>
    %181 = tpu.matmul %180, %164, %cst_68 {dimension_numbers = #tpu.dot_dimension_numbers<[1], [0], [0], [1], [0, 0, 1, 1], [], []>} : vector<32x32xbf16>, vector<32x16xbf16>, vector<32x16xf32> -> vector<32x16xf32>
    %182 = arith.truncf %181 : vector<32x16xf32> to vector<32x16xbf16>
    %183 = vector.extract_strided_slice %42 {offsets = [0, 0], sizes = [16, 64], strides = [1, 1]} : vector<64x64xbf16> to vector<16x64xbf16>
    %cst_69 = arith.constant dense<0.000000e+00> : vector<32x64xf32>
    %184 = tpu.matmul %182, %183, %cst_69 {dimension_numbers = #tpu.dot_dimension_numbers<[1], [0], [0], [1], [0, 0, 1, 1], [], []>} : vector<32x16xbf16>, vector<16x64xbf16>, vector<32x64xf32> -> vector<32x64xf32>
    %185 = arith.addf %158, %184 : vector<32x64xf32>
    %186 = vector.extract_strided_slice %37 {offsets = [32, 16], sizes = [32, 16], strides = [1, 1]} : vector<64x64xf32> to vector<32x16xf32>
    %187 = arith.truncf %186 : vector<32x16xf32> to vector<32x16xbf16>
    %188 = vector.extract_strided_slice %39 {offsets = [32, 16], sizes = [32, 16], strides = [1, 1]} : vector<64x64xf32> to vector<32x16xf32>
    %189 = arith.truncf %188 : vector<32x16xf32> to vector<32x16xbf16>
    %190 = vector.extract_strided_slice %41 {offsets = [32, 16], sizes = [32, 16], strides = [1, 1]} : vector<64x64xf32> to vector<32x16xf32>
    %191 = arith.truncf %190 : vector<32x16xf32> to vector<32x16xbf16>
    %cst_70 = arith.constant dense<0.000000e+00> : vector<32x32xf32>
    %192 = tpu.matmul %187, %189, %cst_70 {dimension_numbers = #tpu.dot_dimension_numbers<[1], [1], [0], [0], [0, 0, 1, 0], [], []>} : vector<32x16xbf16>, vector<32x16xbf16>, vector<32x32xf32> -> vector<32x32xf32>
    %cst_71 = arith.constant 1.250000e-01 : f32
    %193 = vector.broadcast %cst_71 : f32 to vector<32x32xf32>
    %194 = arith.mulf %192, %193 : vector<32x32xf32>
    %cst_72 = arith.constant -1.000000e+30 : f32
    %195 = vector.broadcast %cst_72 : f32 to vector<32x32xf32>
    %196 = arith.select %9, %194, %195 : vector<32x32xi1>, vector<32x32xf32>
    %cst_73 = arith.constant dense<0xFF800000> : vector<32xf32>
    %197 = vector.multi_reduction <maximumf>, %196, %cst_73 [1] : vector<32x32xf32> to vector<32xf32>
    %198 = vector.shape_cast %197 : vector<32xf32> to vector<32x1xf32>
    %199 = vector.broadcast %198 : vector<32x1xf32> to vector<32x32xf32>
    %200 = arith.subf %196, %199 : vector<32x32xf32>
    %201 = math.exp %200 : vector<32x32xf32>
    %cst_74 = arith.constant dense<0.000000e+00> : vector<32xf32>
    %202 = vector.multi_reduction <add>, %201, %cst_74 [1] : vector<32x32xf32> to vector<32xf32>
    %203 = vector.shape_cast %202 : vector<32xf32> to vector<32x1xf32>
    %204 = tpu.reciprocal %203 {approx = true} : vector<32x1xf32> -> vector<32x1xf32>
    %205 = vector.broadcast %204 : vector<32x1xf32> to vector<32x32xf32>
    %206 = arith.mulf %201, %205 : vector<32x32xf32>
    %207 = arith.truncf %206 : vector<32x32xf32> to vector<32x32xbf16>
    %cst_75 = arith.constant dense<0.000000e+00> : vector<32x16xf32>
    %208 = tpu.matmul %207, %191, %cst_75 {dimension_numbers = #tpu.dot_dimension_numbers<[1], [0], [0], [1], [0, 0, 1, 1], [], []>} : vector<32x32xbf16>, vector<32x16xbf16>, vector<32x16xf32> -> vector<32x16xf32>
    %209 = arith.truncf %208 : vector<32x16xf32> to vector<32x16xbf16>
    %210 = vector.extract_strided_slice %42 {offsets = [16, 0], sizes = [16, 64], strides = [1, 1]} : vector<64x64xbf16> to vector<16x64xbf16>
    %cst_76 = arith.constant dense<0.000000e+00> : vector<32x64xf32>
    %211 = tpu.matmul %209, %210, %cst_76 {dimension_numbers = #tpu.dot_dimension_numbers<[1], [0], [0], [1], [0, 0, 1, 1], [], []>} : vector<32x16xbf16>, vector<16x64xbf16>, vector<32x64xf32> -> vector<32x64xf32>
    %212 = arith.addf %185, %211 : vector<32x64xf32>
    %213 = vector.extract_strided_slice %37 {offsets = [32, 32], sizes = [32, 16], strides = [1, 1]} : vector<64x64xf32> to vector<32x16xf32>
    %214 = arith.truncf %213 : vector<32x16xf32> to vector<32x16xbf16>
    %215 = vector.extract_strided_slice %39 {offsets = [32, 32], sizes = [32, 16], strides = [1, 1]} : vector<64x64xf32> to vector<32x16xf32>
    %216 = arith.truncf %215 : vector<32x16xf32> to vector<32x16xbf16>
    %217 = vector.extract_strided_slice %41 {offsets = [32, 32], sizes = [32, 16], strides = [1, 1]} : vector<64x64xf32> to vector<32x16xf32>
    %218 = arith.truncf %217 : vector<32x16xf32> to vector<32x16xbf16>
    %cst_77 = arith.constant dense<0.000000e+00> : vector<32x32xf32>
    %219 = tpu.matmul %214, %216, %cst_77 {dimension_numbers = #tpu.dot_dimension_numbers<[1], [1], [0], [0], [0, 0, 1, 0], [], []>} : vector<32x16xbf16>, vector<32x16xbf16>, vector<32x32xf32> -> vector<32x32xf32>
    %cst_78 = arith.constant 1.250000e-01 : f32
    %220 = vector.broadcast %cst_78 : f32 to vector<32x32xf32>
    %221 = arith.mulf %219, %220 : vector<32x32xf32>
    %cst_79 = arith.constant -1.000000e+30 : f32
    %222 = vector.broadcast %cst_79 : f32 to vector<32x32xf32>
    %223 = arith.select %9, %221, %222 : vector<32x32xi1>, vector<32x32xf32>
    %cst_80 = arith.constant dense<0xFF800000> : vector<32xf32>
    %224 = vector.multi_reduction <maximumf>, %223, %cst_80 [1] : vector<32x32xf32> to vector<32xf32>
    %225 = vector.shape_cast %224 : vector<32xf32> to vector<32x1xf32>
    %226 = vector.broadcast %225 : vector<32x1xf32> to vector<32x32xf32>
    %227 = arith.subf %223, %226 : vector<32x32xf32>
    %228 = math.exp %227 : vector<32x32xf32>
    %cst_81 = arith.constant dense<0.000000e+00> : vector<32xf32>
    %229 = vector.multi_reduction <add>, %228, %cst_81 [1] : vector<32x32xf32> to vector<32xf32>
    %230 = vector.shape_cast %229 : vector<32xf32> to vector<32x1xf32>
    %231 = tpu.reciprocal %230 {approx = true} : vector<32x1xf32> -> vector<32x1xf32>
    %232 = vector.broadcast %231 : vector<32x1xf32> to vector<32x32xf32>
    %233 = arith.mulf %228, %232 : vector<32x32xf32>
    %234 = arith.truncf %233 : vector<32x32xf32> to vector<32x32xbf16>
    %cst_82 = arith.constant dense<0.000000e+00> : vector<32x16xf32>
    %235 = tpu.matmul %234, %218, %cst_82 {dimension_numbers = #tpu.dot_dimension_numbers<[1], [0], [0], [1], [0, 0, 1, 1], [], []>} : vector<32x32xbf16>, vector<32x16xbf16>, vector<32x16xf32> -> vector<32x16xf32>
    %236 = arith.truncf %235 : vector<32x16xf32> to vector<32x16xbf16>
    %237 = vector.extract_strided_slice %42 {offsets = [32, 0], sizes = [16, 64], strides = [1, 1]} : vector<64x64xbf16> to vector<16x64xbf16>
    %cst_83 = arith.constant dense<0.000000e+00> : vector<32x64xf32>
    %238 = tpu.matmul %236, %237, %cst_83 {dimension_numbers = #tpu.dot_dimension_numbers<[1], [0], [0], [1], [0, 0, 1, 1], [], []>} : vector<32x16xbf16>, vector<16x64xbf16>, vector<32x64xf32> -> vector<32x64xf32>
    %239 = arith.addf %212, %238 : vector<32x64xf32>
    %240 = vector.extract_strided_slice %37 {offsets = [32, 48], sizes = [32, 16], strides = [1, 1]} : vector<64x64xf32> to vector<32x16xf32>
    %241 = arith.truncf %240 : vector<32x16xf32> to vector<32x16xbf16>
    %242 = vector.extract_strided_slice %39 {offsets = [32, 48], sizes = [32, 16], strides = [1, 1]} : vector<64x64xf32> to vector<32x16xf32>
    %243 = arith.truncf %242 : vector<32x16xf32> to vector<32x16xbf16>
    %244 = vector.extract_strided_slice %41 {offsets = [32, 48], sizes = [32, 16], strides = [1, 1]} : vector<64x64xf32> to vector<32x16xf32>
    %245 = arith.truncf %244 : vector<32x16xf32> to vector<32x16xbf16>
    %cst_84 = arith.constant dense<0.000000e+00> : vector<32x32xf32>
    %246 = tpu.matmul %241, %243, %cst_84 {dimension_numbers = #tpu.dot_dimension_numbers<[1], [1], [0], [0], [0, 0, 1, 0], [], []>} : vector<32x16xbf16>, vector<32x16xbf16>, vector<32x32xf32> -> vector<32x32xf32>
    %cst_85 = arith.constant 1.250000e-01 : f32
    %247 = vector.broadcast %cst_85 : f32 to vector<32x32xf32>
    %248 = arith.mulf %246, %247 : vector<32x32xf32>
    %cst_86 = arith.constant -1.000000e+30 : f32
    %249 = vector.broadcast %cst_86 : f32 to vector<32x32xf32>
    %250 = arith.select %9, %248, %249 : vector<32x32xi1>, vector<32x32xf32>
    %cst_87 = arith.constant dense<0xFF800000> : vector<32xf32>
    %251 = vector.multi_reduction <maximumf>, %250, %cst_87 [1] : vector<32x32xf32> to vector<32xf32>
    %252 = vector.shape_cast %251 : vector<32xf32> to vector<32x1xf32>
    %253 = vector.broadcast %252 : vector<32x1xf32> to vector<32x32xf32>
    %254 = arith.subf %250, %253 : vector<32x32xf32>
    %255 = math.exp %254 : vector<32x32xf32>
    %cst_88 = arith.constant dense<0.000000e+00> : vector<32xf32>
    %256 = vector.multi_reduction <add>, %255, %cst_88 [1] : vector<32x32xf32> to vector<32xf32>
    %257 = vector.shape_cast %256 : vector<32xf32> to vector<32x1xf32>
    %258 = tpu.reciprocal %257 {approx = true} : vector<32x1xf32> -> vector<32x1xf32>
    %259 = vector.broadcast %258 : vector<32x1xf32> to vector<32x32xf32>
    %260 = arith.mulf %255, %259 : vector<32x32xf32>
    %261 = arith.truncf %260 : vector<32x32xf32> to vector<32x32xbf16>
    %cst_89 = arith.constant dense<0.000000e+00> : vector<32x16xf32>
    %262 = tpu.matmul %261, %245, %cst_89 {dimension_numbers = #tpu.dot_dimension_numbers<[1], [0], [0], [1], [0, 0, 1, 1], [], []>} : vector<32x32xbf16>, vector<32x16xbf16>, vector<32x16xf32> -> vector<32x16xf32>
    %263 = arith.truncf %262 : vector<32x16xf32> to vector<32x16xbf16>
    %264 = vector.extract_strided_slice %42 {offsets = [48, 0], sizes = [16, 64], strides = [1, 1]} : vector<64x64xbf16> to vector<16x64xbf16>
    %cst_90 = arith.constant dense<0.000000e+00> : vector<32x64xf32>
    %265 = tpu.matmul %263, %264, %cst_90 {dimension_numbers = #tpu.dot_dimension_numbers<[1], [0], [0], [1], [0, 0, 1, 1], [], []>} : vector<32x16xbf16>, vector<16x64xbf16>, vector<32x64xf32> -> vector<32x64xf32>
    %266 = arith.addf %239, %265 : vector<32x64xf32>
    %267 = vector.extract_strided_slice %10 {offsets = [32, 0], sizes = [32, 64], strides = [1, 1]} : vector<64x64xf32> to vector<32x64xf32>
    %268 = arith.addf %267, %266 : vector<32x64xf32>
    %269 = vector.broadcast %43 : vector<1x64xf32> to vector<32x64xf32>
    %270 = arith.addf %268, %269 : vector<32x64xf32>
    %c32 = arith.constant 32 : index
    %c0_91 = arith.constant 0 : index
    %271 = vector.load %arg34[%c32, %c0_91] : memref<64x64xf32, #tpu.memory_space<vmem>>, vector<32x64xf32>
    tpu.vector_store %arg34[%c32, %c0_91], %270 {strides = array<i32>} : memref<64x64xf32, #tpu.memory_space<vmem>>, vector<32x64xf32>,
    %c0_92 = arith.constant 0 : index
    %c0_93 = arith.constant 0 : index
    %272 = vector.load %arg34[%c0_92, %c0_93] : memref<64x64xf32, #tpu.memory_space<vmem>>, vector<64x64xf32>
    %c0_94 = arith.constant 0 : index
    %c0_95 = arith.constant 0 : index
    %273 = vector.load %arg10[%c0_94, %c0_95] : memref<1x64xf32, #tpu.memory_space<vmem>>, vector<1x64xf32>
    %c0_96 = arith.constant 0 : index
    %c0_97 = arith.constant 0 : index
    %274 = vector.load %arg11[%c0_96, %c0_97] : memref<1x64xf32, #tpu.memory_space<vmem>>, vector<1x64xf32>
    %cst_98 = arith.constant dense<0.000000e+00> : vector<64xf32>
    %275 = vector.multi_reduction <add>, %272, %cst_98 [1] : vector<64x64xf32> to vector<64xf32>
    %276 = vector.shape_cast %275 : vector<64xf32> to vector<64x1xf32>
    %cst_99 = arith.constant 6.400000e+01 : f32
    %277 = vector.broadcast %cst_99 : f32 to vector<64x1xf32>
    %278 = arith.divf %276, %277 : vector<64x1xf32>
    %279 = vector.broadcast %278 : vector<64x1xf32> to vector<64x64xf32>
    %280 = arith.subf %272, %279 : vector<64x64xf32>
    %281 = arith.mulf %280, %280 : vector<64x64xf32>
    %cst_100 = arith.constant dense<0.000000e+00> : vector<64xf32>
    %282 = vector.multi_reduction <add>, %281, %cst_100 [1] : vector<64x64xf32> to vector<64xf32>
    %283 = vector.shape_cast %282 : vector<64xf32> to vector<64x1xf32>
    %cst_101 = arith.constant 6.400000e+01 : f32
    %284 = vector.broadcast %cst_101 : f32 to vector<64x1xf32>
    %285 = arith.divf %283, %284 : vector<64x1xf32>
    %286 = vector.broadcast %278 : vector<64x1xf32> to vector<64x64xf32>
    %287 = arith.subf %272, %286 : vector<64x64xf32>
    %cst_102 = arith.constant 9.99999974E-6 : f32
    %288 = vector.broadcast %cst_102 : f32 to vector<64x1xf32>
    %289 = arith.addf %285, %288 : vector<64x1xf32>
    %290 = math.rsqrt %289 : vector<64x1xf32>
    %291 = vector.broadcast %290 : vector<64x1xf32> to vector<64x64xf32>
    %292 = arith.mulf %287, %291 : vector<64x64xf32>
    %293 = vector.broadcast %273 : vector<1x64xf32> to vector<64x64xf32>
    %294 = arith.mulf %292, %293 : vector<64x64xf32>
    %295 = vector.broadcast %274 : vector<1x64xf32> to vector<64x64xf32>
    %296 = arith.addf %294, %295 : vector<64x64xf32>
    %297 = arith.truncf %296 : vector<64x64xf32> to vector<64x64xbf16>
    %c0_103 = arith.constant 0 : index
    %c0_104 = arith.constant 0 : index
    %298 = vector.load %arg12[%c0_103, %c0_104] : memref<64x128xbf16, #tpu.memory_space<vmem>>, vector<64x128xbf16>
    %cst_105 = arith.constant dense<0.000000e+00> : vector<64x128xf32>
    %299 = tpu.matmul %297, %298, %cst_105 {dimension_numbers = #tpu.dot_dimension_numbers<[1], [0], [0], [1], [0, 0, 1, 1], [], []>} : vector<64x64xbf16>, vector<64x128xbf16>, vector<64x128xf32> -> vector<64x128xf32>
    %c0_106 = arith.constant 0 : index
    %c0_107 = arith.constant 0 : index
    %300 = vector.load %arg13[%c0_106, %c0_107] : memref<1x128xf32, #tpu.memory_space<vmem>>, vector<1x128xf32>
    %301 = vector.broadcast %300 : vector<1x128xf32> to vector<64x128xf32>
    %302 = arith.addf %299, %301 : vector<64x128xf32>
    %cst_108 = arith.constant 5.000000e-01 : f32
    %303 = vector.broadcast %cst_108 : f32 to vector<64x128xf32>
    %304 = arith.mulf %303, %302 : vector<64x128xf32>
    %cst_109 = arith.constant 0.707106769 : f32
    %305 = vector.broadcast %cst_109 : f32 to vector<64x128xf32>
    %306 = arith.mulf %302, %305 : vector<64x128xf32>
    %307 = math.absf %306 : vector<64x128xf32>
    %cst_110 = arith.constant 0.327591091 : f32
    %308 = vector.broadcast %cst_110 : f32 to vector<64x128xf32>
    %309 = arith.mulf %308, %307 : vector<64x128xf32>
    %cst_111 = arith.constant 1.000000e+00 : f32
    %310 = vector.broadcast %cst_111 : f32 to vector<64x128xf32>
    %311 = arith.addf %310, %309 : vector<64x128xf32>
    %cst_112 = arith.constant 1.000000e+00 : f32
    %312 = vector.broadcast %cst_112 : f32 to vector<64x128xf32>
    %313 = arith.divf %312, %311 : vector<64x128xf32>
    %cst_113 = arith.constant 1.06140542 : f32
    %314 = vector.broadcast %cst_113 : f32 to vector<64x128xf32>
    %315 = arith.mulf %314, %313 : vector<64x128xf32>
    %cst_114 = arith.constant -1.45315206 : f32
    %316 = vector.broadcast %cst_114 : f32 to vector<64x128xf32>
    %317 = arith.addf %315, %316 : vector<64x128xf32>
    %318 = arith.mulf %317, %313 : vector<64x128xf32>
    %cst_115 = arith.constant 1.42141378 : f32
    %319 = vector.broadcast %cst_115 : f32 to vector<64x128xf32>
    %320 = arith.addf %318, %319 : vector<64x128xf32>
    %321 = arith.mulf %320, %313 : vector<64x128xf32>
    %cst_116 = arith.constant -0.284496725 : f32
    %322 = vector.broadcast %cst_116 : f32 to vector<64x128xf32>
    %323 = arith.addf %321, %322 : vector<64x128xf32>
    %324 = arith.mulf %323, %313 : vector<64x128xf32>
    %cst_117 = arith.constant 0.254829586 : f32
    %325 = vector.broadcast %cst_117 : f32 to vector<64x128xf32>
    %326 = arith.addf %324, %325 : vector<64x128xf32>
    %327 = arith.mulf %326, %313 : vector<64x128xf32>
    %cst_118 = arith.constant 0.000000e+00 : f32
    %328 = vector.broadcast %cst_118 : f32 to vector<64x128xf32>
    %329 = arith.subf %328, %307 : vector<64x128xf32>
    %330 = arith.mulf %329, %307 : vector<64x128xf32>
    %331 = math.exp %330 : vector<64x128xf32>
    %332 = arith.mulf %327, %331 : vector<64x128xf32>
    %cst_119 = arith.constant 1.000000e+00 : f32
    %333 = vector.broadcast %cst_119 : f32 to vector<64x128xf32>
    %334 = arith.subf %333, %332 : vector<64x128xf32>
    %cst_120 = arith.constant 0.000000e+00 : f32
    %335 = vector.broadcast %cst_120 : f32 to vector<64x128xf32>
    %336 = arith.cmpf oge, %306, %335 : vector<64x128xf32>
    %cst_121 = arith.constant 0.000000e+00 : f32
    %337 = vector.broadcast %cst_121 : f32 to vector<64x128xf32>
    %338 = arith.subf %337, %334 : vector<64x128xf32>
    %339 = arith.select %336, %334, %338 : vector<64x128xi1>, vector<64x128xf32>
    %cst_122 = arith.constant 1.000000e+00 : f32
    %340 = vector.broadcast %cst_122 : f32 to vector<64x128xf32>
    %341 = arith.addf %340, %339 : vector<64x128xf32>
    %342 = arith.mulf %304, %341 : vector<64x128xf32>
    %343 = arith.truncf %342 : vector<64x128xf32> to vector<64x128xbf16>
    %c0_123 = arith.constant 0 : index
    %c0_124 = arith.constant 0 : index
    %344 = vector.load %arg14[%c0_123, %c0_124] : memref<128x64xbf16, #tpu.memory_space<vmem>>, vector<128x64xbf16>
    %cst_125 = arith.constant dense<0.000000e+00> : vector<64x64xf32>
    %345 = tpu.matmul %343, %344, %cst_125 {dimension_numbers = #tpu.dot_dimension_numbers<[1], [0], [0], [1], [0, 0, 1, 1], [], []>} : vector<64x128xbf16>, vector<128x64xbf16>, vector<64x64xf32> -> vector<64x64xf32>
    %c0_126 = arith.constant 0 : index
    %c0_127 = arith.constant 0 : index
    %346 = vector.load %arg15[%c0_126, %c0_127] : memref<1x64xf32, #tpu.memory_space<vmem>>, vector<1x64xf32>
    %347 = vector.broadcast %346 : vector<1x64xf32> to vector<64x64xf32>
    %348 = arith.addf %345, %347 : vector<64x64xf32>
    %349 = arith.addf %272, %348 : vector<64x64xf32>
    %c0_128 = arith.constant 0 : index
    %c0_129 = arith.constant 0 : index
    %350 = vector.load %arg34[%c0_128, %c0_129] : memref<64x64xf32, #tpu.memory_space<vmem>>, vector<64x64xf32>
    tpu.vector_store %arg34[%c0_128, %c0_129], %349 {strides = array<i32>} : memref<64x64xf32, #tpu.memory_space<vmem>>, vector<64x64xf32>,
    %c0_130 = arith.constant 0 : index
    %c0_131 = arith.constant 0 : index
    %351 = vector.load %arg34[%c0_130, %c0_131] : memref<64x64xf32, #tpu.memory_space<vmem>>, vector<64x64xf32>
    %c0_132 = arith.constant 0 : index
    %c0_133 = arith.constant 0 : index
    %352 = vector.load %arg16[%c0_132, %c0_133] : memref<1x64xf32, #tpu.memory_space<vmem>>, vector<1x64xf32>
    %c0_134 = arith.constant 0 : index
    %c0_135 = arith.constant 0 : index
    %353 = vector.load %arg17[%c0_134, %c0_135] : memref<1x64xf32, #tpu.memory_space<vmem>>, vector<1x64xf32>
    %cst_136 = arith.constant dense<0.000000e+00> : vector<64xf32>
    %354 = vector.multi_reduction <add>, %351, %cst_136 [1] : vector<64x64xf32> to vector<64xf32>
    %355 = vector.shape_cast %354 : vector<64xf32> to vector<64x1xf32>
    %cst_137 = arith.constant 6.400000e+01 : f32
    %356 = vector.broadcast %cst_137 : f32 to vector<64x1xf32>
    %357 = arith.divf %355, %356 : vector<64x1xf32>
    %358 = vector.broadcast %357 : vector<64x1xf32> to vector<64x64xf32>
    %359 = arith.subf %351, %358 : vector<64x64xf32>
    %360 = arith.mulf %359, %359 : vector<64x64xf32>
    %cst_138 = arith.constant dense<0.000000e+00> : vector<64xf32>
    %361 = vector.multi_reduction <add>, %360, %cst_138 [1] : vector<64x64xf32> to vector<64xf32>
    %362 = vector.shape_cast %361 : vector<64xf32> to vector<64x1xf32>
    %cst_139 = arith.constant 6.400000e+01 : f32
    %363 = vector.broadcast %cst_139 : f32 to vector<64x1xf32>
    %364 = arith.divf %362, %363 : vector<64x1xf32>
    %365 = vector.broadcast %357 : vector<64x1xf32> to vector<64x64xf32>
    %366 = arith.subf %351, %365 : vector<64x64xf32>
    %cst_140 = arith.constant 9.99999974E-6 : f32
    %367 = vector.broadcast %cst_140 : f32 to vector<64x1xf32>
    %368 = arith.addf %364, %367 : vector<64x1xf32>
    %369 = math.rsqrt %368 : vector<64x1xf32>
    %370 = vector.broadcast %369 : vector<64x1xf32> to vector<64x64xf32>
    %371 = arith.mulf %366, %370 : vector<64x64xf32>
    %372 = vector.broadcast %352 : vector<1x64xf32> to vector<64x64xf32>
    %373 = arith.mulf %371, %372 : vector<64x64xf32>
    %374 = vector.broadcast %353 : vector<1x64xf32> to vector<64x64xf32>
    %375 = arith.addf %373, %374 : vector<64x64xf32>
    %376 = arith.truncf %375 : vector<64x64xf32> to vector<64x64xbf16>
    %c0_141 = arith.constant 0 : index
    %c0_142 = arith.constant 0 : index
    %377 = vector.load %arg18[%c0_141, %c0_142] : memref<64x64xbf16, #tpu.memory_space<vmem>>, vector<64x64xbf16>
    %cst_143 = arith.constant dense<0.000000e+00> : vector<64x64xf32>
    %378 = tpu.matmul %376, %377, %cst_143 {dimension_numbers = #tpu.dot_dimension_numbers<[1], [0], [0], [1], [0, 0, 1, 1], [], []>} : vector<64x64xbf16>, vector<64x64xbf16>, vector<64x64xf32> -> vector<64x64xf32>
    %c0_144 = arith.constant 0 : index
    %c0_145 = arith.constant 0 : index
    %379 = vector.load %arg19[%c0_144, %c0_145] : memref<64x64xbf16, #tpu.memory_space<vmem>>, vector<64x64xbf16>
    %cst_146 = arith.constant dense<0.000000e+00> : vector<64x64xf32>
    %380 = tpu.matmul %376, %379, %cst_146 {dimension_numbers = #tpu.dot_dimension_numbers<[1], [0], [0], [1], [0, 0, 1, 1], [], []>} : vector<64x64xbf16>, vector<64x64xbf16>, vector<64x64xf32> -> vector<64x64xf32>
    %c0_147 = arith.constant 0 : index
    %c0_148 = arith.constant 0 : index
    %381 = vector.load %arg20[%c0_147, %c0_148] : memref<64x64xbf16, #tpu.memory_space<vmem>>, vector<64x64xbf16>
    %cst_149 = arith.constant dense<0.000000e+00> : vector<64x64xf32>
    %382 = tpu.matmul %376, %381, %cst_149 {dimension_numbers = #tpu.dot_dimension_numbers<[1], [0], [0], [1], [0, 0, 1, 1], [], []>} : vector<64x64xbf16>, vector<64x64xbf16>, vector<64x64xf32> -> vector<64x64xf32>
    %c0_150 = arith.constant 0 : index
    %c0_151 = arith.constant 0 : index
    %383 = vector.load %arg21[%c0_150, %c0_151] : memref<64x64xbf16, #tpu.memory_space<vmem>>, vector<64x64xbf16>
    %c0_152 = arith.constant 0 : index
    %c0_153 = arith.constant 0 : index
    %384 = vector.load %arg22[%c0_152, %c0_153] : memref<1x64xf32, #tpu.memory_space<vmem>>, vector<1x64xf32>
    %cst_154 = arith.constant 0.000000e+00 : f32
    %385 = vector.broadcast %cst_154 : f32 to vector<32x64xf32>
    %386 = vector.extract_strided_slice %378 {offsets = [0, 0], sizes = [32, 16], strides = [1, 1]} : vector<64x64xf32> to vector<32x16xf32>
    %387 = arith.truncf %386 : vector<32x16xf32> to vector<32x16xbf16>
    %388 = vector.extract_strided_slice %380 {offsets = [0, 0], sizes = [32, 16], strides = [1, 1]} : vector<64x64xf32> to vector<32x16xf32>
    %389 = arith.truncf %388 : vector<32x16xf32> to vector<32x16xbf16>
    %390 = vector.extract_strided_slice %382 {offsets = [0, 0], sizes = [32, 16], strides = [1, 1]} : vector<64x64xf32> to vector<32x16xf32>
    %391 = arith.truncf %390 : vector<32x16xf32> to vector<32x16xbf16>
    %cst_155 = arith.constant dense<0.000000e+00> : vector<32x32xf32>
    %392 = tpu.matmul %387, %389, %cst_155 {dimension_numbers = #tpu.dot_dimension_numbers<[1], [1], [0], [0], [0, 0, 1, 0], [], []>} : vector<32x16xbf16>, vector<32x16xbf16>, vector<32x32xf32> -> vector<32x32xf32>
    %cst_156 = arith.constant 1.250000e-01 : f32
    %393 = vector.broadcast %cst_156 : f32 to vector<32x32xf32>
    %394 = arith.mulf %392, %393 : vector<32x32xf32>
    %cst_157 = arith.constant -1.000000e+30 : f32
    %395 = vector.broadcast %cst_157 : f32 to vector<32x32xf32>
    %396 = arith.select %9, %394, %395 : vector<32x32xi1>, vector<32x32xf32>
    %cst_158 = arith.constant dense<0xFF800000> : vector<32xf32>
    %397 = vector.multi_reduction <maximumf>, %396, %cst_158 [1] : vector<32x32xf32> to vector<32xf32>
    %398 = vector.shape_cast %397 : vector<32xf32> to vector<32x1xf32>
    %399 = vector.broadcast %398 : vector<32x1xf32> to vector<32x32xf32>
    %400 = arith.subf %396, %399 : vector<32x32xf32>
    %401 = math.exp %400 : vector<32x32xf32>
    %cst_159 = arith.constant dense<0.000000e+00> : vector<32xf32>
    %402 = vector.multi_reduction <add>, %401, %cst_159 [1] : vector<32x32xf32> to vector<32xf32>
    %403 = vector.shape_cast %402 : vector<32xf32> to vector<32x1xf32>
    %404 = tpu.reciprocal %403 {approx = true} : vector<32x1xf32> -> vector<32x1xf32>
    %405 = vector.broadcast %404 : vector<32x1xf32> to vector<32x32xf32>
    %406 = arith.mulf %401, %405 : vector<32x32xf32>
    %407 = arith.truncf %406 : vector<32x32xf32> to vector<32x32xbf16>
    %cst_160 = arith.constant dense<0.000000e+00> : vector<32x16xf32>
    %408 = tpu.matmul %407, %391, %cst_160 {dimension_numbers = #tpu.dot_dimension_numbers<[1], [0], [0], [1], [0, 0, 1, 1], [], []>} : vector<32x32xbf16>, vector<32x16xbf16>, vector<32x16xf32> -> vector<32x16xf32>
    %409 = arith.truncf %408 : vector<32x16xf32> to vector<32x16xbf16>
    %410 = vector.extract_strided_slice %383 {offsets = [0, 0], sizes = [16, 64], strides = [1, 1]} : vector<64x64xbf16> to vector<16x64xbf16>
    %cst_161 = arith.constant dense<0.000000e+00> : vector<32x64xf32>
    %411 = tpu.matmul %409, %410, %cst_161 {dimension_numbers = #tpu.dot_dimension_numbers<[1], [0], [0], [1], [0, 0, 1, 1], [], []>} : vector<32x16xbf16>, vector<16x64xbf16>, vector<32x64xf32> -> vector<32x64xf32>
    %412 = arith.addf %385, %411 : vector<32x64xf32>
    %413 = vector.extract_strided_slice %378 {offsets = [0, 16], sizes = [32, 16], strides = [1, 1]} : vector<64x64xf32> to vector<32x16xf32>
    %414 = arith.truncf %413 : vector<32x16xf32> to vector<32x16xbf16>
    %415 = vector.extract_strided_slice %380 {offsets = [0, 16], sizes = [32, 16], strides = [1, 1]} : vector<64x64xf32> to vector<32x16xf32>
    %416 = arith.truncf %415 : vector<32x16xf32> to vector<32x16xbf16>
    %417 = vector.extract_strided_slice %382 {offsets = [0, 16], sizes = [32, 16], strides = [1, 1]} : vector<64x64xf32> to vector<32x16xf32>
    %418 = arith.truncf %417 : vector<32x16xf32> to vector<32x16xbf16>
    %cst_162 = arith.constant dense<0.000000e+00> : vector<32x32xf32>
    %419 = tpu.matmul %414, %416, %cst_162 {dimension_numbers = #tpu.dot_dimension_numbers<[1], [1], [0], [0], [0, 0, 1, 0], [], []>} : vector<32x16xbf16>, vector<32x16xbf16>, vector<32x32xf32> -> vector<32x32xf32>
    %cst_163 = arith.constant 1.250000e-01 : f32
    %420 = vector.broadcast %cst_163 : f32 to vector<32x32xf32>
    %421 = arith.mulf %419, %420 : vector<32x32xf32>
    %cst_164 = arith.constant -1.000000e+30 : f32
    %422 = vector.broadcast %cst_164 : f32 to vector<32x32xf32>
    %423 = arith.select %9, %421, %422 : vector<32x32xi1>, vector<32x32xf32>
    %cst_165 = arith.constant dense<0xFF800000> : vector<32xf32>
    %424 = vector.multi_reduction <maximumf>, %423, %cst_165 [1] : vector<32x32xf32> to vector<32xf32>
    %425 = vector.shape_cast %424 : vector<32xf32> to vector<32x1xf32>
    %426 = vector.broadcast %425 : vector<32x1xf32> to vector<32x32xf32>
    %427 = arith.subf %423, %426 : vector<32x32xf32>
    %428 = math.exp %427 : vector<32x32xf32>
    %cst_166 = arith.constant dense<0.000000e+00> : vector<32xf32>
    %429 = vector.multi_reduction <add>, %428, %cst_166 [1] : vector<32x32xf32> to vector<32xf32>
    %430 = vector.shape_cast %429 : vector<32xf32> to vector<32x1xf32>
    %431 = tpu.reciprocal %430 {approx = true} : vector<32x1xf32> -> vector<32x1xf32>
    %432 = vector.broadcast %431 : vector<32x1xf32> to vector<32x32xf32>
    %433 = arith.mulf %428, %432 : vector<32x32xf32>
    %434 = arith.truncf %433 : vector<32x32xf32> to vector<32x32xbf16>
    %cst_167 = arith.constant dense<0.000000e+00> : vector<32x16xf32>
    %435 = tpu.matmul %434, %418, %cst_167 {dimension_numbers = #tpu.dot_dimension_numbers<[1], [0], [0], [1], [0, 0, 1, 1], [], []>} : vector<32x32xbf16>, vector<32x16xbf16>, vector<32x16xf32> -> vector<32x16xf32>
    %436 = arith.truncf %435 : vector<32x16xf32> to vector<32x16xbf16>
    %437 = vector.extract_strided_slice %383 {offsets = [16, 0], sizes = [16, 64], strides = [1, 1]} : vector<64x64xbf16> to vector<16x64xbf16>
    %cst_168 = arith.constant dense<0.000000e+00> : vector<32x64xf32>
    %438 = tpu.matmul %436, %437, %cst_168 {dimension_numbers = #tpu.dot_dimension_numbers<[1], [0], [0], [1], [0, 0, 1, 1], [], []>} : vector<32x16xbf16>, vector<16x64xbf16>, vector<32x64xf32> -> vector<32x64xf32>
    %439 = arith.addf %412, %438 : vector<32x64xf32>
    %440 = vector.extract_strided_slice %378 {offsets = [0, 32], sizes = [32, 16], strides = [1, 1]} : vector<64x64xf32> to vector<32x16xf32>
    %441 = arith.truncf %440 : vector<32x16xf32> to vector<32x16xbf16>
    %442 = vector.extract_strided_slice %380 {offsets = [0, 32], sizes = [32, 16], strides = [1, 1]} : vector<64x64xf32> to vector<32x16xf32>
    %443 = arith.truncf %442 : vector<32x16xf32> to vector<32x16xbf16>
    %444 = vector.extract_strided_slice %382 {offsets = [0, 32], sizes = [32, 16], strides = [1, 1]} : vector<64x64xf32> to vector<32x16xf32>
    %445 = arith.truncf %444 : vector<32x16xf32> to vector<32x16xbf16>
    %cst_169 = arith.constant dense<0.000000e+00> : vector<32x32xf32>
    %446 = tpu.matmul %441, %443, %cst_169 {dimension_numbers = #tpu.dot_dimension_numbers<[1], [1], [0], [0], [0, 0, 1, 0], [], []>} : vector<32x16xbf16>, vector<32x16xbf16>, vector<32x32xf32> -> vector<32x32xf32>
    %cst_170 = arith.constant 1.250000e-01 : f32
    %447 = vector.broadcast %cst_170 : f32 to vector<32x32xf32>
    %448 = arith.mulf %446, %447 : vector<32x32xf32>
    %cst_171 = arith.constant -1.000000e+30 : f32
    %449 = vector.broadcast %cst_171 : f32 to vector<32x32xf32>
    %450 = arith.select %9, %448, %449 : vector<32x32xi1>, vector<32x32xf32>
    %cst_172 = arith.constant dense<0xFF800000> : vector<32xf32>
    %451 = vector.multi_reduction <maximumf>, %450, %cst_172 [1] : vector<32x32xf32> to vector<32xf32>
    %452 = vector.shape_cast %451 : vector<32xf32> to vector<32x1xf32>
    %453 = vector.broadcast %452 : vector<32x1xf32> to vector<32x32xf32>
    %454 = arith.subf %450, %453 : vector<32x32xf32>
    %455 = math.exp %454 : vector<32x32xf32>
    %cst_173 = arith.constant dense<0.000000e+00> : vector<32xf32>
    %456 = vector.multi_reduction <add>, %455, %cst_173 [1] : vector<32x32xf32> to vector<32xf32>
    %457 = vector.shape_cast %456 : vector<32xf32> to vector<32x1xf32>
    %458 = tpu.reciprocal %457 {approx = true} : vector<32x1xf32> -> vector<32x1xf32>
    %459 = vector.broadcast %458 : vector<32x1xf32> to vector<32x32xf32>
    %460 = arith.mulf %455, %459 : vector<32x32xf32>
    %461 = arith.truncf %460 : vector<32x32xf32> to vector<32x32xbf16>
    %cst_174 = arith.constant dense<0.000000e+00> : vector<32x16xf32>
    %462 = tpu.matmul %461, %445, %cst_174 {dimension_numbers = #tpu.dot_dimension_numbers<[1], [0], [0], [1], [0, 0, 1, 1], [], []>} : vector<32x32xbf16>, vector<32x16xbf16>, vector<32x16xf32> -> vector<32x16xf32>
    %463 = arith.truncf %462 : vector<32x16xf32> to vector<32x16xbf16>
    %464 = vector.extract_strided_slice %383 {offsets = [32, 0], sizes = [16, 64], strides = [1, 1]} : vector<64x64xbf16> to vector<16x64xbf16>
    %cst_175 = arith.constant dense<0.000000e+00> : vector<32x64xf32>
    %465 = tpu.matmul %463, %464, %cst_175 {dimension_numbers = #tpu.dot_dimension_numbers<[1], [0], [0], [1], [0, 0, 1, 1], [], []>} : vector<32x16xbf16>, vector<16x64xbf16>, vector<32x64xf32> -> vector<32x64xf32>
    %466 = arith.addf %439, %465 : vector<32x64xf32>
    %467 = vector.extract_strided_slice %378 {offsets = [0, 48], sizes = [32, 16], strides = [1, 1]} : vector<64x64xf32> to vector<32x16xf32>
    %468 = arith.truncf %467 : vector<32x16xf32> to vector<32x16xbf16>
    %469 = vector.extract_strided_slice %380 {offsets = [0, 48], sizes = [32, 16], strides = [1, 1]} : vector<64x64xf32> to vector<32x16xf32>
    %470 = arith.truncf %469 : vector<32x16xf32> to vector<32x16xbf16>
    %471 = vector.extract_strided_slice %382 {offsets = [0, 48], sizes = [32, 16], strides = [1, 1]} : vector<64x64xf32> to vector<32x16xf32>
    %472 = arith.truncf %471 : vector<32x16xf32> to vector<32x16xbf16>
    %cst_176 = arith.constant dense<0.000000e+00> : vector<32x32xf32>
    %473 = tpu.matmul %468, %470, %cst_176 {dimension_numbers = #tpu.dot_dimension_numbers<[1], [1], [0], [0], [0, 0, 1, 0], [], []>} : vector<32x16xbf16>, vector<32x16xbf16>, vector<32x32xf32> -> vector<32x32xf32>
    %cst_177 = arith.constant 1.250000e-01 : f32
    %474 = vector.broadcast %cst_177 : f32 to vector<32x32xf32>
    %475 = arith.mulf %473, %474 : vector<32x32xf32>
    %cst_178 = arith.constant -1.000000e+30 : f32
    %476 = vector.broadcast %cst_178 : f32 to vector<32x32xf32>
    %477 = arith.select %9, %475, %476 : vector<32x32xi1>, vector<32x32xf32>
    %cst_179 = arith.constant dense<0xFF800000> : vector<32xf32>
    %478 = vector.multi_reduction <maximumf>, %477, %cst_179 [1] : vector<32x32xf32> to vector<32xf32>
    %479 = vector.shape_cast %478 : vector<32xf32> to vector<32x1xf32>
    %480 = vector.broadcast %479 : vector<32x1xf32> to vector<32x32xf32>
    %481 = arith.subf %477, %480 : vector<32x32xf32>
    %482 = math.exp %481 : vector<32x32xf32>
    %cst_180 = arith.constant dense<0.000000e+00> : vector<32xf32>
    %483 = vector.multi_reduction <add>, %482, %cst_180 [1] : vector<32x32xf32> to vector<32xf32>
    %484 = vector.shape_cast %483 : vector<32xf32> to vector<32x1xf32>
    %485 = tpu.reciprocal %484 {approx = true} : vector<32x1xf32> -> vector<32x1xf32>
    %486 = vector.broadcast %485 : vector<32x1xf32> to vector<32x32xf32>
    %487 = arith.mulf %482, %486 : vector<32x32xf32>
    %488 = arith.truncf %487 : vector<32x32xf32> to vector<32x32xbf16>
    %cst_181 = arith.constant dense<0.000000e+00> : vector<32x16xf32>
    %489 = tpu.matmul %488, %472, %cst_181 {dimension_numbers = #tpu.dot_dimension_numbers<[1], [0], [0], [1], [0, 0, 1, 1], [], []>} : vector<32x32xbf16>, vector<32x16xbf16>, vector<32x16xf32> -> vector<32x16xf32>
    %490 = arith.truncf %489 : vector<32x16xf32> to vector<32x16xbf16>
    %491 = vector.extract_strided_slice %383 {offsets = [48, 0], sizes = [16, 64], strides = [1, 1]} : vector<64x64xbf16> to vector<16x64xbf16>
    %cst_182 = arith.constant dense<0.000000e+00> : vector<32x64xf32>
    %492 = tpu.matmul %490, %491, %cst_182 {dimension_numbers = #tpu.dot_dimension_numbers<[1], [0], [0], [1], [0, 0, 1, 1], [], []>} : vector<32x16xbf16>, vector<16x64xbf16>, vector<32x64xf32> -> vector<32x64xf32>
    %493 = arith.addf %466, %492 : vector<32x64xf32>
    %494 = vector.extract_strided_slice %351 {offsets = [0, 0], sizes = [32, 64], strides = [1, 1]} : vector<64x64xf32> to vector<32x64xf32>
    %495 = arith.addf %494, %493 : vector<32x64xf32>
    %496 = vector.broadcast %384 : vector<1x64xf32> to vector<32x64xf32>
    %497 = arith.addf %495, %496 : vector<32x64xf32>
    %c0_183 = arith.constant 0 : index
    %c0_184 = arith.constant 0 : index
    %498 = vector.load %arg34[%c0_183, %c0_184] : memref<64x64xf32, #tpu.memory_space<vmem>>, vector<32x64xf32>
    tpu.vector_store %arg34[%c0_183, %c0_184], %497 {strides = array<i32>} : memref<64x64xf32, #tpu.memory_space<vmem>>, vector<32x64xf32>,
    %cst_185 = arith.constant 0.000000e+00 : f32
    %499 = vector.broadcast %cst_185 : f32 to vector<32x64xf32>
    %500 = vector.extract_strided_slice %378 {offsets = [32, 0], sizes = [32, 16], strides = [1, 1]} : vector<64x64xf32> to vector<32x16xf32>
    %501 = arith.truncf %500 : vector<32x16xf32> to vector<32x16xbf16>
    %502 = vector.extract_strided_slice %380 {offsets = [32, 0], sizes = [32, 16], strides = [1, 1]} : vector<64x64xf32> to vector<32x16xf32>
    %503 = arith.truncf %502 : vector<32x16xf32> to vector<32x16xbf16>
    %504 = vector.extract_strided_slice %382 {offsets = [32, 0], sizes = [32, 16], strides = [1, 1]} : vector<64x64xf32> to vector<32x16xf32>
    %505 = arith.truncf %504 : vector<32x16xf32> to vector<32x16xbf16>
    %cst_186 = arith.constant dense<0.000000e+00> : vector<32x32xf32>
    %506 = tpu.matmul %501, %503, %cst_186 {dimension_numbers = #tpu.dot_dimension_numbers<[1], [1], [0], [0], [0, 0, 1, 0], [], []>} : vector<32x16xbf16>, vector<32x16xbf16>, vector<32x32xf32> -> vector<32x32xf32>
    %cst_187 = arith.constant 1.250000e-01 : f32
    %507 = vector.broadcast %cst_187 : f32 to vector<32x32xf32>
    %508 = arith.mulf %506, %507 : vector<32x32xf32>
    %cst_188 = arith.constant -1.000000e+30 : f32
    %509 = vector.broadcast %cst_188 : f32 to vector<32x32xf32>
    %510 = arith.select %9, %508, %509 : vector<32x32xi1>, vector<32x32xf32>
    %cst_189 = arith.constant dense<0xFF800000> : vector<32xf32>
    %511 = vector.multi_reduction <maximumf>, %510, %cst_189 [1] : vector<32x32xf32> to vector<32xf32>
    %512 = vector.shape_cast %511 : vector<32xf32> to vector<32x1xf32>
    %513 = vector.broadcast %512 : vector<32x1xf32> to vector<32x32xf32>
    %514 = arith.subf %510, %513 : vector<32x32xf32>
    %515 = math.exp %514 : vector<32x32xf32>
    %cst_190 = arith.constant dense<0.000000e+00> : vector<32xf32>
    %516 = vector.multi_reduction <add>, %515, %cst_190 [1] : vector<32x32xf32> to vector<32xf32>
    %517 = vector.shape_cast %516 : vector<32xf32> to vector<32x1xf32>
    %518 = tpu.reciprocal %517 {approx = true} : vector<32x1xf32> -> vector<32x1xf32>
    %519 = vector.broadcast %518 : vector<32x1xf32> to vector<32x32xf32>
    %520 = arith.mulf %515, %519 : vector<32x32xf32>
    %521 = arith.truncf %520 : vector<32x32xf32> to vector<32x32xbf16>
    %cst_191 = arith.constant dense<0.000000e+00> : vector<32x16xf32>
    %522 = tpu.matmul %521, %505, %cst_191 {dimension_numbers = #tpu.dot_dimension_numbers<[1], [0], [0], [1], [0, 0, 1, 1], [], []>} : vector<32x32xbf16>, vector<32x16xbf16>, vector<32x16xf32> -> vector<32x16xf32>
    %523 = arith.truncf %522 : vector<32x16xf32> to vector<32x16xbf16>
    %524 = vector.extract_strided_slice %383 {offsets = [0, 0], sizes = [16, 64], strides = [1, 1]} : vector<64x64xbf16> to vector<16x64xbf16>
    %cst_192 = arith.constant dense<0.000000e+00> : vector<32x64xf32>
    %525 = tpu.matmul %523, %524, %cst_192 {dimension_numbers = #tpu.dot_dimension_numbers<[1], [0], [0], [1], [0, 0, 1, 1], [], []>} : vector<32x16xbf16>, vector<16x64xbf16>, vector<32x64xf32> -> vector<32x64xf32>
    %526 = arith.addf %499, %525 : vector<32x64xf32>
    %527 = vector.extract_strided_slice %378 {offsets = [32, 16], sizes = [32, 16], strides = [1, 1]} : vector<64x64xf32> to vector<32x16xf32>
    %528 = arith.truncf %527 : vector<32x16xf32> to vector<32x16xbf16>
    %529 = vector.extract_strided_slice %380 {offsets = [32, 16], sizes = [32, 16], strides = [1, 1]} : vector<64x64xf32> to vector<32x16xf32>
    %530 = arith.truncf %529 : vector<32x16xf32> to vector<32x16xbf16>
    %531 = vector.extract_strided_slice %382 {offsets = [32, 16], sizes = [32, 16], strides = [1, 1]} : vector<64x64xf32> to vector<32x16xf32>
    %532 = arith.truncf %531 : vector<32x16xf32> to vector<32x16xbf16>
    %cst_193 = arith.constant dense<0.000000e+00> : vector<32x32xf32>
    %533 = tpu.matmul %528, %530, %cst_193 {dimension_numbers = #tpu.dot_dimension_numbers<[1], [1], [0], [0], [0, 0, 1, 0], [], []>} : vector<32x16xbf16>, vector<32x16xbf16>, vector<32x32xf32> -> vector<32x32xf32>
    %cst_194 = arith.constant 1.250000e-01 : f32
    %534 = vector.broadcast %cst_194 : f32 to vector<32x32xf32>
    %535 = arith.mulf %533, %534 : vector<32x32xf32>
    %cst_195 = arith.constant -1.000000e+30 : f32
    %536 = vector.broadcast %cst_195 : f32 to vector<32x32xf32>
    %537 = arith.select %9, %535, %536 : vector<32x32xi1>, vector<32x32xf32>
    %cst_196 = arith.constant dense<0xFF800000> : vector<32xf32>
    %538 = vector.multi_reduction <maximumf>, %537, %cst_196 [1] : vector<32x32xf32> to vector<32xf32>
    %539 = vector.shape_cast %538 : vector<32xf32> to vector<32x1xf32>
    %540 = vector.broadcast %539 : vector<32x1xf32> to vector<32x32xf32>
    %541 = arith.subf %537, %540 : vector<32x32xf32>
    %542 = math.exp %541 : vector<32x32xf32>
    %cst_197 = arith.constant dense<0.000000e+00> : vector<32xf32>
    %543 = vector.multi_reduction <add>, %542, %cst_197 [1] : vector<32x32xf32> to vector<32xf32>
    %544 = vector.shape_cast %543 : vector<32xf32> to vector<32x1xf32>
    %545 = tpu.reciprocal %544 {approx = true} : vector<32x1xf32> -> vector<32x1xf32>
    %546 = vector.broadcast %545 : vector<32x1xf32> to vector<32x32xf32>
    %547 = arith.mulf %542, %546 : vector<32x32xf32>
    %548 = arith.truncf %547 : vector<32x32xf32> to vector<32x32xbf16>
    %cst_198 = arith.constant dense<0.000000e+00> : vector<32x16xf32>
    %549 = tpu.matmul %548, %532, %cst_198 {dimension_numbers = #tpu.dot_dimension_numbers<[1], [0], [0], [1], [0, 0, 1, 1], [], []>} : vector<32x32xbf16>, vector<32x16xbf16>, vector<32x16xf32> -> vector<32x16xf32>
    %550 = arith.truncf %549 : vector<32x16xf32> to vector<32x16xbf16>
    %551 = vector.extract_strided_slice %383 {offsets = [16, 0], sizes = [16, 64], strides = [1, 1]} : vector<64x64xbf16> to vector<16x64xbf16>
    %cst_199 = arith.constant dense<0.000000e+00> : vector<32x64xf32>
    %552 = tpu.matmul %550, %551, %cst_199 {dimension_numbers = #tpu.dot_dimension_numbers<[1], [0], [0], [1], [0, 0, 1, 1], [], []>} : vector<32x16xbf16>, vector<16x64xbf16>, vector<32x64xf32> -> vector<32x64xf32>
    %553 = arith.addf %526, %552 : vector<32x64xf32>
    %554 = vector.extract_strided_slice %378 {offsets = [32, 32], sizes = [32, 16], strides = [1, 1]} : vector<64x64xf32> to vector<32x16xf32>
    %555 = arith.truncf %554 : vector<32x16xf32> to vector<32x16xbf16>
    %556 = vector.extract_strided_slice %380 {offsets = [32, 32], sizes = [32, 16], strides = [1, 1]} : vector<64x64xf32> to vector<32x16xf32>
    %557 = arith.truncf %556 : vector<32x16xf32> to vector<32x16xbf16>
    %558 = vector.extract_strided_slice %382 {offsets = [32, 32], sizes = [32, 16], strides = [1, 1]} : vector<64x64xf32> to vector<32x16xf32>
    %559 = arith.truncf %558 : vector<32x16xf32> to vector<32x16xbf16>
    %cst_200 = arith.constant dense<0.000000e+00> : vector<32x32xf32>
    %560 = tpu.matmul %555, %557, %cst_200 {dimension_numbers = #tpu.dot_dimension_numbers<[1], [1], [0], [0], [0, 0, 1, 0], [], []>} : vector<32x16xbf16>, vector<32x16xbf16>, vector<32x32xf32> -> vector<32x32xf32>
    %cst_201 = arith.constant 1.250000e-01 : f32
    %561 = vector.broadcast %cst_201 : f32 to vector<32x32xf32>
    %562 = arith.mulf %560, %561 : vector<32x32xf32>
    %cst_202 = arith.constant -1.000000e+30 : f32
    %563 = vector.broadcast %cst_202 : f32 to vector<32x32xf32>
    %564 = arith.select %9, %562, %563 : vector<32x32xi1>, vector<32x32xf32>
    %cst_203 = arith.constant dense<0xFF800000> : vector<32xf32>
    %565 = vector.multi_reduction <maximumf>, %564, %cst_203 [1] : vector<32x32xf32> to vector<32xf32>
    %566 = vector.shape_cast %565 : vector<32xf32> to vector<32x1xf32>
    %567 = vector.broadcast %566 : vector<32x1xf32> to vector<32x32xf32>
    %568 = arith.subf %564, %567 : vector<32x32xf32>
    %569 = math.exp %568 : vector<32x32xf32>
    %cst_204 = arith.constant dense<0.000000e+00> : vector<32xf32>
    %570 = vector.multi_reduction <add>, %569, %cst_204 [1] : vector<32x32xf32> to vector<32xf32>
    %571 = vector.shape_cast %570 : vector<32xf32> to vector<32x1xf32>
    %572 = tpu.reciprocal %571 {approx = true} : vector<32x1xf32> -> vector<32x1xf32>
    %573 = vector.broadcast %572 : vector<32x1xf32> to vector<32x32xf32>
    %574 = arith.mulf %569, %573 : vector<32x32xf32>
    %575 = arith.truncf %574 : vector<32x32xf32> to vector<32x32xbf16>
    %cst_205 = arith.constant dense<0.000000e+00> : vector<32x16xf32>
    %576 = tpu.matmul %575, %559, %cst_205 {dimension_numbers = #tpu.dot_dimension_numbers<[1], [0], [0], [1], [0, 0, 1, 1], [], []>} : vector<32x32xbf16>, vector<32x16xbf16>, vector<32x16xf32> -> vector<32x16xf32>
    %577 = arith.truncf %576 : vector<32x16xf32> to vector<32x16xbf16>
    %578 = vector.extract_strided_slice %383 {offsets = [32, 0], sizes = [16, 64], strides = [1, 1]} : vector<64x64xbf16> to vector<16x64xbf16>
    %cst_206 = arith.constant dense<0.000000e+00> : vector<32x64xf32>
    %579 = tpu.matmul %577, %578, %cst_206 {dimension_numbers = #tpu.dot_dimension_numbers<[1], [0], [0], [1], [0, 0, 1, 1], [], []>} : vector<32x16xbf16>, vector<16x64xbf16>, vector<32x64xf32> -> vector<32x64xf32>
    %580 = arith.addf %553, %579 : vector<32x64xf32>
    %581 = vector.extract_strided_slice %378 {offsets = [32, 48], sizes = [32, 16], strides = [1, 1]} : vector<64x64xf32> to vector<32x16xf32>
    %582 = arith.truncf %581 : vector<32x16xf32> to vector<32x16xbf16>
    %583 = vector.extract_strided_slice %380 {offsets = [32, 48], sizes = [32, 16], strides = [1, 1]} : vector<64x64xf32> to vector<32x16xf32>
    %584 = arith.truncf %583 : vector<32x16xf32> to vector<32x16xbf16>
    %585 = vector.extract_strided_slice %382 {offsets = [32, 48], sizes = [32, 16], strides = [1, 1]} : vector<64x64xf32> to vector<32x16xf32>
    %586 = arith.truncf %585 : vector<32x16xf32> to vector<32x16xbf16>
    %cst_207 = arith.constant dense<0.000000e+00> : vector<32x32xf32>
    %587 = tpu.matmul %582, %584, %cst_207 {dimension_numbers = #tpu.dot_dimension_numbers<[1], [1], [0], [0], [0, 0, 1, 0], [], []>} : vector<32x16xbf16>, vector<32x16xbf16>, vector<32x32xf32> -> vector<32x32xf32>
    %cst_208 = arith.constant 1.250000e-01 : f32
    %588 = vector.broadcast %cst_208 : f32 to vector<32x32xf32>
    %589 = arith.mulf %587, %588 : vector<32x32xf32>
    %cst_209 = arith.constant -1.000000e+30 : f32
    %590 = vector.broadcast %cst_209 : f32 to vector<32x32xf32>
    %591 = arith.select %9, %589, %590 : vector<32x32xi1>, vector<32x32xf32>
    %cst_210 = arith.constant dense<0xFF800000> : vector<32xf32>
    %592 = vector.multi_reduction <maximumf>, %591, %cst_210 [1] : vector<32x32xf32> to vector<32xf32>
    %593 = vector.shape_cast %592 : vector<32xf32> to vector<32x1xf32>
    %594 = vector.broadcast %593 : vector<32x1xf32> to vector<32x32xf32>
    %595 = arith.subf %591, %594 : vector<32x32xf32>
    %596 = math.exp %595 : vector<32x32xf32>
    %cst_211 = arith.constant dense<0.000000e+00> : vector<32xf32>
    %597 = vector.multi_reduction <add>, %596, %cst_211 [1] : vector<32x32xf32> to vector<32xf32>
    %598 = vector.shape_cast %597 : vector<32xf32> to vector<32x1xf32>
    %599 = tpu.reciprocal %598 {approx = true} : vector<32x1xf32> -> vector<32x1xf32>
    %600 = vector.broadcast %599 : vector<32x1xf32> to vector<32x32xf32>
    %601 = arith.mulf %596, %600 : vector<32x32xf32>
    %602 = arith.truncf %601 : vector<32x32xf32> to vector<32x32xbf16>
    %cst_212 = arith.constant dense<0.000000e+00> : vector<32x16xf32>
    %603 = tpu.matmul %602, %586, %cst_212 {dimension_numbers = #tpu.dot_dimension_numbers<[1], [0], [0], [1], [0, 0, 1, 1], [], []>} : vector<32x32xbf16>, vector<32x16xbf16>, vector<32x16xf32> -> vector<32x16xf32>
    %604 = arith.truncf %603 : vector<32x16xf32> to vector<32x16xbf16>
    %605 = vector.extract_strided_slice %383 {offsets = [48, 0], sizes = [16, 64], strides = [1, 1]} : vector<64x64xbf16> to vector<16x64xbf16>
    %cst_213 = arith.constant dense<0.000000e+00> : vector<32x64xf32>
    %606 = tpu.matmul %604, %605, %cst_213 {dimension_numbers = #tpu.dot_dimension_numbers<[1], [0], [0], [1], [0, 0, 1, 1], [], []>} : vector<32x16xbf16>, vector<16x64xbf16>, vector<32x64xf32> -> vector<32x64xf32>
    %607 = arith.addf %580, %606 : vector<32x64xf32>
    %608 = vector.extract_strided_slice %351 {offsets = [32, 0], sizes = [32, 64], strides = [1, 1]} : vector<64x64xf32> to vector<32x64xf32>
    %609 = arith.addf %608, %607 : vector<32x64xf32>
    %610 = vector.broadcast %384 : vector<1x64xf32> to vector<32x64xf32>
    %611 = arith.addf %609, %610 : vector<32x64xf32>
    %c32_214 = arith.constant 32 : index
    %c0_215 = arith.constant 0 : index
    %612 = vector.load %arg34[%c32_214, %c0_215] : memref<64x64xf32, #tpu.memory_space<vmem>>, vector<32x64xf32>
    tpu.vector_store %arg34[%c32_214, %c0_215], %611 {strides = array<i32>} : memref<64x64xf32, #tpu.memory_space<vmem>>, vector<32x64xf32>,
    %c0_216 = arith.constant 0 : index
    %c0_217 = arith.constant 0 : index
    %613 = vector.load %arg34[%c0_216, %c0_217] : memref<64x64xf32, #tpu.memory_space<vmem>>, vector<64x64xf32>
    %c0_218 = arith.constant 0 : index
    %c0_219 = arith.constant 0 : index
    %614 = vector.load %arg23[%c0_218, %c0_219] : memref<1x64xf32, #tpu.memory_space<vmem>>, vector<1x64xf32>
    %c0_220 = arith.constant 0 : index
    %c0_221 = arith.constant 0 : index
    %615 = vector.load %arg24[%c0_220, %c0_221] : memref<1x64xf32, #tpu.memory_space<vmem>>, vector<1x64xf32>
    %cst_222 = arith.constant dense<0.000000e+00> : vector<64xf32>
    %616 = vector.multi_reduction <add>, %613, %cst_222 [1] : vector<64x64xf32> to vector<64xf32>
    %617 = vector.shape_cast %616 : vector<64xf32> to vector<64x1xf32>
    %cst_223 = arith.constant 6.400000e+01 : f32
    %618 = vector.broadcast %cst_223 : f32 to vector<64x1xf32>
    %619 = arith.divf %617, %618 : vector<64x1xf32>
    %620 = vector.broadcast %619 : vector<64x1xf32> to vector<64x64xf32>
    %621 = arith.subf %613, %620 : vector<64x64xf32>
    %622 = arith.mulf %621, %621 : vector<64x64xf32>
    %cst_224 = arith.constant dense<0.000000e+00> : vector<64xf32>
    %623 = vector.multi_reduction <add>, %622, %cst_224 [1] : vector<64x64xf32> to vector<64xf32>
    %624 = vector.shape_cast %623 : vector<64xf32> to vector<64x1xf32>
    %cst_225 = arith.constant 6.400000e+01 : f32
    %625 = vector.broadcast %cst_225 : f32 to vector<64x1xf32>
    %626 = arith.divf %624, %625 : vector<64x1xf32>
    %627 = vector.broadcast %619 : vector<64x1xf32> to vector<64x64xf32>
    %628 = arith.subf %613, %627 : vector<64x64xf32>
    %cst_226 = arith.constant 9.99999974E-6 : f32
    %629 = vector.broadcast %cst_226 : f32 to vector<64x1xf32>
    %630 = arith.addf %626, %629 : vector<64x1xf32>
    %631 = math.rsqrt %630 : vector<64x1xf32>
    %632 = vector.broadcast %631 : vector<64x1xf32> to vector<64x64xf32>
    %633 = arith.mulf %628, %632 : vector<64x64xf32>
    %634 = vector.broadcast %614 : vector<1x64xf32> to vector<64x64xf32>
    %635 = arith.mulf %633, %634 : vector<64x64xf32>
    %636 = vector.broadcast %615 : vector<1x64xf32> to vector<64x64xf32>
    %637 = arith.addf %635, %636 : vector<64x64xf32>
    %638 = arith.truncf %637 : vector<64x64xf32> to vector<64x64xbf16>
    %c0_227 = arith.constant 0 : index
    %c0_228 = arith.constant 0 : index
    %639 = vector.load %arg25[%c0_227, %c0_228] : memref<64x128xbf16, #tpu.memory_space<vmem>>, vector<64x128xbf16>
    %cst_229 = arith.constant dense<0.000000e+00> : vector<64x128xf32>
    %640 = tpu.matmul %638, %639, %cst_229 {dimension_numbers = #tpu.dot_dimension_numbers<[1], [0], [0], [1], [0, 0, 1, 1], [], []>} : vector<64x64xbf16>, vector<64x128xbf16>, vector<64x128xf32> -> vector<64x128xf32>
    %c0_230 = arith.constant 0 : index
    %c0_231 = arith.constant 0 : index
    %641 = vector.load %arg26[%c0_230, %c0_231] : memref<1x128xf32, #tpu.memory_space<vmem>>, vector<1x128xf32>
    %642 = vector.broadcast %641 : vector<1x128xf32> to vector<64x128xf32>
    %643 = arith.addf %640, %642 : vector<64x128xf32>
    %cst_232 = arith.constant 5.000000e-01 : f32
    %644 = vector.broadcast %cst_232 : f32 to vector<64x128xf32>
    %645 = arith.mulf %644, %643 : vector<64x128xf32>
    %cst_233 = arith.constant 0.707106769 : f32
    %646 = vector.broadcast %cst_233 : f32 to vector<64x128xf32>
    %647 = arith.mulf %643, %646 : vector<64x128xf32>
    %648 = math.absf %647 : vector<64x128xf32>
    %cst_234 = arith.constant 0.327591091 : f32
    %649 = vector.broadcast %cst_234 : f32 to vector<64x128xf32>
    %650 = arith.mulf %649, %648 : vector<64x128xf32>
    %cst_235 = arith.constant 1.000000e+00 : f32
    %651 = vector.broadcast %cst_235 : f32 to vector<64x128xf32>
    %652 = arith.addf %651, %650 : vector<64x128xf32>
    %cst_236 = arith.constant 1.000000e+00 : f32
    %653 = vector.broadcast %cst_236 : f32 to vector<64x128xf32>
    %654 = arith.divf %653, %652 : vector<64x128xf32>
    %cst_237 = arith.constant 1.06140542 : f32
    %655 = vector.broadcast %cst_237 : f32 to vector<64x128xf32>
    %656 = arith.mulf %655, %654 : vector<64x128xf32>
    %cst_238 = arith.constant -1.45315206 : f32
    %657 = vector.broadcast %cst_238 : f32 to vector<64x128xf32>
    %658 = arith.addf %656, %657 : vector<64x128xf32>
    %659 = arith.mulf %658, %654 : vector<64x128xf32>
    %cst_239 = arith.constant 1.42141378 : f32
    %660 = vector.broadcast %cst_239 : f32 to vector<64x128xf32>
    %661 = arith.addf %659, %660 : vector<64x128xf32>
    %662 = arith.mulf %661, %654 : vector<64x128xf32>
    %cst_240 = arith.constant -0.284496725 : f32
    %663 = vector.broadcast %cst_240 : f32 to vector<64x128xf32>
    %664 = arith.addf %662, %663 : vector<64x128xf32>
    %665 = arith.mulf %664, %654 : vector<64x128xf32>
    %cst_241 = arith.constant 0.254829586 : f32
    %666 = vector.broadcast %cst_241 : f32 to vector<64x128xf32>
    %667 = arith.addf %665, %666 : vector<64x128xf32>
    %668 = arith.mulf %667, %654 : vector<64x128xf32>
    %cst_242 = arith.constant 0.000000e+00 : f32
    %669 = vector.broadcast %cst_242 : f32 to vector<64x128xf32>
    %670 = arith.subf %669, %648 : vector<64x128xf32>
    %671 = arith.mulf %670, %648 : vector<64x128xf32>
    %672 = math.exp %671 : vector<64x128xf32>
    %673 = arith.mulf %668, %672 : vector<64x128xf32>
    %cst_243 = arith.constant 1.000000e+00 : f32
    %674 = vector.broadcast %cst_243 : f32 to vector<64x128xf32>
    %675 = arith.subf %674, %673 : vector<64x128xf32>
    %cst_244 = arith.constant 0.000000e+00 : f32
    %676 = vector.broadcast %cst_244 : f32 to vector<64x128xf32>
    %677 = arith.cmpf oge, %647, %676 : vector<64x128xf32>
    %cst_245 = arith.constant 0.000000e+00 : f32
    %678 = vector.broadcast %cst_245 : f32 to vector<64x128xf32>
    %679 = arith.subf %678, %675 : vector<64x128xf32>
    %680 = arith.select %677, %675, %679 : vector<64x128xi1>, vector<64x128xf32>
    %cst_246 = arith.constant 1.000000e+00 : f32
    %681 = vector.broadcast %cst_246 : f32 to vector<64x128xf32>
    %682 = arith.addf %681, %680 : vector<64x128xf32>
    %683 = arith.mulf %645, %682 : vector<64x128xf32>
    %684 = arith.truncf %683 : vector<64x128xf32> to vector<64x128xbf16>
    %c0_247 = arith.constant 0 : index
    %c0_248 = arith.constant 0 : index
    %685 = vector.load %arg27[%c0_247, %c0_248] : memref<128x64xbf16, #tpu.memory_space<vmem>>, vector<128x64xbf16>
    %cst_249 = arith.constant dense<0.000000e+00> : vector<64x64xf32>
    %686 = tpu.matmul %684, %685, %cst_249 {dimension_numbers = #tpu.dot_dimension_numbers<[1], [0], [0], [1], [0, 0, 1, 1], [], []>} : vector<64x128xbf16>, vector<128x64xbf16>, vector<64x64xf32> -> vector<64x64xf32>
    %c0_250 = arith.constant 0 : index
    %c0_251 = arith.constant 0 : index
    %687 = vector.load %arg28[%c0_250, %c0_251] : memref<1x64xf32, #tpu.memory_space<vmem>>, vector<1x64xf32>
    %688 = vector.broadcast %687 : vector<1x64xf32> to vector<64x64xf32>
    %689 = arith.addf %686, %688 : vector<64x64xf32>
    %690 = arith.addf %613, %689 : vector<64x64xf32>
    %c0_252 = arith.constant 0 : index
    %c0_253 = arith.constant 0 : index
    %691 = vector.load %arg34[%c0_252, %c0_253] : memref<64x64xf32, #tpu.memory_space<vmem>>, vector<64x64xf32>
    tpu.vector_store %arg34[%c0_252, %c0_253], %690 {strides = array<i32>} : memref<64x64xf32, #tpu.memory_space<vmem>>, vector<64x64xf32>,
    %c0_254 = arith.constant 0 : index
    %c0_255 = arith.constant 0 : index
    %692 = vector.load %arg34[%c0_254, %c0_255] : memref<64x64xf32, #tpu.memory_space<vmem>>, vector<1x64xf32>
    %c0_256 = arith.constant 0 : index
    %c0_257 = arith.constant 0 : index
    %693 = vector.load %arg29[%c0_256, %c0_257] : memref<1x64xf32, #tpu.memory_space<vmem>>, vector<1x64xf32>
    %c0_258 = arith.constant 0 : index
    %c0_259 = arith.constant 0 : index
    %694 = vector.load %arg30[%c0_258, %c0_259] : memref<1x64xf32, #tpu.memory_space<vmem>>, vector<1x64xf32>
    %cst_260 = arith.constant dense<0.000000e+00> : vector<1xf32>
    %695 = vector.multi_reduction <add>, %692, %cst_260 [1] : vector<1x64xf32> to vector<1xf32>
    %696 = vector.shape_cast %695 : vector<1xf32> to vector<1x1xf32>
    %cst_261 = arith.constant 6.400000e+01 : f32
    %697 = vector.broadcast %cst_261 : f32 to vector<1x1xf32>
    %698 = arith.divf %696, %697 : vector<1x1xf32>
    %699 = vector.broadcast %698 : vector<1x1xf32> to vector<1x64xf32>
    %700 = arith.subf %692, %699 : vector<1x64xf32>
    %701 = arith.mulf %700, %700 : vector<1x64xf32>
    %cst_262 = arith.constant dense<0.000000e+00> : vector<1xf32>
    %702 = vector.multi_reduction <add>, %701, %cst_262 [1] : vector<1x64xf32> to vector<1xf32>
    %703 = vector.shape_cast %702 : vector<1xf32> to vector<1x1xf32>
    %cst_263 = arith.constant 6.400000e+01 : f32
    %704 = vector.broadcast %cst_263 : f32 to vector<1x1xf32>
    %705 = arith.divf %703, %704 : vector<1x1xf32>
    %706 = vector.broadcast %698 : vector<1x1xf32> to vector<1x64xf32>
    %707 = arith.subf %692, %706 : vector<1x64xf32>
    %cst_264 = arith.constant 9.99999974E-6 : f32
    %708 = vector.broadcast %cst_264 : f32 to vector<1x1xf32>
    %709 = arith.addf %705, %708 : vector<1x1xf32>
    %710 = math.rsqrt %709 : vector<1x1xf32>
    %711 = vector.broadcast %710 : vector<1x1xf32> to vector<1x64xf32>
    %712 = arith.mulf %707, %711 : vector<1x64xf32>
    %713 = arith.mulf %712, %693 : vector<1x64xf32>
    %714 = arith.addf %713, %694 : vector<1x64xf32>
    %715 = arith.truncf %714 : vector<1x64xf32> to vector<1x64xbf16>
    %c0_265 = arith.constant 0 : index
    %c0_266 = arith.constant 0 : index
    %716 = vector.load %arg31[%c0_265, %c0_266] : memref<64x10xbf16, #tpu.memory_space<vmem>>, vector<64x10xbf16>
    %cst_267 = arith.constant dense<0.000000e+00> : vector<1x10xf32>
    %717 = tpu.matmul %715, %716, %cst_267 {dimension_numbers = #tpu.dot_dimension_numbers<[1], [0], [0], [1], [0, 0, 1, 1], [], []>} : vector<1x64xbf16>, vector<64x10xbf16>, vector<1x10xf32> -> vector<1x10xf32>
    %c0_268 = arith.constant 0 : index
    %c0_269 = arith.constant 0 : index
    %718 = vector.load %arg32[%c0_268, %c0_269] : memref<1x10xf32, #tpu.memory_space<vmem>>, vector<1x10xf32>
    %719 = arith.addf %717, %718 : vector<1x10xf32>
    %c0_270 = arith.constant 0 : index
    %c0_271 = arith.constant 0 : index
    %720 = vector.load %arg33[%c0_270, %c0_271] : memref<2x10xf32, #tpu.memory_space<vmem>>, vector<1x10xf32>
    tpu.vector_store %arg33[%c0_270, %c0_271], %719 {strides = array<i32>} : memref<2x10xf32, #tpu.memory_space<vmem>>, vector<1x10xf32>,
    %c32_272 = arith.constant 32 : index
    %c0_273 = arith.constant 0 : index
    %721 = vector.load %arg34[%c32_272, %c0_273] : memref<64x64xf32, #tpu.memory_space<vmem>>, vector<1x64xf32>
    %c0_274 = arith.constant 0 : index
    %c0_275 = arith.constant 0 : index
    %722 = vector.load %arg29[%c0_274, %c0_275] : memref<1x64xf32, #tpu.memory_space<vmem>>, vector<1x64xf32>
    %c0_276 = arith.constant 0 : index
    %c0_277 = arith.constant 0 : index
    %723 = vector.load %arg30[%c0_276, %c0_277] : memref<1x64xf32, #tpu.memory_space<vmem>>, vector<1x64xf32>
    %cst_278 = arith.constant dense<0.000000e+00> : vector<1xf32>
    %724 = vector.multi_reduction <add>, %721, %cst_278 [1] : vector<1x64xf32> to vector<1xf32>
    %725 = vector.shape_cast %724 : vector<1xf32> to vector<1x1xf32>
    %cst_279 = arith.constant 6.400000e+01 : f32
    %726 = vector.broadcast %cst_279 : f32 to vector<1x1xf32>
    %727 = arith.divf %725, %726 : vector<1x1xf32>
    %728 = vector.broadcast %727 : vector<1x1xf32> to vector<1x64xf32>
    %729 = arith.subf %721, %728 : vector<1x64xf32>
    %730 = arith.mulf %729, %729 : vector<1x64xf32>
    %cst_280 = arith.constant dense<0.000000e+00> : vector<1xf32>
    %731 = vector.multi_reduction <add>, %730, %cst_280 [1] : vector<1x64xf32> to vector<1xf32>
    %732 = vector.shape_cast %731 : vector<1xf32> to vector<1x1xf32>
    %cst_281 = arith.constant 6.400000e+01 : f32
    %733 = vector.broadcast %cst_281 : f32 to vector<1x1xf32>
    %734 = arith.divf %732, %733 : vector<1x1xf32>
    %735 = vector.broadcast %727 : vector<1x1xf32> to vector<1x64xf32>
    %736 = arith.subf %721, %735 : vector<1x64xf32>
    %cst_282 = arith.constant 9.99999974E-6 : f32
    %737 = vector.broadcast %cst_282 : f32 to vector<1x1xf32>
    %738 = arith.addf %734, %737 : vector<1x1xf32>
    %739 = math.rsqrt %738 : vector<1x1xf32>
    %740 = vector.broadcast %739 : vector<1x1xf32> to vector<1x64xf32>
    %741 = arith.mulf %736, %740 : vector<1x64xf32>
    %742 = arith.mulf %741, %722 : vector<1x64xf32>
    %743 = arith.addf %742, %723 : vector<1x64xf32>
    %744 = arith.truncf %743 : vector<1x64xf32> to vector<1x64xbf16>
    %c0_283 = arith.constant 0 : index
    %c0_284 = arith.constant 0 : index
    %745 = vector.load %arg31[%c0_283, %c0_284] : memref<64x10xbf16, #tpu.memory_space<vmem>>, vector<64x10xbf16>
    %cst_285 = arith.constant dense<0.000000e+00> : vector<1x10xf32>
    %746 = tpu.matmul %744, %745, %cst_285 {dimension_numbers = #tpu.dot_dimension_numbers<[1], [0], [0], [1], [0, 0, 1, 1], [], []>} : vector<1x64xbf16>, vector<64x10xbf16>, vector<1x10xf32> -> vector<1x10xf32>
    %c0_286 = arith.constant 0 : index
    %c0_287 = arith.constant 0 : index
    %747 = vector.load %arg32[%c0_286, %c0_287] : memref<1x10xf32, #tpu.memory_space<vmem>>, vector<1x10xf32>
    %748 = arith.addf %746, %747 : vector<1x10xf32>
    %c1 = arith.constant 1 : index
    %c0_288 = arith.constant 0 : index
    %749 = vector.load %arg33[%c1, %c0_288] : memref<2x10xf32, #tpu.memory_space<vmem>>, vector<1x10xf32>
    tpu.vector_store %arg33[%c1, %c0_288], %748 {strides = array<i32>} : memref<2x10xf32, #tpu.memory_space<vmem>>, vector<1x10xf32>,
    return
  }
}

</mosaic_0001>

<llo_original>
// kernel: vit_forward.1
$region0: #{vit_forward.1}
  #allocation0 [shape = 'u32[]', space=smem, size = 0x4, offset = 0x4, fixed_abs, tag = 'smem constant byte address 0x4 - core index']
  #allocation1 [shape = 'u32[144,128]{1,0:T(1,128)}', space=vmem, size = 0x12000, scoped, tag = 'internal scratch']
  #allocation2 [shape = 'f32[64,64]{1,0:T(8,128)}', space=vmem, size = 0x8000, scoped, tag = 'scratch operand']
  %s0 = inlined_call_operand.smem [shape: u32[34], index: -1, kind: input, shape index: {}]
  %s1 = sld [smem:[%s0]]
  %s2 = scalar_lea.smem %s0, 1
  %s3 = sld [smem:[%s2]]
  %s4 = scalar_lea.smem %s0, 2
  %s5 = sld [smem:[%s4]]
  %s6 = scalar_lea.smem %s0, 3
  %s7 = sld [smem:[%s6]]
  %s8 = scalar_lea.smem %s0, 4
  %s9 = sld [smem:[%s8]]
  %s10 = scalar_lea.smem %s0, 5
  %s11 = sld [smem:[%s10]]
  %s12 = scalar_lea.smem %s0, 6
  %s13 = sld [smem:[%s12]]
  %s14 = scalar_lea.smem %s0, 7
  %s15 = sld [smem:[%s14]]
  %s16 = scalar_lea.smem %s0, 8
  %s17 = sld [smem:[%s16]]
  %s18 = scalar_lea.smem %s0, 9
  %s19 = sld [smem:[%s18]]
  %s20 = scalar_lea.smem %s0, 10
  %s21 = sld [smem:[%s20]]
  %s22 = scalar_lea.smem %s0, 11
  %s23 = sld [smem:[%s22]]
  %s24 = scalar_lea.smem %s0, 12
  %s25 = sld [smem:[%s24]]
  %s26 = scalar_lea.smem %s0, 13
  %s27 = sld [smem:[%s26]]
  %s28 = scalar_lea.smem %s0, 14
  %s29 = sld [smem:[%s28]]
  %s30 = scalar_lea.smem %s0, 15
  %s31 = sld [smem:[%s30]]
  %s32 = scalar_lea.smem %s0, 16
  %s33 = sld [smem:[%s32]]
  %s34 = scalar_lea.smem %s0, 17
  %s35 = sld [smem:[%s34]]
  %s36 = scalar_lea.smem %s0, 18
  %s37 = sld [smem:[%s36]]
  %s38 = scalar_lea.smem %s0, 19
  %s39 = sld [smem:[%s38]]
  %s40 = scalar_lea.smem %s0, 20
  %s41 = sld [smem:[%s40]]
  %s42 = scalar_lea.smem %s0, 21
  %s43 = sld [smem:[%s42]]
  %s44 = scalar_lea.smem %s0, 22
  %s45 = sld [smem:[%s44]]
  %s46 = scalar_lea.smem %s0, 23
  %s47 = sld [smem:[%s46]]
  %s48 = scalar_lea.smem %s0, 24
  %s49 = sld [smem:[%s48]]
  %s50 = scalar_lea.smem %s0, 25
  %s51 = sld [smem:[%s50]]
  %s52 = scalar_lea.smem %s0, 26
  %s53 = sld [smem:[%s52]]
  %s54 = scalar_lea.smem %s0, 27
  %s55 = sld [smem:[%s54]]
  %s56 = scalar_lea.smem %s0, 28
  %s57 = sld [smem:[%s56]]
  %s58 = scalar_lea.smem %s0, 29
  %s59 = sld [smem:[%s58]]
  %s60 = scalar_lea.smem %s0, 30
  %s61 = sld [smem:[%s60]]
  %s62 = scalar_lea.smem %s0, 31
  %s63 = sld [smem:[%s62]]
  %s64 = scalar_lea.smem %s0, 32
  %s65 = sld [smem:[%s64]]
  %s66 = scalar_lea.smem %s0, 33
  %s67 = sld [smem:[%s66]]
  %s68 = sld [smem:[#allocation0]]
  $region142: #{vit_forward.1} parent=0
    _
  %s70 = ssub.s32 1, %s68
  %s71 = scalar_select 0, %s70, %s68
  $region1: #{vit_forward.1} parent=0
    #allocation3 [shape = 'u8[1024]{0}', space=vmem, size = 0x400, scoped, tag = 'output window, operand 0, single buffered']
    #allocation4 [shape = 's32[1]{0}', space=sflag, size = 0x4, scoped, tag = 'scoped memory for vit_forward.1']
    %72 = vsyncpa [#allocation4], 0
    // Predicated region
    $region2: #{vit_forward.1} parent=1 // pred_check
      _
    $region3: #{vit_forward.1} parent=1 // pred_check_branch
      %74 = sbr.rel (0) target = $region5
    $region4: #{vit_forward.1} parent=1 // pred_region
      _
    $region5: #{vit_forward.1} parent=1 // pred_fallthru
      _
    // Predicated region
    $region6: #{vit_forward.1} parent=1 // pred_check
      _
    $region7: #{vit_forward.1} parent=1 // pred_check_branch
      %76 = sbr.rel (0) target = $region9
    $region8: #{vit_forward.1} parent=1 // pred_region
      _
    $region9: #{vit_forward.1} parent=1 // pred_fallthru
      _
    // Predicated region
    $region10: #{vit_forward.1} parent=1 // pred_check
      _
    $region11: #{vit_forward.1} parent=1 // pred_check_branch
      %78 = sbr.rel (0) target = $region13
    $region12: #{vit_forward.1} parent=1 // pred_region
      _
    $region13: #{vit_forward.1} parent=1 // pred_fallthru
      _
    // Predicated region
    $region14: #{vit_forward.1} parent=1 // pred_check
      _
    $region15: #{vit_forward.1} parent=1 // pred_check_branch
      %80 = sbr.rel (0) target = $region17
    $region16: #{vit_forward.1} parent=1 // pred_region
      _
    $region17: #{vit_forward.1} parent=1 // pred_fallthru
      _
    // Predicated region
    $region18: #{vit_forward.1} parent=1 // pred_check
      _
    $region19: #{vit_forward.1} parent=1 // pred_check_branch
      %82 = sbr.rel (0) target = $region21
    $region20: #{vit_forward.1} parent=1 // pred_region
      _
    $region21: #{vit_forward.1} parent=1 // pred_fallthru
      _
    // Predicated region
    $region22: #{vit_forward.1} parent=1 // pred_check
      _
    $region23: #{vit_forward.1} parent=1 // pred_check_branch
      %84 = sbr.rel (0) target = $region25
    $region24: #{vit_forward.1} parent=1 // pred_region
      _
    $region25: #{vit_forward.1} parent=1 // pred_fallthru
      _
    // Predicated region
    $region26: #{vit_forward.1} parent=1 // pred_check
      _
    $region27: #{vit_forward.1} parent=1 // pred_check_branch
      %86 = sbr.rel (0) target = $region29
    $region28: #{vit_forward.1} parent=1 // pred_region
      _
    $region29: #{vit_forward.1} parent=1 // pred_fallthru
      _
    // Predicated region
    $region30: #{vit_forward.1} parent=1 // pred_check
      _
    $region31: #{vit_forward.1} parent=1 // pred_check_branch
      %88 = sbr.rel (0) target = $region33
    $region32: #{vit_forward.1} parent=1 // pred_region
      _
    $region33: #{vit_forward.1} parent=1 // pred_fallthru
      _
    // Predicated region
    $region34: #{vit_forward.1} parent=1 // pred_check
      _
    $region35: #{vit_forward.1} parent=1 // pred_check_branch
      %90 = sbr.rel (0) target = $region37
    $region36: #{vit_forward.1} parent=1 // pred_region
      _
    $region37: #{vit_forward.1} parent=1 // pred_fallthru
      _
    // Predicated region
    $region38: #{vit_forward.1} parent=1 // pred_check
      _
    $region39: #{vit_forward.1} parent=1 // pred_check_branch
      %92 = sbr.rel (0) target = $region41
    $region40: #{vit_forward.1} parent=1 // pred_region
      _
    $region41: #{vit_forward.1} parent=1 // pred_fallthru
      _
    // Predicated region
    $region42: #{vit_forward.1} parent=1 // pred_check
      _
    $region43: #{vit_forward.1} parent=1 // pred_check_branch
      %94 = sbr.rel (0) target = $region45
    $region44: #{vit_forward.1} parent=1 // pred_region
      _
    $region45: #{vit_forward.1} parent=1 // pred_fallthru
      _
    // Predicated region
    $region46: #{vit_forward.1} parent=1 // pred_check
      _
    $region47: #{vit_forward.1} parent=1 // pred_check_branch
      %96 = sbr.rel (0) target = $region49
    $region48: #{vit_forward.1} parent=1 // pred_region
      _
    $region49: #{vit_forward.1} parent=1 // pred_fallthru
      _
    // Predicated region
    $region50: #{vit_forward.1} parent=1 // pred_check
      _
    $region51: #{vit_forward.1} parent=1 // pred_check_branch
      %98 = sbr.rel (0) target = $region53
    $region52: #{vit_forward.1} parent=1 // pred_region
      _
    $region53: #{vit_forward.1} parent=1 // pred_fallthru
      _
    // Predicated region
    $region54: #{vit_forward.1} parent=1 // pred_check
      _
    $region55: #{vit_forward.1} parent=1 // pred_check_branch
      %100 = sbr.rel (0) target = $region57
    $region56: #{vit_forward.1} parent=1 // pred_region
      _
    $region57: #{vit_forward.1} parent=1 // pred_fallthru
      _
    // Predicated region
    $region58: #{vit_forward.1} parent=1 // pred_check
      _
    $region59: #{vit_forward.1} parent=1 // pred_check_branch
      %102 = sbr.rel (0) target = $region61
    $region60: #{vit_forward.1} parent=1 // pred_region
      _
    $region61: #{vit_forward.1} parent=1 // pred_fallthru
      _
    // Predicated region
    $region62: #{vit_forward.1} parent=1 // pred_check
      _
    $region63: #{vit_forward.1} parent=1 // pred_check_branch
      %104 = sbr.rel (0) target = $region65
    $region64: #{vit_forward.1} parent=1 // pred_region
      _
    $region65: #{vit_forward.1} parent=1 // pred_fallthru
      _
    // Predicated region
    $region66: #{vit_forward.1} parent=1 // pred_check
      _
    $region67: #{vit_forward.1} parent=1 // pred_check_branch
      %106 = sbr.rel (0) target = $region69
    $region68: #{vit_forward.1} parent=1 // pred_region
      _
    $region69: #{vit_forward.1} parent=1 // pred_fallthru
      _
    // Predicated region
    $region70: #{vit_forward.1} parent=1 // pred_check
      _
    $region71: #{vit_forward.1} parent=1 // pred_check_branch
      %108 = sbr.rel (0) target = $region73
    $region72: #{vit_forward.1} parent=1 // pred_region
      _
    $region73: #{vit_forward.1} parent=1 // pred_fallthru
      _
    // Predicated region
    $region74: #{vit_forward.1} parent=1 // pred_check
      _
    $region75: #{vit_forward.1} parent=1 // pred_check_branch
      %110 = sbr.rel (0) target = $region77
    $region76: #{vit_forward.1} parent=1 // pred_region
      _
    $region77: #{vit_forward.1} parent=1 // pred_fallthru
      _
    // Predicated region
    $region78: #{vit_forward.1} parent=1 // pred_check
      _
    $region79: #{vit_forward.1} parent=1 // pred_check_branch
      %112 = sbr.rel (0) target = $region81
    $region80: #{vit_forward.1} parent=1 // pred_region
      _
    $region81: #{vit_forward.1} parent=1 // pred_fallthru
      _
    // Predicated region
    $region82: #{vit_forward.1} parent=1 // pred_check
      _
    $region83: #{vit_forward.1} parent=1 // pred_check_branch
      %114 = sbr.rel (0) target = $region85
    $region84: #{vit_forward.1} parent=1 // pred_region
      _
    $region85: #{vit_forward.1} parent=1 // pred_fallthru
      _
    // Predicated region
    $region86: #{vit_forward.1} parent=1 // pred_check
      _
    $region87: #{vit_forward.1} parent=1 // pred_check_branch
      %116 = sbr.rel (0) target = $region89
    $region88: #{vit_forward.1} parent=1 // pred_region
      _
    $region89: #{vit_forward.1} parent=1 // pred_fallthru
      _
    // Predicated region
    $region90: #{vit_forward.1} parent=1 // pred_check
      _
    $region91: #{vit_forward.1} parent=1 // pred_check_branch
      %118 = sbr.rel (0) target = $region93
    $region92: #{vit_forward.1} parent=1 // pred_region
      _
    $region93: #{vit_forward.1} parent=1 // pred_fallthru
      _
    // Predicated region
    $region94: #{vit_forward.1} parent=1 // pred_check
      _
    $region95: #{vit_forward.1} parent=1 // pred_check_branch
      %120 = sbr.rel (0) target = $region97
    $region96: #{vit_forward.1} parent=1 // pred_region
      _
    $region97: #{vit_forward.1} parent=1 // pred_fallthru
      _
    // Predicated region
    $region98: #{vit_forward.1} parent=1 // pred_check
      _
    $region99: #{vit_forward.1} parent=1 // pred_check_branch
      %122 = sbr.rel (0) target = $region101
    $region100: #{vit_forward.1} parent=1 // pred_region
      _
    $region101: #{vit_forward.1} parent=1 // pred_fallthru
      _
    // Predicated region
    $region102: #{vit_forward.1} parent=1 // pred_check
      _
    $region103: #{vit_forward.1} parent=1 // pred_check_branch
      %124 = sbr.rel (0) target = $region105
    $region104: #{vit_forward.1} parent=1 // pred_region
      _
    $region105: #{vit_forward.1} parent=1 // pred_fallthru
      _
    // Predicated region
    $region106: #{vit_forward.1} parent=1 // pred_check
      _
    $region107: #{vit_forward.1} parent=1 // pred_check_branch
      %126 = sbr.rel (0) target = $region109
    $region108: #{vit_forward.1} parent=1 // pred_region
      _
    $region109: #{vit_forward.1} parent=1 // pred_fallthru
      _
    // Predicated region
    $region110: #{vit_forward.1} parent=1 // pred_check
      _
    $region111: #{vit_forward.1} parent=1 // pred_check_branch
      %128 = sbr.rel (0) target = $region113
    $region112: #{vit_forward.1} parent=1 // pred_region
      _
    $region113: #{vit_forward.1} parent=1 // pred_fallthru
      _
    // Predicated region
    $region114: #{vit_forward.1} parent=1 // pred_check
      _
    $region115: #{vit_forward.1} parent=1 // pred_check_branch
      %130 = sbr.rel (0) target = $region117
    $region116: #{vit_forward.1} parent=1 // pred_region
      _
    $region117: #{vit_forward.1} parent=1 // pred_fallthru
      _
    // Predicated region
    $region118: #{vit_forward.1} parent=1 // pred_check
      _
    $region119: #{vit_forward.1} parent=1 // pred_check_branch
      %132 = sbr.rel (0) target = $region121
    $region120: #{vit_forward.1} parent=1 // pred_region
      _
    $region121: #{vit_forward.1} parent=1 // pred_fallthru
      _
    // Predicated region
    $region122: #{vit_forward.1} parent=1 // pred_check
      _
    $region123: #{vit_forward.1} parent=1 // pred_check_branch
      %134 = sbr.rel (0) target = $region125
    $region124: #{vit_forward.1} parent=1 // pred_region
      _
    $region125: #{vit_forward.1} parent=1 // pred_fallthru
      _
    // Predicated region
    $region126: #{vit_forward.1} parent=1 // pred_check
      _
    $region127: #{vit_forward.1} parent=1 // pred_check_branch
      %136 = sbr.rel (0) target = $region129
    $region128: #{vit_forward.1} parent=1 // pred_region
      _
    $region129: #{vit_forward.1} parent=1 // pred_fallthru
      _
    // Predicated region
    $region130: #{vit_forward.1} parent=1 // pred_check
      _
    $region131: #{vit_forward.1} parent=1 // pred_check_branch
      %138 = sbr.rel (0) target = $region133
    $region132: #{vit_forward.1} parent=1 // pred_region
      _
    $region133: #{vit_forward.1} parent=1 // pred_fallthru
      _
    %v140 = vld [vmem:[%s1] sm:$0xff]
    %v141 = vld [vmem:[%s1 + $0x8] sm:$0xff]
    %v142 = vld [vmem:[%s1 + $0x10] sm:$0xff]
    %v143 = vld [vmem:[%s1 + $0x18] sm:$0xff]
    %v144 = vld [vmem:[%s1 + $0x20] sm:$0xff]
    %v145 = vld [vmem:[%s1 + $0x28] sm:$0xff]
    %v146 = vld [vmem:[%s1 + $0x30] sm:$0xff]
    %v147 = vld [vmem:[%s1 + $0x38] sm:$0xff]
    %v148 = vpack.c.bf16 %v141, %v140
    %v149 = vpack.c.bf16 %v143, %v142
    %v150 = vpack.c.bf16 %v145, %v144
    %v151 = vpack.c.bf16 %v147, %v146
    %v152 = vld [vmem:[%s3] sm:$0xf]
    %v153 = vld [vmem:[%s3 + $0x4] sm:$0xf]
    %v154 = vld [vmem:[%s3 + $0x8] sm:$0xf]
    %v155 = vld [vmem:[%s3 + $0xc] sm:$0xf]
    %v156 = vld [vmem:[%s3 + $0x10] sm:$0xf]
    %v157 = vld [vmem:[%s3 + $0x14] sm:$0xf]
    %v158 = vld [vmem:[%s3 + $0x18] sm:$0x1]
    %v159 = vld [vmem:[%s5] sm:$0xff]
    %v160 = vld [vmem:[%s5 + $0x8] sm:$0xff]
    %v161 = vld [vmem:[%s5 + $0x10] sm:$0xff]
    %v162 = vld [vmem:[%s5 + $0x18] sm:$0xff]
    %v163 = vld [vmem:[%s5 + $0x20] sm:$0xff]
    %v164 = vld [vmem:[%s5 + $0x28] sm:$0xff]
    %v165 = vld [vmem:[%s5 + $0x30] sm:$0xff]
    %v166 = vld [vmem:[%s5 + $0x38] sm:$0xff]
    %v174 = vunpack.c.l.b16 %v152
    %v175 = vunpack.c.l.b16 %v153
    %v176 = vunpack.c.l.b16 %v154
    %v177 = vunpack.c.l.b16 %v155
    %v178 = vunpack.c.l.b16 %v156
    %v179 = vunpack.c.l.b16 %v157
    %v180 = vunpack.c.l.b16 %v158
    %v181 = vpack.c.b16 %v175, %v174
    %v182 = vpack.c.b16 %v177, %v176
    %v183 = vpack.c.b16 %v179, %v178
    %v184 = vpack.c.b16 %v180, %v180
    %vm188 = vcmask 400384
    %v190 = vsel %vm188, %v148, 0
    %v193 = vsel %vm188, %v149, 0
    %v196 = vsel %vm188, %v150, 0
    %v199 = vsel %vm188, %v151, 0
    %vm201 = vcmask 1040384
    %v202 = vsel 0, 4294967295, 65535
    %v203 = vsel %vm201, %v202, 0
    %v205 = vand.u32 %v184, %v203
    %207 = vmatprep.subr.bf16.mxu0 0
    %208 = vmatpush1.bf16.msra.mxu0 0
    %209 = vmatprep.subr.bf16.mxu0 0
    %210 = vmatpush1.bf16.msra.mxu0 0
    %211 = vmatprep.subr.bf16.mxu0 0
    %212 = vmatpush1.bf16.msra.mxu0 0
    %213 = vmatprep.subr.bf16.mxu0 0
    %214 = vmatpush1.bf16.msra.mxu0 0
    %215 = vmatprep.subr.bf16.mxu0 0
    %216 = vmatpush1.bf16.msra.mxu0 %v205
    %217 = vmatprep.subr.bf16.mxu0 0
    %218 = vmatpush1.bf16.msra.mxu0 %v183
    %219 = vmatprep.subr.bf16.mxu0 0
    %220 = vmatpush1.bf16.msra.mxu0 %v182
    %221 = vmatprep.subr.bf16.mxu0 0
    %222 = vmatpush1.bf16.msra.mxu0 %v181
    %223 = vmatprep.subr.bf16.mxu0 0
    %224 = vmatpush2.bf16.msra.mxu0 0
    %225 = vmatprep.subr.bf16.mxu0 0
    %226 = vmatpush2.bf16.msra.mxu0 0
    %227 = vmatprep.subr.bf16.mxu0 0
    %228 = vmatpush2.bf16.msra.mxu0 0
    %229 = vmatprep.subr.bf16.mxu0 0
    %230 = vmatpush2.bf16.msra.mxu0 0
    %231 = vmatprep.subr.bf16.mxu0 0
    %232 = vmatpush2.bf16.msra.mxu0 0
    %233 = vmatprep.subr.bf16.mxu0 0
    %234 = vmatpush2.bf16.msra.mxu0 0
    %235 = vmatprep.subr.bf16.mxu0 0
    %236 = vmatpush2.bf16.msra.mxu0 0
    %237 = vmatprep.subr.bf16.mxu0 0
    %238 = vmatpush2.bf16.msra.mxu0 0
    %239 = vmatprep.mubr.bf16.mxu0 0
    %240 = vmatmul.mubr.bf16.gmra.mxu0 %v190
    %v241 = vpop.f32.mrf.mxu0
    %v242 = vadd.f32 %v159, %v241
    %v243 = vpop.f32.mrf.mxu0
    %v244 = vpop.f32.mrf.mxu0
    %v245 = vadd.f32 %v160, %v244
    %v246 = vpop.f32.mrf.mxu0
    %247 = vmatprep.mubr.bf16.mxu0 0
    %248 = vmatmul.mubr.bf16.gmra.mxu0 %v193
    %v249 = vpop.f32.mrf.mxu0
    %v250 = vadd.f32 %v161, %v249
    %v251 = vpop.f32.mrf.mxu0
    %v252 = vpop.f32.mrf.mxu0
    %v253 = vadd.f32 %v162, %v252
    %v254 = vpop.f32.mrf.mxu0
    %255 = vmatprep.mubr.bf16.mxu0 0
    %256 = vmatmul.mubr.bf16.gmra.mxu0 %v196
    %v257 = vpop.f32.mrf.mxu0
    %v258 = vadd.f32 %v163, %v257
    %v259 = vpop.f32.mrf.mxu0
    %v260 = vpop.f32.mrf.mxu0
    %v261 = vadd.f32 %v164, %v260
    %v262 = vpop.f32.mrf.mxu0
    %263 = vmatprep.mubr.bf16.mxu0 0
    %264 = vmatmul.mubr.bf16.gmra.mxu0 %v199
    %v265 = vpop.f32.mrf.mxu0
    %v266 = vadd.f32 %v165, %v265
    %v267 = vpop.f32.mrf.mxu0
    %v268 = vpop.f32.mrf.mxu0
    %v269 = vadd.f32 %v166, %v268
    %v270 = vpop.f32.mrf.mxu0
    %271 = vdwg.mxu0
    %vm272 = vcmask 523264
    %273 = vst.msk [vmem:[#allocation2] sm:$0xff] %vm272, %v242
    %274 = vst.msk [vmem:[#allocation2 + $0x8] sm:$0xff] %vm272, %v245
    %275 = vst.msk [vmem:[#allocation2 + $0x10] sm:$0xff] %vm272, %v250
    %276 = vst.msk [vmem:[#allocation2 + $0x18] sm:$0xff] %vm272, %v253
    %277 = vst.msk [vmem:[#allocation2 + $0x20] sm:$0xff] %vm272, %v258
    %278 = vst.msk [vmem:[#allocation2 + $0x28] sm:$0xff] %vm272, %v261
    %279 = vst.msk [vmem:[#allocation2 + $0x30] sm:$0xff] %vm272, %v266
    %280 = vst.msk [vmem:[#allocation2 + $0x38] sm:$0xff] %vm272, %v269
    %v281 = vlaneseq
    %v282 = vand.u32 %v281, 127
    %vm283 = vcmp.lt.s32.totalorder %v282, 26
    %v284 = vld [vmem:[#allocation2] sm:$0xff]
    %v285 = vld [vmem:[#allocation2 + $0x8] sm:$0xff]
    %v286 = vld [vmem:[#allocation2 + $0x10] sm:$0xff]
    %v287 = vld [vmem:[#allocation2 + $0x18] sm:$0xff]
    %v288 = vld [vmem:[#allocation2 + $0x20] sm:$0xff]
    %v289 = vld [vmem:[#allocation2 + $0x28] sm:$0xff]
    %v290 = vld [vmem:[#allocation2 + $0x30] sm:$0xff]
    %v291 = vld [vmem:[#allocation2 + $0x38] sm:$0xff]
    %v292 = vld [vmem:[%s7] sm:$0x1]
    %v293 = vld [vmem:[%s9] sm:$0x1]
    %v294 = vsel %vm272, %v284, 0.0
    %295 = vadd.xlane.f32.xlu0 %v294
    %v296 = vpop.xlane.xlu0 %295
    %v297 = vsel %vm272, %v285, 0.0
    %298 = vadd.xlane.f32.xlu0 %v297
    %v299 = vpop.xlane.xlu0 %298
    %v300 = vsel %vm272, %v286, 0.0
    %301 = vadd.xlane.f32.xlu0 %v300
    %v302 = vpop.xlane.xlu0 %301
    %v303 = vsel %vm272, %v287, 0.0
    %304 = vadd.xlane.f32.xlu0 %v303
    %v305 = vpop.xlane.xlu0 %304
    %v306 = vsel %vm272, %v288, 0.0
    %307 = vadd.xlane.f32.xlu0 %v306
    %v308 = vpop.xlane.xlu0 %307
    %v309 = vsel %vm272, %v289, 0.0
    %310 = vadd.xlane.f32.xlu0 %v309
    %v311 = vpop.xlane.xlu0 %310
    %v312 = vsel %vm272, %v290, 0.0
    %313 = vadd.xlane.f32.xlu0 %v312
    %v314 = vpop.xlane.xlu0 %313
    %v315 = vsel %vm272, %v291, 0.0
    %316 = vadd.xlane.f32.xlu0 %v315
    %v317 = vpop.xlane.xlu0 %316
    %v318 = vrcp.pop 64.0
    %v319 = vmul.f32 %v296, %v318
    %v320 = vmul.f32 %v299, %v318
    %v321 = vmul.f32 %v302, %v318
    %v322 = vmul.f32 %v305, %v318
    %v323 = vmul.f32 %v308, %v318
    %v324 = vmul.f32 %v311, %v318
    %v325 = vmul.f32 %v314, %v318
    %v326 = vmul.f32 %v317, %v318
    %v327 = vsub.f32 %v284, %v319
    %v328 = vsub.f32 %v285, %v320
    %v329 = vsub.f32 %v286, %v321
    %v330 = vsub.f32 %v287, %v322
    %v331 = vsub.f32 %v288, %v323
    %v332 = vsub.f32 %v289, %v324
    %v333 = vsub.f32 %v290, %v325
    %v334 = vsub.f32 %v291, %v326
    %v335 = vmul.f32 %v327, %v327
    %v336 = vmul.f32 %v328, %v328
    %v337 = vmul.f32 %v329, %v329
    %v338 = vmul.f32 %v330, %v330
    %v339 = vmul.f32 %v331, %v331
    %v340 = vmul.f32 %v332, %v332
    %v341 = vmul.f32 %v333, %v333
    %v342 = vmul.f32 %v334, %v334
    %v343 = vsel %vm272, %v335, 0.0
    %344 = vadd.xlane.f32.xlu0 %v343
    %v345 = vpop.xlane.xlu0 %344
    %v346 = vsel %vm272, %v336, 0.0
    %347 = vadd.xlane.f32.xlu0 %v346
    %v348 = vpop.xlane.xlu0 %347
    %v349 = vsel %vm272, %v337, 0.0
    %350 = vadd.xlane.f32.xlu0 %v349
    %v351 = vpop.xlane.xlu0 %350
    %v352 = vsel %vm272, %v338, 0.0
    %353 = vadd.xlane.f32.xlu0 %v352
    %v354 = vpop.xlane.xlu0 %353
    %v355 = vsel %vm272, %v339, 0.0
    %356 = vadd.xlane.f32.xlu0 %v355
    %v357 = vpop.xlane.xlu0 %356
    %v358 = vsel %vm272, %v340, 0.0
    %359 = vadd.xlane.f32.xlu0 %v358
    %v360 = vpop.xlane.xlu0 %359
    %v361 = vsel %vm272, %v341, 0.0
    %362 = vadd.xlane.f32.xlu0 %v361
    %v363 = vpop.xlane.xlu0 %362
    %v364 = vsel %vm272, %v342, 0.0
    %365 = vadd.xlane.f32.xlu0 %v364
    %v366 = vpop.xlane.xlu0 %365
    %v367 = vmul.f32 %v345, %v318
    %v368 = vmul.f32 %v348, %v318
    %v369 = vmul.f32 %v351, %v318
    %v370 = vmul.f32 %v354, %v318
    %v371 = vmul.f32 %v357, %v318
    %v372 = vmul.f32 %v360, %v318
    %v373 = vmul.f32 %v363, %v318
    %v374 = vmul.f32 %v366, %v318
    %v375 = vadd.f32 %v367, 1e-05
    %v376 = vadd.f32 %v368, 1e-05
    %v377 = vadd.f32 %v369, 1e-05
    %v378 = vadd.f32 %v370, 1e-05
    %v379 = vadd.f32 %v371, 1e-05
    %v380 = vadd.f32 %v372, 1e-05
    %v381 = vadd.f32 %v373, 1e-05
    %v382 = vadd.f32 %v374, 1e-05
    %v383 = vrsqrt.pop %v375
    %v384 = vrsqrt.pop %v376
    %v385 = vrsqrt.pop %v377
    %v386 = vrsqrt.pop %v378
    %v387 = vrsqrt.pop %v379
    %v388 = vrsqrt.pop %v380
    %v389 = vrsqrt.pop %v381
    %v390 = vrsqrt.pop %v382
    %v391 = vmul.f32 %v327, %v383
    %v392 = vmul.f32 %v328, %v384
    %v393 = vmul.f32 %v329, %v385
    %v394 = vmul.f32 %v330, %v386
    %v395 = vmul.f32 %v331, %v387
    %v396 = vmul.f32 %v332, %v388
    %v397 = vmul.f32 %v333, %v389
    %v398 = vmul.f32 %v334, %v390
    %v400 = vlaneseq
    %v401 = vshrl.u32 %v400, 7
    %v402 = vsub.s32 0, %v401
    %v403 = vrot.slane %v292, %v402
    %v405 = vmul.f32 %v391, %v403
    %v406 = vmul.f32 %v392, %v403
    %v407 = vmul.f32 %v393, %v403
    %v408 = vmul.f32 %v394, %v403
    %v409 = vmul.f32 %v395, %v403
    %v410 = vmul.f32 %v396, %v403
    %v411 = vmul.f32 %v397, %v403
    %v412 = vmul.f32 %v398, %v403
    %v414 = vlaneseq
    %v415 = vshrl.u32 %v414, 7
    %v416 = vsub.s32 0, %v415
    %v417 = vrot.slane %v293, %v416
    %v419 = vadd.f32 %v405, %v417
    %v420 = vadd.f32 %v406, %v417
    %v421 = vadd.f32 %v407, %v417
    %v422 = vadd.f32 %v408, %v417
    %v423 = vadd.f32 %v409, %v417
    %v424 = vadd.f32 %v410, %v417
    %v425 = vadd.f32 %v411, %v417
    %v426 = vadd.f32 %v412, %v417
    %v427 = vpack.c.bf16 %v420, %v419
    %v428 = vpack.c.bf16 %v422, %v421
    %v429 = vpack.c.bf16 %v424, %v423
    %v430 = vpack.c.bf16 %v426, %v425
    %v431 = vld [vmem:[%s11] sm:$0xf]
    %v432 = vld [vmem:[%s11 + $0x4] sm:$0xf]
    %v433 = vld [vmem:[%s11 + $0x8] sm:$0xf]
    %v434 = vld [vmem:[%s11 + $0xc] sm:$0xf]
    %v435 = vld [vmem:[%s11 + $0x10] sm:$0xf]
    %v436 = vld [vmem:[%s11 + $0x14] sm:$0xf]
    %v437 = vld [vmem:[%s11 + $0x18] sm:$0xf]
    %v438 = vld [vmem:[%s11 + $0x1c] sm:$0xf]
    %v447 = vunpack.c.l.b16 %v431
    %v448 = vunpack.c.l.b16 %v432
    %v449 = vunpack.c.l.b16 %v433
    %v450 = vunpack.c.l.b16 %v434
    %v451 = vunpack.c.l.b16 %v435
    %v452 = vunpack.c.l.b16 %v436
    %v453 = vunpack.c.l.b16 %v437
    %v454 = vunpack.c.l.b16 %v438
    %v455 = vpack.c.b16 %v448, %v447
    %v456 = vpack.c.b16 %v450, %v449
    %v457 = vpack.c.b16 %v452, %v451
    %v458 = vpack.c.b16 %v454, %v453
    %v464 = vsel %vm272, %v427, 0
    %v467 = vsel %vm272, %v428, 0
    %v470 = vsel %vm272, %v429, 0
    %v473 = vsel %vm272, %v430, 0
    %475 = vmatprep.subr.bf16.mxu0 0
    %476 = vmatpush1.bf16.msra.mxu0 0
    %477 = vmatprep.subr.bf16.mxu0 0
    %478 = vmatpush1.bf16.msra.mxu0 0
    %479 = vmatprep.subr.bf16.mxu0 0
    %480 = vmatpush1.bf16.msra.mxu0 0
    %481 = vmatprep.subr.bf16.mxu0 0
    %482 = vmatpush1.bf16.msra.mxu0 0
    %483 = vmatprep.subr.bf16.mxu0 0
    %484 = vmatpush1.bf16.msra.mxu0 %v458
    %485 = vmatprep.subr.bf16.mxu0 0
    %486 = vmatpush1.bf16.msra.mxu0 %v457
    %487 = vmatprep.subr.bf16.mxu0 0
    %488 = vmatpush1.bf16.msra.mxu0 %v456
    %489 = vmatprep.subr.bf16.mxu0 0
    %490 = vmatpush1.bf16.msra.mxu0 %v455
    %491 = vmatprep.subr.bf16.mxu0 0
    %492 = vmatpush2.bf16.msra.mxu0 0
    %493 = vmatprep.subr.bf16.mxu0 0
    %494 = vmatpush2.bf16.msra.mxu0 0
    %495 = vmatprep.subr.bf16.mxu0 0
    %496 = vmatpush2.bf16.msra.mxu0 0
    %497 = vmatprep.subr.bf16.mxu0 0
    %498 = vmatpush2.bf16.msra.mxu0 0
    %499 = vmatprep.subr.bf16.mxu0 0
    %500 = vmatpush2.bf16.msra.mxu0 0
    %501 = vmatprep.subr.bf16.mxu0 0
    %502 = vmatpush2.bf16.msra.mxu0 0
    %503 = vmatprep.subr.bf16.mxu0 0
    %504 = vmatpush2.bf16.msra.mxu0 0
    %505 = vmatprep.subr.bf16.mxu0 0
    %506 = vmatpush2.bf16.msra.mxu0 0
    %507 = vmatprep.mubr.bf16.mxu0 0
    %508 = vmatmul.mubr.bf16.gmra.mxu0 %v464
    %v509 = vpop.f32.mrf.mxu0
    %v510 = vadd.f32 0.0, %v509
    %v511 = vpop.f32.mrf.mxu0
    %v512 = vpop.f32.mrf.mxu0
    %v513 = vadd.f32 0.0, %v512
    %v514 = vpop.f32.mrf.mxu0
    %515 = vmatprep.mubr.bf16.mxu0 0
    %516 = vmatmul.mubr.bf16.gmra.mxu0 %v467
    %v517 = vpop.f32.mrf.mxu0
    %v518 = vadd.f32 0.0, %v517
    %v519 = vpop.f32.mrf.mxu0
    %v520 = vpop.f32.mrf.mxu0
    %v521 = vadd.f32 0.0, %v520
    %v522 = vpop.f32.mrf.mxu0
    %523 = vmatprep.mubr.bf16.mxu0 0
    %524 = vmatmul.mubr.bf16.gmra.mxu0 %v470
    %v525 = vpop.f32.mrf.mxu0
    %v526 = vadd.f32 0.0, %v525
    %v527 = vpop.f32.mrf.mxu0
    %v528 = vpop.f32.mrf.mxu0
    %v529 = vadd.f32 0.0, %v528
    %v530 = vpop.f32.mrf.mxu0
    %531 = vmatprep.mubr.bf16.mxu0 0
    %532 = vmatmul.mubr.bf16.gmra.mxu0 %v473
    %v533 = vpop.f32.mrf.mxu0
    %v534 = vadd.f32 0.0, %v533
    %v535 = vpop.f32.mrf.mxu0
    %v536 = vpop.f32.mrf.mxu0
    %v537 = vadd.f32 0.0, %v536
    %v538 = vpop.f32.mrf.mxu0
    %539 = vdwg.mxu0
    %v540 = vld [vmem:[%s13] sm:$0xf]
    %v541 = vld [vmem:[%s13 + $0x4] sm:$0xf]
    %v542 = vld [vmem:[%s13 + $0x8] sm:$0xf]
    %v543 = vld [vmem:[%s13 + $0xc] sm:$0xf]
    %v544 = vld [vmem:[%s13 + $0x10] sm:$0xf]
    %v545 = vld [vmem:[%s13 + $0x14] sm:$0xf]
    %v546 = vld [vmem:[%s13 + $0x18] sm:$0xf]
    %v547 = vld [vmem:[%s13 + $0x1c] sm:$0xf]
    %v556 = vunpack.c.l.b16 %v540
    %v557 = vunpack.c.l.b16 %v541
    %v558 = vunpack.c.l.b16 %v542
    %v559 = vunpack.c.l.b16 %v543
    %v560 = vunpack.c.l.b16 %v544
    %v561 = vunpack.c.l.b16 %v545
    %v562 = vunpack.c.l.b16 %v546
    %v563 = vunpack.c.l.b16 %v547
    %v564 = vpack.c.b16 %v557, %v556
    %v565 = vpack.c.b16 %v559, %v558
    %v566 = vpack.c.b16 %v561, %v560
    %v567 = vpack.c.b16 %v563, %v562
    %572 = vmatprep.subr.bf16.mxu0 0
    %573 = vmatpush1.bf16.msra.mxu0 0
    %574 = vmatprep.subr.bf16.mxu0 0
    %575 = vmatpush1.bf16.msra.mxu0 0
    %576 = vmatprep.subr.bf16.mxu0 0
    %577 = vmatpush1.bf16.msra.mxu0 0
    %578 = vmatprep.subr.bf16.mxu0 0
    %579 = vmatpush1.bf16.msra.mxu0 0
    %580 = vmatprep.subr.bf16.mxu0 0
    %581 = vmatpush1.bf16.msra.mxu0 %v567
    %582 = vmatprep.subr.bf16.mxu0 0
    %583 = vmatpush1.bf16.msra.mxu0 %v566
    %584 = vmatprep.subr.bf16.mxu0 0
    %585 = vmatpush1.bf16.msra.mxu0 %v565
    %586 = vmatprep.subr.bf16.mxu0 0
    %587 = vmatpush1.bf16.msra.mxu0 %v564
    %588 = vmatprep.subr.bf16.mxu0 0
    %589 = vmatpush2.bf16.msra.mxu0 0
    %590 = vmatprep.subr.bf16.mxu0 0
    %591 = vmatpush2.bf16.msra.mxu0 0
    %592 = vmatprep.subr.bf16.mxu0 0
    %593 = vmatpush2.bf16.msra.mxu0 0
    %594 = vmatprep.subr.bf16.mxu0 0
    %595 = vmatpush2.bf16.msra.mxu0 0
    %596 = vmatprep.subr.bf16.mxu0 0
    %597 = vmatpush2.bf16.msra.mxu0 0
    %598 = vmatprep.subr.bf16.mxu0 0
    %599 = vmatpush2.bf16.msra.mxu0 0
    %600 = vmatprep.subr.bf16.mxu0 0
    %601 = vmatpush2.bf16.msra.mxu0 0
    %602 = vmatprep.subr.bf16.mxu0 0
    %603 = vmatpush2.bf16.msra.mxu0 0
    %604 = vmatprep.mubr.bf16.mxu0 0
    %605 = vmatmul.mubr.bf16.gmra.mxu0 %v464
    %v606 = vpop.f32.mrf.mxu0
    %v607 = vadd.f32 0.0, %v606
    %v608 = vpop.f32.mrf.mxu0
    %v609 = vpop.f32.mrf.mxu0
    %v610 = vadd.f32 0.0, %v609
    %v611 = vpop.f32.mrf.mxu0
    %612 = vmatprep.mubr.bf16.mxu0 0
    %613 = vmatmul.mubr.bf16.gmra.mxu0 %v467
    %v614 = vpop.f32.mrf.mxu0
    %v615 = vadd.f32 0.0, %v614
    %v616 = vpop.f32.mrf.mxu0
    %v617 = vpop.f32.mrf.mxu0
    %v618 = vadd.f32 0.0, %v617
    %v619 = vpop.f32.mrf.mxu0
    %620 = vmatprep.mubr.bf16.mxu0 0
    %621 = vmatmul.mubr.bf16.gmra.mxu0 %v470
    %v622 = vpop.f32.mrf.mxu0
    %v623 = vadd.f32 0.0, %v622
    %v624 = vpop.f32.mrf.mxu0
    %v625 = vpop.f32.mrf.mxu0
    %v626 = vadd.f32 0.0, %v625
    %v627 = vpop.f32.mrf.mxu0
    %628 = vmatprep.mubr.bf16.mxu0 0
    %629 = vmatmul.mubr.bf16.gmra.mxu0 %v473
    %v630 = vpop.f32.mrf.mxu0
    %v631 = vadd.f32 0.0, %v630
    %v632 = vpop.f32.mrf.mxu0
    %v633 = vpop.f32.mrf.mxu0
    %v634 = vadd.f32 0.0, %v633
    %v635 = vpop.f32.mrf.mxu0
    %636 = vdwg.mxu0
    %v637 = vld [vmem:[%s15] sm:$0xf]
    %v638 = vld [vmem:[%s15 + $0x4] sm:$0xf]
    %v639 = vld [vmem:[%s15 + $0x8] sm:$0xf]
    %v640 = vld [vmem:[%s15 + $0xc] sm:$0xf]
    %v641 = vld [vmem:[%s15 + $0x10] sm:$0xf]
    %v642 = vld [vmem:[%s15 + $0x14] sm:$0xf]
    %v643 = vld [vmem:[%s15 + $0x18] sm:$0xf]
    %v644 = vld [vmem:[%s15 + $0x1c] sm:$0xf]
    %v653 = vunpack.c.l.b16 %v637
    %v654 = vunpack.c.l.b16 %v638
    %v655 = vunpack.c.l.b16 %v639
    %v656 = vunpack.c.l.b16 %v640
    %v657 = vunpack.c.l.b16 %v641
    %v658 = vunpack.c.l.b16 %v642
    %v659 = vunpack.c.l.b16 %v643
    %v660 = vunpack.c.l.b16 %v644
    %v661 = vpack.c.b16 %v654, %v653
    %v662 = vpack.c.b16 %v656, %v655
    %v663 = vpack.c.b16 %v658, %v657
    %v664 = vpack.c.b16 %v660, %v659
    %669 = vmatprep.subr.bf16.mxu0 0
    %670 = vmatpush1.bf16.msra.mxu0 0
    %671 = vmatprep.subr.bf16.mxu0 0
    %672 = vmatpush1.bf16.msra.mxu0 0
    %673 = vmatprep.subr.bf16.mxu0 0
    %674 = vmatpush1.bf16.msra.mxu0 0
    %675 = vmatprep.subr.bf16.mxu0 0
    %676 = vmatpush1.bf16.msra.mxu0 0
    %677 = vmatprep.subr.bf16.mxu0 0
    %678 = vmatpush1.bf16.msra.mxu0 %v664
    %679 = vmatprep.subr.bf16.mxu0 0
    %680 = vmatpush1.bf16.msra.mxu0 %v663
    %681 = vmatprep.subr.bf16.mxu0 0
    %682 = vmatpush1.bf16.msra.mxu0 %v662
    %683 = vmatprep.subr.bf16.mxu0 0
    %684 = vmatpush1.bf16.msra.mxu0 %v661
    %685 = vmatprep.subr.bf16.mxu0 0
    %686 = vmatpush2.bf16.msra.mxu0 0
    %687 = vmatprep.subr.bf16.mxu0 0
    %688 = vmatpush2.bf16.msra.mxu0 0
    %689 = vmatprep.subr.bf16.mxu0 0
    %690 = vmatpush2.bf16.msra.mxu0 0
    %691 = vmatprep.subr.bf16.mxu0 0
    %692 = vmatpush2.bf16.msra.mxu0 0
    %693 = vmatprep.subr.bf16.mxu0 0
    %694 = vmatpush2.bf16.msra.mxu0 0
    %695 = vmatprep.subr.bf16.mxu0 0
    %696 = vmatpush2.bf16.msra.mxu0 0
    %697 = vmatprep.subr.bf16.mxu0 0
    %698 = vmatpush2.bf16.msra.mxu0 0
    %699 = vmatprep.subr.bf16.mxu0 0
    %700 = vmatpush2.bf16.msra.mxu0 0
    %701 = vmatprep.mubr.bf16.mxu0 0
    %702 = vmatmul.mubr.bf16.gmra.mxu0 %v464
    %v703 = vpop.f32.mrf.mxu0
    %v704 = vadd.f32 0.0, %v703
    %v705 = vpop.f32.mrf.mxu0
    %v706 = vpop.f32.mrf.mxu0
    %v707 = vadd.f32 0.0, %v706
    %v708 = vpop.f32.mrf.mxu0
    %709 = vmatprep.mubr.bf16.mxu0 0
    %710 = vmatmul.mubr.bf16.gmra.mxu0 %v467
    %v711 = vpop.f32.mrf.mxu0
    %v712 = vadd.f32 0.0, %v711
    %v713 = vpop.f32.mrf.mxu0
    %v714 = vpop.f32.mrf.mxu0
    %v715 = vadd.f32 0.0, %v714
    %v716 = vpop.f32.mrf.mxu0
    %717 = vmatprep.mubr.bf16.mxu0 0
    %718 = vmatmul.mubr.bf16.gmra.mxu0 %v470
    %v719 = vpop.f32.mrf.mxu0
    %v720 = vadd.f32 0.0, %v719
    %v721 = vpop.f32.mrf.mxu0
    %v722 = vpop.f32.mrf.mxu0
    %v723 = vadd.f32 0.0, %v722
    %v724 = vpop.f32.mrf.mxu0
    %725 = vmatprep.mubr.bf16.mxu0 0
    %726 = vmatmul.mubr.bf16.gmra.mxu0 %v473
    %v727 = vpop.f32.mrf.mxu0
    %v728 = vadd.f32 0.0, %v727
    %v729 = vpop.f32.mrf.mxu0
    %v730 = vpop.f32.mrf.mxu0
    %v731 = vadd.f32 0.0, %v730
    %v732 = vpop.f32.mrf.mxu0
    %733 = vdwg.mxu0
    %v734 = vld [vmem:[%s17] sm:$0xf]
    %v735 = vld [vmem:[%s17 + $0x4] sm:$0xf]
    %v736 = vld [vmem:[%s17 + $0x8] sm:$0xf]
    %v737 = vld [vmem:[%s17 + $0xc] sm:$0xf]
    %v738 = vld [vmem:[%s17 + $0x10] sm:$0xf]
    %v739 = vld [vmem:[%s17 + $0x14] sm:$0xf]
    %v740 = vld [vmem:[%s17 + $0x18] sm:$0xf]
    %v741 = vld [vmem:[%s17 + $0x1c] sm:$0xf]
    %v742 = vld [vmem:[%s19] sm:$0x1]
    %v743 = vpack.c.bf16 %v513, %v510
    %v744 = vpack.c.bf16 %v521, %v518
    %v745 = vpack.c.bf16 %v610, %v607
    %v746 = vpack.c.bf16 %v618, %v615
    %v747 = vpack.c.bf16 %v707, %v704
    %v748 = vpack.c.bf16 %v715, %v712
    %vm749 = vcmask 130048
    %v751 = vsel %vm749, %v743, 0
    %v754 = vsel %vm749, %v744, 0
    %v757 = vsel %vm749, %v745, 0
    %v760 = vsel %vm749, %v746, 0
    %762 = vmatprep.subr.bf16.mxu0 0
    %763 = vmatpush1.bf16.xpose.msra.mxu0 0
    %764 = vmatprep.subr.bf16.mxu0 0
    %765 = vmatpush1.bf16.xpose.msra.mxu0 0
    %766 = vmatprep.subr.bf16.mxu0 0
    %767 = vmatpush1.bf16.xpose.msra.mxu0 0
    %768 = vmatprep.subr.bf16.mxu0 0
    %769 = vmatpush1.bf16.xpose.msra.mxu0 0
    %770 = vmatprep.subr.bf16.mxu0 0
    %771 = vmatpush1.bf16.xpose.msra.mxu0 0
    %772 = vmatprep.subr.bf16.mxu0 0
    %773 = vmatpush1.bf16.xpose.msra.mxu0 0
    %774 = vmatprep.subr.bf16.mxu0 0
    %775 = vmatpush1.bf16.xpose.msra.mxu0 %v760
    %776 = vmatprep.subr.bf16.mxu0 0
    %777 = vmatpush1.bf16.xpose.msra.mxu0 %v757
    %778 = vmatprep.subr.bf16.mxu0 0
    %779 = vmatpush2.bf16.xpose.msra.mxu0 0
    %780 = vmatprep.subr.bf16.mxu0 0
    %781 = vmatpush2.bf16.xpose.msra.mxu0 0
    %782 = vmatprep.subr.bf16.mxu0 0
    %783 = vmatpush2.bf16.xpose.msra.mxu0 0
    %784 = vmatprep.subr.bf16.mxu0 0
    %785 = vmatpush2.bf16.xpose.msra.mxu0 0
    %786 = vmatprep.subr.bf16.mxu0 0
    %787 = vmatpush2.bf16.xpose.msra.mxu0 0
    %788 = vmatprep.subr.bf16.mxu0 0
    %789 = vmatpush2.bf16.xpose.msra.mxu0 0
    %790 = vmatprep.subr.bf16.mxu0 0
    %791 = vmatpush2.bf16.xpose.msra.mxu0 0
    %792 = vmatprep.subr.bf16.mxu0 0
    %793 = vmatpush2.bf16.xpose.msra.mxu0 0
    %794 = vmatprep.mubr.bf16.mxu0 0
    %795 = vmatmul.mubr.bf16.gmra.mxu0 %v751
    %v796 = vpop.f32.mrf.mxu0
    %v797 = vadd.f32 0.0, %v796
    %v798 = vpop.f32.mrf.mxu0
    %v799 = vpop.f32.mrf.mxu0
    %v800 = vadd.f32 0.0, %v799
    %v801 = vpop.f32.mrf.mxu0
    %802 = vmatprep.mubr.bf16.mxu0 0
    %803 = vmatmul.mubr.bf16.gmra.mxu0 %v754
    %v804 = vpop.f32.mrf.mxu0
    %v805 = vadd.f32 0.0, %v804
    %v806 = vpop.f32.mrf.mxu0
    %v807 = vpop.f32.mrf.mxu0
    %v808 = vadd.f32 0.0, %v807
    %v809 = vpop.f32.mrf.mxu0
    %810 = vdwg.mxu0
    %v811 = vmul.f32 %v797, 0.125
    %v812 = vmul.f32 %v800, 0.125
    %v813 = vmul.f32 %v805, 0.125
    %v814 = vmul.f32 %v808, 0.125
    %v815 = vsel %vm283, %v811, -1e+30
    %v816 = vsel %vm283, %v812, -1e+30
    %v817 = vsel %vm283, %v813, -1e+30
    %v818 = vsel %vm283, %v814, -1e+30
    %vm819 = vcmask 261120
    %v820 = vsel %vm819, %v815, -inf
    %821 = vmax.xlane.f32.xlu0 %v820
    %v822 = vpop.xlane.xlu0 %821
    %v823 = vsel %vm819, %v816, -inf
    %824 = vmax.xlane.f32.xlu0 %v823
    %v825 = vpop.xlane.xlu0 %824
    %v826 = vsel %vm819, %v817, -inf
    %827 = vmax.xlane.f32.xlu0 %v826
    %v828 = vpop.xlane.xlu0 %827
    %v829 = vsel %vm819, %v818, -inf
    %830 = vmax.xlane.f32.xlu0 %v829
    %v831 = vpop.xlane.xlu0 %830
    %v832 = vsub.f32 %v815, %v822
    %v833 = vsub.f32 %v816, %v825
    %v834 = vsub.f32 %v817, %v828
    %v835 = vsub.f32 %v818, %v831
    %v836 = vmul.f32 %v832, 1.442695
    %v837 = vpow.pop %v836
    %v838 = vmul.f32 %v833, 1.442695
    %v839 = vpow.pop %v838
    %v840 = vmul.f32 %v834, 1.442695
    %v841 = vpow.pop %v840
    %v842 = vmul.f32 %v835, 1.442695
    %v843 = vpow.pop %v842
    %v844 = vsel %vm819, %v837, 0.0
    %845 = vadd.xlane.f32.xlu0 %v844
    %v846 = vpop.xlane.xlu0 %845
    %v847 = vsel %vm819, %v839, 0.0
    %848 = vadd.xlane.f32.xlu0 %v847
    %v849 = vpop.xlane.xlu0 %848
    %v850 = vsel %vm819, %v841, 0.0
    %851 = vadd.xlane.f32.xlu0 %v850
    %v852 = vpop.xlane.xlu0 %851
    %v853 = vsel %vm819, %v843, 0.0
    %854 = vadd.xlane.f32.xlu0 %v853
    %v855 = vpop.xlane.xlu0 %854
    %v856 = vrcp.pop %v846
    %v857 = vrcp.pop %v849
    %v858 = vrcp.pop %v852
    %v859 = vrcp.pop %v855
    %v860 = vmul.f32 %v837, %v856
    %v861 = vmul.f32 %v839, %v857
    %v862 = vmul.f32 %v841, %v858
    %v863 = vmul.f32 %v843, %v859
    %v864 = vpack.c.bf16 %v861, %v860
    %v865 = vpack.c.bf16 %v863, %v862
    %v867 = vsel %vm819, %v864, 0
    %v870 = vsel %vm819, %v865, 0
    %872 = vmatprep.subr.bf16.mxu0 0
    %873 = vmatpush1.bf16.msra.mxu0 0
    %874 = vmatprep.subr.bf16.mxu0 0
    %875 = vmatpush1.bf16.msra.mxu0 0
    %876 = vmatprep.subr.bf16.mxu0 0
    %877 = vmatpush1.bf16.msra.mxu0 0
    %878 = vmatprep.subr.bf16.mxu0 0
    %879 = vmatpush1.bf16.msra.mxu0 0
    %880 = vmatprep.subr.bf16.mxu0 0
    %881 = vmatpush1.bf16.msra.mxu0 0
    %882 = vmatprep.subr.bf16.mxu0 0
    %883 = vmatpush1.bf16.msra.mxu0 0
    %884 = vmatprep.subr.bf16.mxu0 0
    %885 = vmatpush1.bf16.msra.mxu0 %v748
    %886 = vmatprep.subr.bf16.mxu0 0
    %887 = vmatpush1.bf16.msra.mxu0 %v747
    %888 = vmatprep.subr.bf16.mxu0 0
    %889 = vmatpush2.bf16.msra.mxu0 0
    %890 = vmatprep.subr.bf16.mxu0 0
    %891 = vmatpush2.bf16.msra.mxu0 0
    %892 = vmatprep.subr.bf16.mxu0 0
    %893 = vmatpush2.bf16.msra.mxu0 0
    %894 = vmatprep.subr.bf16.mxu0 0
    %895 = vmatpush2.bf16.msra.mxu0 0
    %896 = vmatprep.subr.bf16.mxu0 0
    %897 = vmatpush2.bf16.msra.mxu0 0
    %898 = vmatprep.subr.bf16.mxu0 0
    %899 = vmatpush2.bf16.msra.mxu0 0
    %900 = vmatprep.subr.bf16.mxu0 0
    %901 = vmatpush2.bf16.msra.mxu0 0
    %902 = vmatprep.subr.bf16.mxu0 0
    %903 = vmatpush2.bf16.msra.mxu0 0
    %904 = vmatprep.mubr.bf16.mxu0 0
    %905 = vmatmul.mubr.bf16.gmra.mxu0 %v867
    %v906 = vpop.f32.mrf.mxu0
    %v907 = vadd.f32 0.0, %v906
    %v908 = vpop.f32.mrf.mxu0
    %v909 = vpop.f32.mrf.mxu0
    %v910 = vadd.f32 0.0, %v909
    %v911 = vpop.f32.mrf.mxu0
    %912 = vmatprep.mubr.bf16.mxu0 0
    %913 = vmatmul.mubr.bf16.gmra.mxu0 %v870
    %v914 = vpop.f32.mrf.mxu0
    %v915 = vadd.f32 0.0, %v914
    %v916 = vpop.f32.mrf.mxu0
    %v917 = vpop.f32.mrf.mxu0
    %v918 = vadd.f32 0.0, %v917
    %v919 = vpop.f32.mrf.mxu0
    %920 = vdwg.mxu0
    %v921 = vpack.c.bf16 %v910, %v907
    %v922 = vpack.c.bf16 %v918, %v915
    %925 = vrot.lane.b32.xlu0 %v743, 112
    %v926 = vpop.permute.xlu0 %925
    %927 = vrot.lane.b32.xlu0 %v744, 112
    %v928 = vpop.permute.xlu0 %927
    %931 = vrot.lane.b32.xlu0 %v745, 112
    %v932 = vpop.permute.xlu0 %931
    %933 = vrot.lane.b32.xlu0 %v746, 112
    %v934 = vpop.permute.xlu0 %933
    %v936 = vsel %vm749, %v926, 0
    %v939 = vsel %vm749, %v928, 0
    %v942 = vsel %vm749, %v932, 0
    %v945 = vsel %vm749, %v934, 0
    %947 = vmatprep.subr.bf16.mxu0 0
    %948 = vmatpush1.bf16.xpose.msra.mxu0 0
    %949 = vmatprep.subr.bf16.mxu0 0
    %950 = vmatpush1.bf16.xpose.msra.mxu0 0
    %951 = vmatprep.subr.bf16.mxu0 0
    %952 = vmatpush1.bf16.xpose.msra.mxu0 0
    %953 = vmatprep.subr.bf16.mxu0 0
    %954 = vmatpush1.bf16.xpose.msra.mxu0 0
    %955 = vmatprep.subr.bf16.mxu0 0
    %956 = vmatpush1.bf16.xpose.msra.mxu0 0
    %957 = vmatprep.subr.bf16.mxu0 0
    %958 = vmatpush1.bf16.xpose.msra.mxu0 0
    %959 = vmatprep.subr.bf16.mxu0 0
    %960 = vmatpush1.bf16.xpose.msra.mxu0 %v945
    %961 = vmatprep.subr.bf16.mxu0 0
    %962 = vmatpush1.bf16.xpose.msra.mxu0 %v942
    %963 = vmatprep.subr.bf16.mxu0 0
    %964 = vmatpush2.bf16.xpose.msra.mxu0 0
    %965 = vmatprep.subr.bf16.mxu0 0
    %966 = vmatpush2.bf16.xpose.msra.mxu0 0
    %967 = vmatprep.subr.bf16.mxu0 0
    %968 = vmatpush2.bf16.xpose.msra.mxu0 0
    %969 = vmatprep.subr.bf16.mxu0 0
    %970 = vmatpush2.bf16.xpose.msra.mxu0 0
    %971 = vmatprep.subr.bf16.mxu0 0
    %972 = vmatpush2.bf16.xpose.msra.mxu0 0
    %973 = vmatprep.subr.bf16.mxu0 0
    %974 = vmatpush2.bf16.xpose.msra.mxu0 0
    %975 = vmatprep.subr.bf16.mxu0 0
    %976 = vmatpush2.bf16.xpose.msra.mxu0 0
    %977 = vmatprep.subr.bf16.mxu0 0
    %978 = vmatpush2.bf16.xpose.msra.mxu0 0
    %979 = vmatprep.mubr.bf16.mxu0 0
    %980 = vmatmul.mubr.bf16.gmra.mxu0 %v936
    %v981 = vpop.f32.mrf.mxu0
    %v982 = vadd.f32 0.0, %v981
    %v983 = vpop.f32.mrf.mxu0
    %v984 = vpop.f32.mrf.mxu0
    %v985 = vadd.f32 0.0, %v984
    %v986 = vpop.f32.mrf.mxu0
    %987 = vmatprep.mubr.bf16.mxu0 0
    %988 = vmatmul.mubr.bf16.gmra.mxu0 %v939
    %v989 = vpop.f32.mrf.mxu0
    %v990 = vadd.f32 0.0, %v989
    %v991 = vpop.f32.mrf.mxu0
    %v992 = vpop.f32.mrf.mxu0
    %v993 = vadd.f32 0.0, %v992
    %v994 = vpop.f32.mrf.mxu0
    %995 = vdwg.mxu0
    %v996 = vmul.f32 %v982, 0.125
    %v997 = vmul.f32 %v985, 0.125
    %v998 = vmul.f32 %v990, 0.125
    %v999 = vmul.f32 %v993, 0.125
    %v1000 = vsel %vm283, %v996, -1e+30
    %v1001 = vsel %vm283, %v997, -1e+30
    %v1002 = vsel %vm283, %v998, -1e+30
    %v1003 = vsel %vm283, %v999, -1e+30
    %v1004 = vsel %vm819, %v1000, -inf
    %1005 = vmax.xlane.f32.xlu0 %v1004
    %v1006 = vpop.xlane.xlu0 %1005
    %v1007 = vsel %vm819, %v1001, -inf
    %1008 = vmax.xlane.f32.xlu0 %v1007
    %v1009 = vpop.xlane.xlu0 %1008
    %v1010 = vsel %vm819, %v1002, -inf
    %1011 = vmax.xlane.f32.xlu0 %v1010
    %v1012 = vpop.xlane.xlu0 %1011
    %v1013 = vsel %vm819, %v1003, -inf
    %1014 = vmax.xlane.f32.xlu0 %v1013
    %v1015 = vpop.xlane.xlu0 %1014
    %v1016 = vsub.f32 %v1000, %v1006
    %v1017 = vsub.f32 %v1001, %v1009
    %v1018 = vsub.f32 %v1002, %v1012
    %v1019 = vsub.f32 %v1003, %v1015
    %v1020 = vmul.f32 %v1016, 1.442695
    %v1021 = vpow.pop %v1020
    %v1022 = vmul.f32 %v1017, 1.442695
    %v1023 = vpow.pop %v1022
    %v1024 = vmul.f32 %v1018, 1.442695
    %v1025 = vpow.pop %v1024
    %v1026 = vmul.f32 %v1019, 1.442695
    %v1027 = vpow.pop %v1026
    %v1028 = vsel %vm819, %v1021, 0.0
    %1029 = vadd.xlane.f32.xlu0 %v1028
    %v1030 = vpop.xlane.xlu0 %1029
    %v1031 = vsel %vm819, %v1023, 0.0
    %1032 = vadd.xlane.f32.xlu0 %v1031
    %v1033 = vpop.xlane.xlu0 %1032
    %v1034 = vsel %vm819, %v1025, 0.0
    %1035 = vadd.xlane.f32.xlu0 %v1034
    %v1036 = vpop.xlane.xlu0 %1035
    %v1037 = vsel %vm819, %v1027, 0.0
    %1038 = vadd.xlane.f32.xlu0 %v1037
    %v1039 = vpop.xlane.xlu0 %1038
    %v1040 = vrcp.pop %v1030
    %v1041 = vrcp.pop %v1033
    %v1042 = vrcp.pop %v1036
    %v1043 = vrcp.pop %v1039
    %v1044 = vmul.f32 %v1021, %v1040
    %v1045 = vmul.f32 %v1023, %v1041
    %v1046 = vmul.f32 %v1025, %v1042
    %v1047 = vmul.f32 %v1027, %v1043
    %v1048 = vpack.c.bf16 %v1045, %v1044
    %v1049 = vpack.c.bf16 %v1047, %v1046
    %1052 = vrot.lane.b32.xlu0 %v747, 112
    %v1053 = vpop.permute.xlu0 %1052
    %1054 = vrot.lane.b32.xlu0 %v748, 112
    %v1055 = vpop.permute.xlu0 %1054
    %v1059 = vsel %vm819, %v1048, 0
    %v1062 = vsel %vm819, %v1049, 0
    %1064 = vmatprep.subr.bf16.mxu0 0
    %1065 = vmatpush1.bf16.msra.mxu0 0
    %1066 = vmatprep.subr.bf16.mxu0 0
    %1067 = vmatpush1.bf16.msra.mxu0 0
    %1068 = vmatprep.subr.bf16.mxu0 0
    %1069 = vmatpush1.bf16.msra.mxu0 0
    %1070 = vmatprep.subr.bf16.mxu0 0
    %1071 = vmatpush1.bf16.msra.mxu0 0
    %1072 = vmatprep.subr.bf16.mxu0 0
    %1073 = vmatpush1.bf16.msra.mxu0 0
    %1074 = vmatprep.subr.bf16.mxu0 0
    %1075 = vmatpush1.bf16.msra.mxu0 0
    %1076 = vmatprep.subr.bf16.mxu0 0
    %1077 = vmatpush1.bf16.msra.mxu0 %v1055
    %1078 = vmatprep.subr.bf16.mxu0 0
    %1079 = vmatpush1.bf16.msra.mxu0 %v1053
    %1080 = vmatprep.subr.bf16.mxu0 0
    %1081 = vmatpush2.bf16.msra.mxu0 0
    %1082 = vmatprep.subr.bf16.mxu0 0
    %1083 = vmatpush2.bf16.msra.mxu0 0
    %1084 = vmatprep.subr.bf16.mxu0 0
    %1085 = vmatpush2.bf16.msra.mxu0 0
    %1086 = vmatprep.subr.bf16.mxu0 0
    %1087 = vmatpush2.bf16.msra.mxu0 0
    %1088 = vmatprep.subr.bf16.mxu0 0
    %1089 = vmatpush2.bf16.msra.mxu0 0
    %1090 = vmatprep.subr.bf16.mxu0 0
    %1091 = vmatpush2.bf16.msra.mxu0 0
    %1092 = vmatprep.subr.bf16.mxu0 0
    %1093 = vmatpush2.bf16.msra.mxu0 0
    %1094 = vmatprep.subr.bf16.mxu0 0
    %1095 = vmatpush2.bf16.msra.mxu0 0
    %1096 = vmatprep.mubr.bf16.mxu0 0
    %1097 = vmatmul.mubr.bf16.gmra.mxu0 %v1059
    %v1098 = vpop.f32.mrf.mxu0
    %v1099 = vadd.f32 0.0, %v1098
    %v1100 = vpop.f32.mrf.mxu0
    %v1101 = vpop.f32.mrf.mxu0
    %v1102 = vadd.f32 0.0, %v1101
    %v1103 = vpop.f32.mrf.mxu0
    %1104 = vmatprep.mubr.bf16.mxu0 0
    %1105 = vmatmul.mubr.bf16.gmra.mxu0 %v1062
    %v1106 = vpop.f32.mrf.mxu0
    %v1107 = vadd.f32 0.0, %v1106
    %v1108 = vpop.f32.mrf.mxu0
    %v1109 = vpop.f32.mrf.mxu0
    %v1110 = vadd.f32 0.0, %v1109
    %v1111 = vpop.f32.mrf.mxu0
    %1112 = vdwg.mxu0
    %v1113 = vpack.c.bf16 %v1102, %v1099
    %v1114 = vpack.c.bf16 %v1110, %v1107
    %v1117 = vunpack.c.l.b16 %v736
    %v1118 = vunpack.c.l.b16 %v737
    %v1119 = vpack.c.b16 %v1118, %v1117
    %v1122 = vsel %vm749, %v1113, 0
    %v1125 = vsel %vm749, %v1114, 0
    %1127 = vmatprep.subr.bf16.mxu0 0
    %1128 = vmatpush1.bf16.msra.mxu0 0
    %1129 = vmatprep.subr.bf16.mxu0 0
    %1130 = vmatpush1.bf16.msra.mxu0 0
    %1131 = vmatprep.subr.bf16.mxu0 0
    %1132 = vmatpush1.bf16.msra.mxu0 0
    %1133 = vmatprep.subr.bf16.mxu0 0
    %1134 = vmatpush1.bf16.msra.mxu0 0
    %1135 = vmatprep.subr.bf16.mxu0 0
    %1136 = vmatpush1.bf16.msra.mxu0 0
    %1137 = vmatprep.subr.bf16.mxu0 0
    %1138 = vmatpush1.bf16.msra.mxu0 0
    %1139 = vmatprep.subr.bf16.mxu0 0
    %1140 = vmatpush1.bf16.msra.mxu0 0
    %1141 = vmatprep.subr.bf16.mxu0 0
    %1142 = vmatpush1.bf16.msra.mxu0 %v1119
    %1143 = vmatprep.subr.bf16.mxu0 0
    %1144 = vmatpush2.bf16.msra.mxu0 0
    %1145 = vmatprep.subr.bf16.mxu0 0
    %1146 = vmatpush2.bf16.msra.mxu0 0
    %1147 = vmatprep.subr.bf16.mxu0 0
    %1148 = vmatpush2.bf16.msra.mxu0 0
    %1149 = vmatprep.subr.bf16.mxu0 0
    %1150 = vmatpush2.bf16.msra.mxu0 0
    %1151 = vmatprep.subr.bf16.mxu0 0
    %1152 = vmatpush2.bf16.msra.mxu0 0
    %1153 = vmatprep.subr.bf16.mxu0 0
    %1154 = vmatpush2.bf16.msra.mxu0 0
    %1155 = vmatprep.subr.bf16.mxu0 0
    %1156 = vmatpush2.bf16.msra.mxu0 0
    %1157 = vmatprep.subr.bf16.mxu0 0
    %1158 = vmatpush2.bf16.msra.mxu0 0
    %1159 = vmatprep.mubr.bf16.mxu0 0
    %1160 = vmatmul.mubr.bf16.gmra.mxu0 %v1122
    %v1161 = vpop.f32.mrf.mxu0
    %v1162 = vadd.f32 0.0, %v1161
    %v1163 = vpop.f32.mrf.mxu0
    %v1164 = vpop.f32.mrf.mxu0
    %v1165 = vadd.f32 0.0, %v1164
    %v1166 = vpop.f32.mrf.mxu0
    %1167 = vmatprep.mubr.bf16.mxu0 0
    %1168 = vmatmul.mubr.bf16.gmra.mxu0 %v1125
    %v1169 = vpop.f32.mrf.mxu0
    %v1170 = vadd.f32 0.0, %v1169
    %v1171 = vpop.f32.mrf.mxu0
    %v1172 = vpop.f32.mrf.mxu0
    %v1173 = vadd.f32 0.0, %v1172
    %v1174 = vpop.f32.mrf.mxu0
    %1175 = vdwg.mxu0
    %v1178 = vunpack.c.l.b16 %v734
    %v1179 = vunpack.c.l.b16 %v735
    %v1180 = vpack.c.b16 %v1179, %v1178
    %v1183 = vsel %vm749, %v921, 0
    %v1186 = vsel %vm749, %v922, 0
    %1188 = vmatprep.subr.bf16.mxu0 0
    %1189 = vmatpush1.bf16.msra.mxu0 0
    %1190 = vmatprep.subr.bf16.mxu0 0
    %1191 = vmatpush1.bf16.msra.mxu0 0
    %1192 = vmatprep.subr.bf16.mxu0 0
    %1193 = vmatpush1.bf16.msra.mxu0 0
    %1194 = vmatprep.subr.bf16.mxu0 0
    %1195 = vmatpush1.bf16.msra.mxu0 0
    %1196 = vmatprep.subr.bf16.mxu0 0
    %1197 = vmatpush1.bf16.msra.mxu0 0
    %1198 = vmatprep.subr.bf16.mxu0 0
    %1199 = vmatpush1.bf16.msra.mxu0 0
    %1200 = vmatprep.subr.bf16.mxu0 0
    %1201 = vmatpush1.bf16.msra.mxu0 0
    %1202 = vmatprep.subr.bf16.mxu0 0
    %1203 = vmatpush1.bf16.msra.mxu0 %v1180
    %1204 = vmatprep.subr.bf16.mxu0 0
    %1205 = vmatpush2.bf16.msra.mxu0 0
    %1206 = vmatprep.subr.bf16.mxu0 0
    %1207 = vmatpush2.bf16.msra.mxu0 0
    %1208 = vmatprep.subr.bf16.mxu0 0
    %1209 = vmatpush2.bf16.msra.mxu0 0
    %1210 = vmatprep.subr.bf16.mxu0 0
    %1211 = vmatpush2.bf16.msra.mxu0 0
    %1212 = vmatprep.subr.bf16.mxu0 0
    %1213 = vmatpush2.bf16.msra.mxu0 0
    %1214 = vmatprep.subr.bf16.mxu0 0
    %1215 = vmatpush2.bf16.msra.mxu0 0
    %1216 = vmatprep.subr.bf16.mxu0 0
    %1217 = vmatpush2.bf16.msra.mxu0 0
    %1218 = vmatprep.subr.bf16.mxu0 0
    %1219 = vmatpush2.bf16.msra.mxu0 0
    %1220 = vmatprep.mubr.bf16.mxu0 0
    %1221 = vmatmul.mubr.bf16.gmra.mxu0 %v1183
    %v1222 = vpop.f32.mrf.mxu0
    %v1223 = vadd.f32 %v1162, %v1222
    %v1224 = vpop.f32.mrf.mxu0
    %v1225 = vpop.f32.mrf.mxu0
    %v1226 = vadd.f32 %v1165, %v1225
    %v1227 = vpop.f32.mrf.mxu0
    %1228 = vmatprep.mubr.bf16.mxu0 0
    %1229 = vmatmul.mubr.bf16.gmra.mxu0 %v1186
    %v1230 = vpop.f32.mrf.mxu0
    %v1231 = vadd.f32 %v1170, %v1230
    %v1232 = vpop.f32.mrf.mxu0
    %v1233 = vpop.f32.mrf.mxu0
    %v1234 = vadd.f32 %v1173, %v1233
    %v1235 = vpop.f32.mrf.mxu0
    %1236 = vdwg.mxu0
    %1237 = vrot.lane.b32.xlu0 %v743, 96
    %v1238 = vpop.permute.xlu0 %1237
    %1239 = vrot.lane.b32.xlu0 %v744, 96
    %v1240 = vpop.permute.xlu0 %1239
    %1241 = vrot.lane.b32.xlu0 %v745, 96
    %v1242 = vpop.permute.xlu0 %1241
    %1243 = vrot.lane.b32.xlu0 %v746, 96
    %v1244 = vpop.permute.xlu0 %1243
    %v1246 = vsel %vm749, %v1238, 0
    %v1249 = vsel %vm749, %v1240, 0
    %v1252 = vsel %vm749, %v1242, 0
    %v1255 = vsel %vm749, %v1244, 0
    %1257 = vmatprep.subr.bf16.mxu0 0
    %1258 = vmatpush1.bf16.xpose.msra.mxu0 0
    %1259 = vmatprep.subr.bf16.mxu0 0
    %1260 = vmatpush1.bf16.xpose.msra.mxu0 0
    %1261 = vmatprep.subr.bf16.mxu0 0
    %1262 = vmatpush1.bf16.xpose.msra.mxu0 0
    %1263 = vmatprep.subr.bf16.mxu0 0
    %1264 = vmatpush1.bf16.xpose.msra.mxu0 0
    %1265 = vmatprep.subr.bf16.mxu0 0
    %1266 = vmatpush1.bf16.xpose.msra.mxu0 0
    %1267 = vmatprep.subr.bf16.mxu0 0
    %1268 = vmatpush1.bf16.xpose.msra.mxu0 0
    %1269 = vmatprep.subr.bf16.mxu0 0
    %1270 = vmatpush1.bf16.xpose.msra.mxu0 %v1255
    %1271 = vmatprep.subr.bf16.mxu0 0
    %1272 = vmatpush1.bf16.xpose.msra.mxu0 %v1252
    %1273 = vmatprep.subr.bf16.mxu0 0
    %1274 = vmatpush2.bf16.xpose.msra.mxu0 0
    %1275 = vmatprep.subr.bf16.mxu0 0
    %1276 = vmatpush2.bf16.xpose.msra.mxu0 0
    %1277 = vmatprep.subr.bf16.mxu0 0
    %1278 = vmatpush2.bf16.xpose.msra.mxu0 0
    %1279 = vmatprep.subr.bf16.mxu0 0
    %1280 = vmatpush2.bf16.xpose.msra.mxu0 0
    %1281 = vmatprep.subr.bf16.mxu0 0
    %1282 = vmatpush2.bf16.xpose.msra.mxu0 0
    %1283 = vmatprep.subr.bf16.mxu0 0
    %1284 = vmatpush2.bf16.xpose.msra.mxu0 0
    %1285 = vmatprep.subr.bf16.mxu0 0
    %1286 = vmatpush2.bf16.xpose.msra.mxu0 0
    %1287 = vmatprep.subr.bf16.mxu0 0
    %1288 = vmatpush2.bf16.xpose.msra.mxu0 0
    %1289 = vmatprep.mubr.bf16.mxu0 0
    %1290 = vmatmul.mubr.bf16.gmra.mxu0 %v1246
    %v1291 = vpop.f32.mrf.mxu0
    %v1292 = vadd.f32 0.0, %v1291
    %v1293 = vpop.f32.mrf.mxu0
    %v1294 = vpop.f32.mrf.mxu0
    %v1295 = vadd.f32 0.0, %v1294
    %v1296 = vpop.f32.mrf.mxu0
    %1297 = vmatprep.mubr.bf16.mxu0 0
    %1298 = vmatmul.mubr.bf16.gmra.mxu0 %v1249
    %v1299 = vpop.f32.mrf.mxu0
    %v1300 = vadd.f32 0.0, %v1299
    %v1301 = vpop.f32.mrf.mxu0
    %v1302 = vpop.f32.mrf.mxu0
    %v1303 = vadd.f32 0.0, %v1302
    %v1304 = vpop.f32.mrf.mxu0
    %1305 = vdwg.mxu0
    %v1306 = vmul.f32 %v1292, 0.125
    %v1307 = vmul.f32 %v1295, 0.125
    %v1308 = vmul.f32 %v1300, 0.125
    %v1309 = vmul.f32 %v1303, 0.125
    %v1310 = vsel %vm283, %v1306, -1e+30
    %v1311 = vsel %vm283, %v1307, -1e+30
    %v1312 = vsel %vm283, %v1308, -1e+30
    %v1313 = vsel %vm283, %v1309, -1e+30
    %v1314 = vsel %vm819, %v1310, -inf
    %1315 = vmax.xlane.f32.xlu0 %v1314
    %v1316 = vpop.xlane.xlu0 %1315
    %v1317 = vsel %vm819, %v1311, -inf
    %1318 = vmax.xlane.f32.xlu0 %v1317
    %v1319 = vpop.xlane.xlu0 %1318
    %v1320 = vsel %vm819, %v1312, -inf
    %1321 = vmax.xlane.f32.xlu0 %v1320
    %v1322 = vpop.xlane.xlu0 %1321
    %v1323 = vsel %vm819, %v1313, -inf
    %1324 = vmax.xlane.f32.xlu0 %v1323
    %v1325 = vpop.xlane.xlu0 %1324
    %v1326 = vsub.f32 %v1310, %v1316
    %v1327 = vsub.f32 %v1311, %v1319
    %v1328 = vsub.f32 %v1312, %v1322
    %v1329 = vsub.f32 %v1313, %v1325
    %v1330 = vmul.f32 %v1326, 1.442695
    %v1331 = vpow.pop %v1330
    %v1332 = vmul.f32 %v1327, 1.442695
    %v1333 = vpow.pop %v1332
    %v1334 = vmul.f32 %v1328, 1.442695
    %v1335 = vpow.pop %v1334
    %v1336 = vmul.f32 %v1329, 1.442695
    %v1337 = vpow.pop %v1336
    %v1338 = vsel %vm819, %v1331, 0.0
    %1339 = vadd.xlane.f32.xlu0 %v1338
    %v1340 = vpop.xlane.xlu0 %1339
    %v1341 = vsel %vm819, %v1333, 0.0
    %1342 = vadd.xlane.f32.xlu0 %v1341
    %v1343 = vpop.xlane.xlu0 %1342
    %v1344 = vsel %vm819, %v1335, 0.0
    %1345 = vadd.xlane.f32.xlu0 %v1344
    %v1346 = vpop.xlane.xlu0 %1345
    %v1347 = vsel %vm819, %v1337, 0.0
    %1348 = vadd.xlane.f32.xlu0 %v1347
    %v1349 = vpop.xlane.xlu0 %1348
    %v1350 = vrcp.pop %v1340
    %v1351 = vrcp.pop %v1343
    %v1352 = vrcp.pop %v1346
    %v1353 = vrcp.pop %v1349
    %v1354 = vmul.f32 %v1331, %v1350
    %v1355 = vmul.f32 %v1333, %v1351
    %v1356 = vmul.f32 %v1335, %v1352
    %v1357 = vmul.f32 %v1337, %v1353
    %v1358 = vpack.c.bf16 %v1355, %v1354
    %v1359 = vpack.c.bf16 %v1357, %v1356
    %1360 = vrot.lane.b32.xlu0 %v747, 96
    %v1361 = vpop.permute.xlu0 %1360
    %1362 = vrot.lane.b32.xlu0 %v748, 96
    %v1363 = vpop.permute.xlu0 %1362
    %v1367 = vsel %vm819, %v1358, 0
    %v1370 = vsel %vm819, %v1359, 0
    %1372 = vmatprep.subr.bf16.mxu0 0
    %1373 = vmatpush1.bf16.msra.mxu0 0
    %1374 = vmatprep.subr.bf16.mxu0 0
    %1375 = vmatpush1.bf16.msra.mxu0 0
    %1376 = vmatprep.subr.bf16.mxu0 0
    %1377 = vmatpush1.bf16.msra.mxu0 0
    %1378 = vmatprep.subr.bf16.mxu0 0
    %1379 = vmatpush1.bf16.msra.mxu0 0
    %1380 = vmatprep.subr.bf16.mxu0 0
    %1381 = vmatpush1.bf16.msra.mxu0 0
    %1382 = vmatprep.subr.bf16.mxu0 0
    %1383 = vmatpush1.bf16.msra.mxu0 0
    %1384 = vmatprep.subr.bf16.mxu0 0
    %1385 = vmatpush1.bf16.msra.mxu0 %v1363
    %1386 = vmatprep.subr.bf16.mxu0 0
    %1387 = vmatpush1.bf16.msra.mxu0 %v1361
    %1388 = vmatprep.subr.bf16.mxu0 0
    %1389 = vmatpush2.bf16.msra.mxu0 0
    %1390 = vmatprep.subr.bf16.mxu0 0
    %1391 = vmatpush2.bf16.msra.mxu0 0
    %1392 = vmatprep.subr.bf16.mxu0 0
    %1393 = vmatpush2.bf16.msra.mxu0 0
    %1394 = vmatprep.subr.bf16.mxu0 0
    %1395 = vmatpush2.bf16.msra.mxu0 0
    %1396 = vmatprep.subr.bf16.mxu0 0
    %1397 = vmatpush2.bf16.msra.mxu0 0
    %1398 = vmatprep.subr.bf16.mxu0 0
    %1399 = vmatpush2.bf16.msra.mxu0 0
    %1400 = vmatprep.subr.bf16.mxu0 0
    %1401 = vmatpush2.bf16.msra.mxu0 0
    %1402 = vmatprep.subr.bf16.mxu0 0
    %1403 = vmatpush2.bf16.msra.mxu0 0
    %1404 = vmatprep.mubr.bf16.mxu0 0
    %1405 = vmatmul.mubr.bf16.gmra.mxu0 %v1367
    %v1406 = vpop.f32.mrf.mxu0
    %v1407 = vadd.f32 0.0, %v1406
    %v1408 = vpop.f32.mrf.mxu0
    %v1409 = vpop.f32.mrf.mxu0
    %v1410 = vadd.f32 0.0, %v1409
    %v1411 = vpop.f32.mrf.mxu0
    %1412 = vmatprep.mubr.bf16.mxu0 0
    %1413 = vmatmul.mubr.bf16.gmra.mxu0 %v1370
    %v1414 = vpop.f32.mrf.mxu0
    %v1415 = vadd.f32 0.0, %v1414
    %v1416 = vpop.f32.mrf.mxu0
    %v1417 = vpop.f32.mrf.mxu0
    %v1418 = vadd.f32 0.0, %v1417
    %v1419 = vpop.f32.mrf.mxu0
    %1420 = vdwg.mxu0
    %v1421 = vpack.c.bf16 %v1410, %v1407
    %v1422 = vpack.c.bf16 %v1418, %v1415
    %v1425 = vunpack.c.l.b16 %v738
    %v1426 = vunpack.c.l.b16 %v739
    %v1427 = vpack.c.b16 %v1426, %v1425
    %v1430 = vsel %vm749, %v1421, 0
    %v1433 = vsel %vm749, %v1422, 0
    %1435 = vmatprep.subr.bf16.mxu0 0
    %1436 = vmatpush1.bf16.msra.mxu0 0
    %1437 = vmatprep.subr.bf16.mxu0 0
    %1438 = vmatpush1.bf16.msra.mxu0 0
    %1439 = vmatprep.subr.bf16.mxu0 0
    %1440 = vmatpush1.bf16.msra.mxu0 0
    %1441 = vmatprep.subr.bf16.mxu0 0
    %1442 = vmatpush1.bf16.msra.mxu0 0
    %1443 = vmatprep.subr.bf16.mxu0 0
    %1444 = vmatpush1.bf16.msra.mxu0 0
    %1445 = vmatprep.subr.bf16.mxu0 0
    %1446 = vmatpush1.bf16.msra.mxu0 0
    %1447 = vmatprep.subr.bf16.mxu0 0
    %1448 = vmatpush1.bf16.msra.mxu0 0
    %1449 = vmatprep.subr.bf16.mxu0 0
    %1450 = vmatpush1.bf16.msra.mxu0 %v1427
    %1451 = vmatprep.subr.bf16.mxu0 0
    %1452 = vmatpush2.bf16.msra.mxu0 0
    %1453 = vmatprep.subr.bf16.mxu0 0
    %1454 = vmatpush2.bf16.msra.mxu0 0
    %1455 = vmatprep.subr.bf16.mxu0 0
    %1456 = vmatpush2.bf16.msra.mxu0 0
    %1457 = vmatprep.subr.bf16.mxu0 0
    %1458 = vmatpush2.bf16.msra.mxu0 0
    %1459 = vmatprep.subr.bf16.mxu0 0
    %1460 = vmatpush2.bf16.msra.mxu0 0
    %1461 = vmatprep.subr.bf16.mxu0 0
    %1462 = vmatpush2.bf16.msra.mxu0 0
    %1463 = vmatprep.subr.bf16.mxu0 0
    %1464 = vmatpush2.bf16.msra.mxu0 0
    %1465 = vmatprep.subr.bf16.mxu0 0
    %1466 = vmatpush2.bf16.msra.mxu0 0
    %1467 = vmatprep.mubr.bf16.mxu0 0
    %1468 = vmatmul.mubr.bf16.gmra.mxu0 %v1430
    %v1469 = vpop.f32.mrf.mxu0
    %v1470 = vadd.f32 0.0, %v1469
    %v1471 = vpop.f32.mrf.mxu0
    %v1472 = vpop.f32.mrf.mxu0
    %v1473 = vadd.f32 0.0, %v1472
    %v1474 = vpop.f32.mrf.mxu0
    %1475 = vmatprep.mubr.bf16.mxu0 0
    %1476 = vmatmul.mubr.bf16.gmra.mxu0 %v1433
    %v1477 = vpop.f32.mrf.mxu0
    %v1478 = vadd.f32 0.0, %v1477
    %v1479 = vpop.f32.mrf.mxu0
    %v1480 = vpop.f32.mrf.mxu0
    %v1481 = vadd.f32 0.0, %v1480
    %v1482 = vpop.f32.mrf.mxu0
    %1483 = vdwg.mxu0
    %v1484 = vadd.f32 %v1223, %v1470
    %v1485 = vadd.f32 %v1226, %v1473
    %v1486 = vadd.f32 %v1231, %v1478
    %v1487 = vadd.f32 %v1234, %v1481
    %1488 = vrot.lane.b32.xlu0 %v743, 80
    %v1489 = vpop.permute.xlu0 %1488
    %1490 = vrot.lane.b32.xlu0 %v744, 80
    %v1491 = vpop.permute.xlu0 %1490
    %1492 = vrot.lane.b32.xlu0 %v745, 80
    %v1493 = vpop.permute.xlu0 %1492
    %1494 = vrot.lane.b32.xlu0 %v746, 80
    %v1495 = vpop.permute.xlu0 %1494
    %v1497 = vsel %vm749, %v1489, 0
    %v1500 = vsel %vm749, %v1491, 0
    %v1503 = vsel %vm749, %v1493, 0
    %v1506 = vsel %vm749, %v1495, 0
    %1508 = vmatprep.subr.bf16.mxu0 0
    %1509 = vmatpush1.bf16.xpose.msra.mxu0 0
    %1510 = vmatprep.subr.bf16.mxu0 0
    %1511 = vmatpush1.bf16.xpose.msra.mxu0 0
    %1512 = vmatprep.subr.bf16.mxu0 0
    %1513 = vmatpush1.bf16.xpose.msra.mxu0 0
    %1514 = vmatprep.subr.bf16.mxu0 0
    %1515 = vmatpush1.bf16.xpose.msra.mxu0 0
    %1516 = vmatprep.subr.bf16.mxu0 0
    %1517 = vmatpush1.bf16.xpose.msra.mxu0 0
    %1518 = vmatprep.subr.bf16.mxu0 0
    %1519 = vmatpush1.bf16.xpose.msra.mxu0 0
    %1520 = vmatprep.subr.bf16.mxu0 0
    %1521 = vmatpush1.bf16.xpose.msra.mxu0 %v1506
    %1522 = vmatprep.subr.bf16.mxu0 0
    %1523 = vmatpush1.bf16.xpose.msra.mxu0 %v1503
    %1524 = vmatprep.subr.bf16.mxu0 0
    %1525 = vmatpush2.bf16.xpose.msra.mxu0 0
    %1526 = vmatprep.subr.bf16.mxu0 0
    %1527 = vmatpush2.bf16.xpose.msra.mxu0 0
    %1528 = vmatprep.subr.bf16.mxu0 0
    %1529 = vmatpush2.bf16.xpose.msra.mxu0 0
    %1530 = vmatprep.subr.bf16.mxu0 0
    %1531 = vmatpush2.bf16.xpose.msra.mxu0 0
    %1532 = vmatprep.subr.bf16.mxu0 0
    %1533 = vmatpush2.bf16.xpose.msra.mxu0 0
    %1534 = vmatprep.subr.bf16.mxu0 0
    %1535 = vmatpush2.bf16.xpose.msra.mxu0 0
    %1536 = vmatprep.subr.bf16.mxu0 0
    %1537 = vmatpush2.bf16.xpose.msra.mxu0 0
    %1538 = vmatprep.subr.bf16.mxu0 0
    %1539 = vmatpush2.bf16.xpose.msra.mxu0 0
    %1540 = vmatprep.mubr.bf16.mxu0 0
    %1541 = vmatmul.mubr.bf16.gmra.mxu0 %v1497
    %v1542 = vpop.f32.mrf.mxu0
    %v1543 = vadd.f32 0.0, %v1542
    %v1544 = vpop.f32.mrf.mxu0
    %v1545 = vpop.f32.mrf.mxu0
    %v1546 = vadd.f32 0.0, %v1545
    %v1547 = vpop.f32.mrf.mxu0
    %1548 = vmatprep.mubr.bf16.mxu0 0
    %1549 = vmatmul.mubr.bf16.gmra.mxu0 %v1500
    %v1550 = vpop.f32.mrf.mxu0
    %v1551 = vadd.f32 0.0, %v1550
    %v1552 = vpop.f32.mrf.mxu0
    %v1553 = vpop.f32.mrf.mxu0
    %v1554 = vadd.f32 0.0, %v1553
    %v1555 = vpop.f32.mrf.mxu0
    %1556 = vdwg.mxu0
    %v1557 = vmul.f32 %v1543, 0.125
    %v1558 = vmul.f32 %v1546, 0.125
    %v1559 = vmul.f32 %v1551, 0.125
    %v1560 = vmul.f32 %v1554, 0.125
    %v1561 = vsel %vm283, %v1557, -1e+30
    %v1562 = vsel %vm283, %v1558, -1e+30
    %v1563 = vsel %vm283, %v1559, -1e+30
    %v1564 = vsel %vm283, %v1560, -1e+30
    %v1565 = vsel %vm819, %v1561, -inf
    %1566 = vmax.xlane.f32.xlu0 %v1565
    %v1567 = vpop.xlane.xlu0 %1566
    %v1568 = vsel %vm819, %v1562, -inf
    %1569 = vmax.xlane.f32.xlu0 %v1568
    %v1570 = vpop.xlane.xlu0 %1569
    %v1571 = vsel %vm819, %v1563, -inf
    %1572 = vmax.xlane.f32.xlu0 %v1571
    %v1573 = vpop.xlane.xlu0 %1572
    %v1574 = vsel %vm819, %v1564, -inf
    %1575 = vmax.xlane.f32.xlu0 %v1574
    %v1576 = vpop.xlane.xlu0 %1575
    %v1577 = vsub.f32 %v1561, %v1567
    %v1578 = vsub.f32 %v1562, %v1570
    %v1579 = vsub.f32 %v1563, %v1573
    %v1580 = vsub.f32 %v1564, %v1576
    %v1581 = vmul.f32 %v1577, 1.442695
    %v1582 = vpow.pop %v1581
    %v1583 = vmul.f32 %v1578, 1.442695
    %v1584 = vpow.pop %v1583
    %v1585 = vmul.f32 %v1579, 1.442695
    %v1586 = vpow.pop %v1585
    %v1587 = vmul.f32 %v1580, 1.442695
    %v1588 = vpow.pop %v1587
    %v1589 = vsel %vm819, %v1582, 0.0
    %1590 = vadd.xlane.f32.xlu0 %v1589
    %v1591 = vpop.xlane.xlu0 %1590
    %v1592 = vsel %vm819, %v1584, 0.0
    %1593 = vadd.xlane.f32.xlu0 %v1592
    %v1594 = vpop.xlane.xlu0 %1593
    %v1595 = vsel %vm819, %v1586, 0.0
    %1596 = vadd.xlane.f32.xlu0 %v1595
    %v1597 = vpop.xlane.xlu0 %1596
    %v1598 = vsel %vm819, %v1588, 0.0
    %1599 = vadd.xlane.f32.xlu0 %v1598
    %v1600 = vpop.xlane.xlu0 %1599
    %v1601 = vrcp.pop %v1591
    %v1602 = vrcp.pop %v1594
    %v1603 = vrcp.pop %v1597
    %v1604 = vrcp.pop %v1600
    %v1605 = vmul.f32 %v1582, %v1601
    %v1606 = vmul.f32 %v1584, %v1602
    %v1607 = vmul.f32 %v1586, %v1603
    %v1608 = vmul.f32 %v1588, %v1604
    %v1609 = vpack.c.bf16 %v1606, %v1605
    %v1610 = vpack.c.bf16 %v1608, %v1607
    %1611 = vrot.lane.b32.xlu0 %v747, 80
    %v1612 = vpop.permute.xlu0 %1611
    %1613 = vrot.lane.b32.xlu0 %v748, 80
    %v1614 = vpop.permute.xlu0 %1613
    %v1618 = vsel %vm819, %v1609, 0
    %v1621 = vsel %vm819, %v1610, 0
    %1623 = vmatprep.subr.bf16.mxu0 0
    %1624 = vmatpush1.bf16.msra.mxu0 0
    %1625 = vmatprep.subr.bf16.mxu0 0
    %1626 = vmatpush1.bf16.msra.mxu0 0
    %1627 = vmatprep.subr.bf16.mxu0 0
    %1628 = vmatpush1.bf16.msra.mxu0 0
    %1629 = vmatprep.subr.bf16.mxu0 0
    %1630 = vmatpush1.bf16.msra.mxu0 0
    %1631 = vmatprep.subr.bf16.mxu0 0
    %1632 = vmatpush1.bf16.msra.mxu0 0
    %1633 = vmatprep.subr.bf16.mxu0 0
    %1634 = vmatpush1.bf16.msra.mxu0 0
    %1635 = vmatprep.subr.bf16.mxu0 0
    %1636 = vmatpush1.bf16.msra.mxu0 %v1614
    %1637 = vmatprep.subr.bf16.mxu0 0
    %1638 = vmatpush1.bf16.msra.mxu0 %v1612
    %1639 = vmatprep.subr.bf16.mxu0 0
    %1640 = vmatpush2.bf16.msra.mxu0 0
    %1641 = vmatprep.subr.bf16.mxu0 0
    %1642 = vmatpush2.bf16.msra.mxu0 0
    %1643 = vmatprep.subr.bf16.mxu0 0
    %1644 = vmatpush2.bf16.msra.mxu0 0
    %1645 = vmatprep.subr.bf16.mxu0 0
    %1646 = vmatpush2.bf16.msra.mxu0 0
    %1647 = vmatprep.subr.bf16.mxu0 0
    %1648 = vmatpush2.bf16.msra.mxu0 0
    %1649 = vmatprep.subr.bf16.mxu0 0
    %1650 = vmatpush2.bf16.msra.mxu0 0
    %1651 = vmatprep.subr.bf16.mxu0 0
    %1652 = vmatpush2.bf16.msra.mxu0 0
    %1653 = vmatprep.subr.bf16.mxu0 0
    %1654 = vmatpush2.bf16.msra.mxu0 0
    %1655 = vmatprep.mubr.bf16.mxu0 0
    %1656 = vmatmul.mubr.bf16.gmra.mxu0 %v1618
    %v1657 = vpop.f32.mrf.mxu0
    %v1658 = vadd.f32 0.0, %v1657
    %v1659 = vpop.f32.mrf.mxu0
    %v1660 = vpop.f32.mrf.mxu0
    %v1661 = vadd.f32 0.0, %v1660
    %v1662 = vpop.f32.mrf.mxu0
    %1663 = vmatprep.mubr.bf16.mxu0 0
    %1664 = vmatmul.mubr.bf16.gmra.mxu0 %v1621
    %v1665 = vpop.f32.mrf.mxu0
    %v1666 = vadd.f32 0.0, %v1665
    %v1667 = vpop.f32.mrf.mxu0
    %v1668 = vpop.f32.mrf.mxu0
    %v1669 = vadd.f32 0.0, %v1668
    %v1670 = vpop.f32.mrf.mxu0
    %1671 = vdwg.mxu0
    %v1672 = vpack.c.bf16 %v1661, %v1658
    %v1673 = vpack.c.bf16 %v1669, %v1666
    %v1676 = vunpack.c.l.b16 %v740
    %v1677 = vunpack.c.l.b16 %v741
    %v1678 = vpack.c.b16 %v1677, %v1676
    %v1681 = vsel %vm749, %v1672, 0
    %v1684 = vsel %vm749, %v1673, 0
    %1686 = vmatprep.subr.bf16.mxu0 0
    %1687 = vmatpush1.bf16.msra.mxu0 0
    %1688 = vmatprep.subr.bf16.mxu0 0
    %1689 = vmatpush1.bf16.msra.mxu0 0
    %1690 = vmatprep.subr.bf16.mxu0 0
    %1691 = vmatpush1.bf16.msra.mxu0 0
    %1692 = vmatprep.subr.bf16.mxu0 0
    %1693 = vmatpush1.bf16.msra.mxu0 0
    %1694 = vmatprep.subr.bf16.mxu0 0
    %1695 = vmatpush1.bf16.msra.mxu0 0
    %1696 = vmatprep.subr.bf16.mxu0 0
    %1697 = vmatpush1.bf16.msra.mxu0 0
    %1698 = vmatprep.subr.bf16.mxu0 0
    %1699 = vmatpush1.bf16.msra.mxu0 0
    %1700 = vmatprep.subr.bf16.mxu0 0
    %1701 = vmatpush1.bf16.msra.mxu0 %v1678
    %1702 = vmatprep.subr.bf16.mxu0 0
    %1703 = vmatpush2.bf16.msra.mxu0 0
    %1704 = vmatprep.subr.bf16.mxu0 0
    %1705 = vmatpush2.bf16.msra.mxu0 0
    %1706 = vmatprep.subr.bf16.mxu0 0
    %1707 = vmatpush2.bf16.msra.mxu0 0
    %1708 = vmatprep.subr.bf16.mxu0 0
    %1709 = vmatpush2.bf16.msra.mxu0 0
    %1710 = vmatprep.subr.bf16.mxu0 0
    %1711 = vmatpush2.bf16.msra.mxu0 0
    %1712 = vmatprep.subr.bf16.mxu0 0
    %1713 = vmatpush2.bf16.msra.mxu0 0
    %1714 = vmatprep.subr.bf16.mxu0 0
    %1715 = vmatpush2.bf16.msra.mxu0 0
    %1716 = vmatprep.subr.bf16.mxu0 0
    %1717 = vmatpush2.bf16.msra.mxu0 0
    %1718 = vmatprep.mubr.bf16.mxu0 0
    %1719 = vmatmul.mubr.bf16.gmra.mxu0 %v1681
    %v1720 = vpop.f32.mrf.mxu0
    %v1721 = vadd.f32 0.0, %v1720
    %v1722 = vpop.f32.mrf.mxu0
    %v1723 = vpop.f32.mrf.mxu0
    %v1724 = vadd.f32 0.0, %v1723
    %v1725 = vpop.f32.mrf.mxu0
    %1726 = vmatprep.mubr.bf16.mxu0 0
    %1727 = vmatmul.mubr.bf16.gmra.mxu0 %v1684
    %v1728 = vpop.f32.mrf.mxu0
    %v1729 = vadd.f32 0.0, %v1728
    %v1730 = vpop.f32.mrf.mxu0
    %v1731 = vpop.f32.mrf.mxu0
    %v1732 = vadd.f32 0.0, %v1731
    %v1733 = vpop.f32.mrf.mxu0
    %1734 = vdwg.mxu0
    %v1735 = vadd.f32 %v1484, %v1721
    %v1736 = vadd.f32 %v1485, %v1724
    %v1737 = vadd.f32 %v1486, %v1729
    %v1738 = vadd.f32 %v1487, %v1732
    %v1739 = vadd.f32 %v284, %v1735
    %v1740 = vadd.f32 %v285, %v1736
    %v1741 = vadd.f32 %v286, %v1737
    %v1742 = vadd.f32 %v287, %v1738
    %v1744 = vlaneseq
    %v1745 = vshrl.u32 %v1744, 7
    %v1746 = vsub.s32 0, %v1745
    %v1747 = vrot.slane %v742, %v1746
    %v1749 = vadd.f32 %v1739, %v1747
    %v1750 = vadd.f32 %v1740, %v1747
    %v1751 = vadd.f32 %v1741, %v1747
    %v1752 = vadd.f32 %v1742, %v1747
    %1753 = vst.msk [vmem:[#allocation2] sm:$0xff] %vm272, %v1749
    %1754 = vst.msk [vmem:[#allocation2 + $0x8] sm:$0xff] %vm272, %v1750
    %1755 = vst.msk [vmem:[#allocation2 + $0x10] sm:$0xff] %vm272, %v1751
    %1756 = vst.msk [vmem:[#allocation2 + $0x18] sm:$0xff] %vm272, %v1752
    %v1757 = vpack.c.bf16 %v529, %v526
    %v1758 = vpack.c.bf16 %v537, %v534
    %v1759 = vpack.c.bf16 %v626, %v623
    %v1760 = vpack.c.bf16 %v634, %v631
    %v1761 = vpack.c.bf16 %v723, %v720
    %v1762 = vpack.c.bf16 %v731, %v728
    %v1764 = vsel %vm749, %v1757, 0
    %v1767 = vsel %vm749, %v1758, 0
    %v1770 = vsel %vm749, %v1759, 0
    %v1773 = vsel %vm749, %v1760, 0
    %1775 = vmatprep.subr.bf16.mxu0 0
    %1776 = vmatpush1.bf16.xpose.msra.mxu0 0
    %1777 = vmatprep.subr.bf16.mxu0 0
    %1778 = vmatpush1.bf16.xpose.msra.mxu0 0
    %1779 = vmatprep.subr.bf16.mxu0 0
    %1780 = vmatpush1.bf16.xpose.msra.mxu0 0
    %1781 = vmatprep.subr.bf16.mxu0 0
    %1782 = vmatpush1.bf16.xpose.msra.mxu0 0
    %1783 = vmatprep.subr.bf16.mxu0 0
    %1784 = vmatpush1.bf16.xpose.msra.mxu0 0
    %1785 = vmatprep.subr.bf16.mxu0 0
    %1786 = vmatpush1.bf16.xpose.msra.mxu0 0
    %1787 = vmatprep.subr.bf16.mxu0 0
    %1788 = vmatpush1.bf16.xpose.msra.mxu0 %v1773
    %1789 = vmatprep.subr.bf16.mxu0 0
    %1790 = vmatpush1.bf16.xpose.msra.mxu0 %v1770
    %1791 = vmatprep.subr.bf16.mxu0 0
    %1792 = vmatpush2.bf16.xpose.msra.mxu0 0
    %1793 = vmatprep.subr.bf16.mxu0 0
    %1794 = vmatpush2.bf16.xpose.msra.mxu0 0
    %1795 = vmatprep.subr.bf16.mxu0 0
    %1796 = vmatpush2.bf16.xpose.msra.mxu0 0
    %1797 = vmatprep.subr.bf16.mxu0 0
    %1798 = vmatpush2.bf16.xpose.msra.mxu0 0
    %1799 = vmatprep.subr.bf16.mxu0 0
    %1800 = vmatpush2.bf16.xpose.msra.mxu0 0
    %1801 = vmatprep.subr.bf16.mxu0 0
    %1802 = vmatpush2.bf16.xpose.msra.mxu0 0
    %1803 = vmatprep.subr.bf16.mxu0 0
    %1804 = vmatpush2.bf16.xpose.msra.mxu0 0
    %1805 = vmatprep.subr.bf16.mxu0 0
    %1806 = vmatpush2.bf16.xpose.msra.mxu0 0
    %1807 = vmatprep.mubr.bf16.mxu0 0
    %1808 = vmatmul.mubr.bf16.gmra.mxu0 %v1764
    %v1809 = vpop.f32.mrf.mxu0
    %v1810 = vadd.f32 0.0, %v1809
    %v1811 = vpop.f32.mrf.mxu0
    %v1812 = vpop.f32.mrf.mxu0
    %v1813 = vadd.f32 0.0, %v1812
    %v1814 = vpop.f32.mrf.mxu0
    %1815 = vmatprep.mubr.bf16.mxu0 0
    %1816 = vmatmul.mubr.bf16.gmra.mxu0 %v1767
    %v1817 = vpop.f32.mrf.mxu0
    %v1818 = vadd.f32 0.0, %v1817
    %v1819 = vpop.f32.mrf.mxu0
    %v1820 = vpop.f32.mrf.mxu0
    %v1821 = vadd.f32 0.0, %v1820
    %v1822 = vpop.f32.mrf.mxu0
    %1823 = vdwg.mxu0
    %v1824 = vmul.f32 %v1810, 0.125
    %v1825 = vmul.f32 %v1813, 0.125
    %v1826 = vmul.f32 %v1818, 0.125
    %v1827 = vmul.f32 %v1821, 0.125
    %v1828 = vsel %vm283, %v1824, -1e+30
    %v1829 = vsel %vm283, %v1825, -1e+30
    %v1830 = vsel %vm283, %v1826, -1e+30
    %v1831 = vsel %vm283, %v1827, -1e+30
    %v1832 = vsel %vm819, %v1828, -inf
    %1833 = vmax.xlane.f32.xlu0 %v1832
    %v1834 = vpop.xlane.xlu0 %1833
    %v1835 = vsel %vm819, %v1829, -inf
    %1836 = vmax.xlane.f32.xlu0 %v1835
    %v1837 = vpop.xlane.xlu0 %1836
    %v1838 = vsel %vm819, %v1830, -inf
    %1839 = vmax.xlane.f32.xlu0 %v1838
    %v1840 = vpop.xlane.xlu0 %1839
    %v1841 = vsel %vm819, %v1831, -inf
    %1842 = vmax.xlane.f32.xlu0 %v1841
    %v1843 = vpop.xlane.xlu0 %1842
    %v1844 = vsub.f32 %v1828, %v1834
    %v1845 = vsub.f32 %v1829, %v1837
    %v1846 = vsub.f32 %v1830, %v1840
    %v1847 = vsub.f32 %v1831, %v1843
    %v1848 = vmul.f32 %v1844, 1.442695
    %v1849 = vpow.pop %v1848
    %v1850 = vmul.f32 %v1845, 1.442695
    %v1851 = vpow.pop %v1850
    %v1852 = vmul.f32 %v1846, 1.442695
    %v1853 = vpow.pop %v1852
    %v1854 = vmul.f32 %v1847, 1.442695
    %v1855 = vpow.pop %v1854
    %v1856 = vsel %vm819, %v1849, 0.0
    %1857 = vadd.xlane.f32.xlu0 %v1856
    %v1858 = vpop.xlane.xlu0 %1857
    %v1859 = vsel %vm819, %v1851, 0.0
    %1860 = vadd.xlane.f32.xlu0 %v1859
    %v1861 = vpop.xlane.xlu0 %1860
    %v1862 = vsel %vm819, %v1853, 0.0
    %1863 = vadd.xlane.f32.xlu0 %v1862
    %v1864 = vpop.xlane.xlu0 %1863
    %v1865 = vsel %vm819, %v1855, 0.0
    %1866 = vadd.xlane.f32.xlu0 %v1865
    %v1867 = vpop.xlane.xlu0 %1866
    %v1868 = vrcp.pop %v1858
    %v1869 = vrcp.pop %v1861
    %v1870 = vrcp.pop %v1864
    %v1871 = vrcp.pop %v1867
    %v1872 = vmul.f32 %v1849, %v1868
    %v1873 = vmul.f32 %v1851, %v1869
    %v1874 = vmul.f32 %v1853, %v1870
    %v1875 = vmul.f32 %v1855, %v1871
    %v1876 = vpack.c.bf16 %v1873, %v1872
    %v1877 = vpack.c.bf16 %v1875, %v1874
    %v1879 = vsel %vm819, %v1876, 0
    %v1882 = vsel %vm819, %v1877, 0
    %1884 = vmatprep.subr.bf16.mxu0 0
    %1885 = vmatpush1.bf16.msra.mxu0 0
    %1886 = vmatprep.subr.bf16.mxu0 0
    %1887 = vmatpush1.bf16.msra.mxu0 0
    %1888 = vmatprep.subr.bf16.mxu0 0
    %1889 = vmatpush1.bf16.msra.mxu0 0
    %1890 = vmatprep.subr.bf16.mxu0 0
    %1891 = vmatpush1.bf16.msra.mxu0 0
    %1892 = vmatprep.subr.bf16.mxu0 0
    %1893 = vmatpush1.bf16.msra.mxu0 0
    %1894 = vmatprep.subr.bf16.mxu0 0
    %1895 = vmatpush1.bf16.msra.mxu0 0
    %1896 = vmatprep.subr.bf16.mxu0 0
    %1897 = vmatpush1.bf16.msra.mxu0 %v1762
    %1898 = vmatprep.subr.bf16.mxu0 0
    %1899 = vmatpush1.bf16.msra.mxu0 %v1761
    %1900 = vmatprep.subr.bf16.mxu0 0
    %1901 = vmatpush2.bf16.msra.mxu0 0
    %1902 = vmatprep.subr.bf16.mxu0 0
    %1903 = vmatpush2.bf16.msra.mxu0 0
    %1904 = vmatprep.subr.bf16.mxu0 0
    %1905 = vmatpush2.bf16.msra.mxu0 0
    %1906 = vmatprep.subr.bf16.mxu0 0
    %1907 = vmatpush2.bf16.msra.mxu0 0
    %1908 = vmatprep.subr.bf16.mxu0 0
    %1909 = vmatpush2.bf16.msra.mxu0 0
    %1910 = vmatprep.subr.bf16.mxu0 0
    %1911 = vmatpush2.bf16.msra.mxu0 0
    %1912 = vmatprep.subr.bf16.mxu0 0
    %1913 = vmatpush2.bf16.msra.mxu0 0
    %1914 = vmatprep.subr.bf16.mxu0 0
    %1915 = vmatpush2.bf16.msra.mxu0 0
    %1916 = vmatprep.mubr.bf16.mxu0 0
    %1917 = vmatmul.mubr.bf16.gmra.mxu0 %v1879
    %v1918 = vpop.f32.mrf.mxu0
    %v1919 = vadd.f32 0.0, %v1918
    %v1920 = vpop.f32.mrf.mxu0
    %v1921 = vpop.f32.mrf.mxu0
    %v1922 = vadd.f32 0.0, %v1921
    %v1923 = vpop.f32.mrf.mxu0
    %1924 = vmatprep.mubr.bf16.mxu0 0
    %1925 = vmatmul.mubr.bf16.gmra.mxu0 %v1882
    %v1926 = vpop.f32.mrf.mxu0
    %v1927 = vadd.f32 0.0, %v1926
    %v1928 = vpop.f32.mrf.mxu0
    %v1929 = vpop.f32.mrf.mxu0
    %v1930 = vadd.f32 0.0, %v1929
    %v1931 = vpop.f32.mrf.mxu0
    %1932 = vdwg.mxu0
    %v1933 = vpack.c.bf16 %v1922, %v1919
    %v1934 = vpack.c.bf16 %v1930, %v1927
    %1937 = vrot.lane.b32.xlu0 %v1757, 112
    %v1938 = vpop.permute.xlu0 %1937
    %1939 = vrot.lane.b32.xlu0 %v1758, 112
    %v1940 = vpop.permute.xlu0 %1939
    %1943 = vrot.lane.b32.xlu0 %v1759, 112
    %v1944 = vpop.permute.xlu0 %1943
    %1945 = vrot.lane.b32.xlu0 %v1760, 112
    %v1946 = vpop.permute.xlu0 %1945
    %v1948 = vsel %vm749, %v1938, 0
    %v1951 = vsel %vm749, %v1940, 0
    %v1954 = vsel %vm749, %v1944, 0
    %v1957 = vsel %vm749, %v1946, 0
    %1959 = vmatprep.subr.bf16.mxu0 0
    %1960 = vmatpush1.bf16.xpose.msra.mxu0 0
    %1961 = vmatprep.subr.bf16.mxu0 0
    %1962 = vmatpush1.bf16.xpose.msra.mxu0 0
    %1963 = vmatprep.subr.bf16.mxu0 0
    %1964 = vmatpush1.bf16.xpose.msra.mxu0 0
    %1965 = vmatprep.subr.bf16.mxu0 0
    %1966 = vmatpush1.bf16.xpose.msra.mxu0 0
    %1967 = vmatprep.subr.bf16.mxu0 0
    %1968 = vmatpush1.bf16.xpose.msra.mxu0 0
    %1969 = vmatprep.subr.bf16.mxu0 0
    %1970 = vmatpush1.bf16.xpose.msra.mxu0 0
    %1971 = vmatprep.subr.bf16.mxu0 0
    %1972 = vmatpush1.bf16.xpose.msra.mxu0 %v1957
    %1973 = vmatprep.subr.bf16.mxu0 0
    %1974 = vmatpush1.bf16.xpose.msra.mxu0 %v1954
    %1975 = vmatprep.subr.bf16.mxu0 0
    %1976 = vmatpush2.bf16.xpose.msra.mxu0 0
    %1977 = vmatprep.subr.bf16.mxu0 0
    %1978 = vmatpush2.bf16.xpose.msra.mxu0 0
    %1979 = vmatprep.subr.bf16.mxu0 0
    %1980 = vmatpush2.bf16.xpose.msra.mxu0 0
    %1981 = vmatprep.subr.bf16.mxu0 0
    %1982 = vmatpush2.bf16.xpose.msra.mxu0 0
    %1983 = vmatprep.subr.bf16.mxu0 0
    %1984 = vmatpush2.bf16.xpose.msra.mxu0 0
    %1985 = vmatprep.subr.bf16.mxu0 0
    %1986 = vmatpush2.bf16.xpose.msra.mxu0 0
    %1987 = vmatprep.subr.bf16.mxu0 0
    %1988 = vmatpush2.bf16.xpose.msra.mxu0 0
    %1989 = vmatprep.subr.bf16.mxu0 0
    %1990 = vmatpush2.bf16.xpose.msra.mxu0 0
    %1991 = vmatprep.mubr.bf16.mxu0 0
    %1992 = vmatmul.mubr.bf16.gmra.mxu0 %v1948
    %v1993 = vpop.f32.mrf.mxu0
    %v1994 = vadd.f32 0.0, %v1993
    %v1995 = vpop.f32.mrf.mxu0
    %v1996 = vpop.f32.mrf.mxu0
    %v1997 = vadd.f32 0.0, %v1996
    %v1998 = vpop.f32.mrf.mxu0
    %1999 = vmatprep.mubr.bf16.mxu0 0
    %2000 = vmatmul.mubr.bf16.gmra.mxu0 %v1951
    %v2001 = vpop.f32.mrf.mxu0
    %v2002 = vadd.f32 0.0, %v2001
    %v2003 = vpop.f32.mrf.mxu0
    %v2004 = vpop.f32.mrf.mxu0
    %v2005 = vadd.f32 0.0, %v2004
    %v2006 = vpop.f32.mrf.mxu0
    %2007 = vdwg.mxu0
    %v2008 = vmul.f32 %v1994, 0.125
    %v2009 = vmul.f32 %v1997, 0.125
    %v2010 = vmul.f32 %v2002, 0.125
    %v2011 = vmul.f32 %v2005, 0.125
    %v2012 = vsel %vm283, %v2008, -1e+30
    %v2013 = vsel %vm283, %v2009, -1e+30
    %v2014 = vsel %vm283, %v2010, -1e+30
    %v2015 = vsel %vm283, %v2011, -1e+30
    %v2016 = vsel %vm819, %v2012, -inf
    %2017 = vmax.xlane.f32.xlu0 %v2016
    %v2018 = vpop.xlane.xlu0 %2017
    %v2019 = vsel %vm819, %v2013, -inf
    %2020 = vmax.xlane.f32.xlu0 %v2019
    %v2021 = vpop.xlane.xlu0 %2020
    %v2022 = vsel %vm819, %v2014, -inf
    %2023 = vmax.xlane.f32.xlu0 %v2022
    %v2024 = vpop.xlane.xlu0 %2023
    %v2025 = vsel %vm819, %v2015, -inf
    %2026 = vmax.xlane.f32.xlu0 %v2025
    %v2027 = vpop.xlane.xlu0 %2026
    %v2028 = vsub.f32 %v2012, %v2018
    %v2029 = vsub.f32 %v2013, %v2021
    %v2030 = vsub.f32 %v2014, %v2024
    %v2031 = vsub.f32 %v2015, %v2027
    %v2032 = vmul.f32 %v2028, 1.442695
    %v2033 = vpow.pop %v2032
    %v2034 = vmul.f32 %v2029, 1.442695
    %v2035 = vpow.pop %v2034
    %v2036 = vmul.f32 %v2030, 1.442695
    %v2037 = vpow.pop %v2036
    %v2038 = vmul.f32 %v2031, 1.442695
    %v2039 = vpow.pop %v2038
    %v2040 = vsel %vm819, %v2033, 0.0
    %2041 = vadd.xlane.f32.xlu0 %v2040
    %v2042 = vpop.xlane.xlu0 %2041
    %v2043 = vsel %vm819, %v2035, 0.0
    %2044 = vadd.xlane.f32.xlu0 %v2043
    %v2045 = vpop.xlane.xlu0 %2044
    %v2046 = vsel %vm819, %v2037, 0.0
    %2047 = vadd.xlane.f32.xlu0 %v2046
    %v2048 = vpop.xlane.xlu0 %2047
    %v2049 = vsel %vm819, %v2039, 0.0
    %2050 = vadd.xlane.f32.xlu0 %v2049
    %v2051 = vpop.xlane.xlu0 %2050
    %v2052 = vrcp.pop %v2042
    %v2053 = vrcp.pop %v2045
    %v2054 = vrcp.pop %v2048
    %v2055 = vrcp.pop %v2051
    %v2056 = vmul.f32 %v2033, %v2052
    %v2057 = vmul.f32 %v2035, %v2053
    %v2058 = vmul.f32 %v2037, %v2054
    %v2059 = vmul.f32 %v2039, %v2055
    %v2060 = vpack.c.bf16 %v2057, %v2056
    %v2061 = vpack.c.bf16 %v2059, %v2058
    %2064 = vrot.lane.b32.xlu0 %v1761, 112
    %v2065 = vpop.permute.xlu0 %2064
    %2066 = vrot.lane.b32.xlu0 %v1762, 112
    %v2067 = vpop.permute.xlu0 %2066
    %v2071 = vsel %vm819, %v2060, 0
    %v2074 = vsel %vm819, %v2061, 0
    %2076 = vmatprep.subr.bf16.mxu0 0
    %2077 = vmatpush1.bf16.msra.mxu0 0
    %2078 = vmatprep.subr.bf16.mxu0 0
    %2079 = vmatpush1.bf16.msra.mxu0 0
    %2080 = vmatprep.subr.bf16.mxu0 0
    %2081 = vmatpush1.bf16.msra.mxu0 0
    %2082 = vmatprep.subr.bf16.mxu0 0
    %2083 = vmatpush1.bf16.msra.mxu0 0
    %2084 = vmatprep.subr.bf16.mxu0 0
    %2085 = vmatpush1.bf16.msra.mxu0 0
    %2086 = vmatprep.subr.bf16.mxu0 0
    %2087 = vmatpush1.bf16.msra.mxu0 0
    %2088 = vmatprep.subr.bf16.mxu0 0
    %2089 = vmatpush1.bf16.msra.mxu0 %v2067
    %2090 = vmatprep.subr.bf16.mxu0 0
    %2091 = vmatpush1.bf16.msra.mxu0 %v2065
    %2092 = vmatprep.subr.bf16.mxu0 0
    %2093 = vmatpush2.bf16.msra.mxu0 0
    %2094 = vmatprep.subr.bf16.mxu0 0
    %2095 = vmatpush2.bf16.msra.mxu0 0
    %2096 = vmatprep.subr.bf16.mxu0 0
    %2097 = vmatpush2.bf16.msra.mxu0 0
    %2098 = vmatprep.subr.bf16.mxu0 0
    %2099 = vmatpush2.bf16.msra.mxu0 0
    %2100 = vmatprep.subr.bf16.mxu0 0
    %2101 = vmatpush2.bf16.msra.mxu0 0
    %2102 = vmatprep.subr.bf16.mxu0 0
    %2103 = vmatpush2.bf16.msra.mxu0 0
    %2104 = vmatprep.subr.bf16.mxu0 0
    %2105 = vmatpush2.bf16.msra.mxu0 0
    %2106 = vmatprep.subr.bf16.mxu0 0
    %2107 = vmatpush2.bf16.msra.mxu0 0
    %2108 = vmatprep.mubr.bf16.mxu0 0
    %2109 = vmatmul.mubr.bf16.gmra.mxu0 %v2071
    %v2110 = vpop.f32.mrf.mxu0
    %v2111 = vadd.f32 0.0, %v2110
    %v2112 = vpop.f32.mrf.mxu0
    %v2113 = vpop.f32.mrf.mxu0
    %v2114 = vadd.f32 0.0, %v2113
    %v2115 = vpop.f32.mrf.mxu0
    %2116 = vmatprep.mubr.bf16.mxu0 0
    %2117 = vmatmul.mubr.bf16.gmra.mxu0 %v2074
    %v2118 = vpop.f32.mrf.mxu0
    %v2119 = vadd.f32 0.0, %v2118
    %v2120 = vpop.f32.mrf.mxu0
    %v2121 = vpop.f32.mrf.mxu0
    %v2122 = vadd.f32 0.0, %v2121
    %v2123 = vpop.f32.mrf.mxu0
    %2124 = vdwg.mxu0
    %v2125 = vpack.c.bf16 %v2114, %v2111
    %v2126 = vpack.c.bf16 %v2122, %v2119
    %v2128 = vsel %vm749, %v2125, 0
    %v2131 = vsel %vm749, %v2126, 0
    %2133 = vmatprep.subr.bf16.mxu0 0
    %2134 = vmatpush1.bf16.msra.mxu0 0
    %2135 = vmatprep.subr.bf16.mxu0 0
    %2136 = vmatpush1.bf16.msra.mxu0 0
    %2137 = vmatprep.subr.bf16.mxu0 0
    %2138 = vmatpush1.bf16.msra.mxu0 0
    %2139 = vmatprep.subr.bf16.mxu0 0
    %2140 = vmatpush1.bf16.msra.mxu0 0
    %2141 = vmatprep.subr.bf16.mxu0 0
    %2142 = vmatpush1.bf16.msra.mxu0 0
    %2143 = vmatprep.subr.bf16.mxu0 0
    %2144 = vmatpush1.bf16.msra.mxu0 0
    %2145 = vmatprep.subr.bf16.mxu0 0
    %2146 = vmatpush1.bf16.msra.mxu0 0
    %2147 = vmatprep.subr.bf16.mxu0 0
    %2148 = vmatpush1.bf16.msra.mxu0 %v1119
    %2149 = vmatprep.subr.bf16.mxu0 0
    %2150 = vmatpush2.bf16.msra.mxu0 0
    %2151 = vmatprep.subr.bf16.mxu0 0
    %2152 = vmatpush2.bf16.msra.mxu0 0
    %2153 = vmatprep.subr.bf16.mxu0 0
    %2154 = vmatpush2.bf16.msra.mxu0 0
    %2155 = vmatprep.subr.bf16.mxu0 0
    %2156 = vmatpush2.bf16.msra.mxu0 0
    %2157 = vmatprep.subr.bf16.mxu0 0
    %2158 = vmatpush2.bf16.msra.mxu0 0
    %2159 = vmatprep.subr.bf16.mxu0 0
    %2160 = vmatpush2.bf16.msra.mxu0 0
    %2161 = vmatprep.subr.bf16.mxu0 0
    %2162 = vmatpush2.bf16.msra.mxu0 0
    %2163 = vmatprep.subr.bf16.mxu0 0
    %2164 = vmatpush2.bf16.msra.mxu0 0
    %2165 = vmatprep.mubr.bf16.mxu0 0
    %2166 = vmatmul.mubr.bf16.gmra.mxu0 %v2128
    %v2167 = vpop.f32.mrf.mxu0
    %v2168 = vadd.f32 0.0, %v2167
    %v2169 = vpop.f32.mrf.mxu0
    %v2170 = vpop.f32.mrf.mxu0
    %v2171 = vadd.f32 0.0, %v2170
    %v2172 = vpop.f32.mrf.mxu0
    %2173 = vmatprep.mubr.bf16.mxu0 0
    %2174 = vmatmul.mubr.bf16.gmra.mxu0 %v2131
    %v2175 = vpop.f32.mrf.mxu0
    %v2176 = vadd.f32 0.0, %v2175
    %v2177 = vpop.f32.mrf.mxu0
    %v2178 = vpop.f32.mrf.mxu0
    %v2179 = vadd.f32 0.0, %v2178
    %v2180 = vpop.f32.mrf.mxu0
    %2181 = vdwg.mxu0
    %v2183 = vsel %vm749, %v1933, 0
    %v2186 = vsel %vm749, %v1934, 0
    %2188 = vmatprep.subr.bf16.mxu0 0
    %2189 = vmatpush1.bf16.msra.mxu0 0
    %2190 = vmatprep.subr.bf16.mxu0 0
    %2191 = vmatpush1.bf16.msra.mxu0 0
    %2192 = vmatprep.subr.bf16.mxu0 0
    %2193 = vmatpush1.bf16.msra.mxu0 0
    %2194 = vmatprep.subr.bf16.mxu0 0
    %2195 = vmatpush1.bf16.msra.mxu0 0
    %2196 = vmatprep.subr.bf16.mxu0 0
    %2197 = vmatpush1.bf16.msra.mxu0 0
    %2198 = vmatprep.subr.bf16.mxu0 0
    %2199 = vmatpush1.bf16.msra.mxu0 0
    %2200 = vmatprep.subr.bf16.mxu0 0
    %2201 = vmatpush1.bf16.msra.mxu0 0
    %2202 = vmatprep.subr.bf16.mxu0 0
    %2203 = vmatpush1.bf16.msra.mxu0 %v1180
    %2204 = vmatprep.subr.bf16.mxu0 0
    %2205 = vmatpush2.bf16.msra.mxu0 0
    %2206 = vmatprep.subr.bf16.mxu0 0
    %2207 = vmatpush2.bf16.msra.mxu0 0
    %2208 = vmatprep.subr.bf16.mxu0 0
    %2209 = vmatpush2.bf16.msra.mxu0 0
    %2210 = vmatprep.subr.bf16.mxu0 0
    %2211 = vmatpush2.bf16.msra.mxu0 0
    %2212 = vmatprep.subr.bf16.mxu0 0
    %2213 = vmatpush2.bf16.msra.mxu0 0
    %2214 = vmatprep.subr.bf16.mxu0 0
    %2215 = vmatpush2.bf16.msra.mxu0 0
    %2216 = vmatprep.subr.bf16.mxu0 0
    %2217 = vmatpush2.bf16.msra.mxu0 0
    %2218 = vmatprep.subr.bf16.mxu0 0
    %2219 = vmatpush2.bf16.msra.mxu0 0
    %2220 = vmatprep.mubr.bf16.mxu0 0
    %2221 = vmatmul.mubr.bf16.gmra.mxu0 %v2183
    %v2222 = vpop.f32.mrf.mxu0
    %v2223 = vadd.f32 %v2168, %v2222
    %v2224 = vpop.f32.mrf.mxu0
    %v2225 = vpop.f32.mrf.mxu0
    %v2226 = vadd.f32 %v2171, %v2225
    %v2227 = vpop.f32.mrf.mxu0
    %2228 = vmatprep.mubr.bf16.mxu0 0
    %2229 = vmatmul.mubr.bf16.gmra.mxu0 %v2186
    %v2230 = vpop.f32.mrf.mxu0
    %v2231 = vadd.f32 %v2176, %v2230
    %v2232 = vpop.f32.mrf.mxu0
    %v2233 = vpop.f32.mrf.mxu0
    %v2234 = vadd.f32 %v2179, %v2233
    %v2235 = vpop.f32.mrf.mxu0
    %2236 = vdwg.mxu0
    %2237 = vrot.lane.b32.xlu0 %v1757, 96
    %v2238 = vpop.permute.xlu0 %2237
    %2239 = vrot.lane.b32.xlu0 %v1758, 96
    %v2240 = vpop.permute.xlu0 %2239
    %2241 = vrot.lane.b32.xlu0 %v1759, 96
    %v2242 = vpop.permute.xlu0 %2241
    %2243 = vrot.lane.b32.xlu0 %v1760, 96
    %v2244 = vpop.permute.xlu0 %2243
    %v2246 = vsel %vm749, %v2238, 0
    %v2249 = vsel %vm749, %v2240, 0
    %v2252 = vsel %vm749, %v2242, 0
    %v2255 = vsel %vm749, %v2244, 0
    %2257 = vmatprep.subr.bf16.mxu0 0
    %2258 = vmatpush1.bf16.xpose.msra.mxu0 0
    %2259 = vmatprep.subr.bf16.mxu0 0
    %2260 = vmatpush1.bf16.xpose.msra.mxu0 0
    %2261 = vmatprep.subr.bf16.mxu0 0
    %2262 = vmatpush1.bf16.xpose.msra.mxu0 0
    %2263 = vmatprep.subr.bf16.mxu0 0
    %2264 = vmatpush1.bf16.xpose.msra.mxu0 0
    %2265 = vmatprep.subr.bf16.mxu0 0
    %2266 = vmatpush1.bf16.xpose.msra.mxu0 0
    %2267 = vmatprep.subr.bf16.mxu0 0
    %2268 = vmatpush1.bf16.xpose.msra.mxu0 0
    %2269 = vmatprep.subr.bf16.mxu0 0
    %2270 = vmatpush1.bf16.xpose.msra.mxu0 %v2255
    %2271 = vmatprep.subr.bf16.mxu0 0
    %2272 = vmatpush1.bf16.xpose.msra.mxu0 %v2252
    %2273 = vmatprep.subr.bf16.mxu0 0
    %2274 = vmatpush2.bf16.xpose.msra.mxu0 0
    %2275 = vmatprep.subr.bf16.mxu0 0
    %2276 = vmatpush2.bf16.xpose.msra.mxu0 0
    %2277 = vmatprep.subr.bf16.mxu0 0
    %2278 = vmatpush2.bf16.xpose.msra.mxu0 0
    %2279 = vmatprep.subr.bf16.mxu0 0
    %2280 = vmatpush2.bf16.xpose.msra.mxu0 0
    %2281 = vmatprep.subr.bf16.mxu0 0
    %2282 = vmatpush2.bf16.xpose.msra.mxu0 0
    %2283 = vmatprep.subr.bf16.mxu0 0
    %2284 = vmatpush2.bf16.xpose.msra.mxu0 0
    %2285 = vmatprep.subr.bf16.mxu0 0
    %2286 = vmatpush2.bf16.xpose.msra.mxu0 0
    %2287 = vmatprep.subr.bf16.mxu0 0
    %2288 = vmatpush2.bf16.xpose.msra.mxu0 0
    %2289 = vmatprep.mubr.bf16.mxu0 0
    %2290 = vmatmul.mubr.bf16.gmra.mxu0 %v2246
    %v2291 = vpop.f32.mrf.mxu0
    %v2292 = vadd.f32 0.0, %v2291
    %v2293 = vpop.f32.mrf.mxu0
    %v2294 = vpop.f32.mrf.mxu0
    %v2295 = vadd.f32 0.0, %v2294
    %v2296 = vpop.f32.mrf.mxu0
    %2297 = vmatprep.mubr.bf16.mxu0 0
    %2298 = vmatmul.mubr.bf16.gmra.mxu0 %v2249
    %v2299 = vpop.f32.mrf.mxu0
    %v2300 = vadd.f32 0.0, %v2299
    %v2301 = vpop.f32.mrf.mxu0
    %v2302 = vpop.f32.mrf.mxu0
    %v2303 = vadd.f32 0.0, %v2302
    %v2304 = vpop.f32.mrf.mxu0
    %2305 = vdwg.mxu0
    %v2306 = vmul.f32 %v2292, 0.125
    %v2307 = vmul.f32 %v2295, 0.125
    %v2308 = vmul.f32 %v2300, 0.125
    %v2309 = vmul.f32 %v2303, 0.125
    %v2310 = vsel %vm283, %v2306, -1e+30
    %v2311 = vsel %vm283, %v2307, -1e+30
    %v2312 = vsel %vm283, %v2308, -1e+30
    %v2313 = vsel %vm283, %v2309, -1e+30
    %v2314 = vsel %vm819, %v2310, -inf
    %2315 = vmax.xlane.f32.xlu0 %v2314
    %v2316 = vpop.xlane.xlu0 %2315
    %v2317 = vsel %vm819, %v2311, -inf
    %2318 = vmax.xlane.f32.xlu0 %v2317
    %v2319 = vpop.xlane.xlu0 %2318
    %v2320 = vsel %vm819, %v2312, -inf
    %2321 = vmax.xlane.f32.xlu0 %v2320
    %v2322 = vpop.xlane.xlu0 %2321
    %v2323 = vsel %vm819, %v2313, -inf
    %2324 = vmax.xlane.f32.xlu0 %v2323
    %v2325 = vpop.xlane.xlu0 %2324
    %v2326 = vsub.f32 %v2310, %v2316
    %v2327 = vsub.f32 %v2311, %v2319
    %v2328 = vsub.f32 %v2312, %v2322
    %v2329 = vsub.f32 %v2313, %v2325
    %v2330 = vmul.f32 %v2326, 1.442695
    %v2331 = vpow.pop %v2330
    %v2332 = vmul.f32 %v2327, 1.442695
    %v2333 = vpow.pop %v2332
    %v2334 = vmul.f32 %v2328, 1.442695
    %v2335 = vpow.pop %v2334
    %v2336 = vmul.f32 %v2329, 1.442695
    %v2337 = vpow.pop %v2336
    %v2338 = vsel %vm819, %v2331, 0.0
    %2339 = vadd.xlane.f32.xlu0 %v2338
    %v2340 = vpop.xlane.xlu0 %2339
    %v2341 = vsel %vm819, %v2333, 0.0
    %2342 = vadd.xlane.f32.xlu0 %v2341
    %v2343 = vpop.xlane.xlu0 %2342
    %v2344 = vsel %vm819, %v2335, 0.0
    %2345 = vadd.xlane.f32.xlu0 %v2344
    %v2346 = vpop.xlane.xlu0 %2345
    %v2347 = vsel %vm819, %v2337, 0.0
    %2348 = vadd.xlane.f32.xlu0 %v2347
    %v2349 = vpop.xlane.xlu0 %2348
    %v2350 = vrcp.pop %v2340
    %v2351 = vrcp.pop %v2343
    %v2352 = vrcp.pop %v2346
    %v2353 = vrcp.pop %v2349
    %v2354 = vmul.f32 %v2331, %v2350
    %v2355 = vmul.f32 %v2333, %v2351
    %v2356 = vmul.f32 %v2335, %v2352
    %v2357 = vmul.f32 %v2337, %v2353
    %v2358 = vpack.c.bf16 %v2355, %v2354
    %v2359 = vpack.c.bf16 %v2357, %v2356
    %2360 = vrot.lane.b32.xlu0 %v1761, 96
    %v2361 = vpop.permute.xlu0 %2360
    %2362 = vrot.lane.b32.xlu0 %v1762, 96
    %v2363 = vpop.permute.xlu0 %2362
    %v2367 = vsel %vm819, %v2358, 0
    %v2370 = vsel %vm819, %v2359, 0
    %2372 = vmatprep.subr.bf16.mxu0 0
    %2373 = vmatpush1.bf16.msra.mxu0 0
    %2374 = vmatprep.subr.bf16.mxu0 0
    %2375 = vmatpush1.bf16.msra.mxu0 0
    %2376 = vmatprep.subr.bf16.mxu0 0
    %2377 = vmatpush1.bf16.msra.mxu0 0
    %2378 = vmatprep.subr.bf16.mxu0 0
    %2379 = vmatpush1.bf16.msra.mxu0 0
    %2380 = vmatprep.subr.bf16.mxu0 0
    %2381 = vmatpush1.bf16.msra.mxu0 0
    %2382 = vmatprep.subr.bf16.mxu0 0
    %2383 = vmatpush1.bf16.msra.mxu0 0
    %2384 = vmatprep.subr.bf16.mxu0 0
    %2385 = vmatpush1.bf16.msra.mxu0 %v2363
    %2386 = vmatprep.subr.bf16.mxu0 0
    %2387 = vmatpush1.bf16.msra.mxu0 %v2361
    %2388 = vmatprep.subr.bf16.mxu0 0
    %2389 = vmatpush2.bf16.msra.mxu0 0
    %2390 = vmatprep.subr.bf16.mxu0 0
    %2391 = vmatpush2.bf16.msra.mxu0 0
    %2392 = vmatprep.subr.bf16.mxu0 0
    %2393 = vmatpush2.bf16.msra.mxu0 0
    %2394 = vmatprep.subr.bf16.mxu0 0
    %2395 = vmatpush2.bf16.msra.mxu0 0
    %2396 = vmatprep.subr.bf16.mxu0 0
    %2397 = vmatpush2.bf16.msra.mxu0 0
    %2398 = vmatprep.subr.bf16.mxu0 0
    %2399 = vmatpush2.bf16.msra.mxu0 0
    %2400 = vmatprep.subr.bf16.mxu0 0
    %2401 = vmatpush2.bf16.msra.mxu0 0
    %2402 = vmatprep.subr.bf16.mxu0 0
    %2403 = vmatpush2.bf16.msra.mxu0 0
    %2404 = vmatprep.mubr.bf16.mxu0 0
    %2405 = vmatmul.mubr.bf16.gmra.mxu0 %v2367
    %v2406 = vpop.f32.mrf.mxu0
    %v2407 = vadd.f32 0.0, %v2406
    %v2408 = vpop.f32.mrf.mxu0
    %v2409 = vpop.f32.mrf.mxu0
    %v2410 = vadd.f32 0.0, %v2409
    %v2411 = vpop.f32.mrf.mxu0
    %2412 = vmatprep.mubr.bf16.mxu0 0
    %2413 = vmatmul.mubr.bf16.gmra.mxu0 %v2370
    %v2414 = vpop.f32.mrf.mxu0
    %v2415 = vadd.f32 0.0, %v2414
    %v2416 = vpop.f32.mrf.mxu0
    %v2417 = vpop.f32.mrf.mxu0
    %v2418 = vadd.f32 0.0, %v2417
    %v2419 = vpop.f32.mrf.mxu0
    %2420 = vdwg.mxu0
    %v2421 = vpack.c.bf16 %v2410, %v2407
    %v2422 = vpack.c.bf16 %v2418, %v2415
    %v2424 = vsel %vm749, %v2421, 0
    %v2427 = vsel %vm749, %v2422, 0
    %2429 = vmatprep.subr.bf16.mxu0 0
    %2430 = vmatpush1.bf16.msra.mxu0 0
    %2431 = vmatprep.subr.bf16.mxu0 0
    %2432 = vmatpush1.bf16.msra.mxu0 0
    %2433 = vmatprep.subr.bf16.mxu0 0
    %2434 = vmatpush1.bf16.msra.mxu0 0
    %2435 = vmatprep.subr.bf16.mxu0 0
    %2436 = vmatpush1.bf16.msra.mxu0 0
    %2437 = vmatprep.subr.bf16.mxu0 0
    %2438 = vmatpush1.bf16.msra.mxu0 0
    %2439 = vmatprep.subr.bf16.mxu0 0
    %2440 = vmatpush1.bf16.msra.mxu0 0
    %2441 = vmatprep.subr.bf16.mxu0 0
    %2442 = vmatpush1.bf16.msra.mxu0 0
    %2443 = vmatprep.subr.bf16.mxu0 0
    %2444 = vmatpush1.bf16.msra.mxu0 %v1427
    %2445 = vmatprep.subr.bf16.mxu0 0
    %2446 = vmatpush2.bf16.msra.mxu0 0
    %2447 = vmatprep.subr.bf16.mxu0 0
    %2448 = vmatpush2.bf16.msra.mxu0 0
    %2449 = vmatprep.subr.bf16.mxu0 0
    %2450 = vmatpush2.bf16.msra.mxu0 0
    %2451 = vmatprep.subr.bf16.mxu0 0
    %2452 = vmatpush2.bf16.msra.mxu0 0
    %2453 = vmatprep.subr.bf16.mxu0 0
    %2454 = vmatpush2.bf16.msra.mxu0 0
    %2455 = vmatprep.subr.bf16.mxu0 0
    %2456 = vmatpush2.bf16.msra.mxu0 0
    %2457 = vmatprep.subr.bf16.mxu0 0
    %2458 = vmatpush2.bf16.msra.mxu0 0
    %2459 = vmatprep.subr.bf16.mxu0 0
    %2460 = vmatpush2.bf16.msra.mxu0 0
    %2461 = vmatprep.mubr.bf16.mxu0 0
    %2462 = vmatmul.mubr.bf16.gmra.mxu0 %v2424
    %v2463 = vpop.f32.mrf.mxu0
    %v2464 = vadd.f32 0.0, %v2463
    %v2465 = vpop.f32.mrf.mxu0
    %v2466 = vpop.f32.mrf.mxu0
    %v2467 = vadd.f32 0.0, %v2466
    %v2468 = vpop.f32.mrf.mxu0
    %2469 = vmatprep.mubr.bf16.mxu0 0
    %2470 = vmatmul.mubr.bf16.gmra.mxu0 %v2427
    %v2471 = vpop.f32.mrf.mxu0
    %v2472 = vadd.f32 0.0, %v2471
    %v2473 = vpop.f32.mrf.mxu0
    %v2474 = vpop.f32.mrf.mxu0
    %v2475 = vadd.f32 0.0, %v2474
    %v2476 = vpop.f32.mrf.mxu0
    %2477 = vdwg.mxu0
    %v2478 = vadd.f32 %v2223, %v2464
    %v2479 = vadd.f32 %v2226, %v2467
    %v2480 = vadd.f32 %v2231, %v2472
    %v2481 = vadd.f32 %v2234, %v2475
    %2482 = vrot.lane.b32.xlu0 %v1757, 80
    %v2483 = vpop.permute.xlu0 %2482
    %2484 = vrot.lane.b32.xlu0 %v1758, 80
    %v2485 = vpop.permute.xlu0 %2484
    %2486 = vrot.lane.b32.xlu0 %v1759, 80
    %v2487 = vpop.permute.xlu0 %2486
    %2488 = vrot.lane.b32.xlu0 %v1760, 80
    %v2489 = vpop.permute.xlu0 %2488
    %v2491 = vsel %vm749, %v2483, 0
    %v2494 = vsel %vm749, %v2485, 0
    %v2497 = vsel %vm749, %v2487, 0
    %v2500 = vsel %vm749, %v2489, 0
    %2502 = vmatprep.subr.bf16.mxu0 0
    %2503 = vmatpush1.bf16.xpose.msra.mxu0 0
    %2504 = vmatprep.subr.bf16.mxu0 0
    %2505 = vmatpush1.bf16.xpose.msra.mxu0 0
    %2506 = vmatprep.subr.bf16.mxu0 0
    %2507 = vmatpush1.bf16.xpose.msra.mxu0 0
    %2508 = vmatprep.subr.bf16.mxu0 0
    %2509 = vmatpush1.bf16.xpose.msra.mxu0 0
    %2510 = vmatprep.subr.bf16.mxu0 0
    %2511 = vmatpush1.bf16.xpose.msra.mxu0 0
    %2512 = vmatprep.subr.bf16.mxu0 0
    %2513 = vmatpush1.bf16.xpose.msra.mxu0 0
    %2514 = vmatprep.subr.bf16.mxu0 0
    %2515 = vmatpush1.bf16.xpose.msra.mxu0 %v2500
    %2516 = vmatprep.subr.bf16.mxu0 0
    %2517 = vmatpush1.bf16.xpose.msra.mxu0 %v2497
    %2518 = vmatprep.subr.bf16.mxu0 0
    %2519 = vmatpush2.bf16.xpose.msra.mxu0 0
    %2520 = vmatprep.subr.bf16.mxu0 0
    %2521 = vmatpush2.bf16.xpose.msra.mxu0 0
    %2522 = vmatprep.subr.bf16.mxu0 0
    %2523 = vmatpush2.bf16.xpose.msra.mxu0 0
    %2524 = vmatprep.subr.bf16.mxu0 0
    %2525 = vmatpush2.bf16.xpose.msra.mxu0 0
    %2526 = vmatprep.subr.bf16.mxu0 0
    %2527 = vmatpush2.bf16.xpose.msra.mxu0 0
    %2528 = vmatprep.subr.bf16.mxu0 0
    %2529 = vmatpush2.bf16.xpose.msra.mxu0 0
    %2530 = vmatprep.subr.bf16.mxu0 0
    %2531 = vmatpush2.bf16.xpose.msra.mxu0 0
    %2532 = vmatprep.subr.bf16.mxu0 0
    %2533 = vmatpush2.bf16.xpose.msra.mxu0 0
    %2534 = vmatprep.mubr.bf16.mxu0 0
    %2535 = vmatmul.mubr.bf16.gmra.mxu0 %v2491
    %v2536 = vpop.f32.mrf.mxu0
    %v2537 = vadd.f32 0.0, %v2536
    %v2538 = vpop.f32.mrf.mxu0
    %v2539 = vpop.f32.mrf.mxu0
    %v2540 = vadd.f32 0.0, %v2539
    %v2541 = vpop.f32.mrf.mxu0
    %2542 = vmatprep.mubr.bf16.mxu0 0
    %2543 = vmatmul.mubr.bf16.gmra.mxu0 %v2494
    %v2544 = vpop.f32.mrf.mxu0
    %v2545 = vadd.f32 0.0, %v2544
    %v2546 = vpop.f32.mrf.mxu0
    %v2547 = vpop.f32.mrf.mxu0
    %v2548 = vadd.f32 0.0, %v2547
    %v2549 = vpop.f32.mrf.mxu0
    %2550 = vdwg.mxu0
    %v2551 = vmul.f32 %v2537, 0.125
    %v2552 = vmul.f32 %v2540, 0.125
    %v2553 = vmul.f32 %v2545, 0.125
    %v2554 = vmul.f32 %v2548, 0.125
    %v2555 = vsel %vm283, %v2551, -1e+30
    %v2556 = vsel %vm283, %v2552, -1e+30
    %v2557 = vsel %vm283, %v2553, -1e+30
    %v2558 = vsel %vm283, %v2554, -1e+30
    %v2559 = vsel %vm819, %v2555, -inf
    %2560 = vmax.xlane.f32.xlu0 %v2559
    %v2561 = vpop.xlane.xlu0 %2560
    %v2562 = vsel %vm819, %v2556, -inf
    %2563 = vmax.xlane.f32.xlu0 %v2562
    %v2564 = vpop.xlane.xlu0 %2563
    %v2565 = vsel %vm819, %v2557, -inf
    %2566 = vmax.xlane.f32.xlu0 %v2565
    %v2567 = vpop.xlane.xlu0 %2566
    %v2568 = vsel %vm819, %v2558, -inf
    %2569 = vmax.xlane.f32.xlu0 %v2568
    %v2570 = vpop.xlane.xlu0 %2569
    %v2571 = vsub.f32 %v2555, %v2561
    %v2572 = vsub.f32 %v2556, %v2564
    %v2573 = vsub.f32 %v2557, %v2567
    %v2574 = vsub.f32 %v2558, %v2570
    %v2575 = vmul.f32 %v2571, 1.442695
    %v2576 = vpow.pop %v2575
    %v2577 = vmul.f32 %v2572, 1.442695
    %v2578 = vpow.pop %v2577
    %v2579 = vmul.f32 %v2573, 1.442695
    %v2580 = vpow.pop %v2579
    %v2581 = vmul.f32 %v2574, 1.442695
    %v2582 = vpow.pop %v2581
    %v2583 = vsel %vm819, %v2576, 0.0
    %2584 = vadd.xlane.f32.xlu0 %v2583
    %v2585 = vpop.xlane.xlu0 %2584
    %v2586 = vsel %vm819, %v2578, 0.0
    %2587 = vadd.xlane.f32.xlu0 %v2586
    %v2588 = vpop.xlane.xlu0 %2587
    %v2589 = vsel %vm819, %v2580, 0.0
    %2590 = vadd.xlane.f32.xlu0 %v2589
    %v2591 = vpop.xlane.xlu0 %2590
    %v2592 = vsel %vm819, %v2582, 0.0
    %2593 = vadd.xlane.f32.xlu0 %v2592
    %v2594 = vpop.xlane.xlu0 %2593
    %v2595 = vrcp.pop %v2585
    %v2596 = vrcp.pop %v2588
    %v2597 = vrcp.pop %v2591
    %v2598 = vrcp.pop %v2594
    %v2599 = vmul.f32 %v2576, %v2595
    %v2600 = vmul.f32 %v2578, %v2596
    %v2601 = vmul.f32 %v2580, %v2597
    %v2602 = vmul.f32 %v2582, %v2598
    %v2603 = vpack.c.bf16 %v2600, %v2599
    %v2604 = vpack.c.bf16 %v2602, %v2601
    %2605 = vrot.lane.b32.xlu0 %v1761, 80
    %v2606 = vpop.permute.xlu0 %2605
    %2607 = vrot.lane.b32.xlu0 %v1762, 80
    %v2608 = vpop.permute.xlu0 %2607
    %v2612 = vsel %vm819, %v2603, 0
    %v2615 = vsel %vm819, %v2604, 0
    %2617 = vmatprep.subr.bf16.mxu0 0
    %2618 = vmatpush1.bf16.msra.mxu0 0
    %2619 = vmatprep.subr.bf16.mxu0 0
    %2620 = vmatpush1.bf16.msra.mxu0 0
    %2621 = vmatprep.subr.bf16.mxu0 0
    %2622 = vmatpush1.bf16.msra.mxu0 0
    %2623 = vmatprep.subr.bf16.mxu0 0
    %2624 = vmatpush1.bf16.msra.mxu0 0
    %2625 = vmatprep.subr.bf16.mxu0 0
    %2626 = vmatpush1.bf16.msra.mxu0 0
    %2627 = vmatprep.subr.bf16.mxu0 0
    %2628 = vmatpush1.bf16.msra.mxu0 0
    %2629 = vmatprep.subr.bf16.mxu0 0
    %2630 = vmatpush1.bf16.msra.mxu0 %v2608
    %2631 = vmatprep.subr.bf16.mxu0 0
    %2632 = vmatpush1.bf16.msra.mxu0 %v2606
    %2633 = vmatprep.subr.bf16.mxu0 0
    %2634 = vmatpush2.bf16.msra.mxu0 0
    %2635 = vmatprep.subr.bf16.mxu0 0
    %2636 = vmatpush2.bf16.msra.mxu0 0
    %2637 = vmatprep.subr.bf16.mxu0 0
    %2638 = vmatpush2.bf16.msra.mxu0 0
    %2639 = vmatprep.subr.bf16.mxu0 0
    %2640 = vmatpush2.bf16.msra.mxu0 0
    %2641 = vmatprep.subr.bf16.mxu0 0
    %2642 = vmatpush2.bf16.msra.mxu0 0
    %2643 = vmatprep.subr.bf16.mxu0 0
    %2644 = vmatpush2.bf16.msra.mxu0 0
    %2645 = vmatprep.subr.bf16.mxu0 0
    %2646 = vmatpush2.bf16.msra.mxu0 0
    %2647 = vmatprep.subr.bf16.mxu0 0
    %2648 = vmatpush2.bf16.msra.mxu0 0
    %2649 = vmatprep.mubr.bf16.mxu0 0
    %2650 = vmatmul.mubr.bf16.gmra.mxu0 %v2612
    %v2651 = vpop.f32.mrf.mxu0
    %v2652 = vadd.f32 0.0, %v2651
    %v2653 = vpop.f32.mrf.mxu0
    %v2654 = vpop.f32.mrf.mxu0
    %v2655 = vadd.f32 0.0, %v2654
    %v2656 = vpop.f32.mrf.mxu0
    %2657 = vmatprep.mubr.bf16.mxu0 0
    %2658 = vmatmul.mubr.bf16.gmra.mxu0 %v2615
    %v2659 = vpop.f32.mrf.mxu0
    %v2660 = vadd.f32 0.0, %v2659
    %v2661 = vpop.f32.mrf.mxu0
    %v2662 = vpop.f32.mrf.mxu0
    %v2663 = vadd.f32 0.0, %v2662
    %v2664 = vpop.f32.mrf.mxu0
    %2665 = vdwg.mxu0
    %v2666 = vpack.c.bf16 %v2655, %v2652
    %v2667 = vpack.c.bf16 %v2663, %v2660
    %v2669 = vsel %vm749, %v2666, 0
    %v2672 = vsel %vm749, %v2667, 0
    %2674 = vmatprep.subr.bf16.mxu0 0
    %2675 = vmatpush1.bf16.msra.mxu0 0
    %2676 = vmatprep.subr.bf16.mxu0 0
    %2677 = vmatpush1.bf16.msra.mxu0 0
    %2678 = vmatprep.subr.bf16.mxu0 0
    %2679 = vmatpush1.bf16.msra.mxu0 0
    %2680 = vmatprep.subr.bf16.mxu0 0
    %2681 = vmatpush1.bf16.msra.mxu0 0
    %2682 = vmatprep.subr.bf16.mxu0 0
    %2683 = vmatpush1.bf16.msra.mxu0 0
    %2684 = vmatprep.subr.bf16.mxu0 0
    %2685 = vmatpush1.bf16.msra.mxu0 0
    %2686 = vmatprep.subr.bf16.mxu0 0
    %2687 = vmatpush1.bf16.msra.mxu0 0
    %2688 = vmatprep.subr.bf16.mxu0 0
    %2689 = vmatpush1.bf16.msra.mxu0 %v1678
    %2690 = vmatprep.subr.bf16.mxu0 0
    %2691 = vmatpush2.bf16.msra.mxu0 0
    %2692 = vmatprep.subr.bf16.mxu0 0
    %2693 = vmatpush2.bf16.msra.mxu0 0
    %2694 = vmatprep.subr.bf16.mxu0 0
    %2695 = vmatpush2.bf16.msra.mxu0 0
    %2696 = vmatprep.subr.bf16.mxu0 0
    %2697 = vmatpush2.bf16.msra.mxu0 0
    %2698 = vmatprep.subr.bf16.mxu0 0
    %2699 = vmatpush2.bf16.msra.mxu0 0
    %2700 = vmatprep.subr.bf16.mxu0 0
    %2701 = vmatpush2.bf16.msra.mxu0 0
    %2702 = vmatprep.subr.bf16.mxu0 0
    %2703 = vmatpush2.bf16.msra.mxu0 0
    %2704 = vmatprep.subr.bf16.mxu0 0
    %2705 = vmatpush2.bf16.msra.mxu0 0
    %2706 = vmatprep.mubr.bf16.mxu0 0
    %2707 = vmatmul.mubr.bf16.gmra.mxu0 %v2669
    %v2708 = vpop.f32.mrf.mxu0
    %v2709 = vadd.f32 0.0, %v2708
    %v2710 = vpop.f32.mrf.mxu0
    %v2711 = vpop.f32.mrf.mxu0
    %v2712 = vadd.f32 0.0, %v2711
    %v2713 = vpop.f32.mrf.mxu0
    %2714 = vmatprep.mubr.bf16.mxu0 0
    %2715 = vmatmul.mubr.bf16.gmra.mxu0 %v2672
    %v2716 = vpop.f32.mrf.mxu0
    %v2717 = vadd.f32 0.0, %v2716
    %v2718 = vpop.f32.mrf.mxu0
    %v2719 = vpop.f32.mrf.mxu0
    %v2720 = vadd.f32 0.0, %v2719
    %v2721 = vpop.f32.mrf.mxu0
    %2722 = vdwg.mxu0
    %v2723 = vadd.f32 %v2478, %v2709
    %v2724 = vadd.f32 %v2479, %v2712
    %v2725 = vadd.f32 %v2480, %v2717
    %v2726 = vadd.f32 %v2481, %v2720
    %v2727 = vadd.f32 %v288, %v2723
    %v2728 = vadd.f32 %v289, %v2724
    %v2729 = vadd.f32 %v290, %v2725
    %v2730 = vadd.f32 %v291, %v2726
    %v2731 = vadd.f32 %v2727, %v1747
    %v2732 = vadd.f32 %v2728, %v1747
    %v2733 = vadd.f32 %v2729, %v1747
    %v2734 = vadd.f32 %v2730, %v1747
    %2735 = vst.msk [vmem:[#allocation2 + $0x20] sm:$0xff] %vm272, %v2731
    %2736 = vst.msk [vmem:[#allocation2 + $0x28] sm:$0xff] %vm272, %v2732
    %2737 = vst.msk [vmem:[#allocation2 + $0x30] sm:$0xff] %vm272, %v2733
    %2738 = vst.msk [vmem:[#allocation2 + $0x38] sm:$0xff] %vm272, %v2734
    %v2739 = vld [vmem:[#allocation2] sm:$0xff]
    %v2740 = vld [vmem:[#allocation2 + $0x8] sm:$0xff]
    %v2741 = vld [vmem:[#allocation2 + $0x10] sm:$0xff]
    %v2742 = vld [vmem:[#allocation2 + $0x18] sm:$0xff]
    %v2743 = vld [vmem:[#allocation2 + $0x20] sm:$0xff]
    %v2744 = vld [vmem:[#allocation2 + $0x28] sm:$0xff]
    %v2745 = vld [vmem:[#allocation2 + $0x30] sm:$0xff]
    %v2746 = vld [vmem:[#allocation2 + $0x38] sm:$0xff]
    %v2747 = vld [vmem:[%s21] sm:$0x1]
    %v2748 = vld [vmem:[%s23] sm:$0x1]
    %v2749 = vsel %vm272, %v2739, 0.0
    %2750 = vadd.xlane.f32.xlu0 %v2749
    %v2751 = vpop.xlane.xlu0 %2750
    %v2752 = vsel %vm272, %v2740, 0.0
    %2753 = vadd.xlane.f32.xlu0 %v2752
    %v2754 = vpop.xlane.xlu0 %2753
    %v2755 = vsel %vm272, %v2741, 0.0
    %2756 = vadd.xlane.f32.xlu0 %v2755
    %v2757 = vpop.xlane.xlu0 %2756
    %v2758 = vsel %vm272, %v2742, 0.0
    %2759 = vadd.xlane.f32.xlu0 %v2758
    %v2760 = vpop.xlane.xlu0 %2759
    %v2761 = vsel %vm272, %v2743, 0.0
    %2762 = vadd.xlane.f32.xlu0 %v2761
    %v2763 = vpop.xlane.xlu0 %2762
    %v2764 = vsel %vm272, %v2744, 0.0
    %2765 = vadd.xlane.f32.xlu0 %v2764
    %v2766 = vpop.xlane.xlu0 %2765
    %v2767 = vsel %vm272, %v2745, 0.0
    %2768 = vadd.xlane.f32.xlu0 %v2767
    %v2769 = vpop.xlane.xlu0 %2768
    %v2770 = vsel %vm272, %v2746, 0.0
    %2771 = vadd.xlane.f32.xlu0 %v2770
    %v2772 = vpop.xlane.xlu0 %2771
    %v2773 = vmul.f32 %v2751, %v318
    %v2774 = vmul.f32 %v2754, %v318
    %v2775 = vmul.f32 %v2757, %v318
    %v2776 = vmul.f32 %v2760, %v318
    %v2777 = vmul.f32 %v2763, %v318
    %v2778 = vmul.f32 %v2766, %v318
    %v2779 = vmul.f32 %v2769, %v318
    %v2780 = vmul.f32 %v2772, %v318
    %v2781 = vsub.f32 %v2739, %v2773
    %v2782 = vsub.f32 %v2740, %v2774
    %v2783 = vsub.f32 %v2741, %v2775
    %v2784 = vsub.f32 %v2742, %v2776
    %v2785 = vsub.f32 %v2743, %v2777
    %v2786 = vsub.f32 %v2744, %v2778
    %v2787 = vsub.f32 %v2745, %v2779
    %v2788 = vsub.f32 %v2746, %v2780
    %v2789 = vmul.f32 %v2781, %v2781
    %v2790 = vmul.f32 %v2782, %v2782
    %v2791 = vmul.f32 %v2783, %v2783
    %v2792 = vmul.f32 %v2784, %v2784
    %v2793 = vmul.f32 %v2785, %v2785
    %v2794 = vmul.f32 %v2786, %v2786
    %v2795 = vmul.f32 %v2787, %v2787
    %v2796 = vmul.f32 %v2788, %v2788
    %v2797 = vsel %vm272, %v2789, 0.0
    %2798 = vadd.xlane.f32.xlu0 %v2797
    %v2799 = vpop.xlane.xlu0 %2798
    %v2800 = vsel %vm272, %v2790, 0.0
    %2801 = vadd.xlane.f32.xlu0 %v2800
    %v2802 = vpop.xlane.xlu0 %2801
    %v2803 = vsel %vm272, %v2791, 0.0
    %2804 = vadd.xlane.f32.xlu0 %v2803
    %v2805 = vpop.xlane.xlu0 %2804
    %v2806 = vsel %vm272, %v2792, 0.0
    %2807 = vadd.xlane.f32.xlu0 %v2806
    %v2808 = vpop.xlane.xlu0 %2807
    %v2809 = vsel %vm272, %v2793, 0.0
    %2810 = vadd.xlane.f32.xlu0 %v2809
    %v2811 = vpop.xlane.xlu0 %2810
    %v2812 = vsel %vm272, %v2794, 0.0
    %2813 = vadd.xlane.f32.xlu0 %v2812
    %v2814 = vpop.xlane.xlu0 %2813
    %v2815 = vsel %vm272, %v2795, 0.0
    %2816 = vadd.xlane.f32.xlu0 %v2815
    %v2817 = vpop.xlane.xlu0 %2816
    %v2818 = vsel %vm272, %v2796, 0.0
    %2819 = vadd.xlane.f32.xlu0 %v2818
    %v2820 = vpop.xlane.xlu0 %2819
    %v2821 = vmul.f32 %v2799, %v318
    %v2822 = vmul.f32 %v2802, %v318
    %v2823 = vmul.f32 %v2805, %v318
    %v2824 = vmul.f32 %v2808, %v318
    %v2825 = vmul.f32 %v2811, %v318
    %v2826 = vmul.f32 %v2814, %v318
    %v2827 = vmul.f32 %v2817, %v318
    %v2828 = vmul.f32 %v2820, %v318
    %v2829 = vadd.f32 %v2821, 1e-05
    %v2830 = vadd.f32 %v2822, 1e-05
    %v2831 = vadd.f32 %v2823, 1e-05
    %v2832 = vadd.f32 %v2824, 1e-05
    %v2833 = vadd.f32 %v2825, 1e-05
    %v2834 = vadd.f32 %v2826, 1e-05
    %v2835 = vadd.f32 %v2827, 1e-05
    %v2836 = vadd.f32 %v2828, 1e-05
    %v2837 = vrsqrt.pop %v2829
    %v2838 = vrsqrt.pop %v2830
    %v2839 = vrsqrt.pop %v2831
    %v2840 = vrsqrt.pop %v2832
    %v2841 = vrsqrt.pop %v2833
    %v2842 = vrsqrt.pop %v2834
    %v2843 = vrsqrt.pop %v2835
    %v2844 = vrsqrt.pop %v2836
    %v2845 = vmul.f32 %v2781, %v2837
    %v2846 = vmul.f32 %v2782, %v2838
    %v2847 = vmul.f32 %v2783, %v2839
    %v2848 = vmul.f32 %v2784, %v2840
    %v2849 = vmul.f32 %v2785, %v2841
    %v2850 = vmul.f32 %v2786, %v2842
    %v2851 = vmul.f32 %v2787, %v2843
    %v2852 = vmul.f32 %v2788, %v2844
    %v2854 = vlaneseq
    %v2855 = vshrl.u32 %v2854, 7
    %v2856 = vsub.s32 0, %v2855
    %v2857 = vrot.slane %v2747, %v2856
    %v2859 = vmul.f32 %v2845, %v2857
    %v2860 = vmul.f32 %v2846, %v2857
    %v2861 = vmul.f32 %v2847, %v2857
    %v2862 = vmul.f32 %v2848, %v2857
    %v2863 = vmul.f32 %v2849, %v2857
    %v2864 = vmul.f32 %v2850, %v2857
    %v2865 = vmul.f32 %v2851, %v2857
    %v2866 = vmul.f32 %v2852, %v2857
    %v2868 = vlaneseq
    %v2869 = vshrl.u32 %v2868, 7
    %v2870 = vsub.s32 0, %v2869
    %v2871 = vrot.slane %v2748, %v2870
    %v2873 = vadd.f32 %v2859, %v2871
    %v2874 = vadd.f32 %v2860, %v2871
    %v2875 = vadd.f32 %v2861, %v2871
    %v2876 = vadd.f32 %v2862, %v2871
    %v2877 = vadd.f32 %v2863, %v2871
    %v2878 = vadd.f32 %v2864, %v2871
    %v2879 = vadd.f32 %v2865, %v2871
    %v2880 = vadd.f32 %v2866, %v2871
    %v2881 = vpack.c.bf16 %v2874, %v2873
    %v2882 = vpack.c.bf16 %v2876, %v2875
    %v2883 = vpack.c.bf16 %v2878, %v2877
    %v2884 = vpack.c.bf16 %v2880, %v2879
    %v2885 = vld [vmem:[%s25] sm:$0xf]
    %v2886 = vld [vmem:[%s25 + $0x4] sm:$0xf]
    %v2887 = vld [vmem:[%s25 + $0x8] sm:$0xf]
    %v2888 = vld [vmem:[%s25 + $0xc] sm:$0xf]
    %v2889 = vld [vmem:[%s25 + $0x10] sm:$0xf]
    %v2890 = vld [vmem:[%s25 + $0x14] sm:$0xf]
    %v2891 = vld [vmem:[%s25 + $0x18] sm:$0xf]
    %v2892 = vld [vmem:[%s25 + $0x1c] sm:$0xf]
    %v2893 = vld [vmem:[%s27] sm:$0x1]
    %v2895 = vlaneseq
    %v2896 = vshrl.u32 %v2895, 7
    %v2897 = vsub.s32 0, %v2896
    %v2898 = vrot.slane %v2893, %v2897
    %v2908 = vunpack.c.l.b16 %v2885
    %v2909 = vunpack.c.l.b16 %v2886
    %v2910 = vunpack.c.l.b16 %v2887
    %v2911 = vunpack.c.l.b16 %v2888
    %v2912 = vunpack.c.l.b16 %v2889
    %v2913 = vunpack.c.l.b16 %v2890
    %v2914 = vunpack.c.l.b16 %v2891
    %v2915 = vunpack.c.l.b16 %v2892
    %v2916 = vpack.c.b16 %v2909, %v2908
    %v2917 = vpack.c.b16 %v2911, %v2910
    %v2918 = vpack.c.b16 %v2913, %v2912
    %v2919 = vpack.c.b16 %v2915, %v2914
    %v2925 = vsel %vm272, %v2881, 0
    %v2928 = vsel %vm272, %v2882, 0
    %v2931 = vsel %vm272, %v2883, 0
    %v2934 = vsel %vm272, %v2884, 0
    %2936 = vmatprep.subr.bf16.mxu0 0
    %2937 = vmatpush1.bf16.msra.mxu0 0
    %2938 = vmatprep.subr.bf16.mxu0 0
    %2939 = vmatpush1.bf16.msra.mxu0 0
    %2940 = vmatprep.subr.bf16.mxu0 0
    %2941 = vmatpush1.bf16.msra.mxu0 0
    %2942 = vmatprep.subr.bf16.mxu0 0
    %2943 = vmatpush1.bf16.msra.mxu0 0
    %2944 = vmatprep.subr.bf16.mxu0 0
    %2945 = vmatpush1.bf16.msra.mxu0 %v2919
    %2946 = vmatprep.subr.bf16.mxu0 0
    %2947 = vmatpush1.bf16.msra.mxu0 %v2918
    %2948 = vmatprep.subr.bf16.mxu0 0
    %2949 = vmatpush1.bf16.msra.mxu0 %v2917
    %2950 = vmatprep.subr.bf16.mxu0 0
    %2951 = vmatpush1.bf16.msra.mxu0 %v2916
    %2952 = vmatprep.subr.bf16.mxu0 0
    %2953 = vmatpush2.bf16.msra.mxu0 0
    %2954 = vmatprep.subr.bf16.mxu0 0
    %2955 = vmatpush2.bf16.msra.mxu0 0
    %2956 = vmatprep.subr.bf16.mxu0 0
    %2957 = vmatpush2.bf16.msra.mxu0 0
    %2958 = vmatprep.subr.bf16.mxu0 0
    %2959 = vmatpush2.bf16.msra.mxu0 0
    %2960 = vmatprep.subr.bf16.mxu0 0
    %2961 = vmatpush2.bf16.msra.mxu0 0
    %2962 = vmatprep.subr.bf16.mxu0 0
    %2963 = vmatpush2.bf16.msra.mxu0 0
    %2964 = vmatprep.subr.bf16.mxu0 0
    %2965 = vmatpush2.bf16.msra.mxu0 0
    %2966 = vmatprep.subr.bf16.mxu0 0
    %2967 = vmatpush2.bf16.msra.mxu0 0
    %2968 = vmatprep.mubr.bf16.mxu0 0
    %2969 = vmatmul.mubr.bf16.gmra.mxu0 %v2925
    %v2970 = vpop.f32.mrf.mxu0
    %v2971 = vadd.f32 %v2898, %v2970
    %v2972 = vpop.f32.mrf.mxu0
    %v2973 = vpop.f32.mrf.mxu0
    %v2974 = vadd.f32 %v2898, %v2973
    %v2975 = vpop.f32.mrf.mxu0
    %2976 = vmatprep.mubr.bf16.mxu0 0
    %2977 = vmatmul.mubr.bf16.gmra.mxu0 %v2928
    %v2978 = vpop.f32.mrf.mxu0
    %v2979 = vadd.f32 %v2898, %v2978
    %v2980 = vpop.f32.mrf.mxu0
    %v2981 = vpop.f32.mrf.mxu0
    %v2982 = vadd.f32 %v2898, %v2981
    %v2983 = vpop.f32.mrf.mxu0
    %2984 = vmatprep.mubr.bf16.mxu0 0
    %2985 = vmatmul.mubr.bf16.gmra.mxu0 %v2931
    %v2986 = vpop.f32.mrf.mxu0
    %v2987 = vadd.f32 %v2898, %v2986
    %v2988 = vpop.f32.mrf.mxu0
    %v2989 = vpop.f32.mrf.mxu0
    %v2990 = vadd.f32 %v2898, %v2989
    %v2991 = vpop.f32.mrf.mxu0
    %2992 = vmatprep.mubr.bf16.mxu0 0
    %2993 = vmatmul.mubr.bf16.gmra.mxu0 %v2934
    %v2994 = vpop.f32.mrf.mxu0
    %v2995 = vadd.f32 %v2898, %v2994
    %v2996 = vpop.f32.mrf.mxu0
    %v2997 = vpop.f32.mrf.mxu0
    %v2998 = vadd.f32 %v2898, %v2997
    %v2999 = vpop.f32.mrf.mxu0
    %3000 = vdwg.mxu0
    %v3001 = vmul.f32 %v2971, 0.5
    %v3002 = vmul.f32 %v2974, 0.5
    %v3003 = vmul.f32 %v2979, 0.5
    %v3004 = vmul.f32 %v2982, 0.5
    %v3005 = vmul.f32 %v2987, 0.5
    %v3006 = vmul.f32 %v2990, 0.5
    %v3007 = vmul.f32 %v2995, 0.5
    %v3008 = vmul.f32 %v2998, 0.5
    %v3009 = vmul.f32 %v2971, 0.70710677
    %v3010 = vmul.f32 %v2974, 0.70710677
    %v3011 = vmul.f32 %v2979, 0.70710677
    %v3012 = vmul.f32 %v2982, 0.70710677
    %v3013 = vmul.f32 %v2987, 0.70710677
    %v3014 = vmul.f32 %v2990, 0.70710677
    %v3015 = vmul.f32 %v2995, 0.70710677
    %v3016 = vmul.f32 %v2998, 0.70710677
    %v3017 = vand.u32 2147483647, %v3009
    %v3018 = vand.u32 2147483647, %v3010
    %v3019 = vand.u32 2147483647, %v3011
    %v3020 = vand.u32 2147483647, %v3012
    %v3021 = vand.u32 2147483647, %v3013
    %v3022 = vand.u32 2147483647, %v3014
    %v3023 = vand.u32 2147483647, %v3015
    %v3024 = vand.u32 2147483647, %v3016
    %v3025 = vmul.f32 %v3017, 0.3275911
    %v3026 = vmul.f32 %v3018, 0.3275911
    %v3027 = vmul.f32 %v3019, 0.3275911
    %v3028 = vmul.f32 %v3020, 0.3275911
    %v3029 = vmul.f32 %v3021, 0.3275911
    %v3030 = vmul.f32 %v3022, 0.3275911
    %v3031 = vmul.f32 %v3023, 0.3275911
    %v3032 = vmul.f32 %v3024, 0.3275911
    %v3033 = vadd.f32 %v3025, 1.0
    %v3034 = vadd.f32 %v3026, 1.0
    %v3035 = vadd.f32 %v3027, 1.0
    %v3036 = vadd.f32 %v3028, 1.0
    %v3037 = vadd.f32 %v3029, 1.0
    %v3038 = vadd.f32 %v3030, 1.0
    %v3039 = vadd.f32 %v3031, 1.0
    %v3040 = vadd.f32 %v3032, 1.0
    %v3041 = vrcp.pop %v3033
    %v3042 = vmul.f32 1.0, %v3041
    %v3043 = vrcp.pop %v3034
    %v3044 = vmul.f32 1.0, %v3043
    %v3045 = vrcp.pop %v3035
    %v3046 = vmul.f32 1.0, %v3045
    %v3047 = vrcp.pop %v3036
    %v3048 = vmul.f32 1.0, %v3047
    %v3049 = vrcp.pop %v3037
    %v3050 = vmul.f32 1.0, %v3049
    %v3051 = vrcp.pop %v3038
    %v3052 = vmul.f32 1.0, %v3051
    %v3053 = vrcp.pop %v3039
    %v3054 = vmul.f32 1.0, %v3053
    %v3055 = vrcp.pop %v3040
    %v3056 = vmul.f32 1.0, %v3055
    %v3057 = vmul.f32 %v3042, 1.0614054
    %v3058 = vmul.f32 %v3044, 1.0614054
    %v3059 = vmul.f32 %v3046, 1.0614054
    %v3060 = vmul.f32 %v3048, 1.0614054
    %v3061 = vmul.f32 %v3050, 1.0614054
    %v3062 = vmul.f32 %v3052, 1.0614054
    %v3063 = vmul.f32 %v3054, 1.0614054
    %v3064 = vmul.f32 %v3056, 1.0614054
    %v3065 = vadd.f32 %v3057, -1.4531521
    %v3066 = vadd.f32 %v3058, -1.4531521
    %v3067 = vadd.f32 %v3059, -1.4531521
    %v3068 = vadd.f32 %v3060, -1.4531521
    %v3069 = vadd.f32 %v3061, -1.4531521
    %v3070 = vadd.f32 %v3062, -1.4531521
    %v3071 = vadd.f32 %v3063, -1.4531521
    %v3072 = vadd.f32 %v3064, -1.4531521
    %v3073 = vmul.f32 %v3065, %v3042
    %v3074 = vmul.f32 %v3066, %v3044
    %v3075 = vmul.f32 %v3067, %v3046
    %v3076 = vmul.f32 %v3068, %v3048
    %v3077 = vmul.f32 %v3069, %v3050
    %v3078 = vmul.f32 %v3070, %v3052
    %v3079 = vmul.f32 %v3071, %v3054
    %v3080 = vmul.f32 %v3072, %v3056
    %v3081 = vadd.f32 %v3073, 1.4214138
    %v3082 = vadd.f32 %v3074, 1.4214138
    %v3083 = vadd.f32 %v3075, 1.4214138
    %v3084 = vadd.f32 %v3076, 1.4214138
    %v3085 = vadd.f32 %v3077, 1.4214138
    %v3086 = vadd.f32 %v3078, 1.4214138
    %v3087 = vadd.f32 %v3079, 1.4214138
    %v3088 = vadd.f32 %v3080, 1.4214138
    %v3089 = vmul.f32 %v3081, %v3042
    %v3090 = vmul.f32 %v3082, %v3044
    %v3091 = vmul.f32 %v3083, %v3046
    %v3092 = vmul.f32 %v3084, %v3048
    %v3093 = vmul.f32 %v3085, %v3050
    %v3094 = vmul.f32 %v3086, %v3052
    %v3095 = vmul.f32 %v3087, %v3054
    %v3096 = vmul.f32 %v3088, %v3056
    %v3097 = vadd.f32 %v3089, -0.28449672
    %v3098 = vadd.f32 %v3090, -0.28449672
    %v3099 = vadd.f32 %v3091, -0.28449672
    %v3100 = vadd.f32 %v3092, -0.28449672
    %v3101 = vadd.f32 %v3093, -0.28449672
    %v3102 = vadd.f32 %v3094, -0.28449672
    %v3103 = vadd.f32 %v3095, -0.28449672
    %v3104 = vadd.f32 %v3096, -0.28449672
    %v3105 = vmul.f32 %v3097, %v3042
    %v3106 = vmul.f32 %v3098, %v3044
    %v3107 = vmul.f32 %v3099, %v3046
    %v3108 = vmul.f32 %v3100, %v3048
    %v3109 = vmul.f32 %v3101, %v3050
    %v3110 = vmul.f32 %v3102, %v3052
    %v3111 = vmul.f32 %v3103, %v3054
    %v3112 = vmul.f32 %v3104, %v3056
    %v3113 = vadd.f32 %v3105, 0.2548296
    %v3114 = vadd.f32 %v3106, 0.2548296
    %v3115 = vadd.f32 %v3107, 0.2548296
    %v3116 = vadd.f32 %v3108, 0.2548296
    %v3117 = vadd.f32 %v3109, 0.2548296
    %v3118 = vadd.f32 %v3110, 0.2548296
    %v3119 = vadd.f32 %v3111, 0.2548296
    %v3120 = vadd.f32 %v3112, 0.2548296
    %v3121 = vmul.f32 %v3113, %v3042
    %v3122 = vmul.f32 %v3114, %v3044
    %v3123 = vmul.f32 %v3115, %v3046
    %v3124 = vmul.f32 %v3116, %v3048
    %v3125 = vmul.f32 %v3117, %v3050
    %v3126 = vmul.f32 %v3118, %v3052
    %v3127 = vmul.f32 %v3119, %v3054
    %v3128 = vmul.f32 %v3120, %v3056
    %v3129 = vsub.f32 0.0, %v3017
    %v3130 = vsub.f32 0.0, %v3018
    %v3131 = vsub.f32 0.0, %v3019
    %v3132 = vsub.f32 0.0, %v3020
    %v3133 = vsub.f32 0.0, %v3021
    %v3134 = vsub.f32 0.0, %v3022
    %v3135 = vsub.f32 0.0, %v3023
    %v3136 = vsub.f32 0.0, %v3024
    %v3137 = vmul.f32 %v3129, %v3017
    %v3138 = vmul.f32 %v3130, %v3018
    %v3139 = vmul.f32 %v3131, %v3019
    %v3140 = vmul.f32 %v3132, %v3020
    %v3141 = vmul.f32 %v3133, %v3021
    %v3142 = vmul.f32 %v3134, %v3022
    %v3143 = vmul.f32 %v3135, %v3023
    %v3144 = vmul.f32 %v3136, %v3024
    %v3145 = vmul.f32 %v3137, 1.442695
    %v3146 = vpow.pop %v3145
    %v3147 = vmul.f32 %v3138, 1.442695
    %v3148 = vpow.pop %v3147
    %v3149 = vmul.f32 %v3139, 1.442695
    %v3150 = vpow.pop %v3149
    %v3151 = vmul.f32 %v3140, 1.442695
    %v3152 = vpow.pop %v3151
    %v3153 = vmul.f32 %v3141, 1.442695
    %v3154 = vpow.pop %v3153
    %v3155 = vmul.f32 %v3142, 1.442695
    %v3156 = vpow.pop %v3155
    %v3157 = vmul.f32 %v3143, 1.442695
    %v3158 = vpow.pop %v3157
    %v3159 = vmul.f32 %v3144, 1.442695
    %v3160 = vpow.pop %v3159
    %v3161 = vmul.f32 %v3121, %v3146
    %v3162 = vmul.f32 %v3122, %v3148
    %v3163 = vmul.f32 %v3123, %v3150
    %v3164 = vmul.f32 %v3124, %v3152
    %v3165 = vmul.f32 %v3125, %v3154
    %v3166 = vmul.f32 %v3126, %v3156
    %v3167 = vmul.f32 %v3127, %v3158
    %v3168 = vmul.f32 %v3128, %v3160
    %v3169 = vsub.f32 1.0, %v3161
    %v3170 = vsub.f32 1.0, %v3162
    %v3171 = vsub.f32 1.0, %v3163
    %v3172 = vsub.f32 1.0, %v3164
    %v3173 = vsub.f32 1.0, %v3165
    %v3174 = vsub.f32 1.0, %v3166
    %v3175 = vsub.f32 1.0, %v3167
    %v3176 = vsub.f32 1.0, %v3168
    %vm3177 = vcmp.ge.f32.partialorder %v3009, 0.0
    %vm3178 = vcmp.ge.f32.partialorder %v3010, 0.0
    %vm3179 = vcmp.ge.f32.partialorder %v3011, 0.0
    %vm3180 = vcmp.ge.f32.partialorder %v3012, 0.0
    %vm3181 = vcmp.ge.f32.partialorder %v3013, 0.0
    %vm3182 = vcmp.ge.f32.partialorder %v3014, 0.0
    %vm3183 = vcmp.ge.f32.partialorder %v3015, 0.0
    %vm3184 = vcmp.ge.f32.partialorder %v3016, 0.0
    %v3185 = vsub.f32 0.0, %v3169
    %v3186 = vsub.f32 0.0, %v3170
    %v3187 = vsub.f32 0.0, %v3171
    %v3188 = vsub.f32 0.0, %v3172
    %v3189 = vsub.f32 0.0, %v3173
    %v3190 = vsub.f32 0.0, %v3174
    %v3191 = vsub.f32 0.0, %v3175
    %v3192 = vsub.f32 0.0, %v3176
    %v3193 = vsel %vm3177, %v3169, %v3185
    %v3194 = vsel %vm3178, %v3170, %v3186
    %v3195 = vsel %vm3179, %v3171, %v3187
    %v3196 = vsel %vm3180, %v3172, %v3188
    %v3197 = vsel %vm3181, %v3173, %v3189
    %v3198 = vsel %vm3182, %v3174, %v3190
    %v3199 = vsel %vm3183, %v3175, %v3191
    %v3200 = vsel %vm3184, %v3176, %v3192
    %v3201 = vadd.f32 %v3193, 1.0
    %v3202 = vadd.f32 %v3194, 1.0
    %v3203 = vadd.f32 %v3195, 1.0
    %v3204 = vadd.f32 %v3196, 1.0
    %v3205 = vadd.f32 %v3197, 1.0
    %v3206 = vadd.f32 %v3198, 1.0
    %v3207 = vadd.f32 %v3199, 1.0
    %v3208 = vadd.f32 %v3200, 1.0
    %v3209 = vmul.f32 %v3001, %v3201
    %v3210 = vmul.f32 %v3002, %v3202
    %v3211 = vmul.f32 %v3003, %v3203
    %v3212 = vmul.f32 %v3004, %v3204
    %v3213 = vmul.f32 %v3005, %v3205
    %v3214 = vmul.f32 %v3006, %v3206
    %v3215 = vmul.f32 %v3007, %v3207
    %v3216 = vmul.f32 %v3008, %v3208
    %v3217 = vpack.c.bf16 %v3210, %v3209
    %v3218 = vpack.c.bf16 %v3212, %v3211
    %v3219 = vpack.c.bf16 %v3214, %v3213
    %v3220 = vpack.c.bf16 %v3216, %v3215
    %v3221 = vld [vmem:[%s29] sm:$0xf]
    %v3222 = vld [vmem:[%s29 + $0x4] sm:$0xf]
    %v3223 = vld [vmem:[%s29 + $0x8] sm:$0xf]
    %v3224 = vld [vmem:[%s29 + $0xc] sm:$0xf]
    %v3225 = vld [vmem:[%s29 + $0x10] sm:$0xf]
    %v3226 = vld [vmem:[%s29 + $0x14] sm:$0xf]
    %v3227 = vld [vmem:[%s29 + $0x18] sm:$0xf]
    %v3228 = vld [vmem:[%s29 + $0x1c] sm:$0xf]
    %v3229 = vld [vmem:[%s29 + $0x20] sm:$0xf]
    %v3230 = vld [vmem:[%s29 + $0x24] sm:$0xf]
    %v3231 = vld [vmem:[%s29 + $0x28] sm:$0xf]
    %v3232 = vld [vmem:[%s29 + $0x2c] sm:$0xf]
    %v3233 = vld [vmem:[%s29 + $0x30] sm:$0xf]
    %v3234 = vld [vmem:[%s29 + $0x34] sm:$0xf]
    %v3235 = vld [vmem:[%s29 + $0x38] sm:$0xf]
    %v3236 = vld [vmem:[%s29 + $0x3c] sm:$0xf]
    %v3237 = vld [vmem:[%s31] sm:$0x1]
    %v3239 = vlaneseq
    %v3240 = vshrl.u32 %v3239, 7
    %v3241 = vsub.s32 0, %v3240
    %v3242 = vrot.slane %v3237, %v3241
    %v3260 = vunpack.c.l.b16 %v3221
    %v3261 = vunpack.c.l.b16 %v3222
    %v3262 = vunpack.c.l.b16 %v3223
    %v3263 = vunpack.c.l.b16 %v3224
    %v3264 = vunpack.c.l.b16 %v3225
    %v3265 = vunpack.c.l.b16 %v3226
    %v3266 = vunpack.c.l.b16 %v3227
    %v3267 = vunpack.c.l.b16 %v3228
    %v3268 = vunpack.c.l.b16 %v3229
    %v3269 = vunpack.c.l.b16 %v3230
    %v3270 = vunpack.c.l.b16 %v3231
    %v3271 = vunpack.c.l.b16 %v3232
    %v3272 = vunpack.c.l.b16 %v3233
    %v3273 = vunpack.c.l.b16 %v3234
    %v3274 = vunpack.c.l.b16 %v3235
    %v3275 = vunpack.c.l.b16 %v3236
    %v3276 = vpack.c.b16 %v3261, %v3260
    %v3277 = vpack.c.b16 %v3263, %v3262
    %v3278 = vpack.c.b16 %v3265, %v3264
    %v3279 = vpack.c.b16 %v3267, %v3266
    %v3280 = vpack.c.b16 %v3269, %v3268
    %v3281 = vpack.c.b16 %v3271, %v3270
    %v3282 = vpack.c.b16 %v3273, %v3272
    %v3283 = vpack.c.b16 %v3275, %v3274
    %3292 = vmatprep.subr.bf16.mxu0 0
    %3293 = vmatpush1.bf16.msra.mxu0 %v3283
    %3294 = vmatprep.subr.bf16.mxu0 0
    %3295 = vmatpush1.bf16.msra.mxu0 %v3282
    %3296 = vmatprep.subr.bf16.mxu0 0
    %3297 = vmatpush1.bf16.msra.mxu0 %v3281
    %3298 = vmatprep.subr.bf16.mxu0 0
    %3299 = vmatpush1.bf16.msra.mxu0 %v3280
    %3300 = vmatprep.subr.bf16.mxu0 0
    %3301 = vmatpush1.bf16.msra.mxu0 %v3279
    %3302 = vmatprep.subr.bf16.mxu0 0
    %3303 = vmatpush1.bf16.msra.mxu0 %v3278
    %3304 = vmatprep.subr.bf16.mxu0 0
    %3305 = vmatpush1.bf16.msra.mxu0 %v3277
    %3306 = vmatprep.subr.bf16.mxu0 0
    %3307 = vmatpush1.bf16.msra.mxu0 %v3276
    %3308 = vmatprep.subr.bf16.mxu0 0
    %3309 = vmatpush2.bf16.msra.mxu0 0
    %3310 = vmatprep.subr.bf16.mxu0 0
    %3311 = vmatpush2.bf16.msra.mxu0 0
    %3312 = vmatprep.subr.bf16.mxu0 0
    %3313 = vmatpush2.bf16.msra.mxu0 0
    %3314 = vmatprep.subr.bf16.mxu0 0
    %3315 = vmatpush2.bf16.msra.mxu0 0
    %3316 = vmatprep.subr.bf16.mxu0 0
    %3317 = vmatpush2.bf16.msra.mxu0 0
    %3318 = vmatprep.subr.bf16.mxu0 0
    %3319 = vmatpush2.bf16.msra.mxu0 0
    %3320 = vmatprep.subr.bf16.mxu0 0
    %3321 = vmatpush2.bf16.msra.mxu0 0
    %3322 = vmatprep.subr.bf16.mxu0 0
    %3323 = vmatpush2.bf16.msra.mxu0 0
    %3324 = vmatprep.mubr.bf16.mxu0 0
    %3325 = vmatmul.mubr.bf16.gmra.mxu0 %v3217
    %v3326 = vpop.f32.mrf.mxu0
    %v3327 = vadd.f32 %v3242, %v3326
    %v3328 = vpop.f32.mrf.mxu0
    %v3329 = vpop.f32.mrf.mxu0
    %v3330 = vadd.f32 %v3242, %v3329
    %v3331 = vpop.f32.mrf.mxu0
    %3332 = vmatprep.mubr.bf16.mxu0 0
    %3333 = vmatmul.mubr.bf16.gmra.mxu0 %v3218
    %v3334 = vpop.f32.mrf.mxu0
    %v3335 = vadd.f32 %v3242, %v3334
    %v3336 = vpop.f32.mrf.mxu0
    %v3337 = vpop.f32.mrf.mxu0
    %v3338 = vadd.f32 %v3242, %v3337
    %v3339 = vpop.f32.mrf.mxu0
    %3340 = vmatprep.mubr.bf16.mxu0 0
    %3341 = vmatmul.mubr.bf16.gmra.mxu0 %v3219
    %v3342 = vpop.f32.mrf.mxu0
    %v3343 = vadd.f32 %v3242, %v3342
    %v3344 = vpop.f32.mrf.mxu0
    %v3345 = vpop.f32.mrf.mxu0
    %v3346 = vadd.f32 %v3242, %v3345
    %v3347 = vpop.f32.mrf.mxu0
    %3348 = vmatprep.mubr.bf16.mxu0 0
    %3349 = vmatmul.mubr.bf16.gmra.mxu0 %v3220
    %v3350 = vpop.f32.mrf.mxu0
    %v3351 = vadd.f32 %v3242, %v3350
    %v3352 = vpop.f32.mrf.mxu0
    %v3353 = vpop.f32.mrf.mxu0
    %v3354 = vadd.f32 %v3242, %v3353
    %v3355 = vpop.f32.mrf.mxu0
    %3356 = vdwg.mxu0
    %v3357 = vadd.f32 %v2739, %v3327
    %v3358 = vadd.f32 %v2740, %v3330
    %v3359 = vadd.f32 %v2741, %v3335
    %v3360 = vadd.f32 %v2742, %v3338
    %v3361 = vadd.f32 %v2743, %v3343
    %v3362 = vadd.f32 %v2744, %v3346
    %v3363 = vadd.f32 %v2745, %v3351
    %v3364 = vadd.f32 %v2746, %v3354
    %3365 = vst.msk [vmem:[#allocation2] sm:$0xff] %vm272, %v3357
    %3366 = vst.msk [vmem:[#allocation2 + $0x8] sm:$0xff] %vm272, %v3358
    %3367 = vst.msk [vmem:[#allocation2 + $0x10] sm:$0xff] %vm272, %v3359
    %3368 = vst.msk [vmem:[#allocation2 + $0x18] sm:$0xff] %vm272, %v3360
    %3369 = vst.msk [vmem:[#allocation2 + $0x20] sm:$0xff] %vm272, %v3361
    %3370 = vst.msk [vmem:[#allocation2 + $0x28] sm:$0xff] %vm272, %v3362
    %3371 = vst.msk [vmem:[#allocation2 + $0x30] sm:$0xff] %vm272, %v3363
    %3372 = vst.msk [vmem:[#allocation2 + $0x38] sm:$0xff] %vm272, %v3364
    %v3373 = vld [vmem:[#allocation2] sm:$0xff]
    %v3374 = vld [vmem:[#allocation2 + $0x8] sm:$0xff]
    %v3375 = vld [vmem:[#allocation2 + $0x10] sm:$0xff]
    %v3376 = vld [vmem:[#allocation2 + $0x18] sm:$0xff]
    %v3377 = vld [vmem:[#allocation2 + $0x20] sm:$0xff]
    %v3378 = vld [vmem:[#allocation2 + $0x28] sm:$0xff]
    %v3379 = vld [vmem:[#allocation2 + $0x30] sm:$0xff]
    %v3380 = vld [vmem:[#allocation2 + $0x38] sm:$0xff]
    %v3381 = vld [vmem:[%s33] sm:$0x1]
    %v3382 = vld [vmem:[%s35] sm:$0x1]
    %v3383 = vsel %vm272, %v3373, 0.0
    %3384 = vadd.xlane.f32.xlu0 %v3383
    %v3385 = vpop.xlane.xlu0 %3384
    %v3386 = vsel %vm272, %v3374, 0.0
    %3387 = vadd.xlane.f32.xlu0 %v3386
    %v3388 = vpop.xlane.xlu0 %3387
    %v3389 = vsel %vm272, %v3375, 0.0
    %3390 = vadd.xlane.f32.xlu0 %v3389
    %v3391 = vpop.xlane.xlu0 %3390
    %v3392 = vsel %vm272, %v3376, 0.0
    %3393 = vadd.xlane.f32.xlu0 %v3392
    %v3394 = vpop.xlane.xlu0 %3393
    %v3395 = vsel %vm272, %v3377, 0.0
    %3396 = vadd.xlane.f32.xlu0 %v3395
    %v3397 = vpop.xlane.xlu0 %3396
    %v3398 = vsel %vm272, %v3378, 0.0
    %3399 = vadd.xlane.f32.xlu0 %v3398
    %v3400 = vpop.xlane.xlu0 %3399
    %v3401 = vsel %vm272, %v3379, 0.0
    %3402 = vadd.xlane.f32.xlu0 %v3401
    %v3403 = vpop.xlane.xlu0 %3402
    %v3404 = vsel %vm272, %v3380, 0.0
    %3405 = vadd.xlane.f32.xlu0 %v3404
    %v3406 = vpop.xlane.xlu0 %3405
    %v3407 = vmul.f32 %v3385, %v318
    %v3408 = vmul.f32 %v3388, %v318
    %v3409 = vmul.f32 %v3391, %v318
    %v3410 = vmul.f32 %v3394, %v318
    %v3411 = vmul.f32 %v3397, %v318
    %v3412 = vmul.f32 %v3400, %v318
    %v3413 = vmul.f32 %v3403, %v318
    %v3414 = vmul.f32 %v3406, %v318
    %v3415 = vsub.f32 %v3373, %v3407
    %v3416 = vsub.f32 %v3374, %v3408
    %v3417 = vsub.f32 %v3375, %v3409
    %v3418 = vsub.f32 %v3376, %v3410
    %v3419 = vsub.f32 %v3377, %v3411
    %v3420 = vsub.f32 %v3378, %v3412
    %v3421 = vsub.f32 %v3379, %v3413
    %v3422 = vsub.f32 %v3380, %v3414
    %v3423 = vmul.f32 %v3415, %v3415
    %v3424 = vmul.f32 %v3416, %v3416
    %v3425 = vmul.f32 %v3417, %v3417
    %v3426 = vmul.f32 %v3418, %v3418
    %v3427 = vmul.f32 %v3419, %v3419
    %v3428 = vmul.f32 %v3420, %v3420
    %v3429 = vmul.f32 %v3421, %v3421
    %v3430 = vmul.f32 %v3422, %v3422
    %v3431 = vsel %vm272, %v3423, 0.0
    %3432 = vadd.xlane.f32.xlu0 %v3431
    %v3433 = vpop.xlane.xlu0 %3432
    %v3434 = vsel %vm272, %v3424, 0.0
    %3435 = vadd.xlane.f32.xlu0 %v3434
    %v3436 = vpop.xlane.xlu0 %3435
    %v3437 = vsel %vm272, %v3425, 0.0
    %3438 = vadd.xlane.f32.xlu0 %v3437
    %v3439 = vpop.xlane.xlu0 %3438
    %v3440 = vsel %vm272, %v3426, 0.0
    %3441 = vadd.xlane.f32.xlu0 %v3440
    %v3442 = vpop.xlane.xlu0 %3441
    %v3443 = vsel %vm272, %v3427, 0.0
    %3444 = vadd.xlane.f32.xlu0 %v3443
    %v3445 = vpop.xlane.xlu0 %3444
    %v3446 = vsel %vm272, %v3428, 0.0
    %3447 = vadd.xlane.f32.xlu0 %v3446
    %v3448 = vpop.xlane.xlu0 %3447
    %v3449 = vsel %vm272, %v3429, 0.0
    %3450 = vadd.xlane.f32.xlu0 %v3449
    %v3451 = vpop.xlane.xlu0 %3450
    %v3452 = vsel %vm272, %v3430, 0.0
    %3453 = vadd.xlane.f32.xlu0 %v3452
    %v3454 = vpop.xlane.xlu0 %3453
    %v3455 = vmul.f32 %v3433, %v318
    %v3456 = vmul.f32 %v3436, %v318
    %v3457 = vmul.f32 %v3439, %v318
    %v3458 = vmul.f32 %v3442, %v318
    %v3459 = vmul.f32 %v3445, %v318
    %v3460 = vmul.f32 %v3448, %v318
    %v3461 = vmul.f32 %v3451, %v318
    %v3462 = vmul.f32 %v3454, %v318
    %v3463 = vadd.f32 %v3455, 1e-05
    %v3464 = vadd.f32 %v3456, 1e-05
    %v3465 = vadd.f32 %v3457, 1e-05
    %v3466 = vadd.f32 %v3458, 1e-05
    %v3467 = vadd.f32 %v3459, 1e-05
    %v3468 = vadd.f32 %v3460, 1e-05
    %v3469 = vadd.f32 %v3461, 1e-05
    %v3470 = vadd.f32 %v3462, 1e-05
    %v3471 = vrsqrt.pop %v3463
    %v3472 = vrsqrt.pop %v3464
    %v3473 = vrsqrt.pop %v3465
    %v3474 = vrsqrt.pop %v3466
    %v3475 = vrsqrt.pop %v3467
    %v3476 = vrsqrt.pop %v3468
    %v3477 = vrsqrt.pop %v3469
    %v3478 = vrsqrt.pop %v3470
    %v3479 = vmul.f32 %v3415, %v3471
    %v3480 = vmul.f32 %v3416, %v3472
    %v3481 = vmul.f32 %v3417, %v3473
    %v3482 = vmul.f32 %v3418, %v3474
    %v3483 = vmul.f32 %v3419, %v3475
    %v3484 = vmul.f32 %v3420, %v3476
    %v3485 = vmul.f32 %v3421, %v3477
    %v3486 = vmul.f32 %v3422, %v3478
    %v3488 = vlaneseq
    %v3489 = vshrl.u32 %v3488, 7
    %v3490 = vsub.s32 0, %v3489
    %v3491 = vrot.slane %v3381, %v3490
    %v3493 = vmul.f32 %v3479, %v3491
    %v3494 = vmul.f32 %v3480, %v3491
    %v3495 = vmul.f32 %v3481, %v3491
    %v3496 = vmul.f32 %v3482, %v3491
    %v3497 = vmul.f32 %v3483, %v3491
    %v3498 = vmul.f32 %v3484, %v3491
    %v3499 = vmul.f32 %v3485, %v3491
    %v3500 = vmul.f32 %v3486, %v3491
    %v3502 = vlaneseq
    %v3503 = vshrl.u32 %v3502, 7
    %v3504 = vsub.s32 0, %v3503
    %v3505 = vrot.slane %v3382, %v3504
    %v3507 = vadd.f32 %v3493, %v3505
    %v3508 = vadd.f32 %v3494, %v3505
    %v3509 = vadd.f32 %v3495, %v3505
    %v3510 = vadd.f32 %v3496, %v3505
    %v3511 = vadd.f32 %v3497, %v3505
    %v3512 = vadd.f32 %v3498, %v3505
    %v3513 = vadd.f32 %v3499, %v3505
    %v3514 = vadd.f32 %v3500, %v3505
    %v3515 = vpack.c.bf16 %v3508, %v3507
    %v3516 = vpack.c.bf16 %v3510, %v3509
    %v3517 = vpack.c.bf16 %v3512, %v3511
    %v3518 = vpack.c.bf16 %v3514, %v3513
    %v3519 = vld [vmem:[%s37] sm:$0xf]
    %v3520 = vld [vmem:[%s37 + $0x4] sm:$0xf]
    %v3521 = vld [vmem:[%s37 + $0x8] sm:$0xf]
    %v3522 = vld [vmem:[%s37 + $0xc] sm:$0xf]
    %v3523 = vld [vmem:[%s37 + $0x10] sm:$0xf]
    %v3524 = vld [vmem:[%s37 + $0x14] sm:$0xf]
    %v3525 = vld [vmem:[%s37 + $0x18] sm:$0xf]
    %v3526 = vld [vmem:[%s37 + $0x1c] sm:$0xf]
    %v3535 = vunpack.c.l.b16 %v3519
    %v3536 = vunpack.c.l.b16 %v3520
    %v3537 = vunpack.c.l.b16 %v3521
    %v3538 = vunpack.c.l.b16 %v3522
    %v3539 = vunpack.c.l.b16 %v3523
    %v3540 = vunpack.c.l.b16 %v3524
    %v3541 = vunpack.c.l.b16 %v3525
    %v3542 = vunpack.c.l.b16 %v3526
    %v3543 = vpack.c.b16 %v3536, %v3535
    %v3544 = vpack.c.b16 %v3538, %v3537
    %v3545 = vpack.c.b16 %v3540, %v3539
    %v3546 = vpack.c.b16 %v3542, %v3541
    %v3552 = vsel %vm272, %v3515, 0
    %v3555 = vsel %vm272, %v3516, 0
    %v3558 = vsel %vm272, %v3517, 0
    %v3561 = vsel %vm272, %v3518, 0
    %3563 = vmatprep.subr.bf16.mxu0 0
    %3564 = vmatpush1.bf16.msra.mxu0 0
    %3565 = vmatprep.subr.bf16.mxu0 0
    %3566 = vmatpush1.bf16.msra.mxu0 0
    %3567 = vmatprep.subr.bf16.mxu0 0
    %3568 = vmatpush1.bf16.msra.mxu0 0
    %3569 = vmatprep.subr.bf16.mxu0 0
    %3570 = vmatpush1.bf16.msra.mxu0 0
    %3571 = vmatprep.subr.bf16.mxu0 0
    %3572 = vmatpush1.bf16.msra.mxu0 %v3546
    %3573 = vmatprep.subr.bf16.mxu0 0
    %3574 = vmatpush1.bf16.msra.mxu0 %v3545
    %3575 = vmatprep.subr.bf16.mxu0 0
    %3576 = vmatpush1.bf16.msra.mxu0 %v3544
    %3577 = vmatprep.subr.bf16.mxu0 0
    %3578 = vmatpush1.bf16.msra.mxu0 %v3543
    %3579 = vmatprep.subr.bf16.mxu0 0
    %3580 = vmatpush2.bf16.msra.mxu0 0
    %3581 = vmatprep.subr.bf16.mxu0 0
    %3582 = vmatpush2.bf16.msra.mxu0 0
    %3583 = vmatprep.subr.bf16.mxu0 0
    %3584 = vmatpush2.bf16.msra.mxu0 0
    %3585 = vmatprep.subr.bf16.mxu0 0
    %3586 = vmatpush2.bf16.msra.mxu0 0
    %3587 = vmatprep.subr.bf16.mxu0 0
    %3588 = vmatpush2.bf16.msra.mxu0 0
    %3589 = vmatprep.subr.bf16.mxu0 0
    %3590 = vmatpush2.bf16.msra.mxu0 0
    %3591 = vmatprep.subr.bf16.mxu0 0
    %3592 = vmatpush2.bf16.msra.mxu0 0
    %3593 = vmatprep.subr.bf16.mxu0 0
    %3594 = vmatpush2.bf16.msra.mxu0 0
    %3595 = vmatprep.mubr.bf16.mxu0 0
    %3596 = vmatmul.mubr.bf16.gmra.mxu0 %v3552
    %v3597 = vpop.f32.mrf.mxu0
    %v3598 = vadd.f32 0.0, %v3597
    %v3599 = vpop.f32.mrf.mxu0
    %v3600 = vpop.f32.mrf.mxu0
    %v3601 = vadd.f32 0.0, %v3600
    %v3602 = vpop.f32.mrf.mxu0
    %3603 = vmatprep.mubr.bf16.mxu0 0
    %3604 = vmatmul.mubr.bf16.gmra.mxu0 %v3555
    %v3605 = vpop.f32.mrf.mxu0
    %v3606 = vadd.f32 0.0, %v3605
    %v3607 = vpop.f32.mrf.mxu0
    %v3608 = vpop.f32.mrf.mxu0
    %v3609 = vadd.f32 0.0, %v3608
    %v3610 = vpop.f32.mrf.mxu0
    %3611 = vmatprep.mubr.bf16.mxu0 0
    %3612 = vmatmul.mubr.bf16.gmra.mxu0 %v3558
    %v3613 = vpop.f32.mrf.mxu0
    %v3614 = vadd.f32 0.0, %v3613
    %v3615 = vpop.f32.mrf.mxu0
    %v3616 = vpop.f32.mrf.mxu0
    %v3617 = vadd.f32 0.0, %v3616
    %v3618 = vpop.f32.mrf.mxu0
    %3619 = vmatprep.mubr.bf16.mxu0 0
    %3620 = vmatmul.mubr.bf16.gmra.mxu0 %v3561
    %v3621 = vpop.f32.mrf.mxu0
    %v3622 = vadd.f32 0.0, %v3621
    %v3623 = vpop.f32.mrf.mxu0
    %v3624 = vpop.f32.mrf.mxu0
    %v3625 = vadd.f32 0.0, %v3624
    %v3626 = vpop.f32.mrf.mxu0
    %3627 = vdwg.mxu0
    %v3628 = vld [vmem:[%s39] sm:$0xf]
    %v3629 = vld [vmem:[%s39 + $0x4] sm:$0xf]
    %v3630 = vld [vmem:[%s39 + $0x8] sm:$0xf]
    %v3631 = vld [vmem:[%s39 + $0xc] sm:$0xf]
    %v3632 = vld [vmem:[%s39 + $0x10] sm:$0xf]
    %v3633 = vld [vmem:[%s39 + $0x14] sm:$0xf]
    %v3634 = vld [vmem:[%s39 + $0x18] sm:$0xf]
    %v3635 = vld [vmem:[%s39 + $0x1c] sm:$0xf]
    %v3644 = vunpack.c.l.b16 %v3628
    %v3645 = vunpack.c.l.b16 %v3629
    %v3646 = vunpack.c.l.b16 %v3630
    %v3647 = vunpack.c.l.b16 %v3631
    %v3648 = vunpack.c.l.b16 %v3632
    %v3649 = vunpack.c.l.b16 %v3633
    %v3650 = vunpack.c.l.b16 %v3634
    %v3651 = vunpack.c.l.b16 %v3635
    %v3652 = vpack.c.b16 %v3645, %v3644
    %v3653 = vpack.c.b16 %v3647, %v3646
    %v3654 = vpack.c.b16 %v3649, %v3648
    %v3655 = vpack.c.b16 %v3651, %v3650
    %3660 = vmatprep.subr.bf16.mxu0 0
    %3661 = vmatpush1.bf16.msra.mxu0 0
    %3662 = vmatprep.subr.bf16.mxu0 0
    %3663 = vmatpush1.bf16.msra.mxu0 0
    %3664 = vmatprep.subr.bf16.mxu0 0
    %3665 = vmatpush1.bf16.msra.mxu0 0
    %3666 = vmatprep.subr.bf16.mxu0 0
    %3667 = vmatpush1.bf16.msra.mxu0 0
    %3668 = vmatprep.subr.bf16.mxu0 0
    %3669 = vmatpush1.bf16.msra.mxu0 %v3655
    %3670 = vmatprep.subr.bf16.mxu0 0
    %3671 = vmatpush1.bf16.msra.mxu0 %v3654
    %3672 = vmatprep.subr.bf16.mxu0 0
    %3673 = vmatpush1.bf16.msra.mxu0 %v3653
    %3674 = vmatprep.subr.bf16.mxu0 0
    %3675 = vmatpush1.bf16.msra.mxu0 %v3652
    %3676 = vmatprep.subr.bf16.mxu0 0
    %3677 = vmatpush2.bf16.msra.mxu0 0
    %3678 = vmatprep.subr.bf16.mxu0 0
    %3679 = vmatpush2.bf16.msra.mxu0 0
    %3680 = vmatprep.subr.bf16.mxu0 0
    %3681 = vmatpush2.bf16.msra.mxu0 0
    %3682 = vmatprep.subr.bf16.mxu0 0
    %3683 = vmatpush2.bf16.msra.mxu0 0
    %3684 = vmatprep.subr.bf16.mxu0 0
    %3685 = vmatpush2.bf16.msra.mxu0 0
    %3686 = vmatprep.subr.bf16.mxu0 0
    %3687 = vmatpush2.bf16.msra.mxu0 0
    %3688 = vmatprep.subr.bf16.mxu0 0
    %3689 = vmatpush2.bf16.msra.mxu0 0
    %3690 = vmatprep.subr.bf16.mxu0 0
    %3691 = vmatpush2.bf16.msra.mxu0 0
    %3692 = vmatprep.mubr.bf16.mxu0 0
    %3693 = vmatmul.mubr.bf16.gmra.mxu0 %v3552
    %v3694 = vpop.f32.mrf.mxu0
    %v3695 = vadd.f32 0.0, %v3694
    %v3696 = vpop.f32.mrf.mxu0
    %v3697 = vpop.f32.mrf.mxu0
    %v3698 = vadd.f32 0.0, %v3697
    %v3699 = vpop.f32.mrf.mxu0
    %3700 = vmatprep.mubr.bf16.mxu0 0
    %3701 = vmatmul.mubr.bf16.gmra.mxu0 %v3555
    %v3702 = vpop.f32.mrf.mxu0
    %v3703 = vadd.f32 0.0, %v3702
    %v3704 = vpop.f32.mrf.mxu0
    %v3705 = vpop.f32.mrf.mxu0
    %v3706 = vadd.f32 0.0, %v3705
    %v3707 = vpop.f32.mrf.mxu0
    %3708 = vmatprep.mubr.bf16.mxu0 0
    %3709 = vmatmul.mubr.bf16.gmra.mxu0 %v3558
    %v3710 = vpop.f32.mrf.mxu0
    %v3711 = vadd.f32 0.0, %v3710
    %v3712 = vpop.f32.mrf.mxu0
    %v3713 = vpop.f32.mrf.mxu0
    %v3714 = vadd.f32 0.0, %v3713
    %v3715 = vpop.f32.mrf.mxu0
    %3716 = vmatprep.mubr.bf16.mxu0 0
    %3717 = vmatmul.mubr.bf16.gmra.mxu0 %v3561
    %v3718 = vpop.f32.mrf.mxu0
    %v3719 = vadd.f32 0.0, %v3718
    %v3720 = vpop.f32.mrf.mxu0
    %v3721 = vpop.f32.mrf.mxu0
    %v3722 = vadd.f32 0.0, %v3721
    %v3723 = vpop.f32.mrf.mxu0
    %3724 = vdwg.mxu0
    %v3725 = vld [vmem:[%s41] sm:$0xf]
    %v3726 = vld [vmem:[%s41 + $0x4] sm:$0xf]
    %v3727 = vld [vmem:[%s41 + $0x8] sm:$0xf]
    %v3728 = vld [vmem:[%s41 + $0xc] sm:$0xf]
    %v3729 = vld [vmem:[%s41 + $0x10] sm:$0xf]
    %v3730 = vld [vmem:[%s41 + $0x14] sm:$0xf]
    %v3731 = vld [vmem:[%s41 + $0x18] sm:$0xf]
    %v3732 = vld [vmem:[%s41 + $0x1c] sm:$0xf]
    %v3741 = vunpack.c.l.b16 %v3725
    %v3742 = vunpack.c.l.b16 %v3726
    %v3743 = vunpack.c.l.b16 %v3727
    %v3744 = vunpack.c.l.b16 %v3728
    %v3745 = vunpack.c.l.b16 %v3729
    %v3746 = vunpack.c.l.b16 %v3730
    %v3747 = vunpack.c.l.b16 %v3731
    %v3748 = vunpack.c.l.b16 %v3732
    %v3749 = vpack.c.b16 %v3742, %v3741
    %v3750 = vpack.c.b16 %v3744, %v3743
    %v3751 = vpack.c.b16 %v3746, %v3745
    %v3752 = vpack.c.b16 %v3748, %v3747
    %3757 = vmatprep.subr.bf16.mxu0 0
    %3758 = vmatpush1.bf16.msra.mxu0 0
    %3759 = vmatprep.subr.bf16.mxu0 0
    %3760 = vmatpush1.bf16.msra.mxu0 0
    %3761 = vmatprep.subr.bf16.mxu0 0
    %3762 = vmatpush1.bf16.msra.mxu0 0
    %3763 = vmatprep.subr.bf16.mxu0 0
    %3764 = vmatpush1.bf16.msra.mxu0 0
    %3765 = vmatprep.subr.bf16.mxu0 0
    %3766 = vmatpush1.bf16.msra.mxu0 %v3752
    %3767 = vmatprep.subr.bf16.mxu0 0
    %3768 = vmatpush1.bf16.msra.mxu0 %v3751
    %3769 = vmatprep.subr.bf16.mxu0 0
    %3770 = vmatpush1.bf16.msra.mxu0 %v3750
    %3771 = vmatprep.subr.bf16.mxu0 0
    %3772 = vmatpush1.bf16.msra.mxu0 %v3749
    %3773 = vmatprep.subr.bf16.mxu0 0
    %3774 = vmatpush2.bf16.msra.mxu0 0
    %3775 = vmatprep.subr.bf16.mxu0 0
    %3776 = vmatpush2.bf16.msra.mxu0 0
    %3777 = vmatprep.subr.bf16.mxu0 0
    %3778 = vmatpush2.bf16.msra.mxu0 0
    %3779 = vmatprep.subr.bf16.mxu0 0
    %3780 = vmatpush2.bf16.msra.mxu0 0
    %3781 = vmatprep.subr.bf16.mxu0 0
    %3782 = vmatpush2.bf16.msra.mxu0 0
    %3783 = vmatprep.subr.bf16.mxu0 0
    %3784 = vmatpush2.bf16.msra.mxu0 0
    %3785 = vmatprep.subr.bf16.mxu0 0
    %3786 = vmatpush2.bf16.msra.mxu0 0
    %3787 = vmatprep.subr.bf16.mxu0 0
    %3788 = vmatpush2.bf16.msra.mxu0 0
    %3789 = vmatprep.mubr.bf16.mxu0 0
    %3790 = vmatmul.mubr.bf16.gmra.mxu0 %v3552
    %v3791 = vpop.f32.mrf.mxu0
    %v3792 = vadd.f32 0.0, %v3791
    %v3793 = vpop.f32.mrf.mxu0
    %v3794 = vpop.f32.mrf.mxu0
    %v3795 = vadd.f32 0.0, %v3794
    %v3796 = vpop.f32.mrf.mxu0
    %3797 = vmatprep.mubr.bf16.mxu0 0
    %3798 = vmatmul.mubr.bf16.gmra.mxu0 %v3555
    %v3799 = vpop.f32.mrf.mxu0
    %v3800 = vadd.f32 0.0, %v3799
    %v3801 = vpop.f32.mrf.mxu0
    %v3802 = vpop.f32.mrf.mxu0
    %v3803 = vadd.f32 0.0, %v3802
    %v3804 = vpop.f32.mrf.mxu0
    %3805 = vmatprep.mubr.bf16.mxu0 0
    %3806 = vmatmul.mubr.bf16.gmra.mxu0 %v3558
    %v3807 = vpop.f32.mrf.mxu0
    %v3808 = vadd.f32 0.0, %v3807
    %v3809 = vpop.f32.mrf.mxu0
    %v3810 = vpop.f32.mrf.mxu0
    %v3811 = vadd.f32 0.0, %v3810
    %v3812 = vpop.f32.mrf.mxu0
    %3813 = vmatprep.mubr.bf16.mxu0 0
    %3814 = vmatmul.mubr.bf16.gmra.mxu0 %v3561
    %v3815 = vpop.f32.mrf.mxu0
    %v3816 = vadd.f32 0.0, %v3815
    %v3817 = vpop.f32.mrf.mxu0
    %v3818 = vpop.f32.mrf.mxu0
    %v3819 = vadd.f32 0.0, %v3818
    %v3820 = vpop.f32.mrf.mxu0
    %3821 = vdwg.mxu0
    %v3822 = vld [vmem:[%s43] sm:$0xf]
    %v3823 = vld [vmem:[%s43 + $0x4] sm:$0xf]
    %v3824 = vld [vmem:[%s43 + $0x8] sm:$0xf]
    %v3825 = vld [vmem:[%s43 + $0xc] sm:$0xf]
    %v3826 = vld [vmem:[%s43 + $0x10] sm:$0xf]
    %v3827 = vld [vmem:[%s43 + $0x14] sm:$0xf]
    %v3828 = vld [vmem:[%s43 + $0x18] sm:$0xf]
    %v3829 = vld [vmem:[%s43 + $0x1c] sm:$0xf]
    %v3830 = vld [vmem:[%s45] sm:$0x1]
    %v3831 = vpack.c.bf16 %v3601, %v3598
    %v3832 = vpack.c.bf16 %v3609, %v3606
    %v3833 = vpack.c.bf16 %v3698, %v3695
    %v3834 = vpack.c.bf16 %v3706, %v3703
    %v3835 = vpack.c.bf16 %v3795, %v3792
    %v3836 = vpack.c.bf16 %v3803, %v3800
    %v3838 = vsel %vm749, %v3831, 0
    %v3841 = vsel %vm749, %v3832, 0
    %v3844 = vsel %vm749, %v3833, 0
    %v3847 = vsel %vm749, %v3834, 0
    %3849 = vmatprep.subr.bf16.mxu0 0
    %3850 = vmatpush1.bf16.xpose.msra.mxu0 0
    %3851 = vmatprep.subr.bf16.mxu0 0
    %3852 = vmatpush1.bf16.xpose.msra.mxu0 0
    %3853 = vmatprep.subr.bf16.mxu0 0
    %3854 = vmatpush1.bf16.xpose.msra.mxu0 0
    %3855 = vmatprep.subr.bf16.mxu0 0
    %3856 = vmatpush1.bf16.xpose.msra.mxu0 0
    %3857 = vmatprep.subr.bf16.mxu0 0
    %3858 = vmatpush1.bf16.xpose.msra.mxu0 0
    %3859 = vmatprep.subr.bf16.mxu0 0
    %3860 = vmatpush1.bf16.xpose.msra.mxu0 0
    %3861 = vmatprep.subr.bf16.mxu0 0
    %3862 = vmatpush1.bf16.xpose.msra.mxu0 %v3847
    %3863 = vmatprep.subr.bf16.mxu0 0
    %3864 = vmatpush1.bf16.xpose.msra.mxu0 %v3844
    %3865 = vmatprep.subr.bf16.mxu0 0
    %3866 = vmatpush2.bf16.xpose.msra.mxu0 0
    %3867 = vmatprep.subr.bf16.mxu0 0
    %3868 = vmatpush2.bf16.xpose.msra.mxu0 0
    %3869 = vmatprep.subr.bf16.mxu0 0
    %3870 = vmatpush2.bf16.xpose.msra.mxu0 0
    %3871 = vmatprep.subr.bf16.mxu0 0
    %3872 = vmatpush2.bf16.xpose.msra.mxu0 0
    %3873 = vmatprep.subr.bf16.mxu0 0
    %3874 = vmatpush2.bf16.xpose.msra.mxu0 0
    %3875 = vmatprep.subr.bf16.mxu0 0
    %3876 = vmatpush2.bf16.xpose.msra.mxu0 0
    %3877 = vmatprep.subr.bf16.mxu0 0
    %3878 = vmatpush2.bf16.xpose.msra.mxu0 0
    %3879 = vmatprep.subr.bf16.mxu0 0
    %3880 = vmatpush2.bf16.xpose.msra.mxu0 0
    %3881 = vmatprep.mubr.bf16.mxu0 0
    %3882 = vmatmul.mubr.bf16.gmra.mxu0 %v3838
    %v3883 = vpop.f32.mrf.mxu0
    %v3884 = vadd.f32 0.0, %v3883
    %v3885 = vpop.f32.mrf.mxu0
    %v3886 = vpop.f32.mrf.mxu0
    %v3887 = vadd.f32 0.0, %v3886
    %v3888 = vpop.f32.mrf.mxu0
    %3889 = vmatprep.mubr.bf16.mxu0 0
    %3890 = vmatmul.mubr.bf16.gmra.mxu0 %v3841
    %v3891 = vpop.f32.mrf.mxu0
    %v3892 = vadd.f32 0.0, %v3891
    %v3893 = vpop.f32.mrf.mxu0
    %v3894 = vpop.f32.mrf.mxu0
    %v3895 = vadd.f32 0.0, %v3894
    %v3896 = vpop.f32.mrf.mxu0
    %3897 = vdwg.mxu0
    %v3898 = vmul.f32 %v3884, 0.125
    %v3899 = vmul.f32 %v3887, 0.125
    %v3900 = vmul.f32 %v3892, 0.125
    %v3901 = vmul.f32 %v3895, 0.125
    %v3902 = vsel %vm283, %v3898, -1e+30
    %v3903 = vsel %vm283, %v3899, -1e+30
    %v3904 = vsel %vm283, %v3900, -1e+30
    %v3905 = vsel %vm283, %v3901, -1e+30
    %v3906 = vsel %vm819, %v3902, -inf
    %3907 = vmax.xlane.f32.xlu0 %v3906
    %v3908 = vpop.xlane.xlu0 %3907
    %v3909 = vsel %vm819, %v3903, -inf
    %3910 = vmax.xlane.f32.xlu0 %v3909
    %v3911 = vpop.xlane.xlu0 %3910
    %v3912 = vsel %vm819, %v3904, -inf
    %3913 = vmax.xlane.f32.xlu0 %v3912
    %v3914 = vpop.xlane.xlu0 %3913
    %v3915 = vsel %vm819, %v3905, -inf
    %3916 = vmax.xlane.f32.xlu0 %v3915
    %v3917 = vpop.xlane.xlu0 %3916
    %v3918 = vsub.f32 %v3902, %v3908
    %v3919 = vsub.f32 %v3903, %v3911
    %v3920 = vsub.f32 %v3904, %v3914
    %v3921 = vsub.f32 %v3905, %v3917
    %v3922 = vmul.f32 %v3918, 1.442695
    %v3923 = vpow.pop %v3922
    %v3924 = vmul.f32 %v3919, 1.442695
    %v3925 = vpow.pop %v3924
    %v3926 = vmul.f32 %v3920, 1.442695
    %v3927 = vpow.pop %v3926
    %v3928 = vmul.f32 %v3921, 1.442695
    %v3929 = vpow.pop %v3928
    %v3930 = vsel %vm819, %v3923, 0.0
    %3931 = vadd.xlane.f32.xlu0 %v3930
    %v3932 = vpop.xlane.xlu0 %3931
    %v3933 = vsel %vm819, %v3925, 0.0
    %3934 = vadd.xlane.f32.xlu0 %v3933
    %v3935 = vpop.xlane.xlu0 %3934
    %v3936 = vsel %vm819, %v3927, 0.0
    %3937 = vadd.xlane.f32.xlu0 %v3936
    %v3938 = vpop.xlane.xlu0 %3937
    %v3939 = vsel %vm819, %v3929, 0.0
    %3940 = vadd.xlane.f32.xlu0 %v3939
    %v3941 = vpop.xlane.xlu0 %3940
    %v3942 = vrcp.pop %v3932
    %v3943 = vrcp.pop %v3935
    %v3944 = vrcp.pop %v3938
    %v3945 = vrcp.pop %v3941
    %v3946 = vmul.f32 %v3923, %v3942
    %v3947 = vmul.f32 %v3925, %v3943
    %v3948 = vmul.f32 %v3927, %v3944
    %v3949 = vmul.f32 %v3929, %v3945
    %v3950 = vpack.c.bf16 %v3947, %v3946
    %v3951 = vpack.c.bf16 %v3949, %v3948
    %v3953 = vsel %vm819, %v3950, 0
    %v3956 = vsel %vm819, %v3951, 0
    %3958 = vmatprep.subr.bf16.mxu0 0
    %3959 = vmatpush1.bf16.msra.mxu0 0
    %3960 = vmatprep.subr.bf16.mxu0 0
    %3961 = vmatpush1.bf16.msra.mxu0 0
    %3962 = vmatprep.subr.bf16.mxu0 0
    %3963 = vmatpush1.bf16.msra.mxu0 0
    %3964 = vmatprep.subr.bf16.mxu0 0
    %3965 = vmatpush1.bf16.msra.mxu0 0
    %3966 = vmatprep.subr.bf16.mxu0 0
    %3967 = vmatpush1.bf16.msra.mxu0 0
    %3968 = vmatprep.subr.bf16.mxu0 0
    %3969 = vmatpush1.bf16.msra.mxu0 0
    %3970 = vmatprep.subr.bf16.mxu0 0
    %3971 = vmatpush1.bf16.msra.mxu0 %v3836
    %3972 = vmatprep.subr.bf16.mxu0 0
    %3973 = vmatpush1.bf16.msra.mxu0 %v3835
    %3974 = vmatprep.subr.bf16.mxu0 0
    %3975 = vmatpush2.bf16.msra.mxu0 0
    %3976 = vmatprep.subr.bf16.mxu0 0
    %3977 = vmatpush2.bf16.msra.mxu0 0
    %3978 = vmatprep.subr.bf16.mxu0 0
    %3979 = vmatpush2.bf16.msra.mxu0 0
    %3980 = vmatprep.subr.bf16.mxu0 0
    %3981 = vmatpush2.bf16.msra.mxu0 0
    %3982 = vmatprep.subr.bf16.mxu0 0
    %3983 = vmatpush2.bf16.msra.mxu0 0
    %3984 = vmatprep.subr.bf16.mxu0 0
    %3985 = vmatpush2.bf16.msra.mxu0 0
    %3986 = vmatprep.subr.bf16.mxu0 0
    %3987 = vmatpush2.bf16.msra.mxu0 0
    %3988 = vmatprep.subr.bf16.mxu0 0
    %3989 = vmatpush2.bf16.msra.mxu0 0
    %3990 = vmatprep.mubr.bf16.mxu0 0
    %3991 = vmatmul.mubr.bf16.gmra.mxu0 %v3953
    %v3992 = vpop.f32.mrf.mxu0
    %v3993 = vadd.f32 0.0, %v3992
    %v3994 = vpop.f32.mrf.mxu0
    %v3995 = vpop.f32.mrf.mxu0
    %v3996 = vadd.f32 0.0, %v3995
    %v3997 = vpop.f32.mrf.mxu0
    %3998 = vmatprep.mubr.bf16.mxu0 0
    %3999 = vmatmul.mubr.bf16.gmra.mxu0 %v3956
    %v4000 = vpop.f32.mrf.mxu0
    %v4001 = vadd.f32 0.0, %v4000
    %v4002 = vpop.f32.mrf.mxu0
    %v4003 = vpop.f32.mrf.mxu0
    %v4004 = vadd.f32 0.0, %v4003
    %v4005 = vpop.f32.mrf.mxu0
    %4006 = vdwg.mxu0
    %v4007 = vpack.c.bf16 %v3996, %v3993
    %v4008 = vpack.c.bf16 %v4004, %v4001
    %4011 = vrot.lane.b32.xlu0 %v3831, 112
    %v4012 = vpop.permute.xlu0 %4011
    %4013 = vrot.lane.b32.xlu0 %v3832, 112
    %v4014 = vpop.permute.xlu0 %4013
    %4017 = vrot.lane.b32.xlu0 %v3833, 112
    %v4018 = vpop.permute.xlu0 %4017
    %4019 = vrot.lane.b32.xlu0 %v3834, 112
    %v4020 = vpop.permute.xlu0 %4019
    %v4022 = vsel %vm749, %v4012, 0
    %v4025 = vsel %vm749, %v4014, 0
    %v4028 = vsel %vm749, %v4018, 0
    %v4031 = vsel %vm749, %v4020, 0
    %4033 = vmatprep.subr.bf16.mxu0 0
    %4034 = vmatpush1.bf16.xpose.msra.mxu0 0
    %4035 = vmatprep.subr.bf16.mxu0 0
    %4036 = vmatpush1.bf16.xpose.msra.mxu0 0
    %4037 = vmatprep.subr.bf16.mxu0 0
    %4038 = vmatpush1.bf16.xpose.msra.mxu0 0
    %4039 = vmatprep.subr.bf16.mxu0 0
    %4040 = vmatpush1.bf16.xpose.msra.mxu0 0
    %4041 = vmatprep.subr.bf16.mxu0 0
    %4042 = vmatpush1.bf16.xpose.msra.mxu0 0
    %4043 = vmatprep.subr.bf16.mxu0 0
    %4044 = vmatpush1.bf16.xpose.msra.mxu0 0
    %4045 = vmatprep.subr.bf16.mxu0 0
    %4046 = vmatpush1.bf16.xpose.msra.mxu0 %v4031
    %4047 = vmatprep.subr.bf16.mxu0 0
    %4048 = vmatpush1.bf16.xpose.msra.mxu0 %v4028
    %4049 = vmatprep.subr.bf16.mxu0 0
    %4050 = vmatpush2.bf16.xpose.msra.mxu0 0
    %4051 = vmatprep.subr.bf16.mxu0 0
    %4052 = vmatpush2.bf16.xpose.msra.mxu0 0
    %4053 = vmatprep.subr.bf16.mxu0 0
    %4054 = vmatpush2.bf16.xpose.msra.mxu0 0
    %4055 = vmatprep.subr.bf16.mxu0 0
    %4056 = vmatpush2.bf16.xpose.msra.mxu0 0
    %4057 = vmatprep.subr.bf16.mxu0 0
    %4058 = vmatpush2.bf16.xpose.msra.mxu0 0
    %4059 = vmatprep.subr.bf16.mxu0 0
    %4060 = vmatpush2.bf16.xpose.msra.mxu0 0
    %4061 = vmatprep.subr.bf16.mxu0 0
    %4062 = vmatpush2.bf16.xpose.msra.mxu0 0
    %4063 = vmatprep.subr.bf16.mxu0 0
    %4064 = vmatpush2.bf16.xpose.msra.mxu0 0
    %4065 = vmatprep.mubr.bf16.mxu0 0
    %4066 = vmatmul.mubr.bf16.gmra.mxu0 %v4022
    %v4067 = vpop.f32.mrf.mxu0
    %v4068 = vadd.f32 0.0, %v4067
    %v4069 = vpop.f32.mrf.mxu0
    %v4070 = vpop.f32.mrf.mxu0
    %v4071 = vadd.f32 0.0, %v4070
    %v4072 = vpop.f32.mrf.mxu0
    %4073 = vmatprep.mubr.bf16.mxu0 0
    %4074 = vmatmul.mubr.bf16.gmra.mxu0 %v4025
    %v4075 = vpop.f32.mrf.mxu0
    %v4076 = vadd.f32 0.0, %v4075
    %v4077 = vpop.f32.mrf.mxu0
    %v4078 = vpop.f32.mrf.mxu0
    %v4079 = vadd.f32 0.0, %v4078
    %v4080 = vpop.f32.mrf.mxu0
    %4081 = vdwg.mxu0
    %v4082 = vmul.f32 %v4068, 0.125
    %v4083 = vmul.f32 %v4071, 0.125
    %v4084 = vmul.f32 %v4076, 0.125
    %v4085 = vmul.f32 %v4079, 0.125
    %v4086 = vsel %vm283, %v4082, -1e+30
    %v4087 = vsel %vm283, %v4083, -1e+30
    %v4088 = vsel %vm283, %v4084, -1e+30
    %v4089 = vsel %vm283, %v4085, -1e+30
    %v4090 = vsel %vm819, %v4086, -inf
    %4091 = vmax.xlane.f32.xlu0 %v4090
    %v4092 = vpop.xlane.xlu0 %4091
    %v4093 = vsel %vm819, %v4087, -inf
    %4094 = vmax.xlane.f32.xlu0 %v4093
    %v4095 = vpop.xlane.xlu0 %4094
    %v4096 = vsel %vm819, %v4088, -inf
    %4097 = vmax.xlane.f32.xlu0 %v4096
    %v4098 = vpop.xlane.xlu0 %4097
    %v4099 = vsel %vm819, %v4089, -inf
    %4100 = vmax.xlane.f32.xlu0 %v4099
    %v4101 = vpop.xlane.xlu0 %4100
    %v4102 = vsub.f32 %v4086, %v4092
    %v4103 = vsub.f32 %v4087, %v4095
    %v4104 = vsub.f32 %v4088, %v4098
    %v4105 = vsub.f32 %v4089, %v4101
    %v4106 = vmul.f32 %v4102, 1.442695
    %v4107 = vpow.pop %v4106
    %v4108 = vmul.f32 %v4103, 1.442695
    %v4109 = vpow.pop %v4108
    %v4110 = vmul.f32 %v4104, 1.442695
    %v4111 = vpow.pop %v4110
    %v4112 = vmul.f32 %v4105, 1.442695
    %v4113 = vpow.pop %v4112
    %v4114 = vsel %vm819, %v4107, 0.0
    %4115 = vadd.xlane.f32.xlu0 %v4114
    %v4116 = vpop.xlane.xlu0 %4115
    %v4117 = vsel %vm819, %v4109, 0.0
    %4118 = vadd.xlane.f32.xlu0 %v4117
    %v4119 = vpop.xlane.xlu0 %4118
    %v4120 = vsel %vm819, %v4111, 0.0
    %4121 = vadd.xlane.f32.xlu0 %v4120
    %v4122 = vpop.xlane.xlu0 %4121
    %v4123 = vsel %vm819, %v4113, 0.0
    %4124 = vadd.xlane.f32.xlu0 %v4123
    %v4125 = vpop.xlane.xlu0 %4124
    %v4126 = vrcp.pop %v4116
    %v4127 = vrcp.pop %v4119
    %v4128 = vrcp.pop %v4122
    %v4129 = vrcp.pop %v4125
    %v4130 = vmul.f32 %v4107, %v4126
    %v4131 = vmul.f32 %v4109, %v4127
    %v4132 = vmul.f32 %v4111, %v4128
    %v4133 = vmul.f32 %v4113, %v4129
    %v4134 = vpack.c.bf16 %v4131, %v4130
    %v4135 = vpack.c.bf16 %v4133, %v4132
    %4138 = vrot.lane.b32.xlu0 %v3835, 112
    %v4139 = vpop.permute.xlu0 %4138
    %4140 = vrot.lane.b32.xlu0 %v3836, 112
    %v4141 = vpop.permute.xlu0 %4140
    %v4145 = vsel %vm819, %v4134, 0
    %v4148 = vsel %vm819, %v4135, 0
    %4150 = vmatprep.subr.bf16.mxu0 0
    %4151 = vmatpush1.bf16.msra.mxu0 0
    %4152 = vmatprep.subr.bf16.mxu0 0
    %4153 = vmatpush1.bf16.msra.mxu0 0
    %4154 = vmatprep.subr.bf16.mxu0 0
    %4155 = vmatpush1.bf16.msra.mxu0 0
    %4156 = vmatprep.subr.bf16.mxu0 0
    %4157 = vmatpush1.bf16.msra.mxu0 0
    %4158 = vmatprep.subr.bf16.mxu0 0
    %4159 = vmatpush1.bf16.msra.mxu0 0
    %4160 = vmatprep.subr.bf16.mxu0 0
    %4161 = vmatpush1.bf16.msra.mxu0 0
    %4162 = vmatprep.subr.bf16.mxu0 0
    %4163 = vmatpush1.bf16.msra.mxu0 %v4141
    %4164 = vmatprep.subr.bf16.mxu0 0
    %4165 = vmatpush1.bf16.msra.mxu0 %v4139
    %4166 = vmatprep.subr.bf16.mxu0 0
    %4167 = vmatpush2.bf16.msra.mxu0 0
    %4168 = vmatprep.subr.bf16.mxu0 0
    %4169 = vmatpush2.bf16.msra.mxu0 0
    %4170 = vmatprep.subr.bf16.mxu0 0
    %4171 = vmatpush2.bf16.msra.mxu0 0
    %4172 = vmatprep.subr.bf16.mxu0 0
    %4173 = vmatpush2.bf16.msra.mxu0 0
    %4174 = vmatprep.subr.bf16.mxu0 0
    %4175 = vmatpush2.bf16.msra.mxu0 0
    %4176 = vmatprep.subr.bf16.mxu0 0
    %4177 = vmatpush2.bf16.msra.mxu0 0
    %4178 = vmatprep.subr.bf16.mxu0 0
    %4179 = vmatpush2.bf16.msra.mxu0 0
    %4180 = vmatprep.subr.bf16.mxu0 0
    %4181 = vmatpush2.bf16.msra.mxu0 0
    %4182 = vmatprep.mubr.bf16.mxu0 0
    %4183 = vmatmul.mubr.bf16.gmra.mxu0 %v4145
    %v4184 = vpop.f32.mrf.mxu0
    %v4185 = vadd.f32 0.0, %v4184
    %v4186 = vpop.f32.mrf.mxu0
    %v4187 = vpop.f32.mrf.mxu0
    %v4188 = vadd.f32 0.0, %v4187
    %v4189 = vpop.f32.mrf.mxu0
    %4190 = vmatprep.mubr.bf16.mxu0 0
    %4191 = vmatmul.mubr.bf16.gmra.mxu0 %v4148
    %v4192 = vpop.f32.mrf.mxu0
    %v4193 = vadd.f32 0.0, %v4192
    %v4194 = vpop.f32.mrf.mxu0
    %v4195 = vpop.f32.mrf.mxu0
    %v4196 = vadd.f32 0.0, %v4195
    %v4197 = vpop.f32.mrf.mxu0
    %4198 = vdwg.mxu0
    %v4199 = vpack.c.bf16 %v4188, %v4185
    %v4200 = vpack.c.bf16 %v4196, %v4193
    %v4203 = vunpack.c.l.b16 %v3824
    %v4204 = vunpack.c.l.b16 %v3825
    %v4205 = vpack.c.b16 %v4204, %v4203
    %v4208 = vsel %vm749, %v4199, 0
    %v4211 = vsel %vm749, %v4200, 0
    %4213 = vmatprep.subr.bf16.mxu0 0
    %4214 = vmatpush1.bf16.msra.mxu0 0
    %4215 = vmatprep.subr.bf16.mxu0 0
    %4216 = vmatpush1.bf16.msra.mxu0 0
    %4217 = vmatprep.subr.bf16.mxu0 0
    %4218 = vmatpush1.bf16.msra.mxu0 0
    %4219 = vmatprep.subr.bf16.mxu0 0
    %4220 = vmatpush1.bf16.msra.mxu0 0
    %4221 = vmatprep.subr.bf16.mxu0 0
    %4222 = vmatpush1.bf16.msra.mxu0 0
    %4223 = vmatprep.subr.bf16.mxu0 0
    %4224 = vmatpush1.bf16.msra.mxu0 0
    %4225 = vmatprep.subr.bf16.mxu0 0
    %4226 = vmatpush1.bf16.msra.mxu0 0
    %4227 = vmatprep.subr.bf16.mxu0 0
    %4228 = vmatpush1.bf16.msra.mxu0 %v4205
    %4229 = vmatprep.subr.bf16.mxu0 0
    %4230 = vmatpush2.bf16.msra.mxu0 0
    %4231 = vmatprep.subr.bf16.mxu0 0
    %4232 = vmatpush2.bf16.msra.mxu0 0
    %4233 = vmatprep.subr.bf16.mxu0 0
    %4234 = vmatpush2.bf16.msra.mxu0 0
    %4235 = vmatprep.subr.bf16.mxu0 0
    %4236 = vmatpush2.bf16.msra.mxu0 0
    %4237 = vmatprep.subr.bf16.mxu0 0
    %4238 = vmatpush2.bf16.msra.mxu0 0
    %4239 = vmatprep.subr.bf16.mxu0 0
    %4240 = vmatpush2.bf16.msra.mxu0 0
    %4241 = vmatprep.subr.bf16.mxu0 0
    %4242 = vmatpush2.bf16.msra.mxu0 0
    %4243 = vmatprep.subr.bf16.mxu0 0
    %4244 = vmatpush2.bf16.msra.mxu0 0
    %4245 = vmatprep.mubr.bf16.mxu0 0
    %4246 = vmatmul.mubr.bf16.gmra.mxu0 %v4208
    %v4247 = vpop.f32.mrf.mxu0
    %v4248 = vadd.f32 0.0, %v4247
    %v4249 = vpop.f32.mrf.mxu0
    %v4250 = vpop.f32.mrf.mxu0
    %v4251 = vadd.f32 0.0, %v4250
    %v4252 = vpop.f32.mrf.mxu0
    %4253 = vmatprep.mubr.bf16.mxu0 0
    %4254 = vmatmul.mubr.bf16.gmra.mxu0 %v4211
    %v4255 = vpop.f32.mrf.mxu0
    %v4256 = vadd.f32 0.0, %v4255
    %v4257 = vpop.f32.mrf.mxu0
    %v4258 = vpop.f32.mrf.mxu0
    %v4259 = vadd.f32 0.0, %v4258
    %v4260 = vpop.f32.mrf.mxu0
    %4261 = vdwg.mxu0
    %v4264 = vunpack.c.l.b16 %v3822
    %v4265 = vunpack.c.l.b16 %v3823
    %v4266 = vpack.c.b16 %v4265, %v4264
    %v4269 = vsel %vm749, %v4007, 0
    %v4272 = vsel %vm749, %v4008, 0
    %4274 = vmatprep.subr.bf16.mxu0 0
    %4275 = vmatpush1.bf16.msra.mxu0 0
    %4276 = vmatprep.subr.bf16.mxu0 0
    %4277 = vmatpush1.bf16.msra.mxu0 0
    %4278 = vmatprep.subr.bf16.mxu0 0
    %4279 = vmatpush1.bf16.msra.mxu0 0
    %4280 = vmatprep.subr.bf16.mxu0 0
    %4281 = vmatpush1.bf16.msra.mxu0 0
    %4282 = vmatprep.subr.bf16.mxu0 0
    %4283 = vmatpush1.bf16.msra.mxu0 0
    %4284 = vmatprep.subr.bf16.mxu0 0
    %4285 = vmatpush1.bf16.msra.mxu0 0
    %4286 = vmatprep.subr.bf16.mxu0 0
    %4287 = vmatpush1.bf16.msra.mxu0 0
    %4288 = vmatprep.subr.bf16.mxu0 0
    %4289 = vmatpush1.bf16.msra.mxu0 %v4266
    %4290 = vmatprep.subr.bf16.mxu0 0
    %4291 = vmatpush2.bf16.msra.mxu0 0
    %4292 = vmatprep.subr.bf16.mxu0 0
    %4293 = vmatpush2.bf16.msra.mxu0 0
    %4294 = vmatprep.subr.bf16.mxu0 0
    %4295 = vmatpush2.bf16.msra.mxu0 0
    %4296 = vmatprep.subr.bf16.mxu0 0
    %4297 = vmatpush2.bf16.msra.mxu0 0
    %4298 = vmatprep.subr.bf16.mxu0 0
    %4299 = vmatpush2.bf16.msra.mxu0 0
    %4300 = vmatprep.subr.bf16.mxu0 0
    %4301 = vmatpush2.bf16.msra.mxu0 0
    %4302 = vmatprep.subr.bf16.mxu0 0
    %4303 = vmatpush2.bf16.msra.mxu0 0
    %4304 = vmatprep.subr.bf16.mxu0 0
    %4305 = vmatpush2.bf16.msra.mxu0 0
    %4306 = vmatprep.mubr.bf16.mxu0 0
    %4307 = vmatmul.mubr.bf16.gmra.mxu0 %v4269
    %v4308 = vpop.f32.mrf.mxu0
    %v4309 = vadd.f32 %v4248, %v4308
    %v4310 = vpop.f32.mrf.mxu0
    %v4311 = vpop.f32.mrf.mxu0
    %v4312 = vadd.f32 %v4251, %v4311
    %v4313 = vpop.f32.mrf.mxu0
    %4314 = vmatprep.mubr.bf16.mxu0 0
    %4315 = vmatmul.mubr.bf16.gmra.mxu0 %v4272
    %v4316 = vpop.f32.mrf.mxu0
    %v4317 = vadd.f32 %v4256, %v4316
    %v4318 = vpop.f32.mrf.mxu0
    %v4319 = vpop.f32.mrf.mxu0
    %v4320 = vadd.f32 %v4259, %v4319
    %v4321 = vpop.f32.mrf.mxu0
    %4322 = vdwg.mxu0
    %4323 = vrot.lane.b32.xlu0 %v3831, 96
    %v4324 = vpop.permute.xlu0 %4323
    %4325 = vrot.lane.b32.xlu0 %v3832, 96
    %v4326 = vpop.permute.xlu0 %4325
    %4327 = vrot.lane.b32.xlu0 %v3833, 96
    %v4328 = vpop.permute.xlu0 %4327
    %4329 = vrot.lane.b32.xlu0 %v3834, 96
    %v4330 = vpop.permute.xlu0 %4329
    %v4332 = vsel %vm749, %v4324, 0
    %v4335 = vsel %vm749, %v4326, 0
    %v4338 = vsel %vm749, %v4328, 0
    %v4341 = vsel %vm749, %v4330, 0
    %4343 = vmatprep.subr.bf16.mxu0 0
    %4344 = vmatpush1.bf16.xpose.msra.mxu0 0
    %4345 = vmatprep.subr.bf16.mxu0 0
    %4346 = vmatpush1.bf16.xpose.msra.mxu0 0
    %4347 = vmatprep.subr.bf16.mxu0 0
    %4348 = vmatpush1.bf16.xpose.msra.mxu0 0
    %4349 = vmatprep.subr.bf16.mxu0 0
    %4350 = vmatpush1.bf16.xpose.msra.mxu0 0
    %4351 = vmatprep.subr.bf16.mxu0 0
    %4352 = vmatpush1.bf16.xpose.msra.mxu0 0
    %4353 = vmatprep.subr.bf16.mxu0 0
    %4354 = vmatpush1.bf16.xpose.msra.mxu0 0
    %4355 = vmatprep.subr.bf16.mxu0 0
    %4356 = vmatpush1.bf16.xpose.msra.mxu0 %v4341
    %4357 = vmatprep.subr.bf16.mxu0 0
    %4358 = vmatpush1.bf16.xpose.msra.mxu0 %v4338
    %4359 = vmatprep.subr.bf16.mxu0 0
    %4360 = vmatpush2.bf16.xpose.msra.mxu0 0
    %4361 = vmatprep.subr.bf16.mxu0 0
    %4362 = vmatpush2.bf16.xpose.msra.mxu0 0
    %4363 = vmatprep.subr.bf16.mxu0 0
    %4364 = vmatpush2.bf16.xpose.msra.mxu0 0
    %4365 = vmatprep.subr.bf16.mxu0 0
    %4366 = vmatpush2.bf16.xpose.msra.mxu0 0
    %4367 = vmatprep.subr.bf16.mxu0 0
    %4368 = vmatpush2.bf16.xpose.msra.mxu0 0
    %4369 = vmatprep.subr.bf16.mxu0 0
    %4370 = vmatpush2.bf16.xpose.msra.mxu0 0
    %4371 = vmatprep.subr.bf16.mxu0 0
    %4372 = vmatpush2.bf16.xpose.msra.mxu0 0
    %4373 = vmatprep.subr.bf16.mxu0 0
    %4374 = vmatpush2.bf16.xpose.msra.mxu0 0
    %4375 = vmatprep.mubr.bf16.mxu0 0
    %4376 = vmatmul.mubr.bf16.gmra.mxu0 %v4332
    %v4377 = vpop.f32.mrf.mxu0
    %v4378 = vadd.f32 0.0, %v4377
    %v4379 = vpop.f32.mrf.mxu0
    %v4380 = vpop.f32.mrf.mxu0
    %v4381 = vadd.f32 0.0, %v4380
    %v4382 = vpop.f32.mrf.mxu0
    %4383 = vmatprep.mubr.bf16.mxu0 0
    %4384 = vmatmul.mubr.bf16.gmra.mxu0 %v4335
    %v4385 = vpop.f32.mrf.mxu0
    %v4386 = vadd.f32 0.0, %v4385
    %v4387 = vpop.f32.mrf.mxu0
    %v4388 = vpop.f32.mrf.mxu0
    %v4389 = vadd.f32 0.0, %v4388
    %v4390 = vpop.f32.mrf.mxu0
    %4391 = vdwg.mxu0
    %v4392 = vmul.f32 %v4378, 0.125
    %v4393 = vmul.f32 %v4381, 0.125
    %v4394 = vmul.f32 %v4386, 0.125
    %v4395 = vmul.f32 %v4389, 0.125
    %v4396 = vsel %vm283, %v4392, -1e+30
    %v4397 = vsel %vm283, %v4393, -1e+30
    %v4398 = vsel %vm283, %v4394, -1e+30
    %v4399 = vsel %vm283, %v4395, -1e+30
    %v4400 = vsel %vm819, %v4396, -inf
    %4401 = vmax.xlane.f32.xlu0 %v4400
    %v4402 = vpop.xlane.xlu0 %4401
    %v4403 = vsel %vm819, %v4397, -inf
    %4404 = vmax.xlane.f32.xlu0 %v4403
    %v4405 = vpop.xlane.xlu0 %4404
    %v4406 = vsel %vm819, %v4398, -inf
    %4407 = vmax.xlane.f32.xlu0 %v4406
    %v4408 = vpop.xlane.xlu0 %4407
    %v4409 = vsel %vm819, %v4399, -inf
    %4410 = vmax.xlane.f32.xlu0 %v4409
    %v4411 = vpop.xlane.xlu0 %4410
    %v4412 = vsub.f32 %v4396, %v4402
    %v4413 = vsub.f32 %v4397, %v4405
    %v4414 = vsub.f32 %v4398, %v4408
    %v4415 = vsub.f32 %v4399, %v4411
    %v4416 = vmul.f32 %v4412, 1.442695
    %v4417 = vpow.pop %v4416
    %v4418 = vmul.f32 %v4413, 1.442695
    %v4419 = vpow.pop %v4418
    %v4420 = vmul.f32 %v4414, 1.442695
    %v4421 = vpow.pop %v4420
    %v4422 = vmul.f32 %v4415, 1.442695
    %v4423 = vpow.pop %v4422
    %v4424 = vsel %vm819, %v4417, 0.0
    %4425 = vadd.xlane.f32.xlu0 %v4424
    %v4426 = vpop.xlane.xlu0 %4425
    %v4427 = vsel %vm819, %v4419, 0.0
    %4428 = vadd.xlane.f32.xlu0 %v4427
    %v4429 = vpop.xlane.xlu0 %4428
    %v4430 = vsel %vm819, %v4421, 0.0
    %4431 = vadd.xlane.f32.xlu0 %v4430
    %v4432 = vpop.xlane.xlu0 %4431
    %v4433 = vsel %vm819, %v4423, 0.0
    %4434 = vadd.xlane.f32.xlu0 %v4433
    %v4435 = vpop.xlane.xlu0 %4434
    %v4436 = vrcp.pop %v4426
    %v4437 = vrcp.pop %v4429
    %v4438 = vrcp.pop %v4432
    %v4439 = vrcp.pop %v4435
    %v4440 = vmul.f32 %v4417, %v4436
    %v4441 = vmul.f32 %v4419, %v4437
    %v4442 = vmul.f32 %v4421, %v4438
    %v4443 = vmul.f32 %v4423, %v4439
    %v4444 = vpack.c.bf16 %v4441, %v4440
    %v4445 = vpack.c.bf16 %v4443, %v4442
    %4446 = vrot.lane.b32.xlu0 %v3835, 96
    %v4447 = vpop.permute.xlu0 %4446
    %4448 = vrot.lane.b32.xlu0 %v3836, 96
    %v4449 = vpop.permute.xlu0 %4448
    %v4453 = vsel %vm819, %v4444, 0
    %v4456 = vsel %vm819, %v4445, 0
    %4458 = vmatprep.subr.bf16.mxu0 0
    %4459 = vmatpush1.bf16.msra.mxu0 0
    %4460 = vmatprep.subr.bf16.mxu0 0
    %4461 = vmatpush1.bf16.msra.mxu0 0
    %4462 = vmatprep.subr.bf16.mxu0 0
    %4463 = vmatpush1.bf16.msra.mxu0 0
    %4464 = vmatprep.subr.bf16.mxu0 0
    %4465 = vmatpush1.bf16.msra.mxu0 0
    %4466 = vmatprep.subr.bf16.mxu0 0
    %4467 = vmatpush1.bf16.msra.mxu0 0
    %4468 = vmatprep.subr.bf16.mxu0 0
    %4469 = vmatpush1.bf16.msra.mxu0 0
    %4470 = vmatprep.subr.bf16.mxu0 0
    %4471 = vmatpush1.bf16.msra.mxu0 %v4449
    %4472 = vmatprep.subr.bf16.mxu0 0
    %4473 = vmatpush1.bf16.msra.mxu0 %v4447
    %4474 = vmatprep.subr.bf16.mxu0 0
    %4475 = vmatpush2.bf16.msra.mxu0 0
    %4476 = vmatprep.subr.bf16.mxu0 0
    %4477 = vmatpush2.bf16.msra.mxu0 0
    %4478 = vmatprep.subr.bf16.mxu0 0
    %4479 = vmatpush2.bf16.msra.mxu0 0
    %4480 = vmatprep.subr.bf16.mxu0 0
    %4481 = vmatpush2.bf16.msra.mxu0 0
    %4482 = vmatprep.subr.bf16.mxu0 0
    %4483 = vmatpush2.bf16.msra.mxu0 0
    %4484 = vmatprep.subr.bf16.mxu0 0
    %4485 = vmatpush2.bf16.msra.mxu0 0
    %4486 = vmatprep.subr.bf16.mxu0 0
    %4487 = vmatpush2.bf16.msra.mxu0 0
    %4488 = vmatprep.subr.bf16.mxu0 0
    %4489 = vmatpush2.bf16.msra.mxu0 0
    %4490 = vmatprep.mubr.bf16.mxu0 0
    %4491 = vmatmul.mubr.bf16.gmra.mxu0 %v4453
    %v4492 = vpop.f32.mrf.mxu0
    %v4493 = vadd.f32 0.0, %v4492
    %v4494 = vpop.f32.mrf.mxu0
    %v4495 = vpop.f32.mrf.mxu0
    %v4496 = vadd.f32 0.0, %v4495
    %v4497 = vpop.f32.mrf.mxu0
    %4498 = vmatprep.mubr.bf16.mxu0 0
    %4499 = vmatmul.mubr.bf16.gmra.mxu0 %v4456
    %v4500 = vpop.f32.mrf.mxu0
    %v4501 = vadd.f32 0.0, %v4500
    %v4502 = vpop.f32.mrf.mxu0
    %v4503 = vpop.f32.mrf.mxu0
    %v4504 = vadd.f32 0.0, %v4503
    %v4505 = vpop.f32.mrf.mxu0
    %4506 = vdwg.mxu0
    %v4507 = vpack.c.bf16 %v4496, %v4493
    %v4508 = vpack.c.bf16 %v4504, %v4501
    %v4511 = vunpack.c.l.b16 %v3826
    %v4512 = vunpack.c.l.b16 %v3827
    %v4513 = vpack.c.b16 %v4512, %v4511
    %v4516 = vsel %vm749, %v4507, 0
    %v4519 = vsel %vm749, %v4508, 0
    %4521 = vmatprep.subr.bf16.mxu0 0
    %4522 = vmatpush1.bf16.msra.mxu0 0
    %4523 = vmatprep.subr.bf16.mxu0 0
    %4524 = vmatpush1.bf16.msra.mxu0 0
    %4525 = vmatprep.subr.bf16.mxu0 0
    %4526 = vmatpush1.bf16.msra.mxu0 0
    %4527 = vmatprep.subr.bf16.mxu0 0
    %4528 = vmatpush1.bf16.msra.mxu0 0
    %4529 = vmatprep.subr.bf16.mxu0 0
    %4530 = vmatpush1.bf16.msra.mxu0 0
    %4531 = vmatprep.subr.bf16.mxu0 0
    %4532 = vmatpush1.bf16.msra.mxu0 0
    %4533 = vmatprep.subr.bf16.mxu0 0
    %4534 = vmatpush1.bf16.msra.mxu0 0
    %4535 = vmatprep.subr.bf16.mxu0 0
    %4536 = vmatpush1.bf16.msra.mxu0 %v4513
    %4537 = vmatprep.subr.bf16.mxu0 0
    %4538 = vmatpush2.bf16.msra.mxu0 0
    %4539 = vmatprep.subr.bf16.mxu0 0
    %4540 = vmatpush2.bf16.msra.mxu0 0
    %4541 = vmatprep.subr.bf16.mxu0 0
    %4542 = vmatpush2.bf16.msra.mxu0 0
    %4543 = vmatprep.subr.bf16.mxu0 0
    %4544 = vmatpush2.bf16.msra.mxu0 0
    %4545 = vmatprep.subr.bf16.mxu0 0
    %4546 = vmatpush2.bf16.msra.mxu0 0
    %4547 = vmatprep.subr.bf16.mxu0 0
    %4548 = vmatpush2.bf16.msra.mxu0 0
    %4549 = vmatprep.subr.bf16.mxu0 0
    %4550 = vmatpush2.bf16.msra.mxu0 0
    %4551 = vmatprep.subr.bf16.mxu0 0
    %4552 = vmatpush2.bf16.msra.mxu0 0
    %4553 = vmatprep.mubr.bf16.mxu0 0
    %4554 = vmatmul.mubr.bf16.gmra.mxu0 %v4516
    %v4555 = vpop.f32.mrf.mxu0
    %v4556 = vadd.f32 0.0, %v4555
    %v4557 = vpop.f32.mrf.mxu0
    %v4558 = vpop.f32.mrf.mxu0
    %v4559 = vadd.f32 0.0, %v4558
    %v4560 = vpop.f32.mrf.mxu0
    %4561 = vmatprep.mubr.bf16.mxu0 0
    %4562 = vmatmul.mubr.bf16.gmra.mxu0 %v4519
    %v4563 = vpop.f32.mrf.mxu0
    %v4564 = vadd.f32 0.0, %v4563
    %v4565 = vpop.f32.mrf.mxu0
    %v4566 = vpop.f32.mrf.mxu0
    %v4567 = vadd.f32 0.0, %v4566
    %v4568 = vpop.f32.mrf.mxu0
    %4569 = vdwg.mxu0
    %v4570 = vadd.f32 %v4309, %v4556
    %v4571 = vadd.f32 %v4312, %v4559
    %v4572 = vadd.f32 %v4317, %v4564
    %v4573 = vadd.f32 %v4320, %v4567
    %4574 = vrot.lane.b32.xlu0 %v3831, 80
    %v4575 = vpop.permute.xlu0 %4574
    %4576 = vrot.lane.b32.xlu0 %v3832, 80
    %v4577 = vpop.permute.xlu0 %4576
    %4578 = vrot.lane.b32.xlu0 %v3833, 80
    %v4579 = vpop.permute.xlu0 %4578
    %4580 = vrot.lane.b32.xlu0 %v3834, 80
    %v4581 = vpop.permute.xlu0 %4580
    %v4583 = vsel %vm749, %v4575, 0
    %v4586 = vsel %vm749, %v4577, 0
    %v4589 = vsel %vm749, %v4579, 0
    %v4592 = vsel %vm749, %v4581, 0
    %4594 = vmatprep.subr.bf16.mxu0 0
    %4595 = vmatpush1.bf16.xpose.msra.mxu0 0
    %4596 = vmatprep.subr.bf16.mxu0 0
    %4597 = vmatpush1.bf16.xpose.msra.mxu0 0
    %4598 = vmatprep.subr.bf16.mxu0 0
    %4599 = vmatpush1.bf16.xpose.msra.mxu0 0
    %4600 = vmatprep.subr.bf16.mxu0 0
    %4601 = vmatpush1.bf16.xpose.msra.mxu0 0
    %4602 = vmatprep.subr.bf16.mxu0 0
    %4603 = vmatpush1.bf16.xpose.msra.mxu0 0
    %4604 = vmatprep.subr.bf16.mxu0 0
    %4605 = vmatpush1.bf16.xpose.msra.mxu0 0
    %4606 = vmatprep.subr.bf16.mxu0 0
    %4607 = vmatpush1.bf16.xpose.msra.mxu0 %v4592
    %4608 = vmatprep.subr.bf16.mxu0 0
    %4609 = vmatpush1.bf16.xpose.msra.mxu0 %v4589
    %4610 = vmatprep.subr.bf16.mxu0 0
    %4611 = vmatpush2.bf16.xpose.msra.mxu0 0
    %4612 = vmatprep.subr.bf16.mxu0 0
    %4613 = vmatpush2.bf16.xpose.msra.mxu0 0
    %4614 = vmatprep.subr.bf16.mxu0 0
    %4615 = vmatpush2.bf16.xpose.msra.mxu0 0
    %4616 = vmatprep.subr.bf16.mxu0 0
    %4617 = vmatpush2.bf16.xpose.msra.mxu0 0
    %4618 = vmatprep.subr.bf16.mxu0 0
    %4619 = vmatpush2.bf16.xpose.msra.mxu0 0
    %4620 = vmatprep.subr.bf16.mxu0 0
    %4621 = vmatpush2.bf16.xpose.msra.mxu0 0
    %4622 = vmatprep.subr.bf16.mxu0 0
    %4623 = vmatpush2.bf16.xpose.msra.mxu0 0
    %4624 = vmatprep.subr.bf16.mxu0 0
    %4625 = vmatpush2.bf16.xpose.msra.mxu0 0
    %4626 = vmatprep.mubr.bf16.mxu0 0
    %4627 = vmatmul.mubr.bf16.gmra.mxu0 %v4583
    %v4628 = vpop.f32.mrf.mxu0
    %v4629 = vadd.f32 0.0, %v4628
    %v4630 = vpop.f32.mrf.mxu0
    %v4631 = vpop.f32.mrf.mxu0
    %v4632 = vadd.f32 0.0, %v4631
    %v4633 = vpop.f32.mrf.mxu0
    %4634 = vmatprep.mubr.bf16.mxu0 0
    %4635 = vmatmul.mubr.bf16.gmra.mxu0 %v4586
    %v4636 = vpop.f32.mrf.mxu0
    %v4637 = vadd.f32 0.0, %v4636
    %v4638 = vpop.f32.mrf.mxu0
    %v4639 = vpop.f32.mrf.mxu0
    %v4640 = vadd.f32 0.0, %v4639
    %v4641 = vpop.f32.mrf.mxu0
    %4642 = vdwg.mxu0
    %v4643 = vmul.f32 %v4629, 0.125
    %v4644 = vmul.f32 %v4632, 0.125
    %v4645 = vmul.f32 %v4637, 0.125
    %v4646 = vmul.f32 %v4640, 0.125
    %v4647 = vsel %vm283, %v4643, -1e+30
    %v4648 = vsel %vm283, %v4644, -1e+30
    %v4649 = vsel %vm283, %v4645, -1e+30
    %v4650 = vsel %vm283, %v4646, -1e+30
    %v4651 = vsel %vm819, %v4647, -inf
    %4652 = vmax.xlane.f32.xlu0 %v4651
    %v4653 = vpop.xlane.xlu0 %4652
    %v4654 = vsel %vm819, %v4648, -inf
    %4655 = vmax.xlane.f32.xlu0 %v4654
    %v4656 = vpop.xlane.xlu0 %4655
    %v4657 = vsel %vm819, %v4649, -inf
    %4658 = vmax.xlane.f32.xlu0 %v4657
    %v4659 = vpop.xlane.xlu0 %4658
    %v4660 = vsel %vm819, %v4650, -inf
    %4661 = vmax.xlane.f32.xlu0 %v4660
    %v4662 = vpop.xlane.xlu0 %4661
    %v4663 = vsub.f32 %v4647, %v4653
    %v4664 = vsub.f32 %v4648, %v4656
    %v4665 = vsub.f32 %v4649, %v4659
    %v4666 = vsub.f32 %v4650, %v4662
    %v4667 = vmul.f32 %v4663, 1.442695
    %v4668 = vpow.pop %v4667
    %v4669 = vmul.f32 %v4664, 1.442695
    %v4670 = vpow.pop %v4669
    %v4671 = vmul.f32 %v4665, 1.442695
    %v4672 = vpow.pop %v4671
    %v4673 = vmul.f32 %v4666, 1.442695
    %v4674 = vpow.pop %v4673
    %v4675 = vsel %vm819, %v4668, 0.0
    %4676 = vadd.xlane.f32.xlu0 %v4675
    %v4677 = vpop.xlane.xlu0 %4676
    %v4678 = vsel %vm819, %v4670, 0.0
    %4679 = vadd.xlane.f32.xlu0 %v4678
    %v4680 = vpop.xlane.xlu0 %4679
    %v4681 = vsel %vm819, %v4672, 0.0
    %4682 = vadd.xlane.f32.xlu0 %v4681
    %v4683 = vpop.xlane.xlu0 %4682
    %v4684 = vsel %vm819, %v4674, 0.0
    %4685 = vadd.xlane.f32.xlu0 %v4684
    %v4686 = vpop.xlane.xlu0 %4685
    %v4687 = vrcp.pop %v4677
    %v4688 = vrcp.pop %v4680
    %v4689 = vrcp.pop %v4683
    %v4690 = vrcp.pop %v4686
    %v4691 = vmul.f32 %v4668, %v4687
    %v4692 = vmul.f32 %v4670, %v4688
    %v4693 = vmul.f32 %v4672, %v4689
    %v4694 = vmul.f32 %v4674, %v4690
    %v4695 = vpack.c.bf16 %v4692, %v4691
    %v4696 = vpack.c.bf16 %v4694, %v4693
    %4697 = vrot.lane.b32.xlu0 %v3835, 80
    %v4698 = vpop.permute.xlu0 %4697
    %4699 = vrot.lane.b32.xlu0 %v3836, 80
    %v4700 = vpop.permute.xlu0 %4699
    %v4704 = vsel %vm819, %v4695, 0
    %v4707 = vsel %vm819, %v4696, 0
    %4709 = vmatprep.subr.bf16.mxu0 0
    %4710 = vmatpush1.bf16.msra.mxu0 0
    %4711 = vmatprep.subr.bf16.mxu0 0
    %4712 = vmatpush1.bf16.msra.mxu0 0
    %4713 = vmatprep.subr.bf16.mxu0 0
    %4714 = vmatpush1.bf16.msra.mxu0 0
    %4715 = vmatprep.subr.bf16.mxu0 0
    %4716 = vmatpush1.bf16.msra.mxu0 0
    %4717 = vmatprep.subr.bf16.mxu0 0
    %4718 = vmatpush1.bf16.msra.mxu0 0
    %4719 = vmatprep.subr.bf16.mxu0 0
    %4720 = vmatpush1.bf16.msra.mxu0 0
    %4721 = vmatprep.subr.bf16.mxu0 0
    %4722 = vmatpush1.bf16.msra.mxu0 %v4700
    %4723 = vmatprep.subr.bf16.mxu0 0
    %4724 = vmatpush1.bf16.msra.mxu0 %v4698
    %4725 = vmatprep.subr.bf16.mxu0 0
    %4726 = vmatpush2.bf16.msra.mxu0 0
    %4727 = vmatprep.subr.bf16.mxu0 0
    %4728 = vmatpush2.bf16.msra.mxu0 0
    %4729 = vmatprep.subr.bf16.mxu0 0
    %4730 = vmatpush2.bf16.msra.mxu0 0
    %4731 = vmatprep.subr.bf16.mxu0 0
    %4732 = vmatpush2.bf16.msra.mxu0 0
    %4733 = vmatprep.subr.bf16.mxu0 0
    %4734 = vmatpush2.bf16.msra.mxu0 0
    %4735 = vmatprep.subr.bf16.mxu0 0
    %4736 = vmatpush2.bf16.msra.mxu0 0
    %4737 = vmatprep.subr.bf16.mxu0 0
    %4738 = vmatpush2.bf16.msra.mxu0 0
    %4739 = vmatprep.subr.bf16.mxu0 0
    %4740 = vmatpush2.bf16.msra.mxu0 0
    %4741 = vmatprep.mubr.bf16.mxu0 0
    %4742 = vmatmul.mubr.bf16.gmra.mxu0 %v4704
    %v4743 = vpop.f32.mrf.mxu0
    %v4744 = vadd.f32 0.0, %v4743
    %v4745 = vpop.f32.mrf.mxu0
    %v4746 = vpop.f32.mrf.mxu0
    %v4747 = vadd.f32 0.0, %v4746
    %v4748 = vpop.f32.mrf.mxu0
    %4749 = vmatprep.mubr.bf16.mxu0 0
    %4750 = vmatmul.mubr.bf16.gmra.mxu0 %v4707
    %v4751 = vpop.f32.mrf.mxu0
    %v4752 = vadd.f32 0.0, %v4751
    %v4753 = vpop.f32.mrf.mxu0
    %v4754 = vpop.f32.mrf.mxu0
    %v4755 = vadd.f32 0.0, %v4754
    %v4756 = vpop.f32.mrf.mxu0
    %4757 = vdwg.mxu0
    %v4758 = vpack.c.bf16 %v4747, %v4744
    %v4759 = vpack.c.bf16 %v4755, %v4752
    %v4762 = vunpack.c.l.b16 %v3828
    %v4763 = vunpack.c.l.b16 %v3829
    %v4764 = vpack.c.b16 %v4763, %v4762
    %v4767 = vsel %vm749, %v4758, 0
    %v4770 = vsel %vm749, %v4759, 0
    %4772 = vmatprep.subr.bf16.mxu0 0
    %4773 = vmatpush1.bf16.msra.mxu0 0
    %4774 = vmatprep.subr.bf16.mxu0 0
    %4775 = vmatpush1.bf16.msra.mxu0 0
    %4776 = vmatprep.subr.bf16.mxu0 0
    %4777 = vmatpush1.bf16.msra.mxu0 0
    %4778 = vmatprep.subr.bf16.mxu0 0
    %4779 = vmatpush1.bf16.msra.mxu0 0
    %4780 = vmatprep.subr.bf16.mxu0 0
    %4781 = vmatpush1.bf16.msra.mxu0 0
    %4782 = vmatprep.subr.bf16.mxu0 0
    %4783 = vmatpush1.bf16.msra.mxu0 0
    %4784 = vmatprep.subr.bf16.mxu0 0
    %4785 = vmatpush1.bf16.msra.mxu0 0
    %4786 = vmatprep.subr.bf16.mxu0 0
    %4787 = vmatpush1.bf16.msra.mxu0 %v4764
    %4788 = vmatprep.subr.bf16.mxu0 0
    %4789 = vmatpush2.bf16.msra.mxu0 0
    %4790 = vmatprep.subr.bf16.mxu0 0
    %4791 = vmatpush2.bf16.msra.mxu0 0
    %4792 = vmatprep.subr.bf16.mxu0 0
    %4793 = vmatpush2.bf16.msra.mxu0 0
    %4794 = vmatprep.subr.bf16.mxu0 0
    %4795 = vmatpush2.bf16.msra.mxu0 0
    %4796 = vmatprep.subr.bf16.mxu0 0
    %4797 = vmatpush2.bf16.msra.mxu0 0
    %4798 = vmatprep.subr.bf16.mxu0 0
    %4799 = vmatpush2.bf16.msra.mxu0 0
    %4800 = vmatprep.subr.bf16.mxu0 0
    %4801 = vmatpush2.bf16.msra.mxu0 0
    %4802 = vmatprep.subr.bf16.mxu0 0
    %4803 = vmatpush2.bf16.msra.mxu0 0
    %4804 = vmatprep.mubr.bf16.mxu0 0
    %4805 = vmatmul.mubr.bf16.gmra.mxu0 %v4767
    %v4806 = vpop.f32.mrf.mxu0
    %v4807 = vadd.f32 0.0, %v4806
    %v4808 = vpop.f32.mrf.mxu0
    %v4809 = vpop.f32.mrf.mxu0
    %v4810 = vadd.f32 0.0, %v4809
    %v4811 = vpop.f32.mrf.mxu0
    %4812 = vmatprep.mubr.bf16.mxu0 0
    %4813 = vmatmul.mubr.bf16.gmra.mxu0 %v4770
    %v4814 = vpop.f32.mrf.mxu0
    %v4815 = vadd.f32 0.0, %v4814
    %v4816 = vpop.f32.mrf.mxu0
    %v4817 = vpop.f32.mrf.mxu0
    %v4818 = vadd.f32 0.0, %v4817
    %v4819 = vpop.f32.mrf.mxu0
    %4820 = vdwg.mxu0
    %v4821 = vadd.f32 %v4570, %v4807
    %v4822 = vadd.f32 %v4571, %v4810
    %v4823 = vadd.f32 %v4572, %v4815
    %v4824 = vadd.f32 %v4573, %v4818
    %v4825 = vadd.f32 %v3373, %v4821
    %v4826 = vadd.f32 %v3374, %v4822
    %v4827 = vadd.f32 %v3375, %v4823
    %v4828 = vadd.f32 %v3376, %v4824
    %v4830 = vlaneseq
    %v4831 = vshrl.u32 %v4830, 7
    %v4832 = vsub.s32 0, %v4831
    %v4833 = vrot.slane %v3830, %v4832
    %v4835 = vadd.f32 %v4825, %v4833
    %v4836 = vadd.f32 %v4826, %v4833
    %v4837 = vadd.f32 %v4827, %v4833
    %v4838 = vadd.f32 %v4828, %v4833
    %4839 = vst.msk [vmem:[#allocation2] sm:$0xff] %vm272, %v4835
    %4840 = vst.msk [vmem:[#allocation2 + $0x8] sm:$0xff] %vm272, %v4836
    %4841 = vst.msk [vmem:[#allocation2 + $0x10] sm:$0xff] %vm272, %v4837
    %4842 = vst.msk [vmem:[#allocation2 + $0x18] sm:$0xff] %vm272, %v4838
    %v4843 = vpack.c.bf16 %v3617, %v3614
    %v4844 = vpack.c.bf16 %v3625, %v3622
    %v4845 = vpack.c.bf16 %v3714, %v3711
    %v4846 = vpack.c.bf16 %v3722, %v3719
    %v4847 = vpack.c.bf16 %v3811, %v3808
    %v4848 = vpack.c.bf16 %v3819, %v3816
    %v4850 = vsel %vm749, %v4843, 0
    %v4853 = vsel %vm749, %v4844, 0
    %v4856 = vsel %vm749, %v4845, 0
    %v4859 = vsel %vm749, %v4846, 0
    %4861 = vmatprep.subr.bf16.mxu0 0
    %4862 = vmatpush1.bf16.xpose.msra.mxu0 0
    %4863 = vmatprep.subr.bf16.mxu0 0
    %4864 = vmatpush1.bf16.xpose.msra.mxu0 0
    %4865 = vmatprep.subr.bf16.mxu0 0
    %4866 = vmatpush1.bf16.xpose.msra.mxu0 0
    %4867 = vmatprep.subr.bf16.mxu0 0
    %4868 = vmatpush1.bf16.xpose.msra.mxu0 0
    %4869 = vmatprep.subr.bf16.mxu0 0
    %4870 = vmatpush1.bf16.xpose.msra.mxu0 0
    %4871 = vmatprep.subr.bf16.mxu0 0
    %4872 = vmatpush1.bf16.xpose.msra.mxu0 0
    %4873 = vmatprep.subr.bf16.mxu0 0
    %4874 = vmatpush1.bf16.xpose.msra.mxu0 %v4859
    %4875 = vmatprep.subr.bf16.mxu0 0
    %4876 = vmatpush1.bf16.xpose.msra.mxu0 %v4856
    %4877 = vmatprep.subr.bf16.mxu0 0
    %4878 = vmatpush2.bf16.xpose.msra.mxu0 0
    %4879 = vmatprep.subr.bf16.mxu0 0
    %4880 = vmatpush2.bf16.xpose.msra.mxu0 0
    %4881 = vmatprep.subr.bf16.mxu0 0
    %4882 = vmatpush2.bf16.xpose.msra.mxu0 0
    %4883 = vmatprep.subr.bf16.mxu0 0
    %4884 = vmatpush2.bf16.xpose.msra.mxu0 0
    %4885 = vmatprep.subr.bf16.mxu0 0
    %4886 = vmatpush2.bf16.xpose.msra.mxu0 0
    %4887 = vmatprep.subr.bf16.mxu0 0
    %4888 = vmatpush2.bf16.xpose.msra.mxu0 0
    %4889 = vmatprep.subr.bf16.mxu0 0
    %4890 = vmatpush2.bf16.xpose.msra.mxu0 0
    %4891 = vmatprep.subr.bf16.mxu0 0
    %4892 = vmatpush2.bf16.xpose.msra.mxu0 0
    %4893 = vmatprep.mubr.bf16.mxu0 0
    %4894 = vmatmul.mubr.bf16.gmra.mxu0 %v4850
    %v4895 = vpop.f32.mrf.mxu0
    %v4896 = vadd.f32 0.0, %v4895
    %v4897 = vpop.f32.mrf.mxu0
    %v4898 = vpop.f32.mrf.mxu0
    %v4899 = vadd.f32 0.0, %v4898
    %v4900 = vpop.f32.mrf.mxu0
    %4901 = vmatprep.mubr.bf16.mxu0 0
    %4902 = vmatmul.mubr.bf16.gmra.mxu0 %v4853
    %v4903 = vpop.f32.mrf.mxu0
    %v4904 = vadd.f32 0.0, %v4903
    %v4905 = vpop.f32.mrf.mxu0
    %v4906 = vpop.f32.mrf.mxu0
    %v4907 = vadd.f32 0.0, %v4906
    %v4908 = vpop.f32.mrf.mxu0
    %4909 = vdwg.mxu0
    %v4910 = vmul.f32 %v4896, 0.125
    %v4911 = vmul.f32 %v4899, 0.125
    %v4912 = vmul.f32 %v4904, 0.125
    %v4913 = vmul.f32 %v4907, 0.125
    %v4914 = vsel %vm283, %v4910, -1e+30
    %v4915 = vsel %vm283, %v4911, -1e+30
    %v4916 = vsel %vm283, %v4912, -1e+30
    %v4917 = vsel %vm283, %v4913, -1e+30
    %v4918 = vsel %vm819, %v4914, -inf
    %4919 = vmax.xlane.f32.xlu0 %v4918
    %v4920 = vpop.xlane.xlu0 %4919
    %v4921 = vsel %vm819, %v4915, -inf
    %4922 = vmax.xlane.f32.xlu0 %v4921
    %v4923 = vpop.xlane.xlu0 %4922
    %v4924 = vsel %vm819, %v4916, -inf
    %4925 = vmax.xlane.f32.xlu0 %v4924
    %v4926 = vpop.xlane.xlu0 %4925
    %v4927 = vsel %vm819, %v4917, -inf
    %4928 = vmax.xlane.f32.xlu0 %v4927
    %v4929 = vpop.xlane.xlu0 %4928
    %v4930 = vsub.f32 %v4914, %v4920
    %v4931 = vsub.f32 %v4915, %v4923
    %v4932 = vsub.f32 %v4916, %v4926
    %v4933 = vsub.f32 %v4917, %v4929
    %v4934 = vmul.f32 %v4930, 1.442695
    %v4935 = vpow.pop %v4934
    %v4936 = vmul.f32 %v4931, 1.442695
    %v4937 = vpow.pop %v4936
    %v4938 = vmul.f32 %v4932, 1.442695
    %v4939 = vpow.pop %v4938
    %v4940 = vmul.f32 %v4933, 1.442695
    %v4941 = vpow.pop %v4940
    %v4942 = vsel %vm819, %v4935, 0.0
    %4943 = vadd.xlane.f32.xlu0 %v4942
    %v4944 = vpop.xlane.xlu0 %4943
    %v4945 = vsel %vm819, %v4937, 0.0
    %4946 = vadd.xlane.f32.xlu0 %v4945
    %v4947 = vpop.xlane.xlu0 %4946
    %v4948 = vsel %vm819, %v4939, 0.0
    %4949 = vadd.xlane.f32.xlu0 %v4948
    %v4950 = vpop.xlane.xlu0 %4949
    %v4951 = vsel %vm819, %v4941, 0.0
    %4952 = vadd.xlane.f32.xlu0 %v4951
    %v4953 = vpop.xlane.xlu0 %4952
    %v4954 = vrcp.pop %v4944
    %v4955 = vrcp.pop %v4947
    %v4956 = vrcp.pop %v4950
    %v4957 = vrcp.pop %v4953
    %v4958 = vmul.f32 %v4935, %v4954
    %v4959 = vmul.f32 %v4937, %v4955
    %v4960 = vmul.f32 %v4939, %v4956
    %v4961 = vmul.f32 %v4941, %v4957
    %v4962 = vpack.c.bf16 %v4959, %v4958
    %v4963 = vpack.c.bf16 %v4961, %v4960
    %v4965 = vsel %vm819, %v4962, 0
    %v4968 = vsel %vm819, %v4963, 0
    %4970 = vmatprep.subr.bf16.mxu0 0
    %4971 = vmatpush1.bf16.msra.mxu0 0
    %4972 = vmatprep.subr.bf16.mxu0 0
    %4973 = vmatpush1.bf16.msra.mxu0 0
    %4974 = vmatprep.subr.bf16.mxu0 0
    %4975 = vmatpush1.bf16.msra.mxu0 0
    %4976 = vmatprep.subr.bf16.mxu0 0
    %4977 = vmatpush1.bf16.msra.mxu0 0
    %4978 = vmatprep.subr.bf16.mxu0 0
    %4979 = vmatpush1.bf16.msra.mxu0 0
    %4980 = vmatprep.subr.bf16.mxu0 0
    %4981 = vmatpush1.bf16.msra.mxu0 0
    %4982 = vmatprep.subr.bf16.mxu0 0
    %4983 = vmatpush1.bf16.msra.mxu0 %v4848
    %4984 = vmatprep.subr.bf16.mxu0 0
    %4985 = vmatpush1.bf16.msra.mxu0 %v4847
    %4986 = vmatprep.subr.bf16.mxu0 0
    %4987 = vmatpush2.bf16.msra.mxu0 0
    %4988 = vmatprep.subr.bf16.mxu0 0
    %4989 = vmatpush2.bf16.msra.mxu0 0
    %4990 = vmatprep.subr.bf16.mxu0 0
    %4991 = vmatpush2.bf16.msra.mxu0 0
    %4992 = vmatprep.subr.bf16.mxu0 0
    %4993 = vmatpush2.bf16.msra.mxu0 0
    %4994 = vmatprep.subr.bf16.mxu0 0
    %4995 = vmatpush2.bf16.msra.mxu0 0
    %4996 = vmatprep.subr.bf16.mxu0 0
    %4997 = vmatpush2.bf16.msra.mxu0 0
    %4998 = vmatprep.subr.bf16.mxu0 0
    %4999 = vmatpush2.bf16.msra.mxu0 0
    %5000 = vmatprep.subr.bf16.mxu0 0
    %5001 = vmatpush2.bf16.msra.mxu0 0
    %5002 = vmatprep.mubr.bf16.mxu0 0
    %5003 = vmatmul.mubr.bf16.gmra.mxu0 %v4965
    %v5004 = vpop.f32.mrf.mxu0
    %v5005 = vadd.f32 0.0, %v5004
    %v5006 = vpop.f32.mrf.mxu0
    %v5007 = vpop.f32.mrf.mxu0
    %v5008 = vadd.f32 0.0, %v5007
    %v5009 = vpop.f32.mrf.mxu0
    %5010 = vmatprep.mubr.bf16.mxu0 0
    %5011 = vmatmul.mubr.bf16.gmra.mxu0 %v4968
    %v5012 = vpop.f32.mrf.mxu0
    %v5013 = vadd.f32 0.0, %v5012
    %v5014 = vpop.f32.mrf.mxu0
    %v5015 = vpop.f32.mrf.mxu0
    %v5016 = vadd.f32 0.0, %v5015
    %v5017 = vpop.f32.mrf.mxu0
    %5018 = vdwg.mxu0
    %v5019 = vpack.c.bf16 %v5008, %v5005
    %v5020 = vpack.c.bf16 %v5016, %v5013
    %5023 = vrot.lane.b32.xlu0 %v4843, 112
    %v5024 = vpop.permute.xlu0 %5023
    %5025 = vrot.lane.b32.xlu0 %v4844, 112
    %v5026 = vpop.permute.xlu0 %5025
    %5029 = vrot.lane.b32.xlu0 %v4845, 112
    %v5030 = vpop.permute.xlu0 %5029
    %5031 = vrot.lane.b32.xlu0 %v4846, 112
    %v5032 = vpop.permute.xlu0 %5031
    %v5034 = vsel %vm749, %v5024, 0
    %v5037 = vsel %vm749, %v5026, 0
    %v5040 = vsel %vm749, %v5030, 0
    %v5043 = vsel %vm749, %v5032, 0
    %5045 = vmatprep.subr.bf16.mxu0 0
    %5046 = vmatpush1.bf16.xpose.msra.mxu0 0
    %5047 = vmatprep.subr.bf16.mxu0 0
    %5048 = vmatpush1.bf16.xpose.msra.mxu0 0
    %5049 = vmatprep.subr.bf16.mxu0 0
    %5050 = vmatpush1.bf16.xpose.msra.mxu0 0
    %5051 = vmatprep.subr.bf16.mxu0 0
    %5052 = vmatpush1.bf16.xpose.msra.mxu0 0
    %5053 = vmatprep.subr.bf16.mxu0 0
    %5054 = vmatpush1.bf16.xpose.msra.mxu0 0
    %5055 = vmatprep.subr.bf16.mxu0 0
    %5056 = vmatpush1.bf16.xpose.msra.mxu0 0
    %5057 = vmatprep.subr.bf16.mxu0 0
    %5058 = vmatpush1.bf16.xpose.msra.mxu0 %v5043
    %5059 = vmatprep.subr.bf16.mxu0 0
    %5060 = vmatpush1.bf16.xpose.msra.mxu0 %v5040
    %5061 = vmatprep.subr.bf16.mxu0 0
    %5062 = vmatpush2.bf16.xpose.msra.mxu0 0
    %5063 = vmatprep.subr.bf16.mxu0 0
    %5064 = vmatpush2.bf16.xpose.msra.mxu0 0
    %5065 = vmatprep.subr.bf16.mxu0 0
    %5066 = vmatpush2.bf16.xpose.msra.mxu0 0
    %5067 = vmatprep.subr.bf16.mxu0 0
    %5068 = vmatpush2.bf16.xpose.msra.mxu0 0
    %5069 = vmatprep.subr.bf16.mxu0 0
    %5070 = vmatpush2.bf16.xpose.msra.mxu0 0
    %5071 = vmatprep.subr.bf16.mxu0 0
    %5072 = vmatpush2.bf16.xpose.msra.mxu0 0
    %5073 = vmatprep.subr.bf16.mxu0 0
    %5074 = vmatpush2.bf16.xpose.msra.mxu0 0
    %5075 = vmatprep.subr.bf16.mxu0 0
    %5076 = vmatpush2.bf16.xpose.msra.mxu0 0
    %5077 = vmatprep.mubr.bf16.mxu0 0
    %5078 = vmatmul.mubr.bf16.gmra.mxu0 %v5034
    %v5079 = vpop.f32.mrf.mxu0
    %v5080 = vadd.f32 0.0, %v5079
    %v5081 = vpop.f32.mrf.mxu0
    %v5082 = vpop.f32.mrf.mxu0
    %v5083 = vadd.f32 0.0, %v5082
    %v5084 = vpop.f32.mrf.mxu0
    %5085 = vmatprep.mubr.bf16.mxu0 0
    %5086 = vmatmul.mubr.bf16.gmra.mxu0 %v5037
    %v5087 = vpop.f32.mrf.mxu0
    %v5088 = vadd.f32 0.0, %v5087
    %v5089 = vpop.f32.mrf.mxu0
    %v5090 = vpop.f32.mrf.mxu0
    %v5091 = vadd.f32 0.0, %v5090
    %v5092 = vpop.f32.mrf.mxu0
    %5093 = vdwg.mxu0
    %v5094 = vmul.f32 %v5080, 0.125
    %v5095 = vmul.f32 %v5083, 0.125
    %v5096 = vmul.f32 %v5088, 0.125
    %v5097 = vmul.f32 %v5091, 0.125
    %v5098 = vsel %vm283, %v5094, -1e+30
    %v5099 = vsel %vm283, %v5095, -1e+30
    %v5100 = vsel %vm283, %v5096, -1e+30
    %v5101 = vsel %vm283, %v5097, -1e+30
    %v5102 = vsel %vm819, %v5098, -inf
    %5103 = vmax.xlane.f32.xlu0 %v5102
    %v5104 = vpop.xlane.xlu0 %5103
    %v5105 = vsel %vm819, %v5099, -inf
    %5106 = vmax.xlane.f32.xlu0 %v5105
    %v5107 = vpop.xlane.xlu0 %5106
    %v5108 = vsel %vm819, %v5100, -inf
    %5109 = vmax.xlane.f32.xlu0 %v5108
    %v5110 = vpop.xlane.xlu0 %5109
    %v5111 = vsel %vm819, %v5101, -inf
    %5112 = vmax.xlane.f32.xlu0 %v5111
    %v5113 = vpop.xlane.xlu0 %5112
    %v5114 = vsub.f32 %v5098, %v5104
    %v5115 = vsub.f32 %v5099, %v5107
    %v5116 = vsub.f32 %v5100, %v5110
    %v5117 = vsub.f32 %v5101, %v5113
    %v5118 = vmul.f32 %v5114, 1.442695
    %v5119 = vpow.pop %v5118
    %v5120 = vmul.f32 %v5115, 1.442695
    %v5121 = vpow.pop %v5120
    %v5122 = vmul.f32 %v5116, 1.442695
    %v5123 = vpow.pop %v5122
    %v5124 = vmul.f32 %v5117, 1.442695
    %v5125 = vpow.pop %v5124
    %v5126 = vsel %vm819, %v5119, 0.0
    %5127 = vadd.xlane.f32.xlu0 %v5126
    %v5128 = vpop.xlane.xlu0 %5127
    %v5129 = vsel %vm819, %v5121, 0.0
    %5130 = vadd.xlane.f32.xlu0 %v5129
    %v5131 = vpop.xlane.xlu0 %5130
    %v5132 = vsel %vm819, %v5123, 0.0
    %5133 = vadd.xlane.f32.xlu0 %v5132
    %v5134 = vpop.xlane.xlu0 %5133
    %v5135 = vsel %vm819, %v5125, 0.0
    %5136 = vadd.xlane.f32.xlu0 %v5135
    %v5137 = vpop.xlane.xlu0 %5136
    %v5138 = vrcp.pop %v5128
    %v5139 = vrcp.pop %v5131
    %v5140 = vrcp.pop %v5134
    %v5141 = vrcp.pop %v5137
    %v5142 = vmul.f32 %v5119, %v5138
    %v5143 = vmul.f32 %v5121, %v5139
    %v5144 = vmul.f32 %v5123, %v5140
    %v5145 = vmul.f32 %v5125, %v5141
    %v5146 = vpack.c.bf16 %v5143, %v5142
    %v5147 = vpack.c.bf16 %v5145, %v5144
    %5150 = vrot.lane.b32.xlu0 %v4847, 112
    %v5151 = vpop.permute.xlu0 %5150
    %5152 = vrot.lane.b32.xlu0 %v4848, 112
    %v5153 = vpop.permute.xlu0 %5152
    %v5157 = vsel %vm819, %v5146, 0
    %v5160 = vsel %vm819, %v5147, 0
    %5162 = vmatprep.subr.bf16.mxu0 0
    %5163 = vmatpush1.bf16.msra.mxu0 0
    %5164 = vmatprep.subr.bf16.mxu0 0
    %5165 = vmatpush1.bf16.msra.mxu0 0
    %5166 = vmatprep.subr.bf16.mxu0 0
    %5167 = vmatpush1.bf16.msra.mxu0 0
    %5168 = vmatprep.subr.bf16.mxu0 0
    %5169 = vmatpush1.bf16.msra.mxu0 0
    %5170 = vmatprep.subr.bf16.mxu0 0
    %5171 = vmatpush1.bf16.msra.mxu0 0
    %5172 = vmatprep.subr.bf16.mxu0 0
    %5173 = vmatpush1.bf16.msra.mxu0 0
    %5174 = vmatprep.subr.bf16.mxu0 0
    %5175 = vmatpush1.bf16.msra.mxu0 %v5153
    %5176 = vmatprep.subr.bf16.mxu0 0
    %5177 = vmatpush1.bf16.msra.mxu0 %v5151
    %5178 = vmatprep.subr.bf16.mxu0 0
    %5179 = vmatpush2.bf16.msra.mxu0 0
    %5180 = vmatprep.subr.bf16.mxu0 0
    %5181 = vmatpush2.bf16.msra.mxu0 0
    %5182 = vmatprep.subr.bf16.mxu0 0
    %5183 = vmatpush2.bf16.msra.mxu0 0
    %5184 = vmatprep.subr.bf16.mxu0 0
    %5185 = vmatpush2.bf16.msra.mxu0 0
    %5186 = vmatprep.subr.bf16.mxu0 0
    %5187 = vmatpush2.bf16.msra.mxu0 0
    %5188 = vmatprep.subr.bf16.mxu0 0
    %5189 = vmatpush2.bf16.msra.mxu0 0
    %5190 = vmatprep.subr.bf16.mxu0 0
    %5191 = vmatpush2.bf16.msra.mxu0 0
    %5192 = vmatprep.subr.bf16.mxu0 0
    %5193 = vmatpush2.bf16.msra.mxu0 0
    %5194 = vmatprep.mubr.bf16.mxu0 0
    %5195 = vmatmul.mubr.bf16.gmra.mxu0 %v5157
    %v5196 = vpop.f32.mrf.mxu0
    %v5197 = vadd.f32 0.0, %v5196
    %v5198 = vpop.f32.mrf.mxu0
    %v5199 = vpop.f32.mrf.mxu0
    %v5200 = vadd.f32 0.0, %v5199
    %v5201 = vpop.f32.mrf.mxu0
    %5202 = vmatprep.mubr.bf16.mxu0 0
    %5203 = vmatmul.mubr.bf16.gmra.mxu0 %v5160
    %v5204 = vpop.f32.mrf.mxu0
    %v5205 = vadd.f32 0.0, %v5204
    %v5206 = vpop.f32.mrf.mxu0
    %v5207 = vpop.f32.mrf.mxu0
    %v5208 = vadd.f32 0.0, %v5207
    %v5209 = vpop.f32.mrf.mxu0
    %5210 = vdwg.mxu0
    %v5211 = vpack.c.bf16 %v5200, %v5197
    %v5212 = vpack.c.bf16 %v5208, %v5205
    %v5214 = vsel %vm749, %v5211, 0
    %v5217 = vsel %vm749, %v5212, 0
    %5219 = vmatprep.subr.bf16.mxu0 0
    %5220 = vmatpush1.bf16.msra.mxu0 0
    %5221 = vmatprep.subr.bf16.mxu0 0
    %5222 = vmatpush1.bf16.msra.mxu0 0
    %5223 = vmatprep.subr.bf16.mxu0 0
    %5224 = vmatpush1.bf16.msra.mxu0 0
    %5225 = vmatprep.subr.bf16.mxu0 0
    %5226 = vmatpush1.bf16.msra.mxu0 0
    %5227 = vmatprep.subr.bf16.mxu0 0
    %5228 = vmatpush1.bf16.msra.mxu0 0
    %5229 = vmatprep.subr.bf16.mxu0 0
    %5230 = vmatpush1.bf16.msra.mxu0 0
    %5231 = vmatprep.subr.bf16.mxu0 0
    %5232 = vmatpush1.bf16.msra.mxu0 0
    %5233 = vmatprep.subr.bf16.mxu0 0
    %5234 = vmatpush1.bf16.msra.mxu0 %v4205
    %5235 = vmatprep.subr.bf16.mxu0 0
    %5236 = vmatpush2.bf16.msra.mxu0 0
    %5237 = vmatprep.subr.bf16.mxu0 0
    %5238 = vmatpush2.bf16.msra.mxu0 0
    %5239 = vmatprep.subr.bf16.mxu0 0
    %5240 = vmatpush2.bf16.msra.mxu0 0
    %5241 = vmatprep.subr.bf16.mxu0 0
    %5242 = vmatpush2.bf16.msra.mxu0 0
    %5243 = vmatprep.subr.bf16.mxu0 0
    %5244 = vmatpush2.bf16.msra.mxu0 0
    %5245 = vmatprep.subr.bf16.mxu0 0
    %5246 = vmatpush2.bf16.msra.mxu0 0
    %5247 = vmatprep.subr.bf16.mxu0 0
    %5248 = vmatpush2.bf16.msra.mxu0 0
    %5249 = vmatprep.subr.bf16.mxu0 0
    %5250 = vmatpush2.bf16.msra.mxu0 0
    %5251 = vmatprep.mubr.bf16.mxu0 0
    %5252 = vmatmul.mubr.bf16.gmra.mxu0 %v5214
    %v5253 = vpop.f32.mrf.mxu0
    %v5254 = vadd.f32 0.0, %v5253
    %v5255 = vpop.f32.mrf.mxu0
    %v5256 = vpop.f32.mrf.mxu0
    %v5257 = vadd.f32 0.0, %v5256
    %v5258 = vpop.f32.mrf.mxu0
    %5259 = vmatprep.mubr.bf16.mxu0 0
    %5260 = vmatmul.mubr.bf16.gmra.mxu0 %v5217
    %v5261 = vpop.f32.mrf.mxu0
    %v5262 = vadd.f32 0.0, %v5261
    %v5263 = vpop.f32.mrf.mxu0
    %v5264 = vpop.f32.mrf.mxu0
    %v5265 = vadd.f32 0.0, %v5264
    %v5266 = vpop.f32.mrf.mxu0
    %5267 = vdwg.mxu0
    %v5269 = vsel %vm749, %v5019, 0
    %v5272 = vsel %vm749, %v5020, 0
    %5274 = vmatprep.subr.bf16.mxu0 0
    %5275 = vmatpush1.bf16.msra.mxu0 0
    %5276 = vmatprep.subr.bf16.mxu0 0
    %5277 = vmatpush1.bf16.msra.mxu0 0
    %5278 = vmatprep.subr.bf16.mxu0 0
    %5279 = vmatpush1.bf16.msra.mxu0 0
    %5280 = vmatprep.subr.bf16.mxu0 0
    %5281 = vmatpush1.bf16.msra.mxu0 0
    %5282 = vmatprep.subr.bf16.mxu0 0
    %5283 = vmatpush1.bf16.msra.mxu0 0
    %5284 = vmatprep.subr.bf16.mxu0 0
    %5285 = vmatpush1.bf16.msra.mxu0 0
    %5286 = vmatprep.subr.bf16.mxu0 0
    %5287 = vmatpush1.bf16.msra.mxu0 0
    %5288 = vmatprep.subr.bf16.mxu0 0
    %5289 = vmatpush1.bf16.msra.mxu0 %v4266
    %5290 = vmatprep.subr.bf16.mxu0 0
    %5291 = vmatpush2.bf16.msra.mxu0 0
    %5292 = vmatprep.subr.bf16.mxu0 0
    %5293 = vmatpush2.bf16.msra.mxu0 0
    %5294 = vmatprep.subr.bf16.mxu0 0
    %5295 = vmatpush2.bf16.msra.mxu0 0
    %5296 = vmatprep.subr.bf16.mxu0 0
    %5297 = vmatpush2.bf16.msra.mxu0 0
    %5298 = vmatprep.subr.bf16.mxu0 0
    %5299 = vmatpush2.bf16.msra.mxu0 0
    %5300 = vmatprep.subr.bf16.mxu0 0
    %5301 = vmatpush2.bf16.msra.mxu0 0
    %5302 = vmatprep.subr.bf16.mxu0 0
    %5303 = vmatpush2.bf16.msra.mxu0 0
    %5304 = vmatprep.subr.bf16.mxu0 0
    %5305 = vmatpush2.bf16.msra.mxu0 0
    %5306 = vmatprep.mubr.bf16.mxu0 0
    %5307 = vmatmul.mubr.bf16.gmra.mxu0 %v5269
    %v5308 = vpop.f32.mrf.mxu0
    %v5309 = vadd.f32 %v5254, %v5308
    %v5310 = vpop.f32.mrf.mxu0
    %v5311 = vpop.f32.mrf.mxu0
    %v5312 = vadd.f32 %v5257, %v5311
    %v5313 = vpop.f32.mrf.mxu0
    %5314 = vmatprep.mubr.bf16.mxu0 0
    %5315 = vmatmul.mubr.bf16.gmra.mxu0 %v5272
    %v5316 = vpop.f32.mrf.mxu0
    %v5317 = vadd.f32 %v5262, %v5316
    %v5318 = vpop.f32.mrf.mxu0
    %v5319 = vpop.f32.mrf.mxu0
    %v5320 = vadd.f32 %v5265, %v5319
    %v5321 = vpop.f32.mrf.mxu0
    %5322 = vdwg.mxu0
    %5323 = vrot.lane.b32.xlu0 %v4843, 96
    %v5324 = vpop.permute.xlu0 %5323
    %5325 = vrot.lane.b32.xlu0 %v4844, 96
    %v5326 = vpop.permute.xlu0 %5325
    %5327 = vrot.lane.b32.xlu0 %v4845, 96
    %v5328 = vpop.permute.xlu0 %5327
    %5329 = vrot.lane.b32.xlu0 %v4846, 96
    %v5330 = vpop.permute.xlu0 %5329
    %v5332 = vsel %vm749, %v5324, 0
    %v5335 = vsel %vm749, %v5326, 0
    %v5338 = vsel %vm749, %v5328, 0
    %v5341 = vsel %vm749, %v5330, 0
    %5343 = vmatprep.subr.bf16.mxu0 0
    %5344 = vmatpush1.bf16.xpose.msra.mxu0 0
    %5345 = vmatprep.subr.bf16.mxu0 0
    %5346 = vmatpush1.bf16.xpose.msra.mxu0 0
    %5347 = vmatprep.subr.bf16.mxu0 0
    %5348 = vmatpush1.bf16.xpose.msra.mxu0 0
    %5349 = vmatprep.subr.bf16.mxu0 0
    %5350 = vmatpush1.bf16.xpose.msra.mxu0 0
    %5351 = vmatprep.subr.bf16.mxu0 0
    %5352 = vmatpush1.bf16.xpose.msra.mxu0 0
    %5353 = vmatprep.subr.bf16.mxu0 0
    %5354 = vmatpush1.bf16.xpose.msra.mxu0 0
    %5355 = vmatprep.subr.bf16.mxu0 0
    %5356 = vmatpush1.bf16.xpose.msra.mxu0 %v5341
    %5357 = vmatprep.subr.bf16.mxu0 0
    %5358 = vmatpush1.bf16.xpose.msra.mxu0 %v5338
    %5359 = vmatprep.subr.bf16.mxu0 0
    %5360 = vmatpush2.bf16.xpose.msra.mxu0 0
    %5361 = vmatprep.subr.bf16.mxu0 0
    %5362 = vmatpush2.bf16.xpose.msra.mxu0 0
    %5363 = vmatprep.subr.bf16.mxu0 0
    %5364 = vmatpush2.bf16.xpose.msra.mxu0 0
    %5365 = vmatprep.subr.bf16.mxu0 0
    %5366 = vmatpush2.bf16.xpose.msra.mxu0 0
    %5367 = vmatprep.subr.bf16.mxu0 0
    %5368 = vmatpush2.bf16.xpose.msra.mxu0 0
    %5369 = vmatprep.subr.bf16.mxu0 0
    %5370 = vmatpush2.bf16.xpose.msra.mxu0 0
    %5371 = vmatprep.subr.bf16.mxu0 0
    %5372 = vmatpush2.bf16.xpose.msra.mxu0 0
    %5373 = vmatprep.subr.bf16.mxu0 0
    %5374 = vmatpush2.bf16.xpose.msra.mxu0 0
    %5375 = vmatprep.mubr.bf16.mxu0 0
    %5376 = vmatmul.mubr.bf16.gmra.mxu0 %v5332
    %v5377 = vpop.f32.mrf.mxu0
    %v5378 = vadd.f32 0.0, %v5377
    %v5379 = vpop.f32.mrf.mxu0
    %v5380 = vpop.f32.mrf.mxu0
    %v5381 = vadd.f32 0.0, %v5380
    %v5382 = vpop.f32.mrf.mxu0
    %5383 = vmatprep.mubr.bf16.mxu0 0
    %5384 = vmatmul.mubr.bf16.gmra.mxu0 %v5335
    %v5385 = vpop.f32.mrf.mxu0
    %v5386 = vadd.f32 0.0, %v5385
    %v5387 = vpop.f32.mrf.mxu0
    %v5388 = vpop.f32.mrf.mxu0
    %v5389 = vadd.f32 0.0, %v5388
    %v5390 = vpop.f32.mrf.mxu0
    %5391 = vdwg.mxu0
    %v5392 = vmul.f32 %v5378, 0.125
    %v5393 = vmul.f32 %v5381, 0.125
    %v5394 = vmul.f32 %v5386, 0.125
    %v5395 = vmul.f32 %v5389, 0.125
    %v5396 = vsel %vm283, %v5392, -1e+30
    %v5397 = vsel %vm283, %v5393, -1e+30
    %v5398 = vsel %vm283, %v5394, -1e+30
    %v5399 = vsel %vm283, %v5395, -1e+30
    %v5400 = vsel %vm819, %v5396, -inf
    %5401 = vmax.xlane.f32.xlu0 %v5400
    %v5402 = vpop.xlane.xlu0 %5401
    %v5403 = vsel %vm819, %v5397, -inf
    %5404 = vmax.xlane.f32.xlu0 %v5403
    %v5405 = vpop.xlane.xlu0 %5404
    %v5406 = vsel %vm819, %v5398, -inf
    %5407 = vmax.xlane.f32.xlu0 %v5406
    %v5408 = vpop.xlane.xlu0 %5407
    %v5409 = vsel %vm819, %v5399, -inf
    %5410 = vmax.xlane.f32.xlu0 %v5409
    %v5411 = vpop.xlane.xlu0 %5410
    %v5412 = vsub.f32 %v5396, %v5402
    %v5413 = vsub.f32 %v5397, %v5405
    %v5414 = vsub.f32 %v5398, %v5408
    %v5415 = vsub.f32 %v5399, %v5411
    %v5416 = vmul.f32 %v5412, 1.442695
    %v5417 = vpow.pop %v5416
    %v5418 = vmul.f32 %v5413, 1.442695
    %v5419 = vpow.pop %v5418
    %v5420 = vmul.f32 %v5414, 1.442695
    %v5421 = vpow.pop %v5420
    %v5422 = vmul.f32 %v5415, 1.442695
    %v5423 = vpow.pop %v5422
    %v5424 = vsel %vm819, %v5417, 0.0
    %5425 = vadd.xlane.f32.xlu0 %v5424
    %v5426 = vpop.xlane.xlu0 %5425
    %v5427 = vsel %vm819, %v5419, 0.0
    %5428 = vadd.xlane.f32.xlu0 %v5427
    %v5429 = vpop.xlane.xlu0 %5428
    %v5430 = vsel %vm819, %v5421, 0.0
    %5431 = vadd.xlane.f32.xlu0 %v5430
    %v5432 = vpop.xlane.xlu0 %5431
    %v5433 = vsel %vm819, %v5423, 0.0
    %5434 = vadd.xlane.f32.xlu0 %v5433
    %v5435 = vpop.xlane.xlu0 %5434
    %v5436 = vrcp.pop %v5426
    %v5437 = vrcp.pop %v5429
    %v5438 = vrcp.pop %v5432
    %v5439 = vrcp.pop %v5435
    %v5440 = vmul.f32 %v5417, %v5436
    %v5441 = vmul.f32 %v5419, %v5437
    %v5442 = vmul.f32 %v5421, %v5438
    %v5443 = vmul.f32 %v5423, %v5439
    %v5444 = vpack.c.bf16 %v5441, %v5440
    %v5445 = vpack.c.bf16 %v5443, %v5442
    %5446 = vrot.lane.b32.xlu0 %v4847, 96
    %v5447 = vpop.permute.xlu0 %5446
    %5448 = vrot.lane.b32.xlu0 %v4848, 96
    %v5449 = vpop.permute.xlu0 %5448
    %v5453 = vsel %vm819, %v5444, 0
    %v5456 = vsel %vm819, %v5445, 0
    %5458 = vmatprep.subr.bf16.mxu0 0
    %5459 = vmatpush1.bf16.msra.mxu0 0
    %5460 = vmatprep.subr.bf16.mxu0 0
    %5461 = vmatpush1.bf16.msra.mxu0 0
    %5462 = vmatprep.subr.bf16.mxu0 0
    %5463 = vmatpush1.bf16.msra.mxu0 0
    %5464 = vmatprep.subr.bf16.mxu0 0
    %5465 = vmatpush1.bf16.msra.mxu0 0
    %5466 = vmatprep.subr.bf16.mxu0 0
    %5467 = vmatpush1.bf16.msra.mxu0 0
    %5468 = vmatprep.subr.bf16.mxu0 0
    %5469 = vmatpush1.bf16.msra.mxu0 0
    %5470 = vmatprep.subr.bf16.mxu0 0
    %5471 = vmatpush1.bf16.msra.mxu0 %v5449
    %5472 = vmatprep.subr.bf16.mxu0 0
    %5473 = vmatpush1.bf16.msra.mxu0 %v5447
    %5474 = vmatprep.subr.bf16.mxu0 0
    %5475 = vmatpush2.bf16.msra.mxu0 0
    %5476 = vmatprep.subr.bf16.mxu0 0
    %5477 = vmatpush2.bf16.msra.mxu0 0
    %5478 = vmatprep.subr.bf16.mxu0 0
    %5479 = vmatpush2.bf16.msra.mxu0 0
    %5480 = vmatprep.subr.bf16.mxu0 0
    %5481 = vmatpush2.bf16.msra.mxu0 0
    %5482 = vmatprep.subr.bf16.mxu0 0
    %5483 = vmatpush2.bf16.msra.mxu0 0
    %5484 = vmatprep.subr.bf16.mxu0 0
    %5485 = vmatpush2.bf16.msra.mxu0 0
    %5486 = vmatprep.subr.bf16.mxu0 0
    %5487 = vmatpush2.bf16.msra.mxu0 0
    %5488 = vmatprep.subr.bf16.mxu0 0
    %5489 = vmatpush2.bf16.msra.mxu0 0
    %5490 = vmatprep.mubr.bf16.mxu0 0
    %5491 = vmatmul.mubr.bf16.gmra.mxu0 %v5453
    %v5492 = vpop.f32.mrf.mxu0
    %v5493 = vadd.f32 0.0, %v5492
    %v5494 = vpop.f32.mrf.mxu0
    %v5495 = vpop.f32.mrf.mxu0
    %v5496 = vadd.f32 0.0, %v5495
    %v5497 = vpop.f32.mrf.mxu0
    %5498 = vmatprep.mubr.bf16.mxu0 0
    %5499 = vmatmul.mubr.bf16.gmra.mxu0 %v5456
    %v5500 = vpop.f32.mrf.mxu0
    %v5501 = vadd.f32 0.0, %v5500
    %v5502 = vpop.f32.mrf.mxu0
    %v5503 = vpop.f32.mrf.mxu0
    %v5504 = vadd.f32 0.0, %v5503
    %v5505 = vpop.f32.mrf.mxu0
    %5506 = vdwg.mxu0
    %v5507 = vpack.c.bf16 %v5496, %v5493
    %v5508 = vpack.c.bf16 %v5504, %v5501
    %v5510 = vsel %vm749, %v5507, 0
    %v5513 = vsel %vm749, %v5508, 0
    %5515 = vmatprep.subr.bf16.mxu0 0
    %5516 = vmatpush1.bf16.msra.mxu0 0
    %5517 = vmatprep.subr.bf16.mxu0 0
    %5518 = vmatpush1.bf16.msra.mxu0 0
    %5519 = vmatprep.subr.bf16.mxu0 0
    %5520 = vmatpush1.bf16.msra.mxu0 0
    %5521 = vmatprep.subr.bf16.mxu0 0
    %5522 = vmatpush1.bf16.msra.mxu0 0
    %5523 = vmatprep.subr.bf16.mxu0 0
    %5524 = vmatpush1.bf16.msra.mxu0 0
    %5525 = vmatprep.subr.bf16.mxu0 0
    %5526 = vmatpush1.bf16.msra.mxu0 0
    %5527 = vmatprep.subr.bf16.mxu0 0
    %5528 = vmatpush1.bf16.msra.mxu0 0
    %5529 = vmatprep.subr.bf16.mxu0 0
    %5530 = vmatpush1.bf16.msra.mxu0 %v4513
    %5531 = vmatprep.subr.bf16.mxu0 0
    %5532 = vmatpush2.bf16.msra.mxu0 0
    %5533 = vmatprep.subr.bf16.mxu0 0
    %5534 = vmatpush2.bf16.msra.mxu0 0
    %5535 = vmatprep.subr.bf16.mxu0 0
    %5536 = vmatpush2.bf16.msra.mxu0 0
    %5537 = vmatprep.subr.bf16.mxu0 0
    %5538 = vmatpush2.bf16.msra.mxu0 0
    %5539 = vmatprep.subr.bf16.mxu0 0
    %5540 = vmatpush2.bf16.msra.mxu0 0
    %5541 = vmatprep.subr.bf16.mxu0 0
    %5542 = vmatpush2.bf16.msra.mxu0 0
    %5543 = vmatprep.subr.bf16.mxu0 0
    %5544 = vmatpush2.bf16.msra.mxu0 0
    %5545 = vmatprep.subr.bf16.mxu0 0
    %5546 = vmatpush2.bf16.msra.mxu0 0
    %5547 = vmatprep.mubr.bf16.mxu0 0
    %5548 = vmatmul.mubr.bf16.gmra.mxu0 %v5510
    %v5549 = vpop.f32.mrf.mxu0
    %v5550 = vadd.f32 0.0, %v5549
    %v5551 = vpop.f32.mrf.mxu0
    %v5552 = vpop.f32.mrf.mxu0
    %v5553 = vadd.f32 0.0, %v5552
    %v5554 = vpop.f32.mrf.mxu0
    %5555 = vmatprep.mubr.bf16.mxu0 0
    %5556 = vmatmul.mubr.bf16.gmra.mxu0 %v5513
    %v5557 = vpop.f32.mrf.mxu0
    %v5558 = vadd.f32 0.0, %v5557
    %v5559 = vpop.f32.mrf.mxu0
    %v5560 = vpop.f32.mrf.mxu0
    %v5561 = vadd.f32 0.0, %v5560
    %v5562 = vpop.f32.mrf.mxu0
    %5563 = vdwg.mxu0
    %v5564 = vadd.f32 %v5309, %v5550
    %v5565 = vadd.f32 %v5312, %v5553
    %v5566 = vadd.f32 %v5317, %v5558
    %v5567 = vadd.f32 %v5320, %v5561
    %5568 = vrot.lane.b32.xlu0 %v4843, 80
    %v5569 = vpop.permute.xlu0 %5568
    %5570 = vrot.lane.b32.xlu0 %v4844, 80
    %v5571 = vpop.permute.xlu0 %5570
    %5572 = vrot.lane.b32.xlu0 %v4845, 80
    %v5573 = vpop.permute.xlu0 %5572
    %5574 = vrot.lane.b32.xlu0 %v4846, 80
    %v5575 = vpop.permute.xlu0 %5574
    %v5577 = vsel %vm749, %v5569, 0
    %v5580 = vsel %vm749, %v5571, 0
    %v5583 = vsel %vm749, %v5573, 0
    %v5586 = vsel %vm749, %v5575, 0
    %5588 = vmatprep.subr.bf16.mxu0 0
    %5589 = vmatpush1.bf16.xpose.msra.mxu0 0
    %5590 = vmatprep.subr.bf16.mxu0 0
    %5591 = vmatpush1.bf16.xpose.msra.mxu0 0
    %5592 = vmatprep.subr.bf16.mxu0 0
    %5593 = vmatpush1.bf16.xpose.msra.mxu0 0
    %5594 = vmatprep.subr.bf16.mxu0 0
    %5595 = vmatpush1.bf16.xpose.msra.mxu0 0
    %5596 = vmatprep.subr.bf16.mxu0 0
    %5597 = vmatpush1.bf16.xpose.msra.mxu0 0
    %5598 = vmatprep.subr.bf16.mxu0 0
    %5599 = vmatpush1.bf16.xpose.msra.mxu0 0
    %5600 = vmatprep.subr.bf16.mxu0 0
    %5601 = vmatpush1.bf16.xpose.msra.mxu0 %v5586
    %5602 = vmatprep.subr.bf16.mxu0 0
    %5603 = vmatpush1.bf16.xpose.msra.mxu0 %v5583
    %5604 = vmatprep.subr.bf16.mxu0 0
    %5605 = vmatpush2.bf16.xpose.msra.mxu0 0
    %5606 = vmatprep.subr.bf16.mxu0 0
    %5607 = vmatpush2.bf16.xpose.msra.mxu0 0
    %5608 = vmatprep.subr.bf16.mxu0 0
    %5609 = vmatpush2.bf16.xpose.msra.mxu0 0
    %5610 = vmatprep.subr.bf16.mxu0 0
    %5611 = vmatpush2.bf16.xpose.msra.mxu0 0
    %5612 = vmatprep.subr.bf16.mxu0 0
    %5613 = vmatpush2.bf16.xpose.msra.mxu0 0
    %5614 = vmatprep.subr.bf16.mxu0 0
    %5615 = vmatpush2.bf16.xpose.msra.mxu0 0
    %5616 = vmatprep.subr.bf16.mxu0 0
    %5617 = vmatpush2.bf16.xpose.msra.mxu0 0
    %5618 = vmatprep.subr.bf16.mxu0 0
    %5619 = vmatpush2.bf16.xpose.msra.mxu0 0
    %5620 = vmatprep.mubr.bf16.mxu0 0
    %5621 = vmatmul.mubr.bf16.gmra.mxu0 %v5577
    %v5622 = vpop.f32.mrf.mxu0
    %v5623 = vadd.f32 0.0, %v5622
    %v5624 = vpop.f32.mrf.mxu0
    %v5625 = vpop.f32.mrf.mxu0
    %v5626 = vadd.f32 0.0, %v5625
    %v5627 = vpop.f32.mrf.mxu0
    %5628 = vmatprep.mubr.bf16.mxu0 0
    %5629 = vmatmul.mubr.bf16.gmra.mxu0 %v5580
    %v5630 = vpop.f32.mrf.mxu0
    %v5631 = vadd.f32 0.0, %v5630
    %v5632 = vpop.f32.mrf.mxu0
    %v5633 = vpop.f32.mrf.mxu0
    %v5634 = vadd.f32 0.0, %v5633
    %v5635 = vpop.f32.mrf.mxu0
    %5636 = vdwg.mxu0
    %v5637 = vmul.f32 %v5623, 0.125
    %v5638 = vmul.f32 %v5626, 0.125
    %v5639 = vmul.f32 %v5631, 0.125
    %v5640 = vmul.f32 %v5634, 0.125
    %v5641 = vsel %vm283, %v5637, -1e+30
    %v5642 = vsel %vm283, %v5638, -1e+30
    %v5643 = vsel %vm283, %v5639, -1e+30
    %v5644 = vsel %vm283, %v5640, -1e+30
    %v5645 = vsel %vm819, %v5641, -inf
    %5646 = vmax.xlane.f32.xlu0 %v5645
    %v5647 = vpop.xlane.xlu0 %5646
    %v5648 = vsel %vm819, %v5642, -inf
    %5649 = vmax.xlane.f32.xlu0 %v5648
    %v5650 = vpop.xlane.xlu0 %5649
    %v5651 = vsel %vm819, %v5643, -inf
    %5652 = vmax.xlane.f32.xlu0 %v5651
    %v5653 = vpop.xlane.xlu0 %5652
    %v5654 = vsel %vm819, %v5644, -inf
    %5655 = vmax.xlane.f32.xlu0 %v5654
    %v5656 = vpop.xlane.xlu0 %5655
    %v5657 = vsub.f32 %v5641, %v5647
    %v5658 = vsub.f32 %v5642, %v5650
    %v5659 = vsub.f32 %v5643, %v5653
    %v5660 = vsub.f32 %v5644, %v5656
    %v5661 = vmul.f32 %v5657, 1.442695
    %v5662 = vpow.pop %v5661
    %v5663 = vmul.f32 %v5658, 1.442695
    %v5664 = vpow.pop %v5663
    %v5665 = vmul.f32 %v5659, 1.442695
    %v5666 = vpow.pop %v5665
    %v5667 = vmul.f32 %v5660, 1.442695
    %v5668 = vpow.pop %v5667
    %v5669 = vsel %vm819, %v5662, 0.0
    %5670 = vadd.xlane.f32.xlu0 %v5669
    %v5671 = vpop.xlane.xlu0 %5670
    %v5672 = vsel %vm819, %v5664, 0.0
    %5673 = vadd.xlane.f32.xlu0 %v5672
    %v5674 = vpop.xlane.xlu0 %5673
    %v5675 = vsel %vm819, %v5666, 0.0
    %5676 = vadd.xlane.f32.xlu0 %v5675
    %v5677 = vpop.xlane.xlu0 %5676
    %v5678 = vsel %vm819, %v5668, 0.0
    %5679 = vadd.xlane.f32.xlu0 %v5678
    %v5680 = vpop.xlane.xlu0 %5679
    %v5681 = vrcp.pop %v5671
    %v5682 = vrcp.pop %v5674
    %v5683 = vrcp.pop %v5677
    %v5684 = vrcp.pop %v5680
    %v5685 = vmul.f32 %v5662, %v5681
    %v5686 = vmul.f32 %v5664, %v5682
    %v5687 = vmul.f32 %v5666, %v5683
    %v5688 = vmul.f32 %v5668, %v5684
    %v5689 = vpack.c.bf16 %v5686, %v5685
    %v5690 = vpack.c.bf16 %v5688, %v5687
    %5691 = vrot.lane.b32.xlu0 %v4847, 80
    %v5692 = vpop.permute.xlu0 %5691
    %5693 = vrot.lane.b32.xlu0 %v4848, 80
    %v5694 = vpop.permute.xlu0 %5693
    %v5698 = vsel %vm819, %v5689, 0
    %v5701 = vsel %vm819, %v5690, 0
    %5703 = vmatprep.subr.bf16.mxu0 0
    %5704 = vmatpush1.bf16.msra.mxu0 0
    %5705 = vmatprep.subr.bf16.mxu0 0
    %5706 = vmatpush1.bf16.msra.mxu0 0
    %5707 = vmatprep.subr.bf16.mxu0 0
    %5708 = vmatpush1.bf16.msra.mxu0 0
    %5709 = vmatprep.subr.bf16.mxu0 0
    %5710 = vmatpush1.bf16.msra.mxu0 0
    %5711 = vmatprep.subr.bf16.mxu0 0
    %5712 = vmatpush1.bf16.msra.mxu0 0
    %5713 = vmatprep.subr.bf16.mxu0 0
    %5714 = vmatpush1.bf16.msra.mxu0 0
    %5715 = vmatprep.subr.bf16.mxu0 0
    %5716 = vmatpush1.bf16.msra.mxu0 %v5694
    %5717 = vmatprep.subr.bf16.mxu0 0
    %5718 = vmatpush1.bf16.msra.mxu0 %v5692
    %5719 = vmatprep.subr.bf16.mxu0 0
    %5720 = vmatpush2.bf16.msra.mxu0 0
    %5721 = vmatprep.subr.bf16.mxu0 0
    %5722 = vmatpush2.bf16.msra.mxu0 0
    %5723 = vmatprep.subr.bf16.mxu0 0
    %5724 = vmatpush2.bf16.msra.mxu0 0
    %5725 = vmatprep.subr.bf16.mxu0 0
    %5726 = vmatpush2.bf16.msra.mxu0 0
    %5727 = vmatprep.subr.bf16.mxu0 0
    %5728 = vmatpush2.bf16.msra.mxu0 0
    %5729 = vmatprep.subr.bf16.mxu0 0
    %5730 = vmatpush2.bf16.msra.mxu0 0
    %5731 = vmatprep.subr.bf16.mxu0 0
    %5732 = vmatpush2.bf16.msra.mxu0 0
    %5733 = vmatprep.subr.bf16.mxu0 0
    %5734 = vmatpush2.bf16.msra.mxu0 0
    %5735 = vmatprep.mubr.bf16.mxu0 0
    %5736 = vmatmul.mubr.bf16.gmra.mxu0 %v5698
    %v5737 = vpop.f32.mrf.mxu0
    %v5738 = vadd.f32 0.0, %v5737
    %v5739 = vpop.f32.mrf.mxu0
    %v5740 = vpop.f32.mrf.mxu0
    %v5741 = vadd.f32 0.0, %v5740
    %v5742 = vpop.f32.mrf.mxu0
    %5743 = vmatprep.mubr.bf16.mxu0 0
    %5744 = vmatmul.mubr.bf16.gmra.mxu0 %v5701
    %v5745 = vpop.f32.mrf.mxu0
    %v5746 = vadd.f32 0.0, %v5745
    %v5747 = vpop.f32.mrf.mxu0
    %v5748 = vpop.f32.mrf.mxu0
    %v5749 = vadd.f32 0.0, %v5748
    %v5750 = vpop.f32.mrf.mxu0
    %5751 = vdwg.mxu0
    %v5752 = vpack.c.bf16 %v5741, %v5738
    %v5753 = vpack.c.bf16 %v5749, %v5746
    %v5755 = vsel %vm749, %v5752, 0
    %v5758 = vsel %vm749, %v5753, 0
    %5760 = vmatprep.subr.bf16.mxu0 0
    %5761 = vmatpush1.bf16.msra.mxu0 0
    %5762 = vmatprep.subr.bf16.mxu0 0
    %5763 = vmatpush1.bf16.msra.mxu0 0
    %5764 = vmatprep.subr.bf16.mxu0 0
    %5765 = vmatpush1.bf16.msra.mxu0 0
    %5766 = vmatprep.subr.bf16.mxu0 0
    %5767 = vmatpush1.bf16.msra.mxu0 0
    %5768 = vmatprep.subr.bf16.mxu0 0
    %5769 = vmatpush1.bf16.msra.mxu0 0
    %5770 = vmatprep.subr.bf16.mxu0 0
    %5771 = vmatpush1.bf16.msra.mxu0 0
    %5772 = vmatprep.subr.bf16.mxu0 0
    %5773 = vmatpush1.bf16.msra.mxu0 0
    %5774 = vmatprep.subr.bf16.mxu0 0
    %5775 = vmatpush1.bf16.msra.mxu0 %v4764
    %5776 = vmatprep.subr.bf16.mxu0 0
    %5777 = vmatpush2.bf16.msra.mxu0 0
    %5778 = vmatprep.subr.bf16.mxu0 0
    %5779 = vmatpush2.bf16.msra.mxu0 0
    %5780 = vmatprep.subr.bf16.mxu0 0
    %5781 = vmatpush2.bf16.msra.mxu0 0
    %5782 = vmatprep.subr.bf16.mxu0 0
    %5783 = vmatpush2.bf16.msra.mxu0 0
    %5784 = vmatprep.subr.bf16.mxu0 0
    %5785 = vmatpush2.bf16.msra.mxu0 0
    %5786 = vmatprep.subr.bf16.mxu0 0
    %5787 = vmatpush2.bf16.msra.mxu0 0
    %5788 = vmatprep.subr.bf16.mxu0 0
    %5789 = vmatpush2.bf16.msra.mxu0 0
    %5790 = vmatprep.subr.bf16.mxu0 0
    %5791 = vmatpush2.bf16.msra.mxu0 0
    %5792 = vmatprep.mubr.bf16.mxu0 0
    %5793 = vmatmul.mubr.bf16.gmra.mxu0 %v5755
    %v5794 = vpop.f32.mrf.mxu0
    %v5795 = vadd.f32 0.0, %v5794
    %v5796 = vpop.f32.mrf.mxu0
    %v5797 = vpop.f32.mrf.mxu0
    %v5798 = vadd.f32 0.0, %v5797
    %v5799 = vpop.f32.mrf.mxu0
    %5800 = vmatprep.mubr.bf16.mxu0 0
    %5801 = vmatmul.mubr.bf16.gmra.mxu0 %v5758
    %v5802 = vpop.f32.mrf.mxu0
    %v5803 = vadd.f32 0.0, %v5802
    %v5804 = vpop.f32.mrf.mxu0
    %v5805 = vpop.f32.mrf.mxu0
    %v5806 = vadd.f32 0.0, %v5805
    %v5807 = vpop.f32.mrf.mxu0
    %5808 = vdwg.mxu0
    %v5809 = vadd.f32 %v5564, %v5795
    %v5810 = vadd.f32 %v5565, %v5798
    %v5811 = vadd.f32 %v5566, %v5803
    %v5812 = vadd.f32 %v5567, %v5806
    %v5813 = vadd.f32 %v3377, %v5809
    %v5814 = vadd.f32 %v3378, %v5810
    %v5815 = vadd.f32 %v3379, %v5811
    %v5816 = vadd.f32 %v3380, %v5812
    %v5817 = vadd.f32 %v5813, %v4833
    %v5818 = vadd.f32 %v5814, %v4833
    %v5819 = vadd.f32 %v5815, %v4833
    %v5820 = vadd.f32 %v5816, %v4833
    %5821 = vst.msk [vmem:[#allocation2 + $0x20] sm:$0xff] %vm272, %v5817
    %5822 = vst.msk [vmem:[#allocation2 + $0x28] sm:$0xff] %vm272, %v5818
    %5823 = vst.msk [vmem:[#allocation2 + $0x30] sm:$0xff] %vm272, %v5819
    %5824 = vst.msk [vmem:[#allocation2 + $0x38] sm:$0xff] %vm272, %v5820
    %v5825 = vld [vmem:[#allocation2] sm:$0xff]
    %v5826 = vld [vmem:[#allocation2 + $0x8] sm:$0xff]
    %v5827 = vld [vmem:[#allocation2 + $0x10] sm:$0xff]
    %v5828 = vld [vmem:[#allocation2 + $0x18] sm:$0xff]
    %v5829 = vld [vmem:[#allocation2 + $0x20] sm:$0xff]
    %v5830 = vld [vmem:[#allocation2 + $0x28] sm:$0xff]
    %v5831 = vld [vmem:[#allocation2 + $0x30] sm:$0xff]
    %v5832 = vld [vmem:[#allocation2 + $0x38] sm:$0xff]
    %v5833 = vld [vmem:[%s47] sm:$0x1]
    %v5834 = vld [vmem:[%s49] sm:$0x1]
    %v5835 = vsel %vm272, %v5825, 0.0
    %5836 = vadd.xlane.f32.xlu0 %v5835
    %v5837 = vpop.xlane.xlu0 %5836
    %v5838 = vsel %vm272, %v5826, 0.0
    %5839 = vadd.xlane.f32.xlu0 %v5838
    %v5840 = vpop.xlane.xlu0 %5839
    %v5841 = vsel %vm272, %v5827, 0.0
    %5842 = vadd.xlane.f32.xlu0 %v5841
    %v5843 = vpop.xlane.xlu0 %5842
    %v5844 = vsel %vm272, %v5828, 0.0
    %5845 = vadd.xlane.f32.xlu0 %v5844
    %v5846 = vpop.xlane.xlu0 %5845
    %v5847 = vsel %vm272, %v5829, 0.0
    %5848 = vadd.xlane.f32.xlu0 %v5847
    %v5849 = vpop.xlane.xlu0 %5848
    %v5850 = vsel %vm272, %v5830, 0.0
    %5851 = vadd.xlane.f32.xlu0 %v5850
    %v5852 = vpop.xlane.xlu0 %5851
    %v5853 = vsel %vm272, %v5831, 0.0
    %5854 = vadd.xlane.f32.xlu0 %v5853
    %v5855 = vpop.xlane.xlu0 %5854
    %v5856 = vsel %vm272, %v5832, 0.0
    %5857 = vadd.xlane.f32.xlu0 %v5856
    %v5858 = vpop.xlane.xlu0 %5857
    %v5859 = vmul.f32 %v5837, %v318
    %v5860 = vmul.f32 %v5840, %v318
    %v5861 = vmul.f32 %v5843, %v318
    %v5862 = vmul.f32 %v5846, %v318
    %v5863 = vmul.f32 %v5849, %v318
    %v5864 = vmul.f32 %v5852, %v318
    %v5865 = vmul.f32 %v5855, %v318
    %v5866 = vmul.f32 %v5858, %v318
    %v5867 = vsub.f32 %v5825, %v5859
    %v5868 = vsub.f32 %v5826, %v5860
    %v5869 = vsub.f32 %v5827, %v5861
    %v5870 = vsub.f32 %v5828, %v5862
    %v5871 = vsub.f32 %v5829, %v5863
    %v5872 = vsub.f32 %v5830, %v5864
    %v5873 = vsub.f32 %v5831, %v5865
    %v5874 = vsub.f32 %v5832, %v5866
    %v5875 = vmul.f32 %v5867, %v5867
    %v5876 = vmul.f32 %v5868, %v5868
    %v5877 = vmul.f32 %v5869, %v5869
    %v5878 = vmul.f32 %v5870, %v5870
    %v5879 = vmul.f32 %v5871, %v5871
    %v5880 = vmul.f32 %v5872, %v5872
    %v5881 = vmul.f32 %v5873, %v5873
    %v5882 = vmul.f32 %v5874, %v5874
    %v5883 = vsel %vm272, %v5875, 0.0
    %5884 = vadd.xlane.f32.xlu0 %v5883
    %v5885 = vpop.xlane.xlu0 %5884
    %v5886 = vsel %vm272, %v5876, 0.0
    %5887 = vadd.xlane.f32.xlu0 %v5886
    %v5888 = vpop.xlane.xlu0 %5887
    %v5889 = vsel %vm272, %v5877, 0.0
    %5890 = vadd.xlane.f32.xlu0 %v5889
    %v5891 = vpop.xlane.xlu0 %5890
    %v5892 = vsel %vm272, %v5878, 0.0
    %5893 = vadd.xlane.f32.xlu0 %v5892
    %v5894 = vpop.xlane.xlu0 %5893
    %v5895 = vsel %vm272, %v5879, 0.0
    %5896 = vadd.xlane.f32.xlu0 %v5895
    %v5897 = vpop.xlane.xlu0 %5896
    %v5898 = vsel %vm272, %v5880, 0.0
    %5899 = vadd.xlane.f32.xlu0 %v5898
    %v5900 = vpop.xlane.xlu0 %5899
    %v5901 = vsel %vm272, %v5881, 0.0
    %5902 = vadd.xlane.f32.xlu0 %v5901
    %v5903 = vpop.xlane.xlu0 %5902
    %v5904 = vsel %vm272, %v5882, 0.0
    %5905 = vadd.xlane.f32.xlu0 %v5904
    %v5906 = vpop.xlane.xlu0 %5905
    %v5907 = vmul.f32 %v5885, %v318
    %v5908 = vmul.f32 %v5888, %v318
    %v5909 = vmul.f32 %v5891, %v318
    %v5910 = vmul.f32 %v5894, %v318
    %v5911 = vmul.f32 %v5897, %v318
    %v5912 = vmul.f32 %v5900, %v318
    %v5913 = vmul.f32 %v5903, %v318
    %v5914 = vmul.f32 %v5906, %v318
    %v5915 = vadd.f32 %v5907, 1e-05
    %v5916 = vadd.f32 %v5908, 1e-05
    %v5917 = vadd.f32 %v5909, 1e-05
    %v5918 = vadd.f32 %v5910, 1e-05
    %v5919 = vadd.f32 %v5911, 1e-05
    %v5920 = vadd.f32 %v5912, 1e-05
    %v5921 = vadd.f32 %v5913, 1e-05
    %v5922 = vadd.f32 %v5914, 1e-05
    %v5923 = vrsqrt.pop %v5915
    %v5924 = vrsqrt.pop %v5916
    %v5925 = vrsqrt.pop %v5917
    %v5926 = vrsqrt.pop %v5918
    %v5927 = vrsqrt.pop %v5919
    %v5928 = vrsqrt.pop %v5920
    %v5929 = vrsqrt.pop %v5921
    %v5930 = vrsqrt.pop %v5922
    %v5931 = vmul.f32 %v5867, %v5923
    %v5932 = vmul.f32 %v5868, %v5924
    %v5933 = vmul.f32 %v5869, %v5925
    %v5934 = vmul.f32 %v5870, %v5926
    %v5935 = vmul.f32 %v5871, %v5927
    %v5936 = vmul.f32 %v5872, %v5928
    %v5937 = vmul.f32 %v5873, %v5929
    %v5938 = vmul.f32 %v5874, %v5930
    %v5940 = vlaneseq
    %v5941 = vshrl.u32 %v5940, 7
    %v5942 = vsub.s32 0, %v5941
    %v5943 = vrot.slane %v5833, %v5942
    %v5945 = vmul.f32 %v5931, %v5943
    %v5946 = vmul.f32 %v5932, %v5943
    %v5947 = vmul.f32 %v5933, %v5943
    %v5948 = vmul.f32 %v5934, %v5943
    %v5949 = vmul.f32 %v5935, %v5943
    %v5950 = vmul.f32 %v5936, %v5943
    %v5951 = vmul.f32 %v5937, %v5943
    %v5952 = vmul.f32 %v5938, %v5943
    %v5954 = vlaneseq
    %v5955 = vshrl.u32 %v5954, 7
    %v5956 = vsub.s32 0, %v5955
    %v5957 = vrot.slane %v5834, %v5956
    %v5959 = vadd.f32 %v5945, %v5957
    %v5960 = vadd.f32 %v5946, %v5957
    %v5961 = vadd.f32 %v5947, %v5957
    %v5962 = vadd.f32 %v5948, %v5957
    %v5963 = vadd.f32 %v5949, %v5957
    %v5964 = vadd.f32 %v5950, %v5957
    %v5965 = vadd.f32 %v5951, %v5957
    %v5966 = vadd.f32 %v5952, %v5957
    %v5967 = vpack.c.bf16 %v5960, %v5959
    %v5968 = vpack.c.bf16 %v5962, %v5961
    %v5969 = vpack.c.bf16 %v5964, %v5963
    %v5970 = vpack.c.bf16 %v5966, %v5965
    %v5971 = vld [vmem:[%s51] sm:$0xf]
    %v5972 = vld [vmem:[%s51 + $0x4] sm:$0xf]
    %v5973 = vld [vmem:[%s51 + $0x8] sm:$0xf]
    %v5974 = vld [vmem:[%s51 + $0xc] sm:$0xf]
    %v5975 = vld [vmem:[%s51 + $0x10] sm:$0xf]
    %v5976 = vld [vmem:[%s51 + $0x14] sm:$0xf]
    %v5977 = vld [vmem:[%s51 + $0x18] sm:$0xf]
    %v5978 = vld [vmem:[%s51 + $0x1c] sm:$0xf]
    %v5979 = vld [vmem:[%s53] sm:$0x1]
    %v5981 = vlaneseq
    %v5982 = vshrl.u32 %v5981, 7
    %v5983 = vsub.s32 0, %v5982
    %v5984 = vrot.slane %v5979, %v5983
    %v5994 = vunpack.c.l.b16 %v5971
    %v5995 = vunpack.c.l.b16 %v5972
    %v5996 = vunpack.c.l.b16 %v5973
    %v5997 = vunpack.c.l.b16 %v5974
    %v5998 = vunpack.c.l.b16 %v5975
    %v5999 = vunpack.c.l.b16 %v5976
    %v6000 = vunpack.c.l.b16 %v5977
    %v6001 = vunpack.c.l.b16 %v5978
    %v6002 = vpack.c.b16 %v5995, %v5994
    %v6003 = vpack.c.b16 %v5997, %v5996
    %v6004 = vpack.c.b16 %v5999, %v5998
    %v6005 = vpack.c.b16 %v6001, %v6000
    %v6011 = vsel %vm272, %v5967, 0
    %v6014 = vsel %vm272, %v5968, 0
    %v6017 = vsel %vm272, %v5969, 0
    %v6020 = vsel %vm272, %v5970, 0
    %6022 = vmatprep.subr.bf16.mxu0 0
    %6023 = vmatpush1.bf16.msra.mxu0 0
    %6024 = vmatprep.subr.bf16.mxu0 0
    %6025 = vmatpush1.bf16.msra.mxu0 0
    %6026 = vmatprep.subr.bf16.mxu0 0
    %6027 = vmatpush1.bf16.msra.mxu0 0
    %6028 = vmatprep.subr.bf16.mxu0 0
    %6029 = vmatpush1.bf16.msra.mxu0 0
    %6030 = vmatprep.subr.bf16.mxu0 0
    %6031 = vmatpush1.bf16.msra.mxu0 %v6005
    %6032 = vmatprep.subr.bf16.mxu0 0
    %6033 = vmatpush1.bf16.msra.mxu0 %v6004
    %6034 = vmatprep.subr.bf16.mxu0 0
    %6035 = vmatpush1.bf16.msra.mxu0 %v6003
    %6036 = vmatprep.subr.bf16.mxu0 0
    %6037 = vmatpush1.bf16.msra.mxu0 %v6002
    %6038 = vmatprep.subr.bf16.mxu0 0
    %6039 = vmatpush2.bf16.msra.mxu0 0
    %6040 = vmatprep.subr.bf16.mxu0 0
    %6041 = vmatpush2.bf16.msra.mxu0 0
    %6042 = vmatprep.subr.bf16.mxu0 0
    %6043 = vmatpush2.bf16.msra.mxu0 0
    %6044 = vmatprep.subr.bf16.mxu0 0
    %6045 = vmatpush2.bf16.msra.mxu0 0
    %6046 = vmatprep.subr.bf16.mxu0 0
    %6047 = vmatpush2.bf16.msra.mxu0 0
    %6048 = vmatprep.subr.bf16.mxu0 0
    %6049 = vmatpush2.bf16.msra.mxu0 0
    %6050 = vmatprep.subr.bf16.mxu0 0
    %6051 = vmatpush2.bf16.msra.mxu0 0
    %6052 = vmatprep.subr.bf16.mxu0 0
    %6053 = vmatpush2.bf16.msra.mxu0 0
    %6054 = vmatprep.mubr.bf16.mxu0 0
    %6055 = vmatmul.mubr.bf16.gmra.mxu0 %v6011
    %v6056 = vpop.f32.mrf.mxu0
    %v6057 = vadd.f32 %v5984, %v6056
    %v6058 = vpop.f32.mrf.mxu0
    %v6059 = vpop.f32.mrf.mxu0
    %v6060 = vadd.f32 %v5984, %v6059
    %v6061 = vpop.f32.mrf.mxu0
    %6062 = vmatprep.mubr.bf16.mxu0 0
    %6063 = vmatmul.mubr.bf16.gmra.mxu0 %v6014
    %v6064 = vpop.f32.mrf.mxu0
    %v6065 = vadd.f32 %v5984, %v6064
    %v6066 = vpop.f32.mrf.mxu0
    %v6067 = vpop.f32.mrf.mxu0
    %v6068 = vadd.f32 %v5984, %v6067
    %v6069 = vpop.f32.mrf.mxu0
    %6070 = vmatprep.mubr.bf16.mxu0 0
    %6071 = vmatmul.mubr.bf16.gmra.mxu0 %v6017
    %v6072 = vpop.f32.mrf.mxu0
    %v6073 = vadd.f32 %v5984, %v6072
    %v6074 = vpop.f32.mrf.mxu0
    %v6075 = vpop.f32.mrf.mxu0
    %v6076 = vadd.f32 %v5984, %v6075
    %v6077 = vpop.f32.mrf.mxu0
    %6078 = vmatprep.mubr.bf16.mxu0 0
    %6079 = vmatmul.mubr.bf16.gmra.mxu0 %v6020
    %v6080 = vpop.f32.mrf.mxu0
    %v6081 = vadd.f32 %v5984, %v6080
    %v6082 = vpop.f32.mrf.mxu0
    %v6083 = vpop.f32.mrf.mxu0
    %v6084 = vadd.f32 %v5984, %v6083
    %v6085 = vpop.f32.mrf.mxu0
    %6086 = vdwg.mxu0
    %v6087 = vmul.f32 %v6057, 0.5
    %v6088 = vmul.f32 %v6060, 0.5
    %v6089 = vmul.f32 %v6065, 0.5
    %v6090 = vmul.f32 %v6068, 0.5
    %v6091 = vmul.f32 %v6073, 0.5
    %v6092 = vmul.f32 %v6076, 0.5
    %v6093 = vmul.f32 %v6081, 0.5
    %v6094 = vmul.f32 %v6084, 0.5
    %v6095 = vmul.f32 %v6057, 0.70710677
    %v6096 = vmul.f32 %v6060, 0.70710677
    %v6097 = vmul.f32 %v6065, 0.70710677
    %v6098 = vmul.f32 %v6068, 0.70710677
    %v6099 = vmul.f32 %v6073, 0.70710677
    %v6100 = vmul.f32 %v6076, 0.70710677
    %v6101 = vmul.f32 %v6081, 0.70710677
    %v6102 = vmul.f32 %v6084, 0.70710677
    %v6103 = vand.u32 2147483647, %v6095
    %v6104 = vand.u32 2147483647, %v6096
    %v6105 = vand.u32 2147483647, %v6097
    %v6106 = vand.u32 2147483647, %v6098
    %v6107 = vand.u32 2147483647, %v6099
    %v6108 = vand.u32 2147483647, %v6100
    %v6109 = vand.u32 2147483647, %v6101
    %v6110 = vand.u32 2147483647, %v6102
    %v6111 = vmul.f32 %v6103, 0.3275911
    %v6112 = vmul.f32 %v6104, 0.3275911
    %v6113 = vmul.f32 %v6105, 0.3275911
    %v6114 = vmul.f32 %v6106, 0.3275911
    %v6115 = vmul.f32 %v6107, 0.3275911
    %v6116 = vmul.f32 %v6108, 0.3275911
    %v6117 = vmul.f32 %v6109, 0.3275911
    %v6118 = vmul.f32 %v6110, 0.3275911
    %v6119 = vadd.f32 %v6111, 1.0
    %v6120 = vadd.f32 %v6112, 1.0
    %v6121 = vadd.f32 %v6113, 1.0
    %v6122 = vadd.f32 %v6114, 1.0
    %v6123 = vadd.f32 %v6115, 1.0
    %v6124 = vadd.f32 %v6116, 1.0
    %v6125 = vadd.f32 %v6117, 1.0
    %v6126 = vadd.f32 %v6118, 1.0
    %v6127 = vrcp.pop %v6119
    %v6128 = vmul.f32 1.0, %v6127
    %v6129 = vrcp.pop %v6120
    %v6130 = vmul.f32 1.0, %v6129
    %v6131 = vrcp.pop %v6121
    %v6132 = vmul.f32 1.0, %v6131
    %v6133 = vrcp.pop %v6122
    %v6134 = vmul.f32 1.0, %v6133
    %v6135 = vrcp.pop %v6123
    %v6136 = vmul.f32 1.0, %v6135
    %v6137 = vrcp.pop %v6124
    %v6138 = vmul.f32 1.0, %v6137
    %v6139 = vrcp.pop %v6125
    %v6140 = vmul.f32 1.0, %v6139
    %v6141 = vrcp.pop %v6126
    %v6142 = vmul.f32 1.0, %v6141
    %v6143 = vmul.f32 %v6128, 1.0614054
    %v6144 = vmul.f32 %v6130, 1.0614054
    %v6145 = vmul.f32 %v6132, 1.0614054
    %v6146 = vmul.f32 %v6134, 1.0614054
    %v6147 = vmul.f32 %v6136, 1.0614054
    %v6148 = vmul.f32 %v6138, 1.0614054
    %v6149 = vmul.f32 %v6140, 1.0614054
    %v6150 = vmul.f32 %v6142, 1.0614054
    %v6151 = vadd.f32 %v6143, -1.4531521
    %v6152 = vadd.f32 %v6144, -1.4531521
    %v6153 = vadd.f32 %v6145, -1.4531521
    %v6154 = vadd.f32 %v6146, -1.4531521
    %v6155 = vadd.f32 %v6147, -1.4531521
    %v6156 = vadd.f32 %v6148, -1.4531521
    %v6157 = vadd.f32 %v6149, -1.4531521
    %v6158 = vadd.f32 %v6150, -1.4531521
    %v6159 = vmul.f32 %v6151, %v6128
    %v6160 = vmul.f32 %v6152, %v6130
    %v6161 = vmul.f32 %v6153, %v6132
    %v6162 = vmul.f32 %v6154, %v6134
    %v6163 = vmul.f32 %v6155, %v6136
    %v6164 = vmul.f32 %v6156, %v6138
    %v6165 = vmul.f32 %v6157, %v6140
    %v6166 = vmul.f32 %v6158, %v6142
    %v6167 = vadd.f32 %v6159, 1.4214138
    %v6168 = vadd.f32 %v6160, 1.4214138
    %v6169 = vadd.f32 %v6161, 1.4214138
    %v6170 = vadd.f32 %v6162, 1.4214138
    %v6171 = vadd.f32 %v6163, 1.4214138
    %v6172 = vadd.f32 %v6164, 1.4214138
    %v6173 = vadd.f32 %v6165, 1.4214138
    %v6174 = vadd.f32 %v6166, 1.4214138
    %v6175 = vmul.f32 %v6167, %v6128
    %v6176 = vmul.f32 %v6168, %v6130
    %v6177 = vmul.f32 %v6169, %v6132
    %v6178 = vmul.f32 %v6170, %v6134
    %v6179 = vmul.f32 %v6171, %v6136
    %v6180 = vmul.f32 %v6172, %v6138
    %v6181 = vmul.f32 %v6173, %v6140
    %v6182 = vmul.f32 %v6174, %v6142
    %v6183 = vadd.f32 %v6175, -0.28449672
    %v6184 = vadd.f32 %v6176, -0.28449672
    %v6185 = vadd.f32 %v6177, -0.28449672
    %v6186 = vadd.f32 %v6178, -0.28449672
    %v6187 = vadd.f32 %v6179, -0.28449672
    %v6188 = vadd.f32 %v6180, -0.28449672
    %v6189 = vadd.f32 %v6181, -0.28449672
    %v6190 = vadd.f32 %v6182, -0.28449672
    %v6191 = vmul.f32 %v6183, %v6128
    %v6192 = vmul.f32 %v6184, %v6130
    %v6193 = vmul.f32 %v6185, %v6132
    %v6194 = vmul.f32 %v6186, %v6134
    %v6195 = vmul.f32 %v6187, %v6136
    %v6196 = vmul.f32 %v6188, %v6138
    %v6197 = vmul.f32 %v6189, %v6140
    %v6198 = vmul.f32 %v6190, %v6142
    %v6199 = vadd.f32 %v6191, 0.2548296
    %v6200 = vadd.f32 %v6192, 0.2548296
    %v6201 = vadd.f32 %v6193, 0.2548296
    %v6202 = vadd.f32 %v6194, 0.2548296
    %v6203 = vadd.f32 %v6195, 0.2548296
    %v6204 = vadd.f32 %v6196, 0.2548296
    %v6205 = vadd.f32 %v6197, 0.2548296
    %v6206 = vadd.f32 %v6198, 0.2548296
    %v6207 = vmul.f32 %v6199, %v6128
    %v6208 = vmul.f32 %v6200, %v6130
    %v6209 = vmul.f32 %v6201, %v6132
    %v6210 = vmul.f32 %v6202, %v6134
    %v6211 = vmul.f32 %v6203, %v6136
    %v6212 = vmul.f32 %v6204, %v6138
    %v6213 = vmul.f32 %v6205, %v6140
    %v6214 = vmul.f32 %v6206, %v6142
    %v6215 = vsub.f32 0.0, %v6103
    %v6216 = vsub.f32 0.0, %v6104
    %v6217 = vsub.f32 0.0, %v6105
    %v6218 = vsub.f32 0.0, %v6106
    %v6219 = vsub.f32 0.0, %v6107
    %v6220 = vsub.f32 0.0, %v6108
    %v6221 = vsub.f32 0.0, %v6109
    %v6222 = vsub.f32 0.0, %v6110
    %v6223 = vmul.f32 %v6215, %v6103
    %v6224 = vmul.f32 %v6216, %v6104
    %v6225 = vmul.f32 %v6217, %v6105
    %v6226 = vmul.f32 %v6218, %v6106
    %v6227 = vmul.f32 %v6219, %v6107
    %v6228 = vmul.f32 %v6220, %v6108
    %v6229 = vmul.f32 %v6221, %v6109
    %v6230 = vmul.f32 %v6222, %v6110
    %v6231 = vmul.f32 %v6223, 1.442695
    %v6232 = vpow.pop %v6231
    %v6233 = vmul.f32 %v6224, 1.442695
    %v6234 = vpow.pop %v6233
    %v6235 = vmul.f32 %v6225, 1.442695
    %v6236 = vpow.pop %v6235
    %v6237 = vmul.f32 %v6226, 1.442695
    %v6238 = vpow.pop %v6237
    %v6239 = vmul.f32 %v6227, 1.442695
    %v6240 = vpow.pop %v6239
    %v6241 = vmul.f32 %v6228, 1.442695
    %v6242 = vpow.pop %v6241
    %v6243 = vmul.f32 %v6229, 1.442695
    %v6244 = vpow.pop %v6243
    %v6245 = vmul.f32 %v6230, 1.442695
    %v6246 = vpow.pop %v6245
    %v6247 = vmul.f32 %v6207, %v6232
    %v6248 = vmul.f32 %v6208, %v6234
    %v6249 = vmul.f32 %v6209, %v6236
    %v6250 = vmul.f32 %v6210, %v6238
    %v6251 = vmul.f32 %v6211, %v6240
    %v6252 = vmul.f32 %v6212, %v6242
    %v6253 = vmul.f32 %v6213, %v6244
    %v6254 = vmul.f32 %v6214, %v6246
    %v6255 = vsub.f32 1.0, %v6247
    %v6256 = vsub.f32 1.0, %v6248
    %v6257 = vsub.f32 1.0, %v6249
    %v6258 = vsub.f32 1.0, %v6250
    %v6259 = vsub.f32 1.0, %v6251
    %v6260 = vsub.f32 1.0, %v6252
    %v6261 = vsub.f32 1.0, %v6253
    %v6262 = vsub.f32 1.0, %v6254
    %vm6263 = vcmp.ge.f32.partialorder %v6095, 0.0
    %vm6264 = vcmp.ge.f32.partialorder %v6096, 0.0
    %vm6265 = vcmp.ge.f32.partialorder %v6097, 0.0
    %vm6266 = vcmp.ge.f32.partialorder %v6098, 0.0
    %vm6267 = vcmp.ge.f32.partialorder %v6099, 0.0
    %vm6268 = vcmp.ge.f32.partialorder %v6100, 0.0
    %vm6269 = vcmp.ge.f32.partialorder %v6101, 0.0
    %vm6270 = vcmp.ge.f32.partialorder %v6102, 0.0
    %v6271 = vsub.f32 0.0, %v6255
    %v6272 = vsub.f32 0.0, %v6256
    %v6273 = vsub.f32 0.0, %v6257
    %v6274 = vsub.f32 0.0, %v6258
    %v6275 = vsub.f32 0.0, %v6259
    %v6276 = vsub.f32 0.0, %v6260
    %v6277 = vsub.f32 0.0, %v6261
    %v6278 = vsub.f32 0.0, %v6262
    %v6279 = vsel %vm6263, %v6255, %v6271
    %v6280 = vsel %vm6264, %v6256, %v6272
    %v6281 = vsel %vm6265, %v6257, %v6273
    %v6282 = vsel %vm6266, %v6258, %v6274
    %v6283 = vsel %vm6267, %v6259, %v6275
    %v6284 = vsel %vm6268, %v6260, %v6276
    %v6285 = vsel %vm6269, %v6261, %v6277
    %v6286 = vsel %vm6270, %v6262, %v6278
    %v6287 = vadd.f32 %v6279, 1.0
    %v6288 = vadd.f32 %v6280, 1.0
    %v6289 = vadd.f32 %v6281, 1.0
    %v6290 = vadd.f32 %v6282, 1.0
    %v6291 = vadd.f32 %v6283, 1.0
    %v6292 = vadd.f32 %v6284, 1.0
    %v6293 = vadd.f32 %v6285, 1.0
    %v6294 = vadd.f32 %v6286, 1.0
    %v6295 = vmul.f32 %v6087, %v6287
    %v6296 = vmul.f32 %v6088, %v6288
    %v6297 = vmul.f32 %v6089, %v6289
    %v6298 = vmul.f32 %v6090, %v6290
    %v6299 = vmul.f32 %v6091, %v6291
    %v6300 = vmul.f32 %v6092, %v6292
    %v6301 = vmul.f32 %v6093, %v6293
    %v6302 = vmul.f32 %v6094, %v6294
    %v6303 = vpack.c.bf16 %v6296, %v6295
    %v6304 = vpack.c.bf16 %v6298, %v6297
    %v6305 = vpack.c.bf16 %v6300, %v6299
    %v6306 = vpack.c.bf16 %v6302, %v6301
    %v6307 = vld [vmem:[%s55] sm:$0xf]
    %v6308 = vld [vmem:[%s55 + $0x4] sm:$0xf]
    %v6309 = vld [vmem:[%s55 + $0x8] sm:$0xf]
    %v6310 = vld [vmem:[%s55 + $0xc] sm:$0xf]
    %v6311 = vld [vmem:[%s55 + $0x10] sm:$0xf]
    %v6312 = vld [vmem:[%s55 + $0x14] sm:$0xf]
    %v6313 = vld [vmem:[%s55 + $0x18] sm:$0xf]
    %v6314 = vld [vmem:[%s55 + $0x1c] sm:$0xf]
    %v6315 = vld [vmem:[%s55 + $0x20] sm:$0xf]
    %v6316 = vld [vmem:[%s55 + $0x24] sm:$0xf]
    %v6317 = vld [vmem:[%s55 + $0x28] sm:$0xf]
    %v6318 = vld [vmem:[%s55 + $0x2c] sm:$0xf]
    %v6319 = vld [vmem:[%s55 + $0x30] sm:$0xf]
    %v6320 = vld [vmem:[%s55 + $0x34] sm:$0xf]
    %v6321 = vld [vmem:[%s55 + $0x38] sm:$0xf]
    %v6322 = vld [vmem:[%s55 + $0x3c] sm:$0xf]
    %v6323 = vld [vmem:[%s57] sm:$0x1]
    %v6325 = vlaneseq
    %v6326 = vshrl.u32 %v6325, 7
    %v6327 = vsub.s32 0, %v6326
    %v6328 = vrot.slane %v6323, %v6327
    %v6346 = vunpack.c.l.b16 %v6307
    %v6347 = vunpack.c.l.b16 %v6308
    %v6348 = vunpack.c.l.b16 %v6309
    %v6349 = vunpack.c.l.b16 %v6310
    %v6350 = vunpack.c.l.b16 %v6311
    %v6351 = vunpack.c.l.b16 %v6312
    %v6352 = vunpack.c.l.b16 %v6313
    %v6353 = vunpack.c.l.b16 %v6314
    %v6354 = vunpack.c.l.b16 %v6315
    %v6355 = vunpack.c.l.b16 %v6316
    %v6356 = vunpack.c.l.b16 %v6317
    %v6357 = vunpack.c.l.b16 %v6318
    %v6358 = vunpack.c.l.b16 %v6319
    %v6359 = vunpack.c.l.b16 %v6320
    %v6360 = vunpack.c.l.b16 %v6321
    %v6361 = vunpack.c.l.b16 %v6322
    %v6362 = vpack.c.b16 %v6347, %v6346
    %v6363 = vpack.c.b16 %v6349, %v6348
    %v6364 = vpack.c.b16 %v6351, %v6350
    %v6365 = vpack.c.b16 %v6353, %v6352
    %v6366 = vpack.c.b16 %v6355, %v6354
    %v6367 = vpack.c.b16 %v6357, %v6356
    %v6368 = vpack.c.b16 %v6359, %v6358
    %v6369 = vpack.c.b16 %v6361, %v6360
    %6378 = vmatprep.subr.bf16.mxu0 0
    %6379 = vmatpush1.bf16.msra.mxu0 %v6369
    %6380 = vmatprep.subr.bf16.mxu0 0
    %6381 = vmatpush1.bf16.msra.mxu0 %v6368
    %6382 = vmatprep.subr.bf16.mxu0 0
    %6383 = vmatpush1.bf16.msra.mxu0 %v6367
    %6384 = vmatprep.subr.bf16.mxu0 0
    %6385 = vmatpush1.bf16.msra.mxu0 %v6366
    %6386 = vmatprep.subr.bf16.mxu0 0
    %6387 = vmatpush1.bf16.msra.mxu0 %v6365
    %6388 = vmatprep.subr.bf16.mxu0 0
    %6389 = vmatpush1.bf16.msra.mxu0 %v6364
    %6390 = vmatprep.subr.bf16.mxu0 0
    %6391 = vmatpush1.bf16.msra.mxu0 %v6363
    %6392 = vmatprep.subr.bf16.mxu0 0
    %6393 = vmatpush1.bf16.msra.mxu0 %v6362
    %6394 = vmatprep.subr.bf16.mxu0 0
    %6395 = vmatpush2.bf16.msra.mxu0 0
    %6396 = vmatprep.subr.bf16.mxu0 0
    %6397 = vmatpush2.bf16.msra.mxu0 0
    %6398 = vmatprep.subr.bf16.mxu0 0
    %6399 = vmatpush2.bf16.msra.mxu0 0
    %6400 = vmatprep.subr.bf16.mxu0 0
    %6401 = vmatpush2.bf16.msra.mxu0 0
    %6402 = vmatprep.subr.bf16.mxu0 0
    %6403 = vmatpush2.bf16.msra.mxu0 0
    %6404 = vmatprep.subr.bf16.mxu0 0
    %6405 = vmatpush2.bf16.msra.mxu0 0
    %6406 = vmatprep.subr.bf16.mxu0 0
    %6407 = vmatpush2.bf16.msra.mxu0 0
    %6408 = vmatprep.subr.bf16.mxu0 0
    %6409 = vmatpush2.bf16.msra.mxu0 0
    %6410 = vmatprep.mubr.bf16.mxu0 0
    %6411 = vmatmul.mubr.bf16.gmra.mxu0 %v6303
    %v6412 = vpop.f32.mrf.mxu0
    %v6413 = vadd.f32 %v6328, %v6412
    %v6414 = vpop.f32.mrf.mxu0
    %v6415 = vpop.f32.mrf.mxu0
    %v6416 = vadd.f32 %v6328, %v6415
    %v6417 = vpop.f32.mrf.mxu0
    %6418 = vmatprep.mubr.bf16.mxu0 0
    %6419 = vmatmul.mubr.bf16.gmra.mxu0 %v6304
    %v6420 = vpop.f32.mrf.mxu0
    %v6421 = vadd.f32 %v6328, %v6420
    %v6422 = vpop.f32.mrf.mxu0
    %v6423 = vpop.f32.mrf.mxu0
    %v6424 = vadd.f32 %v6328, %v6423
    %v6425 = vpop.f32.mrf.mxu0
    %6426 = vmatprep.mubr.bf16.mxu0 0
    %6427 = vmatmul.mubr.bf16.gmra.mxu0 %v6305
    %v6428 = vpop.f32.mrf.mxu0
    %v6429 = vadd.f32 %v6328, %v6428
    %v6430 = vpop.f32.mrf.mxu0
    %v6431 = vpop.f32.mrf.mxu0
    %v6432 = vadd.f32 %v6328, %v6431
    %v6433 = vpop.f32.mrf.mxu0
    %6434 = vmatprep.mubr.bf16.mxu0 0
    %6435 = vmatmul.mubr.bf16.gmra.mxu0 %v6306
    %v6436 = vpop.f32.mrf.mxu0
    %v6437 = vadd.f32 %v6328, %v6436
    %v6438 = vpop.f32.mrf.mxu0
    %v6439 = vpop.f32.mrf.mxu0
    %v6440 = vadd.f32 %v6328, %v6439
    %v6441 = vpop.f32.mrf.mxu0
    %6442 = vdwg.mxu0
    %v6443 = vadd.f32 %v5825, %v6413
    %v6444 = vadd.f32 %v5826, %v6416
    %v6445 = vadd.f32 %v5827, %v6421
    %v6446 = vadd.f32 %v5828, %v6424
    %v6447 = vadd.f32 %v5829, %v6429
    %v6448 = vadd.f32 %v5830, %v6432
    %v6449 = vadd.f32 %v5831, %v6437
    %v6450 = vadd.f32 %v5832, %v6440
    %6451 = vst.msk [vmem:[#allocation2] sm:$0xff] %vm272, %v6443
    %6452 = vst.msk [vmem:[#allocation2 + $0x8] sm:$0xff] %vm272, %v6444
    %6453 = vst.msk [vmem:[#allocation2 + $0x10] sm:$0xff] %vm272, %v6445
    %6454 = vst.msk [vmem:[#allocation2 + $0x18] sm:$0xff] %vm272, %v6446
    %6455 = vst.msk [vmem:[#allocation2 + $0x20] sm:$0xff] %vm272, %v6447
    %6456 = vst.msk [vmem:[#allocation2 + $0x28] sm:$0xff] %vm272, %v6448
    %6457 = vst.msk [vmem:[#allocation2 + $0x30] sm:$0xff] %vm272, %v6449
    %6458 = vst.msk [vmem:[#allocation2 + $0x38] sm:$0xff] %vm272, %v6450
    %v6459 = vld [vmem:[#allocation2] sm:$0x1]
    %v6460 = vld [vmem:[%s59] sm:$0x1]
    %v6461 = vld [vmem:[%s61] sm:$0x1]
    %vm6462 = vcmask 516096
    %v6463 = vsel %vm6462, %v6459, 0.0
    %6464 = vadd.xlane.f32.xlu0 %v6463
    %v6465 = vpop.xlane.xlu0 %6464
    %v6466 = vmul.f32 %v6465, %v318
    %v6467 = vsub.f32 %v6459, %v6466
    %v6468 = vmul.f32 %v6467, %v6467
    %v6469 = vsel %vm6462, %v6468, 0.0
    %6470 = vadd.xlane.f32.xlu0 %v6469
    %v6471 = vpop.xlane.xlu0 %6470
    %v6472 = vmul.f32 %v6471, %v318
    %v6473 = vadd.f32 %v6472, 1e-05
    %v6474 = vrsqrt.pop %v6473
    %v6475 = vmul.f32 %v6467, %v6474
    %v6476 = vmul.f32 %v6475, %v6460
    %v6477 = vadd.f32 %v6476, %v6461
    %v6478 = vpack.c.bf16 %v6477, %v6477
    %v6479 = vld [vmem:[%s63] sm:$0xf]
    %v6480 = vld [vmem:[%s63 + $0x4] sm:$0xf]
    %v6481 = vld [vmem:[%s63 + $0x8] sm:$0xf]
    %v6482 = vld [vmem:[%s63 + $0xc] sm:$0xf]
    %v6483 = vld [vmem:[%s63 + $0x10] sm:$0xf]
    %v6484 = vld [vmem:[%s63 + $0x14] sm:$0xf]
    %v6485 = vld [vmem:[%s63 + $0x18] sm:$0xf]
    %v6486 = vld [vmem:[%s63 + $0x1c] sm:$0xf]
    %v6487 = vld [vmem:[%s65] sm:$0x1]
    %v6496 = vunpack.c.l.b16 %v6479
    %v6497 = vunpack.c.l.b16 %v6480
    %v6498 = vunpack.c.l.b16 %v6481
    %v6499 = vunpack.c.l.b16 %v6482
    %v6500 = vunpack.c.l.b16 %v6483
    %v6501 = vunpack.c.l.b16 %v6484
    %v6502 = vunpack.c.l.b16 %v6485
    %v6503 = vunpack.c.l.b16 %v6486
    %v6504 = vpack.c.b16 %v6497, %v6496
    %v6505 = vpack.c.b16 %v6499, %v6498
    %v6506 = vpack.c.b16 %v6501, %v6500
    %v6507 = vpack.c.b16 %v6503, %v6502
    %v6513 = vsel %vm272, %v6478, 0
    %6515 = vmatprep.subr.bf16.mxu0 0
    %6516 = vmatpush1.bf16.msra.mxu0 0
    %6517 = vmatprep.subr.bf16.mxu0 0
    %6518 = vmatpush1.bf16.msra.mxu0 0
    %6519 = vmatprep.subr.bf16.mxu0 0
    %6520 = vmatpush1.bf16.msra.mxu0 0
    %6521 = vmatprep.subr.bf16.mxu0 0
    %6522 = vmatpush1.bf16.msra.mxu0 0
    %6523 = vmatprep.subr.bf16.mxu0 0
    %6524 = vmatpush1.bf16.msra.mxu0 %v6507
    %6525 = vmatprep.subr.bf16.mxu0 0
    %6526 = vmatpush1.bf16.msra.mxu0 %v6506
    %6527 = vmatprep.subr.bf16.mxu0 0
    %6528 = vmatpush1.bf16.msra.mxu0 %v6505
    %6529 = vmatprep.subr.bf16.mxu0 0
    %6530 = vmatpush1.bf16.msra.mxu0 %v6504
    %6531 = vmatprep.subr.bf16.mxu0 0
    %6532 = vmatpush2.bf16.msra.mxu0 0
    %6533 = vmatprep.subr.bf16.mxu0 0
    %6534 = vmatpush2.bf16.msra.mxu0 0
    %6535 = vmatprep.subr.bf16.mxu0 0
    %6536 = vmatpush2.bf16.msra.mxu0 0
    %6537 = vmatprep.subr.bf16.mxu0 0
    %6538 = vmatpush2.bf16.msra.mxu0 0
    %6539 = vmatprep.subr.bf16.mxu0 0
    %6540 = vmatpush2.bf16.msra.mxu0 0
    %6541 = vmatprep.subr.bf16.mxu0 0
    %6542 = vmatpush2.bf16.msra.mxu0 0
    %6543 = vmatprep.subr.bf16.mxu0 0
    %6544 = vmatpush2.bf16.msra.mxu0 0
    %6545 = vmatprep.subr.bf16.mxu0 0
    %6546 = vmatpush2.bf16.msra.mxu0 0
    %6547 = vmatprep.mubr.bf16.mxu0 0
    %6548 = vmatmul.mubr.bf16.gmra.mxu0 %v6513
    %v6549 = vpop.f32.mrf.mxu0
    %v6550 = vadd.f32 %v6487, %v6549
    %v6551 = vpop.f32.mrf.mxu0
    %v6552 = vpop.f32.mrf.mxu0
    %v6553 = vpop.f32.mrf.mxu0
    %6554 = vdwg.mxu0
    %vm6555 = vcmask 73728
    %6556 = vst.msk [vmem:[#allocation3] sm:$0x1] %vm6555, %v6550
    %v6557 = vld [vmem:[#allocation2 + $0x20] sm:$0x1]
    %v6558 = vld [vmem:[%s59] sm:$0x1]
    %v6559 = vld [vmem:[%s61] sm:$0x1]
    %v6560 = vsel %vm6462, %v6557, 0.0
    %6561 = vadd.xlane.f32.xlu0 %v6560
    %v6562 = vpop.xlane.xlu0 %6561
    %v6563 = vmul.f32 %v6562, %v318
    %v6564 = vsub.f32 %v6557, %v6563
    %v6565 = vmul.f32 %v6564, %v6564
    %v6566 = vsel %vm6462, %v6565, 0.0
    %6567 = vadd.xlane.f32.xlu0 %v6566
    %v6568 = vpop.xlane.xlu0 %6567
    %v6569 = vmul.f32 %v6568, %v318
    %v6570 = vadd.f32 %v6569, 1e-05
    %v6571 = vrsqrt.pop %v6570
    %v6572 = vmul.f32 %v6564, %v6571
    %v6573 = vmul.f32 %v6572, %v6558
    %v6574 = vadd.f32 %v6573, %v6559
    %v6575 = vpack.c.bf16 %v6574, %v6574
    %v6576 = vld [vmem:[%s63] sm:$0xf]
    %v6577 = vld [vmem:[%s63 + $0x4] sm:$0xf]
    %v6578 = vld [vmem:[%s63 + $0x8] sm:$0xf]
    %v6579 = vld [vmem:[%s63 + $0xc] sm:$0xf]
    %v6580 = vld [vmem:[%s63 + $0x10] sm:$0xf]
    %v6581 = vld [vmem:[%s63 + $0x14] sm:$0xf]
    %v6582 = vld [vmem:[%s63 + $0x18] sm:$0xf]
    %v6583 = vld [vmem:[%s63 + $0x1c] sm:$0xf]
    %v6584 = vld [vmem:[%s65] sm:$0x1]
    %v6593 = vunpack.c.l.b16 %v6576
    %v6594 = vunpack.c.l.b16 %v6577
    %v6595 = vunpack.c.l.b16 %v6578
    %v6596 = vunpack.c.l.b16 %v6579
    %v6597 = vunpack.c.l.b16 %v6580
    %v6598 = vunpack.c.l.b16 %v6581
    %v6599 = vunpack.c.l.b16 %v6582
    %v6600 = vunpack.c.l.b16 %v6583
    %v6601 = vpack.c.b16 %v6594, %v6593
    %v6602 = vpack.c.b16 %v6596, %v6595
    %v6603 = vpack.c.b16 %v6598, %v6597
    %v6604 = vpack.c.b16 %v6600, %v6599
    %v6610 = vsel %vm272, %v6575, 0
    %6612 = vmatprep.subr.bf16.mxu0 0
    %6613 = vmatpush1.bf16.msra.mxu0 0
    %6614 = vmatprep.subr.bf16.mxu0 0
    %6615 = vmatpush1.bf16.msra.mxu0 0
    %6616 = vmatprep.subr.bf16.mxu0 0
    %6617 = vmatpush1.bf16.msra.mxu0 0
    %6618 = vmatprep.subr.bf16.mxu0 0
    %6619 = vmatpush1.bf16.msra.mxu0 0
    %6620 = vmatprep.subr.bf16.mxu0 0
    %6621 = vmatpush1.bf16.msra.mxu0 %v6604
    %6622 = vmatprep.subr.bf16.mxu0 0
    %6623 = vmatpush1.bf16.msra.mxu0 %v6603
    %6624 = vmatprep.subr.bf16.mxu0 0
    %6625 = vmatpush1.bf16.msra.mxu0 %v6602
    %6626 = vmatprep.subr.bf16.mxu0 0
    %6627 = vmatpush1.bf16.msra.mxu0 %v6601
    %6628 = vmatprep.subr.bf16.mxu0 0
    %6629 = vmatpush2.bf16.msra.mxu0 0
    %6630 = vmatprep.subr.bf16.mxu0 0
    %6631 = vmatpush2.bf16.msra.mxu0 0
    %6632 = vmatprep.subr.bf16.mxu0 0
    %6633 = vmatpush2.bf16.msra.mxu0 0
    %6634 = vmatprep.subr.bf16.mxu0 0
    %6635 = vmatpush2.bf16.msra.mxu0 0
    %6636 = vmatprep.subr.bf16.mxu0 0
    %6637 = vmatpush2.bf16.msra.mxu0 0
    %6638 = vmatprep.subr.bf16.mxu0 0
    %6639 = vmatpush2.bf16.msra.mxu0 0
    %6640 = vmatprep.subr.bf16.mxu0 0
    %6641 = vmatpush2.bf16.msra.mxu0 0
    %6642 = vmatprep.subr.bf16.mxu0 0
    %6643 = vmatpush2.bf16.msra.mxu0 0
    %6644 = vmatprep.mubr.bf16.mxu0 0
    %6645 = vmatmul.mubr.bf16.gmra.mxu0 %v6610
    %v6646 = vpop.f32.mrf.mxu0
    %v6647 = vadd.f32 %v6584, %v6646
    %v6648 = vpop.f32.mrf.mxu0
    %v6649 = vpop.f32.mrf.mxu0
    %v6650 = vpop.f32.mrf.mxu0
    %6651 = vdwg.mxu0
    %6652 = vst.msk [vmem:[#allocation3 + $0x1] sm:$0x1] %vm6555, %v6647
    // Predicated region
    $region134: #{vit_forward.1} parent=1 // pred_check
      _
    $region135: #{vit_forward.1} parent=1 // pred_check_branch
      %6654 = sbr.rel (0) target = $region137
    $region136: #{vit_forward.1} parent=1 // pred_region
      %s6656 = ssub.s32 32, 32
      %6657 = vsyncadd [#allocation4], %s6656
      %s6659 = sshll.u32 [#allocation3], 4
      %s6660 = int_to_ptr.vmem [resolvable:$true] %s6659
      %6662 = dma.vmem_to_hbm [thread:$0]  %s6660, 32, %s67, [#allocation4]
    $region137: #{vit_forward.1} parent=1 // pred_fallthru
      _
    // Predicated region
    $region138: #{vit_forward.1} parent=1 // pred_check
      _
    $region139: #{vit_forward.1} parent=1 // pred_check_branch
      %6664 = sbr.rel (0) target = $region141
    $region140: #{vit_forward.1} parent=1 // pred_region
      %6665 = dma.done [#allocation4], 32
    $region141: #{vit_forward.1} parent=1 // pred_fallthru
      _
    %6666 = vsyncpa [#allocation4], 1

</llo_original>
